<compile_context>
chip_gen: v6e
topology: v6e:2x2x1
jax: 0.10.0
libtpu: 0.0.40
codegen_flags: <defaults>
</compile_context>

<pallas_src>
import jax
import jax.numpy as jnp
from jax.experimental import pallas as pl
from jax.experimental.pallas import tpu as pltpu

C_IN = 4           # input_dim
C1 = 8             # conv1 out channels
C2 = 4             # conv2 out channels
H = W = 32         # forced by Linear(4*32*32, 4)
HW = H * W
N_TAPS = 9
BN_EPS = 1e-5
SB = 8             # sub-batch rows per inner iteration (one sublane group)
GROUP = 4          # conv output channels accumulated together (live vregs < 64)

# flat-index shift for each 3x3 tap (dy, dx); center tap has shift == 0
_SHIFTS = tuple((dy - 1) * W + (dx - 1) for dy in range(3) for dx in range(3))


def _coord_kernel(x_ref, mask_ref, w1_ref, b1_ref, wfc_ref, fcb_ref, out_ref):
    tb = x_ref.shape[1]
    nsb = tb // SB

    def sub_batch(sb, carry):
        row0 = pl.multiple_of(sb * SB, SB)

        # 4 logit accumulators (one per FC output), each (SB, 1).
        logits = [jnp.zeros((SB, 1), jnp.float32) for _ in range(4)]

        # conv1 (eval-mode BN folded) + ReLU + folded-FC partials, streamed
        # over channel groups so only GROUP accumulators + 1 slab + 1 input
        # channel are live at a time.
        for g in range(0, C1, GROUP):
            accs = [jnp.zeros((SB, HW), jnp.float32) for _ in range(GROUP)]
            for ci in range(C_IN):
                xc = x_ref[ci, pl.ds(row0, SB), :]                    # (SB, HW)
                for t in range(N_TAPS):
                    s = _SHIFTS[t]
                    if s == 0:
                        slab = xc                                     # center tap
                    else:
                        # roll(x, k)[i] = x[(i - k) % n]; shift = (-s) % HW gives
                        # slab[i] = x[(i + s) % HW]; wrapped entries are exactly
                        # the ones zeroed by the pre-broadcast border mask.
                        slab = pltpu.roll(xc, (-s) % HW, axis=1) * mask_ref[t]
                    for k in range(GROUP):
                        widx = (g + k) * C_IN * N_TAPS + ci * N_TAPS + t
                        accs[k] = accs[k] + w1_ref[widx] * slab

            for k in range(GROUP):
                co = g + k
                a = jnp.maximum(accs[k] + b1_ref[co], 0.0)            # (SB, HW)
                # conv2+Linear folded offline; N=4 -> VPU multiply + XLU lane
                # reduction per (channel, logit) row instead of a 4-lane MXU RHS.
                for j in range(4):
                    logits[j] = logits[j] + jnp.sum(
                        a * wfc_ref[co * 4 + j], axis=1, keepdims=True)

        # sigmoid (EUP) + corner assembly + clamp
        r = [1.0 / (1.0 + jnp.exp(-(logits[j] + fcb_ref[j]))) for j in range(4)]
        cx, cy, half_w, half_h = r
        x1, x2 = cx - half_w, cx + half_w
        y1, y2 = cy - half_h, cy + half_h
        corners = jnp.concatenate([x1, y1, x2, y1, x2, y2, x1, y2], axis=1)  # (SB, 8)
        out_ref[pl.ds(row0, SB), :] = jnp.clip(corners, 0.0, 1.0)
        return carry

    jax.lax.fori_loop(0, nsb, sub_batch, 0, unroll=True)


def _tap_masks():
    """(9, HW) f32 validity masks for the 3x3 taps on the flattened spatial dim."""
    idx = jnp.arange(HW)
    hh = idx // W
    ww = idx % W
    rows = []
    for dy in range(3):
        for dx in range(3):
            valid = ((hh + dy - 1 >= 0) & (hh + dy - 1 < H) &
                     (ww + dx - 1 >= 0) & (ww + dx - 1 < W))
            rows.append(valid.astype(jnp.float32))
    return jnp.stack(rows, axis=0)


def fold_params(raw):
    """Fold BN into conv1 and conv2+b2 into the Linear; build kernel params."""
    w1, b1, gamma, beta, run_mean, run_var, w2, b2, fc_w, fc_b = raw

    # eval-mode BatchNorm2d folded into conv1
    scale = gamma / jnp.sqrt(run_var + BN_EPS)
    w1f = w1 * scale[:, None, None, None]
    b1f = (b1 - run_mean) * scale + beta

    # conv2 + b2 folded into the FC weight/bias:
    #   W_eff[j,c1,h,w] = sum_{c2,dy,dx} w2[c2,c1,dy,dx] * fcw[j,c2,h-dy+1,w-dx+1]
    #   fcb_eff[j]      = fcb[j] + sum_{c2} b2[c2] * sum_{h,w} fcw[j,c2,h,w]
    fcw = fc_w.reshape(4, C2, H, W)
    fcw_pad = jnp.pad(fcw, ((0, 0), (0, 0), (1, 1), (1, 1)))
    w_eff = jnp.zeros((4, C1, H, W), jnp.float32)
    for dy in range(3):
        for dx in range(3):
            sl = fcw_pad[:, :, 2 - dy:2 - dy + H, 2 - dx:2 - dx + W]  # (4,C2,H,W)
            w_eff = w_eff + jnp.einsum('oc,johw->jchw', w2[:, :, dy, dx], sl)
    fcb_eff = fc_b + jnp.einsum('o,johw->j', b2, fcw)

    # Kernel-side layouts:
    #  * tap masks pre-broadcast over the SB sublanes -> no in-kernel broadcasts
    masks = jnp.asarray(jnp.broadcast_to(_tap_masks()[:, None, :], (N_TAPS, SB, HW)))
    #  * folded FC weight stored lane-dense as per-(channel, logit) rows of
    #    length HW, pre-broadcast over SB sublanes (128 KiB logical, 1 MiB VMEM)
    w_rows = jnp.transpose(w_eff.reshape(4, C1, HW), (1, 0, 2)).reshape(C1 * 4, HW)
    wfc = jnp.asarray(jnp.broadcast_to(w_rows[:, None, :], (C1 * 4, SB, HW)))

    return (masks,                          # (9, SB, HW)     VMEM
            w1f.reshape(-1),                # (C1*C_IN*9,)    SMEM scalars
            b1f,                            # (C1,)           SMEM scalars
            wfc,                            # (C1*4, SB, HW)  VMEM, lane-dense
            fcb_eff)                        # (4,)            SMEM scalars


def _round_up(n, m):
    return ((n + m - 1) // m) * m


def coordinate_generator(x, kparams, *, batch_tile=32):
    """Pallas implementation of CoordinateGenerator.forward (NCHW input)."""
    assert x.ndim == 4 and x.shape[1:] == (C_IN, H, W)
    masks, w1_flat, b1, wfc, fcb = kparams

    B = x.shape[0]
    # Batch block: multiple of 8 rows; when B > 8, cap it at ceil(B/2) (rounded
    # up to 8) so the "parallel" grid axis has >= 2 steps for v7x's two cores.
    tb = max(SB, min(_round_up(batch_tile, SB), _round_up(-(-B // 2), SB)))
    bp = _round_up(B, tb)

    # (C_IN, B, HW): channel indexing in-kernel is a free leading-dim select,
    # and the flattened spatial dim fills whole lane tiles (1024 lanes).
    xt = jnp.transpose(x.reshape(B, C_IN, HW), (1, 0, 2))
    if bp != B:
        xt = jnp.pad(xt, ((0, 0), (0, bp - B), (0, 0)))

    out = pl.pallas_call(
        _coord_kernel,
        out_shape=jax.ShapeDtypeStruct((bp, 8), jnp.float32),
        grid=(bp // tb,),
        in_specs=[
            pl.BlockSpec((C_IN, tb, HW), lambda b: (0, b, 0)),        # x
            pl.BlockSpec((N_TAPS, SB, HW), lambda b: (0, 0, 0)),      # tap masks
            pl.BlockSpec(memory_space=pltpu.MemorySpace.SMEM),        # w1 (BN-folded)
            pl.BlockSpec(memory_space=pltpu.MemorySpace.SMEM),        # b1 (BN-folded)
            pl.BlockSpec((C1 * 4, SB, HW), lambda b: (0, 0, 0)),      # folded FC weight
            pl.BlockSpec(memory_space=pltpu.MemorySpace.SMEM),        # folded FC bias
        ],
        out_specs=pl.BlockSpec((tb, 8), lambda b: (b, 0)),
        compiler_params=pltpu.CompilerParams(
            dimension_semantics=("parallel",)),
    )(xt, masks, w1_flat, b1, wfc, fcb)

    return out[:B].reshape(B, 4, 2)


def reference_forward(x, raw):
    """Plain-JAX mirror of the PyTorch module (eval mode), for validation."""
    w1, b1, gamma, beta, run_mean, run_var, w2, b2, fc_w, fc_b = raw

    def conv3x3(inp, w, b):
        xp = jnp.pad(inp, ((0, 0), (0, 0), (1, 1), (1, 1)))
        out = jnp.zeros((inp.shape[0], w.shape[0], H, W), jnp.float32)
        for dy in range(3):
            for dx in range(3):
                out = out + jnp.einsum('bchw,oc->bohw',
                                       xp[:, :, dy:dy + H, dx:dx + W],
                                       w[:, :, dy, dx])
        return out + b[None, :, None, None]

    h1 = conv3x3(x, w1, b1)
    h1 = (h1 - run_mean[None, :, None, None]) / jnp.sqrt(run_var[None, :, None, None] + BN_EPS)
    h1 = gamma[None, :, None, None] * h1 + beta[None, :, None, None]
    h1 = jnp.maximum(h1, 0.0)
    h2 = conv3x3(h1, w2, b2)
    r = jax.nn.sigmoid(h2.reshape(x.shape[0], -1) @ fc_w.T + fc_b)
    cx, cy, w_, h_ = r[:, 0], r[:, 1], r[:, 2], r[:, 3]
    x1, x2, y1, y2 = cx - w_, cx + w_, cy - h_, cy + h_
    c = jnp.stack([jnp.stack([x1, y1], 1), jnp.stack([x2, y1], 1),
                   jnp.stack([x2, y2], 1), jnp.stack([x1, y2], 1)], 1)
    return jnp.clip(c, 0.0, 1.0)


def init_raw_params(key):
    ks = jax.random.split(key, 10)
    w1 = 0.1 * jax.random.normal(ks[0], (C1, C_IN, 3, 3), jnp.float32)
    b1 = 0.1 * jax.random.normal(ks[1], (C1,), jnp.float32)
    gamma = 1.0 + 0.1 * jax.random.normal(ks[2], (C1,), jnp.float32)
    beta = 0.1 * jax.random.normal(ks[3], (C1,), jnp.float32)
    run_mean = 0.05 * jax.random.normal(ks[4], (C1,), jnp.float32)
    run_var = jnp.abs(1.0 + 0.1 * jax.random.normal(ks[5], (C1,), jnp.float32))
    w2 = 0.1 * jax.random.normal(ks[6], (C2, C1, 3, 3), jnp.float32)
    b2 = 0.1 * jax.random.normal(ks[7], (C2,), jnp.float32)
    fc_w = 0.02 * jax.random.normal(ks[8], (4, C2 * H * W), jnp.float32)
    fc_b = 0.1 * jax.random.normal(ks[9], (4,), jnp.float32)
    return (w1, b1, gamma, beta, run_mean, run_var, w2, b2, fc_w, fc_b)


if __name__ == "__main__":
    key = jax.random.PRNGKey(0)
    kx, kp = jax.random.split(key)
    B = 2
    x = jax.random.normal(kx, (B, C_IN, H, W), jnp.float32)   # NCHW

    raw = init_raw_params(kp)
    kparams = fold_params(raw)

    fwd = jax.jit(lambda xx: coordinate_generator(xx, kparams))
    coords = jax.block_until_ready(fwd(x))

    assert coords.shape == (B, 4, 2)
    assert bool(jnp.all(jnp.isfinite(coords)))
    assert bool(jnp.all(coords >= 0.0)) and bool(jnp.all(coords <= 1.0))

    ref = jax.block_until_ready(reference_forward(x, raw))
    err = float(jnp.max(jnp.abs(coords - ref)))
    assert err < 1e-3, f"mismatch vs JAX reference: max abs err = {err}"

    print("KERNEL_OK")
</pallas_src>

<mosaic_0001>
module attributes {stable_mosaic.version = 11 : i64} {
  func.func @_coord_kernel(%arg0: i32, %arg1: memref<4x8x1024xf32, #tpu.memory_space<vmem>>, %arg2: memref<9x8x1024xf32, #tpu.memory_space<vmem>>, %arg3: memref<288xf32, #tpu.memory_space<smem>>, %arg4: memref<8xf32, #tpu.memory_space<smem>>, %arg5: memref<32x8x1024xf32, #tpu.memory_space<vmem>>, %arg6: memref<4xf32, #tpu.memory_space<smem>>, %arg7: memref<8x8xf32, #tpu.memory_space<vmem>>) attributes {dimension_semantics = [#tpu.dimension_semantics<parallel>], iteration_bounds = array<i64: 1>, scalar_prefetch = 0 : i64, scratch_operands = 0 : i64, tpu.core_type = #tpu.core_type<tc>, window_params = [{transform_indices = @transform_0, window_bounds = array<i64: 4, 8, 1024>}, {pipeline_mode = #tpu.pipeline_mode<synchronous>, transform_indices = @transform_1, window_bounds = array<i64: 9, 8, 1024>}, {transform_indices = @transform_2, window_bounds = array<i64: 288>}, {transform_indices = @transform_3, window_bounds = array<i64: 8>}, {pipeline_mode = #tpu.pipeline_mode<synchronous>, transform_indices = @transform_4, window_bounds = array<i64: 32, 8, 1024>}, {transform_indices = @transform_5, window_bounds = array<i64: 4>}, {transform_indices = @transform_6, window_bounds = array<i64: 8, 8>}]} {
    %c0_i32 = arith.constant 0 : i32
    %c8_i32 = arith.constant 8 : i32
    %0 = arith.muli %c0_i32, %c8_i32 : i32
    %1 = tpu.assume_multiple %0, 8 : i32
    %cst = arith.constant 0.000000e+00 : f32
    %2 = vector.broadcast %cst : f32 to vector<8x1xf32>
    %cst_0 = arith.constant 0.000000e+00 : f32
    %3 = vector.broadcast %cst_0 : f32 to vector<8x1xf32>
    %cst_1 = arith.constant 0.000000e+00 : f32
    %4 = vector.broadcast %cst_1 : f32 to vector<8x1xf32>
    %cst_2 = arith.constant 0.000000e+00 : f32
    %5 = vector.broadcast %cst_2 : f32 to vector<8x1xf32>
    %cst_3 = arith.constant 0.000000e+00 : f32
    %6 = vector.broadcast %cst_3 : f32 to vector<8x1024xf32>
    %cst_4 = arith.constant 0.000000e+00 : f32
    %7 = vector.broadcast %cst_4 : f32 to vector<8x1024xf32>
    %cst_5 = arith.constant 0.000000e+00 : f32
    %8 = vector.broadcast %cst_5 : f32 to vector<8x1024xf32>
    %cst_6 = arith.constant 0.000000e+00 : f32
    %9 = vector.broadcast %cst_6 : f32 to vector<8x1024xf32>
    %c0 = arith.constant 0 : index
    %10 = arith.index_cast %1 : i32 to index
    %c0_7 = arith.constant 0 : index
    %11 = vector.load %arg1[%c0, %10, %c0_7] : memref<4x8x1024xf32, #tpu.memory_space<vmem>>, vector<1x8x1024xf32>
    %12 = vector.shape_cast %11 : vector<1x8x1024xf32> to vector<8x1024xf32>
    %c33_i32 = arith.constant 33 : i32
    %13 = tpu.dynamic_rotate %12 by %c33_i32 dim 1 : vector<8x1024xf32>, i32 -> vector<8x1024xf32>
    %c0_8 = arith.constant 0 : index
    %c0_9 = arith.constant 0 : index
    %c0_10 = arith.constant 0 : index
    %14 = vector.load %arg2[%c0_8, %c0_9, %c0_10] : memref<9x8x1024xf32, #tpu.memory_space<vmem>>, vector<1x8x1024xf32>
    %15 = vector.shape_cast %14 : vector<1x8x1024xf32> to vector<8x1024xf32>
    %16 = arith.mulf %13, %15 : vector<8x1024xf32>
    %c0_11 = arith.constant 0 : index
    %17 = memref.load %arg3[%c0_11] : memref<288xf32, #tpu.memory_space<smem>>
    %18 = vector.broadcast %17 : f32 to vector<8x1024xf32>
    %19 = arith.mulf %18, %16 : vector<8x1024xf32>
    %20 = arith.addf %6, %19 : vector<8x1024xf32>
    %c36 = arith.constant 36 : index
    %21 = memref.load %arg3[%c36] : memref<288xf32, #tpu.memory_space<smem>>
    %22 = vector.broadcast %21 : f32 to vector<8x1024xf32>
    %23 = arith.mulf %22, %16 : vector<8x1024xf32>
    %24 = arith.addf %7, %23 : vector<8x1024xf32>
    %c72 = arith.constant 72 : index
    %25 = memref.load %arg3[%c72] : memref<288xf32, #tpu.memory_space<smem>>
    %26 = vector.broadcast %25 : f32 to vector<8x1024xf32>
    %27 = arith.mulf %26, %16 : vector<8x1024xf32>
    %28 = arith.addf %8, %27 : vector<8x1024xf32>
    %c108 = arith.constant 108 : index
    %29 = memref.load %arg3[%c108] : memref<288xf32, #tpu.memory_space<smem>>
    %30 = vector.broadcast %29 : f32 to vector<8x1024xf32>
    %31 = arith.mulf %30, %16 : vector<8x1024xf32>
    %32 = arith.addf %9, %31 : vector<8x1024xf32>
    %c32_i32 = arith.constant 32 : i32
    %33 = tpu.dynamic_rotate %12 by %c32_i32 dim 1 : vector<8x1024xf32>, i32 -> vector<8x1024xf32>
    %c1 = arith.constant 1 : index
    %c0_12 = arith.constant 0 : index
    %c0_13 = arith.constant 0 : index
    %34 = vector.load %arg2[%c1, %c0_12, %c0_13] : memref<9x8x1024xf32, #tpu.memory_space<vmem>>, vector<1x8x1024xf32>
    %35 = vector.shape_cast %34 : vector<1x8x1024xf32> to vector<8x1024xf32>
    %36 = arith.mulf %33, %35 : vector<8x1024xf32>
    %c1_14 = arith.constant 1 : index
    %37 = memref.load %arg3[%c1_14] : memref<288xf32, #tpu.memory_space<smem>>
    %38 = vector.broadcast %37 : f32 to vector<8x1024xf32>
    %39 = arith.mulf %38, %36 : vector<8x1024xf32>
    %40 = arith.addf %20, %39 : vector<8x1024xf32>
    %c37 = arith.constant 37 : index
    %41 = memref.load %arg3[%c37] : memref<288xf32, #tpu.memory_space<smem>>
    %42 = vector.broadcast %41 : f32 to vector<8x1024xf32>
    %43 = arith.mulf %42, %36 : vector<8x1024xf32>
    %44 = arith.addf %24, %43 : vector<8x1024xf32>
    %c73 = arith.constant 73 : index
    %45 = memref.load %arg3[%c73] : memref<288xf32, #tpu.memory_space<smem>>
    %46 = vector.broadcast %45 : f32 to vector<8x1024xf32>
    %47 = arith.mulf %46, %36 : vector<8x1024xf32>
    %48 = arith.addf %28, %47 : vector<8x1024xf32>
    %c109 = arith.constant 109 : index
    %49 = memref.load %arg3[%c109] : memref<288xf32, #tpu.memory_space<smem>>
    %50 = vector.broadcast %49 : f32 to vector<8x1024xf32>
    %51 = arith.mulf %50, %36 : vector<8x1024xf32>
    %52 = arith.addf %32, %51 : vector<8x1024xf32>
    %c31_i32 = arith.constant 31 : i32
    %53 = tpu.dynamic_rotate %12 by %c31_i32 dim 1 : vector<8x1024xf32>, i32 -> vector<8x1024xf32>
    %c2 = arith.constant 2 : index
    %c0_15 = arith.constant 0 : index
    %c0_16 = arith.constant 0 : index
    %54 = vector.load %arg2[%c2, %c0_15, %c0_16] : memref<9x8x1024xf32, #tpu.memory_space<vmem>>, vector<1x8x1024xf32>
    %55 = vector.shape_cast %54 : vector<1x8x1024xf32> to vector<8x1024xf32>
    %56 = arith.mulf %53, %55 : vector<8x1024xf32>
    %c2_17 = arith.constant 2 : index
    %57 = memref.load %arg3[%c2_17] : memref<288xf32, #tpu.memory_space<smem>>
    %58 = vector.broadcast %57 : f32 to vector<8x1024xf32>
    %59 = arith.mulf %58, %56 : vector<8x1024xf32>
    %60 = arith.addf %40, %59 : vector<8x1024xf32>
    %c38 = arith.constant 38 : index
    %61 = memref.load %arg3[%c38] : memref<288xf32, #tpu.memory_space<smem>>
    %62 = vector.broadcast %61 : f32 to vector<8x1024xf32>
    %63 = arith.mulf %62, %56 : vector<8x1024xf32>
    %64 = arith.addf %44, %63 : vector<8x1024xf32>
    %c74 = arith.constant 74 : index
    %65 = memref.load %arg3[%c74] : memref<288xf32, #tpu.memory_space<smem>>
    %66 = vector.broadcast %65 : f32 to vector<8x1024xf32>
    %67 = arith.mulf %66, %56 : vector<8x1024xf32>
    %68 = arith.addf %48, %67 : vector<8x1024xf32>
    %c110 = arith.constant 110 : index
    %69 = memref.load %arg3[%c110] : memref<288xf32, #tpu.memory_space<smem>>
    %70 = vector.broadcast %69 : f32 to vector<8x1024xf32>
    %71 = arith.mulf %70, %56 : vector<8x1024xf32>
    %72 = arith.addf %52, %71 : vector<8x1024xf32>
    %c1_i32 = arith.constant 1 : i32
    %73 = tpu.dynamic_rotate %12 by %c1_i32 dim 1 : vector<8x1024xf32>, i32 -> vector<8x1024xf32>
    %c3 = arith.constant 3 : index
    %c0_18 = arith.constant 0 : index
    %c0_19 = arith.constant 0 : index
    %74 = vector.load %arg2[%c3, %c0_18, %c0_19] : memref<9x8x1024xf32, #tpu.memory_space<vmem>>, vector<1x8x1024xf32>
    %75 = vector.shape_cast %74 : vector<1x8x1024xf32> to vector<8x1024xf32>
    %76 = arith.mulf %73, %75 : vector<8x1024xf32>
    %c3_20 = arith.constant 3 : index
    %77 = memref.load %arg3[%c3_20] : memref<288xf32, #tpu.memory_space<smem>>
    %78 = vector.broadcast %77 : f32 to vector<8x1024xf32>
    %79 = arith.mulf %78, %76 : vector<8x1024xf32>
    %80 = arith.addf %60, %79 : vector<8x1024xf32>
    %c39 = arith.constant 39 : index
    %81 = memref.load %arg3[%c39] : memref<288xf32, #tpu.memory_space<smem>>
    %82 = vector.broadcast %81 : f32 to vector<8x1024xf32>
    %83 = arith.mulf %82, %76 : vector<8x1024xf32>
    %84 = arith.addf %64, %83 : vector<8x1024xf32>
    %c75 = arith.constant 75 : index
    %85 = memref.load %arg3[%c75] : memref<288xf32, #tpu.memory_space<smem>>
    %86 = vector.broadcast %85 : f32 to vector<8x1024xf32>
    %87 = arith.mulf %86, %76 : vector<8x1024xf32>
    %88 = arith.addf %68, %87 : vector<8x1024xf32>
    %c111 = arith.constant 111 : index
    %89 = memref.load %arg3[%c111] : memref<288xf32, #tpu.memory_space<smem>>
    %90 = vector.broadcast %89 : f32 to vector<8x1024xf32>
    %91 = arith.mulf %90, %76 : vector<8x1024xf32>
    %92 = arith.addf %72, %91 : vector<8x1024xf32>
    %c4 = arith.constant 4 : index
    %93 = memref.load %arg3[%c4] : memref<288xf32, #tpu.memory_space<smem>>
    %94 = vector.broadcast %93 : f32 to vector<8x1024xf32>
    %95 = arith.mulf %94, %12 : vector<8x1024xf32>
    %96 = arith.addf %80, %95 : vector<8x1024xf32>
    %c40 = arith.constant 40 : index
    %97 = memref.load %arg3[%c40] : memref<288xf32, #tpu.memory_space<smem>>
    %98 = vector.broadcast %97 : f32 to vector<8x1024xf32>
    %99 = arith.mulf %98, %12 : vector<8x1024xf32>
    %100 = arith.addf %84, %99 : vector<8x1024xf32>
    %c76 = arith.constant 76 : index
    %101 = memref.load %arg3[%c76] : memref<288xf32, #tpu.memory_space<smem>>
    %102 = vector.broadcast %101 : f32 to vector<8x1024xf32>
    %103 = arith.mulf %102, %12 : vector<8x1024xf32>
    %104 = arith.addf %88, %103 : vector<8x1024xf32>
    %c112 = arith.constant 112 : index
    %105 = memref.load %arg3[%c112] : memref<288xf32, #tpu.memory_space<smem>>
    %106 = vector.broadcast %105 : f32 to vector<8x1024xf32>
    %107 = arith.mulf %106, %12 : vector<8x1024xf32>
    %108 = arith.addf %92, %107 : vector<8x1024xf32>
    %c1023_i32 = arith.constant 1023 : i32
    %109 = tpu.dynamic_rotate %12 by %c1023_i32 dim 1 : vector<8x1024xf32>, i32 -> vector<8x1024xf32>
    %c5 = arith.constant 5 : index
    %c0_21 = arith.constant 0 : index
    %c0_22 = arith.constant 0 : index
    %110 = vector.load %arg2[%c5, %c0_21, %c0_22] : memref<9x8x1024xf32, #tpu.memory_space<vmem>>, vector<1x8x1024xf32>
    %111 = vector.shape_cast %110 : vector<1x8x1024xf32> to vector<8x1024xf32>
    %112 = arith.mulf %109, %111 : vector<8x1024xf32>
    %c5_23 = arith.constant 5 : index
    %113 = memref.load %arg3[%c5_23] : memref<288xf32, #tpu.memory_space<smem>>
    %114 = vector.broadcast %113 : f32 to vector<8x1024xf32>
    %115 = arith.mulf %114, %112 : vector<8x1024xf32>
    %116 = arith.addf %96, %115 : vector<8x1024xf32>
    %c41 = arith.constant 41 : index
    %117 = memref.load %arg3[%c41] : memref<288xf32, #tpu.memory_space<smem>>
    %118 = vector.broadcast %117 : f32 to vector<8x1024xf32>
    %119 = arith.mulf %118, %112 : vector<8x1024xf32>
    %120 = arith.addf %100, %119 : vector<8x1024xf32>
    %c77 = arith.constant 77 : index
    %121 = memref.load %arg3[%c77] : memref<288xf32, #tpu.memory_space<smem>>
    %122 = vector.broadcast %121 : f32 to vector<8x1024xf32>
    %123 = arith.mulf %122, %112 : vector<8x1024xf32>
    %124 = arith.addf %104, %123 : vector<8x1024xf32>
    %c113 = arith.constant 113 : index
    %125 = memref.load %arg3[%c113] : memref<288xf32, #tpu.memory_space<smem>>
    %126 = vector.broadcast %125 : f32 to vector<8x1024xf32>
    %127 = arith.mulf %126, %112 : vector<8x1024xf32>
    %128 = arith.addf %108, %127 : vector<8x1024xf32>
    %c993_i32 = arith.constant 993 : i32
    %129 = tpu.dynamic_rotate %12 by %c993_i32 dim 1 : vector<8x1024xf32>, i32 -> vector<8x1024xf32>
    %c6 = arith.constant 6 : index
    %c0_24 = arith.constant 0 : index
    %c0_25 = arith.constant 0 : index
    %130 = vector.load %arg2[%c6, %c0_24, %c0_25] : memref<9x8x1024xf32, #tpu.memory_space<vmem>>, vector<1x8x1024xf32>
    %131 = vector.shape_cast %130 : vector<1x8x1024xf32> to vector<8x1024xf32>
    %132 = arith.mulf %129, %131 : vector<8x1024xf32>
    %c6_26 = arith.constant 6 : index
    %133 = memref.load %arg3[%c6_26] : memref<288xf32, #tpu.memory_space<smem>>
    %134 = vector.broadcast %133 : f32 to vector<8x1024xf32>
    %135 = arith.mulf %134, %132 : vector<8x1024xf32>
    %136 = arith.addf %116, %135 : vector<8x1024xf32>
    %c42 = arith.constant 42 : index
    %137 = memref.load %arg3[%c42] : memref<288xf32, #tpu.memory_space<smem>>
    %138 = vector.broadcast %137 : f32 to vector<8x1024xf32>
    %139 = arith.mulf %138, %132 : vector<8x1024xf32>
    %140 = arith.addf %120, %139 : vector<8x1024xf32>
    %c78 = arith.constant 78 : index
    %141 = memref.load %arg3[%c78] : memref<288xf32, #tpu.memory_space<smem>>
    %142 = vector.broadcast %141 : f32 to vector<8x1024xf32>
    %143 = arith.mulf %142, %132 : vector<8x1024xf32>
    %144 = arith.addf %124, %143 : vector<8x1024xf32>
    %c114 = arith.constant 114 : index
    %145 = memref.load %arg3[%c114] : memref<288xf32, #tpu.memory_space<smem>>
    %146 = vector.broadcast %145 : f32 to vector<8x1024xf32>
    %147 = arith.mulf %146, %132 : vector<8x1024xf32>
    %148 = arith.addf %128, %147 : vector<8x1024xf32>
    %c992_i32 = arith.constant 992 : i32
    %149 = tpu.dynamic_rotate %12 by %c992_i32 dim 1 : vector<8x1024xf32>, i32 -> vector<8x1024xf32>
    %c7 = arith.constant 7 : index
    %c0_27 = arith.constant 0 : index
    %c0_28 = arith.constant 0 : index
    %150 = vector.load %arg2[%c7, %c0_27, %c0_28] : memref<9x8x1024xf32, #tpu.memory_space<vmem>>, vector<1x8x1024xf32>
    %151 = vector.shape_cast %150 : vector<1x8x1024xf32> to vector<8x1024xf32>
    %152 = arith.mulf %149, %151 : vector<8x1024xf32>
    %c7_29 = arith.constant 7 : index
    %153 = memref.load %arg3[%c7_29] : memref<288xf32, #tpu.memory_space<smem>>
    %154 = vector.broadcast %153 : f32 to vector<8x1024xf32>
    %155 = arith.mulf %154, %152 : vector<8x1024xf32>
    %156 = arith.addf %136, %155 : vector<8x1024xf32>
    %c43 = arith.constant 43 : index
    %157 = memref.load %arg3[%c43] : memref<288xf32, #tpu.memory_space<smem>>
    %158 = vector.broadcast %157 : f32 to vector<8x1024xf32>
    %159 = arith.mulf %158, %152 : vector<8x1024xf32>
    %160 = arith.addf %140, %159 : vector<8x1024xf32>
    %c79 = arith.constant 79 : index
    %161 = memref.load %arg3[%c79] : memref<288xf32, #tpu.memory_space<smem>>
    %162 = vector.broadcast %161 : f32 to vector<8x1024xf32>
    %163 = arith.mulf %162, %152 : vector<8x1024xf32>
    %164 = arith.addf %144, %163 : vector<8x1024xf32>
    %c115 = arith.constant 115 : index
    %165 = memref.load %arg3[%c115] : memref<288xf32, #tpu.memory_space<smem>>
    %166 = vector.broadcast %165 : f32 to vector<8x1024xf32>
    %167 = arith.mulf %166, %152 : vector<8x1024xf32>
    %168 = arith.addf %148, %167 : vector<8x1024xf32>
    %c991_i32 = arith.constant 991 : i32
    %169 = tpu.dynamic_rotate %12 by %c991_i32 dim 1 : vector<8x1024xf32>, i32 -> vector<8x1024xf32>
    %c8 = arith.constant 8 : index
    %c0_30 = arith.constant 0 : index
    %c0_31 = arith.constant 0 : index
    %170 = vector.load %arg2[%c8, %c0_30, %c0_31] : memref<9x8x1024xf32, #tpu.memory_space<vmem>>, vector<1x8x1024xf32>
    %171 = vector.shape_cast %170 : vector<1x8x1024xf32> to vector<8x1024xf32>
    %172 = arith.mulf %169, %171 : vector<8x1024xf32>
    %c8_32 = arith.constant 8 : index
    %173 = memref.load %arg3[%c8_32] : memref<288xf32, #tpu.memory_space<smem>>
    %174 = vector.broadcast %173 : f32 to vector<8x1024xf32>
    %175 = arith.mulf %174, %172 : vector<8x1024xf32>
    %176 = arith.addf %156, %175 : vector<8x1024xf32>
    %c44 = arith.constant 44 : index
    %177 = memref.load %arg3[%c44] : memref<288xf32, #tpu.memory_space<smem>>
    %178 = vector.broadcast %177 : f32 to vector<8x1024xf32>
    %179 = arith.mulf %178, %172 : vector<8x1024xf32>
    %180 = arith.addf %160, %179 : vector<8x1024xf32>
    %c80 = arith.constant 80 : index
    %181 = memref.load %arg3[%c80] : memref<288xf32, #tpu.memory_space<smem>>
    %182 = vector.broadcast %181 : f32 to vector<8x1024xf32>
    %183 = arith.mulf %182, %172 : vector<8x1024xf32>
    %184 = arith.addf %164, %183 : vector<8x1024xf32>
    %c116 = arith.constant 116 : index
    %185 = memref.load %arg3[%c116] : memref<288xf32, #tpu.memory_space<smem>>
    %186 = vector.broadcast %185 : f32 to vector<8x1024xf32>
    %187 = arith.mulf %186, %172 : vector<8x1024xf32>
    %188 = arith.addf %168, %187 : vector<8x1024xf32>
    %c1_33 = arith.constant 1 : index
    %189 = arith.index_cast %1 : i32 to index
    %c0_34 = arith.constant 0 : index
    %190 = vector.load %arg1[%c1_33, %189, %c0_34] : memref<4x8x1024xf32, #tpu.memory_space<vmem>>, vector<1x8x1024xf32>
    %191 = vector.shape_cast %190 : vector<1x8x1024xf32> to vector<8x1024xf32>
    %c33_i32_35 = arith.constant 33 : i32
    %192 = tpu.dynamic_rotate %191 by %c33_i32_35 dim 1 : vector<8x1024xf32>, i32 -> vector<8x1024xf32>
    %c0_36 = arith.constant 0 : index
    %c0_37 = arith.constant 0 : index
    %c0_38 = arith.constant 0 : index
    %193 = vector.load %arg2[%c0_36, %c0_37, %c0_38] : memref<9x8x1024xf32, #tpu.memory_space<vmem>>, vector<1x8x1024xf32>
    %194 = vector.shape_cast %193 : vector<1x8x1024xf32> to vector<8x1024xf32>
    %195 = arith.mulf %192, %194 : vector<8x1024xf32>
    %c9 = arith.constant 9 : index
    %196 = memref.load %arg3[%c9] : memref<288xf32, #tpu.memory_space<smem>>
    %197 = vector.broadcast %196 : f32 to vector<8x1024xf32>
    %198 = arith.mulf %197, %195 : vector<8x1024xf32>
    %199 = arith.addf %176, %198 : vector<8x1024xf32>
    %c45 = arith.constant 45 : index
    %200 = memref.load %arg3[%c45] : memref<288xf32, #tpu.memory_space<smem>>
    %201 = vector.broadcast %200 : f32 to vector<8x1024xf32>
    %202 = arith.mulf %201, %195 : vector<8x1024xf32>
    %203 = arith.addf %180, %202 : vector<8x1024xf32>
    %c81 = arith.constant 81 : index
    %204 = memref.load %arg3[%c81] : memref<288xf32, #tpu.memory_space<smem>>
    %205 = vector.broadcast %204 : f32 to vector<8x1024xf32>
    %206 = arith.mulf %205, %195 : vector<8x1024xf32>
    %207 = arith.addf %184, %206 : vector<8x1024xf32>
    %c117 = arith.constant 117 : index
    %208 = memref.load %arg3[%c117] : memref<288xf32, #tpu.memory_space<smem>>
    %209 = vector.broadcast %208 : f32 to vector<8x1024xf32>
    %210 = arith.mulf %209, %195 : vector<8x1024xf32>
    %211 = arith.addf %188, %210 : vector<8x1024xf32>
    %c32_i32_39 = arith.constant 32 : i32
    %212 = tpu.dynamic_rotate %191 by %c32_i32_39 dim 1 : vector<8x1024xf32>, i32 -> vector<8x1024xf32>
    %c1_40 = arith.constant 1 : index
    %c0_41 = arith.constant 0 : index
    %c0_42 = arith.constant 0 : index
    %213 = vector.load %arg2[%c1_40, %c0_41, %c0_42] : memref<9x8x1024xf32, #tpu.memory_space<vmem>>, vector<1x8x1024xf32>
    %214 = vector.shape_cast %213 : vector<1x8x1024xf32> to vector<8x1024xf32>
    %215 = arith.mulf %212, %214 : vector<8x1024xf32>
    %c10 = arith.constant 10 : index
    %216 = memref.load %arg3[%c10] : memref<288xf32, #tpu.memory_space<smem>>
    %217 = vector.broadcast %216 : f32 to vector<8x1024xf32>
    %218 = arith.mulf %217, %215 : vector<8x1024xf32>
    %219 = arith.addf %199, %218 : vector<8x1024xf32>
    %c46 = arith.constant 46 : index
    %220 = memref.load %arg3[%c46] : memref<288xf32, #tpu.memory_space<smem>>
    %221 = vector.broadcast %220 : f32 to vector<8x1024xf32>
    %222 = arith.mulf %221, %215 : vector<8x1024xf32>
    %223 = arith.addf %203, %222 : vector<8x1024xf32>
    %c82 = arith.constant 82 : index
    %224 = memref.load %arg3[%c82] : memref<288xf32, #tpu.memory_space<smem>>
    %225 = vector.broadcast %224 : f32 to vector<8x1024xf32>
    %226 = arith.mulf %225, %215 : vector<8x1024xf32>
    %227 = arith.addf %207, %226 : vector<8x1024xf32>
    %c118 = arith.constant 118 : index
    %228 = memref.load %arg3[%c118] : memref<288xf32, #tpu.memory_space<smem>>
    %229 = vector.broadcast %228 : f32 to vector<8x1024xf32>
    %230 = arith.mulf %229, %215 : vector<8x1024xf32>
    %231 = arith.addf %211, %230 : vector<8x1024xf32>
    %c31_i32_43 = arith.constant 31 : i32
    %232 = tpu.dynamic_rotate %191 by %c31_i32_43 dim 1 : vector<8x1024xf32>, i32 -> vector<8x1024xf32>
    %c2_44 = arith.constant 2 : index
    %c0_45 = arith.constant 0 : index
    %c0_46 = arith.constant 0 : index
    %233 = vector.load %arg2[%c2_44, %c0_45, %c0_46] : memref<9x8x1024xf32, #tpu.memory_space<vmem>>, vector<1x8x1024xf32>
    %234 = vector.shape_cast %233 : vector<1x8x1024xf32> to vector<8x1024xf32>
    %235 = arith.mulf %232, %234 : vector<8x1024xf32>
    %c11 = arith.constant 11 : index
    %236 = memref.load %arg3[%c11] : memref<288xf32, #tpu.memory_space<smem>>
    %237 = vector.broadcast %236 : f32 to vector<8x1024xf32>
    %238 = arith.mulf %237, %235 : vector<8x1024xf32>
    %239 = arith.addf %219, %238 : vector<8x1024xf32>
    %c47 = arith.constant 47 : index
    %240 = memref.load %arg3[%c47] : memref<288xf32, #tpu.memory_space<smem>>
    %241 = vector.broadcast %240 : f32 to vector<8x1024xf32>
    %242 = arith.mulf %241, %235 : vector<8x1024xf32>
    %243 = arith.addf %223, %242 : vector<8x1024xf32>
    %c83 = arith.constant 83 : index
    %244 = memref.load %arg3[%c83] : memref<288xf32, #tpu.memory_space<smem>>
    %245 = vector.broadcast %244 : f32 to vector<8x1024xf32>
    %246 = arith.mulf %245, %235 : vector<8x1024xf32>
    %247 = arith.addf %227, %246 : vector<8x1024xf32>
    %c119 = arith.constant 119 : index
    %248 = memref.load %arg3[%c119] : memref<288xf32, #tpu.memory_space<smem>>
    %249 = vector.broadcast %248 : f32 to vector<8x1024xf32>
    %250 = arith.mulf %249, %235 : vector<8x1024xf32>
    %251 = arith.addf %231, %250 : vector<8x1024xf32>
    %c1_i32_47 = arith.constant 1 : i32
    %252 = tpu.dynamic_rotate %191 by %c1_i32_47 dim 1 : vector<8x1024xf32>, i32 -> vector<8x1024xf32>
    %c3_48 = arith.constant 3 : index
    %c0_49 = arith.constant 0 : index
    %c0_50 = arith.constant 0 : index
    %253 = vector.load %arg2[%c3_48, %c0_49, %c0_50] : memref<9x8x1024xf32, #tpu.memory_space<vmem>>, vector<1x8x1024xf32>
    %254 = vector.shape_cast %253 : vector<1x8x1024xf32> to vector<8x1024xf32>
    %255 = arith.mulf %252, %254 : vector<8x1024xf32>
    %c12 = arith.constant 12 : index
    %256 = memref.load %arg3[%c12] : memref<288xf32, #tpu.memory_space<smem>>
    %257 = vector.broadcast %256 : f32 to vector<8x1024xf32>
    %258 = arith.mulf %257, %255 : vector<8x1024xf32>
    %259 = arith.addf %239, %258 : vector<8x1024xf32>
    %c48 = arith.constant 48 : index
    %260 = memref.load %arg3[%c48] : memref<288xf32, #tpu.memory_space<smem>>
    %261 = vector.broadcast %260 : f32 to vector<8x1024xf32>
    %262 = arith.mulf %261, %255 : vector<8x1024xf32>
    %263 = arith.addf %243, %262 : vector<8x1024xf32>
    %c84 = arith.constant 84 : index
    %264 = memref.load %arg3[%c84] : memref<288xf32, #tpu.memory_space<smem>>
    %265 = vector.broadcast %264 : f32 to vector<8x1024xf32>
    %266 = arith.mulf %265, %255 : vector<8x1024xf32>
    %267 = arith.addf %247, %266 : vector<8x1024xf32>
    %c120 = arith.constant 120 : index
    %268 = memref.load %arg3[%c120] : memref<288xf32, #tpu.memory_space<smem>>
    %269 = vector.broadcast %268 : f32 to vector<8x1024xf32>
    %270 = arith.mulf %269, %255 : vector<8x1024xf32>
    %271 = arith.addf %251, %270 : vector<8x1024xf32>
    %c13 = arith.constant 13 : index
    %272 = memref.load %arg3[%c13] : memref<288xf32, #tpu.memory_space<smem>>
    %273 = vector.broadcast %272 : f32 to vector<8x1024xf32>
    %274 = arith.mulf %273, %191 : vector<8x1024xf32>
    %275 = arith.addf %259, %274 : vector<8x1024xf32>
    %c49 = arith.constant 49 : index
    %276 = memref.load %arg3[%c49] : memref<288xf32, #tpu.memory_space<smem>>
    %277 = vector.broadcast %276 : f32 to vector<8x1024xf32>
    %278 = arith.mulf %277, %191 : vector<8x1024xf32>
    %279 = arith.addf %263, %278 : vector<8x1024xf32>
    %c85 = arith.constant 85 : index
    %280 = memref.load %arg3[%c85] : memref<288xf32, #tpu.memory_space<smem>>
    %281 = vector.broadcast %280 : f32 to vector<8x1024xf32>
    %282 = arith.mulf %281, %191 : vector<8x1024xf32>
    %283 = arith.addf %267, %282 : vector<8x1024xf32>
    %c121 = arith.constant 121 : index
    %284 = memref.load %arg3[%c121] : memref<288xf32, #tpu.memory_space<smem>>
    %285 = vector.broadcast %284 : f32 to vector<8x1024xf32>
    %286 = arith.mulf %285, %191 : vector<8x1024xf32>
    %287 = arith.addf %271, %286 : vector<8x1024xf32>
    %c1023_i32_51 = arith.constant 1023 : i32
    %288 = tpu.dynamic_rotate %191 by %c1023_i32_51 dim 1 : vector<8x1024xf32>, i32 -> vector<8x1024xf32>
    %c5_52 = arith.constant 5 : index
    %c0_53 = arith.constant 0 : index
    %c0_54 = arith.constant 0 : index
    %289 = vector.load %arg2[%c5_52, %c0_53, %c0_54] : memref<9x8x1024xf32, #tpu.memory_space<vmem>>, vector<1x8x1024xf32>
    %290 = vector.shape_cast %289 : vector<1x8x1024xf32> to vector<8x1024xf32>
    %291 = arith.mulf %288, %290 : vector<8x1024xf32>
    %c14 = arith.constant 14 : index
    %292 = memref.load %arg3[%c14] : memref<288xf32, #tpu.memory_space<smem>>
    %293 = vector.broadcast %292 : f32 to vector<8x1024xf32>
    %294 = arith.mulf %293, %291 : vector<8x1024xf32>
    %295 = arith.addf %275, %294 : vector<8x1024xf32>
    %c50 = arith.constant 50 : index
    %296 = memref.load %arg3[%c50] : memref<288xf32, #tpu.memory_space<smem>>
    %297 = vector.broadcast %296 : f32 to vector<8x1024xf32>
    %298 = arith.mulf %297, %291 : vector<8x1024xf32>
    %299 = arith.addf %279, %298 : vector<8x1024xf32>
    %c86 = arith.constant 86 : index
    %300 = memref.load %arg3[%c86] : memref<288xf32, #tpu.memory_space<smem>>
    %301 = vector.broadcast %300 : f32 to vector<8x1024xf32>
    %302 = arith.mulf %301, %291 : vector<8x1024xf32>
    %303 = arith.addf %283, %302 : vector<8x1024xf32>
    %c122 = arith.constant 122 : index
    %304 = memref.load %arg3[%c122] : memref<288xf32, #tpu.memory_space<smem>>
    %305 = vector.broadcast %304 : f32 to vector<8x1024xf32>
    %306 = arith.mulf %305, %291 : vector<8x1024xf32>
    %307 = arith.addf %287, %306 : vector<8x1024xf32>
    %c993_i32_55 = arith.constant 993 : i32
    %308 = tpu.dynamic_rotate %191 by %c993_i32_55 dim 1 : vector<8x1024xf32>, i32 -> vector<8x1024xf32>
    %c6_56 = arith.constant 6 : index
    %c0_57 = arith.constant 0 : index
    %c0_58 = arith.constant 0 : index
    %309 = vector.load %arg2[%c6_56, %c0_57, %c0_58] : memref<9x8x1024xf32, #tpu.memory_space<vmem>>, vector<1x8x1024xf32>
    %310 = vector.shape_cast %309 : vector<1x8x1024xf32> to vector<8x1024xf32>
    %311 = arith.mulf %308, %310 : vector<8x1024xf32>
    %c15 = arith.constant 15 : index
    %312 = memref.load %arg3[%c15] : memref<288xf32, #tpu.memory_space<smem>>
    %313 = vector.broadcast %312 : f32 to vector<8x1024xf32>
    %314 = arith.mulf %313, %311 : vector<8x1024xf32>
    %315 = arith.addf %295, %314 : vector<8x1024xf32>
    %c51 = arith.constant 51 : index
    %316 = memref.load %arg3[%c51] : memref<288xf32, #tpu.memory_space<smem>>
    %317 = vector.broadcast %316 : f32 to vector<8x1024xf32>
    %318 = arith.mulf %317, %311 : vector<8x1024xf32>
    %319 = arith.addf %299, %318 : vector<8x1024xf32>
    %c87 = arith.constant 87 : index
    %320 = memref.load %arg3[%c87] : memref<288xf32, #tpu.memory_space<smem>>
    %321 = vector.broadcast %320 : f32 to vector<8x1024xf32>
    %322 = arith.mulf %321, %311 : vector<8x1024xf32>
    %323 = arith.addf %303, %322 : vector<8x1024xf32>
    %c123 = arith.constant 123 : index
    %324 = memref.load %arg3[%c123] : memref<288xf32, #tpu.memory_space<smem>>
    %325 = vector.broadcast %324 : f32 to vector<8x1024xf32>
    %326 = arith.mulf %325, %311 : vector<8x1024xf32>
    %327 = arith.addf %307, %326 : vector<8x1024xf32>
    %c992_i32_59 = arith.constant 992 : i32
    %328 = tpu.dynamic_rotate %191 by %c992_i32_59 dim 1 : vector<8x1024xf32>, i32 -> vector<8x1024xf32>
    %c7_60 = arith.constant 7 : index
    %c0_61 = arith.constant 0 : index
    %c0_62 = arith.constant 0 : index
    %329 = vector.load %arg2[%c7_60, %c0_61, %c0_62] : memref<9x8x1024xf32, #tpu.memory_space<vmem>>, vector<1x8x1024xf32>
    %330 = vector.shape_cast %329 : vector<1x8x1024xf32> to vector<8x1024xf32>
    %331 = arith.mulf %328, %330 : vector<8x1024xf32>
    %c16 = arith.constant 16 : index
    %332 = memref.load %arg3[%c16] : memref<288xf32, #tpu.memory_space<smem>>
    %333 = vector.broadcast %332 : f32 to vector<8x1024xf32>
    %334 = arith.mulf %333, %331 : vector<8x1024xf32>
    %335 = arith.addf %315, %334 : vector<8x1024xf32>
    %c52 = arith.constant 52 : index
    %336 = memref.load %arg3[%c52] : memref<288xf32, #tpu.memory_space<smem>>
    %337 = vector.broadcast %336 : f32 to vector<8x1024xf32>
    %338 = arith.mulf %337, %331 : vector<8x1024xf32>
    %339 = arith.addf %319, %338 : vector<8x1024xf32>
    %c88 = arith.constant 88 : index
    %340 = memref.load %arg3[%c88] : memref<288xf32, #tpu.memory_space<smem>>
    %341 = vector.broadcast %340 : f32 to vector<8x1024xf32>
    %342 = arith.mulf %341, %331 : vector<8x1024xf32>
    %343 = arith.addf %323, %342 : vector<8x1024xf32>
    %c124 = arith.constant 124 : index
    %344 = memref.load %arg3[%c124] : memref<288xf32, #tpu.memory_space<smem>>
    %345 = vector.broadcast %344 : f32 to vector<8x1024xf32>
    %346 = arith.mulf %345, %331 : vector<8x1024xf32>
    %347 = arith.addf %327, %346 : vector<8x1024xf32>
    %c991_i32_63 = arith.constant 991 : i32
    %348 = tpu.dynamic_rotate %191 by %c991_i32_63 dim 1 : vector<8x1024xf32>, i32 -> vector<8x1024xf32>
    %c8_64 = arith.constant 8 : index
    %c0_65 = arith.constant 0 : index
    %c0_66 = arith.constant 0 : index
    %349 = vector.load %arg2[%c8_64, %c0_65, %c0_66] : memref<9x8x1024xf32, #tpu.memory_space<vmem>>, vector<1x8x1024xf32>
    %350 = vector.shape_cast %349 : vector<1x8x1024xf32> to vector<8x1024xf32>
    %351 = arith.mulf %348, %350 : vector<8x1024xf32>
    %c17 = arith.constant 17 : index
    %352 = memref.load %arg3[%c17] : memref<288xf32, #tpu.memory_space<smem>>
    %353 = vector.broadcast %352 : f32 to vector<8x1024xf32>
    %354 = arith.mulf %353, %351 : vector<8x1024xf32>
    %355 = arith.addf %335, %354 : vector<8x1024xf32>
    %c53 = arith.constant 53 : index
    %356 = memref.load %arg3[%c53] : memref<288xf32, #tpu.memory_space<smem>>
    %357 = vector.broadcast %356 : f32 to vector<8x1024xf32>
    %358 = arith.mulf %357, %351 : vector<8x1024xf32>
    %359 = arith.addf %339, %358 : vector<8x1024xf32>
    %c89 = arith.constant 89 : index
    %360 = memref.load %arg3[%c89] : memref<288xf32, #tpu.memory_space<smem>>
    %361 = vector.broadcast %360 : f32 to vector<8x1024xf32>
    %362 = arith.mulf %361, %351 : vector<8x1024xf32>
    %363 = arith.addf %343, %362 : vector<8x1024xf32>
    %c125 = arith.constant 125 : index
    %364 = memref.load %arg3[%c125] : memref<288xf32, #tpu.memory_space<smem>>
    %365 = vector.broadcast %364 : f32 to vector<8x1024xf32>
    %366 = arith.mulf %365, %351 : vector<8x1024xf32>
    %367 = arith.addf %347, %366 : vector<8x1024xf32>
    %c2_67 = arith.constant 2 : index
    %368 = arith.index_cast %1 : i32 to index
    %c0_68 = arith.constant 0 : index
    %369 = vector.load %arg1[%c2_67, %368, %c0_68] : memref<4x8x1024xf32, #tpu.memory_space<vmem>>, vector<1x8x1024xf32>
    %370 = vector.shape_cast %369 : vector<1x8x1024xf32> to vector<8x1024xf32>
    %c33_i32_69 = arith.constant 33 : i32
    %371 = tpu.dynamic_rotate %370 by %c33_i32_69 dim 1 : vector<8x1024xf32>, i32 -> vector<8x1024xf32>
    %c0_70 = arith.constant 0 : index
    %c0_71 = arith.constant 0 : index
    %c0_72 = arith.constant 0 : index
    %372 = vector.load %arg2[%c0_70, %c0_71, %c0_72] : memref<9x8x1024xf32, #tpu.memory_space<vmem>>, vector<1x8x1024xf32>
    %373 = vector.shape_cast %372 : vector<1x8x1024xf32> to vector<8x1024xf32>
    %374 = arith.mulf %371, %373 : vector<8x1024xf32>
    %c18 = arith.constant 18 : index
    %375 = memref.load %arg3[%c18] : memref<288xf32, #tpu.memory_space<smem>>
    %376 = vector.broadcast %375 : f32 to vector<8x1024xf32>
    %377 = arith.mulf %376, %374 : vector<8x1024xf32>
    %378 = arith.addf %355, %377 : vector<8x1024xf32>
    %c54 = arith.constant 54 : index
    %379 = memref.load %arg3[%c54] : memref<288xf32, #tpu.memory_space<smem>>
    %380 = vector.broadcast %379 : f32 to vector<8x1024xf32>
    %381 = arith.mulf %380, %374 : vector<8x1024xf32>
    %382 = arith.addf %359, %381 : vector<8x1024xf32>
    %c90 = arith.constant 90 : index
    %383 = memref.load %arg3[%c90] : memref<288xf32, #tpu.memory_space<smem>>
    %384 = vector.broadcast %383 : f32 to vector<8x1024xf32>
    %385 = arith.mulf %384, %374 : vector<8x1024xf32>
    %386 = arith.addf %363, %385 : vector<8x1024xf32>
    %c126 = arith.constant 126 : index
    %387 = memref.load %arg3[%c126] : memref<288xf32, #tpu.memory_space<smem>>
    %388 = vector.broadcast %387 : f32 to vector<8x1024xf32>
    %389 = arith.mulf %388, %374 : vector<8x1024xf32>
    %390 = arith.addf %367, %389 : vector<8x1024xf32>
    %c32_i32_73 = arith.constant 32 : i32
    %391 = tpu.dynamic_rotate %370 by %c32_i32_73 dim 1 : vector<8x1024xf32>, i32 -> vector<8x1024xf32>
    %c1_74 = arith.constant 1 : index
    %c0_75 = arith.constant 0 : index
    %c0_76 = arith.constant 0 : index
    %392 = vector.load %arg2[%c1_74, %c0_75, %c0_76] : memref<9x8x1024xf32, #tpu.memory_space<vmem>>, vector<1x8x1024xf32>
    %393 = vector.shape_cast %392 : vector<1x8x1024xf32> to vector<8x1024xf32>
    %394 = arith.mulf %391, %393 : vector<8x1024xf32>
    %c19 = arith.constant 19 : index
    %395 = memref.load %arg3[%c19] : memref<288xf32, #tpu.memory_space<smem>>
    %396 = vector.broadcast %395 : f32 to vector<8x1024xf32>
    %397 = arith.mulf %396, %394 : vector<8x1024xf32>
    %398 = arith.addf %378, %397 : vector<8x1024xf32>
    %c55 = arith.constant 55 : index
    %399 = memref.load %arg3[%c55] : memref<288xf32, #tpu.memory_space<smem>>
    %400 = vector.broadcast %399 : f32 to vector<8x1024xf32>
    %401 = arith.mulf %400, %394 : vector<8x1024xf32>
    %402 = arith.addf %382, %401 : vector<8x1024xf32>
    %c91 = arith.constant 91 : index
    %403 = memref.load %arg3[%c91] : memref<288xf32, #tpu.memory_space<smem>>
    %404 = vector.broadcast %403 : f32 to vector<8x1024xf32>
    %405 = arith.mulf %404, %394 : vector<8x1024xf32>
    %406 = arith.addf %386, %405 : vector<8x1024xf32>
    %c127 = arith.constant 127 : index
    %407 = memref.load %arg3[%c127] : memref<288xf32, #tpu.memory_space<smem>>
    %408 = vector.broadcast %407 : f32 to vector<8x1024xf32>
    %409 = arith.mulf %408, %394 : vector<8x1024xf32>
    %410 = arith.addf %390, %409 : vector<8x1024xf32>
    %c31_i32_77 = arith.constant 31 : i32
    %411 = tpu.dynamic_rotate %370 by %c31_i32_77 dim 1 : vector<8x1024xf32>, i32 -> vector<8x1024xf32>
    %c2_78 = arith.constant 2 : index
    %c0_79 = arith.constant 0 : index
    %c0_80 = arith.constant 0 : index
    %412 = vector.load %arg2[%c2_78, %c0_79, %c0_80] : memref<9x8x1024xf32, #tpu.memory_space<vmem>>, vector<1x8x1024xf32>
    %413 = vector.shape_cast %412 : vector<1x8x1024xf32> to vector<8x1024xf32>
    %414 = arith.mulf %411, %413 : vector<8x1024xf32>
    %c20 = arith.constant 20 : index
    %415 = memref.load %arg3[%c20] : memref<288xf32, #tpu.memory_space<smem>>
    %416 = vector.broadcast %415 : f32 to vector<8x1024xf32>
    %417 = arith.mulf %416, %414 : vector<8x1024xf32>
    %418 = arith.addf %398, %417 : vector<8x1024xf32>
    %c56 = arith.constant 56 : index
    %419 = memref.load %arg3[%c56] : memref<288xf32, #tpu.memory_space<smem>>
    %420 = vector.broadcast %419 : f32 to vector<8x1024xf32>
    %421 = arith.mulf %420, %414 : vector<8x1024xf32>
    %422 = arith.addf %402, %421 : vector<8x1024xf32>
    %c92 = arith.constant 92 : index
    %423 = memref.load %arg3[%c92] : memref<288xf32, #tpu.memory_space<smem>>
    %424 = vector.broadcast %423 : f32 to vector<8x1024xf32>
    %425 = arith.mulf %424, %414 : vector<8x1024xf32>
    %426 = arith.addf %406, %425 : vector<8x1024xf32>
    %c128 = arith.constant 128 : index
    %427 = memref.load %arg3[%c128] : memref<288xf32, #tpu.memory_space<smem>>
    %428 = vector.broadcast %427 : f32 to vector<8x1024xf32>
    %429 = arith.mulf %428, %414 : vector<8x1024xf32>
    %430 = arith.addf %410, %429 : vector<8x1024xf32>
    %c1_i32_81 = arith.constant 1 : i32
    %431 = tpu.dynamic_rotate %370 by %c1_i32_81 dim 1 : vector<8x1024xf32>, i32 -> vector<8x1024xf32>
    %c3_82 = arith.constant 3 : index
    %c0_83 = arith.constant 0 : index
    %c0_84 = arith.constant 0 : index
    %432 = vector.load %arg2[%c3_82, %c0_83, %c0_84] : memref<9x8x1024xf32, #tpu.memory_space<vmem>>, vector<1x8x1024xf32>
    %433 = vector.shape_cast %432 : vector<1x8x1024xf32> to vector<8x1024xf32>
    %434 = arith.mulf %431, %433 : vector<8x1024xf32>
    %c21 = arith.constant 21 : index
    %435 = memref.load %arg3[%c21] : memref<288xf32, #tpu.memory_space<smem>>
    %436 = vector.broadcast %435 : f32 to vector<8x1024xf32>
    %437 = arith.mulf %436, %434 : vector<8x1024xf32>
    %438 = arith.addf %418, %437 : vector<8x1024xf32>
    %c57 = arith.constant 57 : index
    %439 = memref.load %arg3[%c57] : memref<288xf32, #tpu.memory_space<smem>>
    %440 = vector.broadcast %439 : f32 to vector<8x1024xf32>
    %441 = arith.mulf %440, %434 : vector<8x1024xf32>
    %442 = arith.addf %422, %441 : vector<8x1024xf32>
    %c93 = arith.constant 93 : index
    %443 = memref.load %arg3[%c93] : memref<288xf32, #tpu.memory_space<smem>>
    %444 = vector.broadcast %443 : f32 to vector<8x1024xf32>
    %445 = arith.mulf %444, %434 : vector<8x1024xf32>
    %446 = arith.addf %426, %445 : vector<8x1024xf32>
    %c129 = arith.constant 129 : index
    %447 = memref.load %arg3[%c129] : memref<288xf32, #tpu.memory_space<smem>>
    %448 = vector.broadcast %447 : f32 to vector<8x1024xf32>
    %449 = arith.mulf %448, %434 : vector<8x1024xf32>
    %450 = arith.addf %430, %449 : vector<8x1024xf32>
    %c22 = arith.constant 22 : index
    %451 = memref.load %arg3[%c22] : memref<288xf32, #tpu.memory_space<smem>>
    %452 = vector.broadcast %451 : f32 to vector<8x1024xf32>
    %453 = arith.mulf %452, %370 : vector<8x1024xf32>
    %454 = arith.addf %438, %453 : vector<8x1024xf32>
    %c58 = arith.constant 58 : index
    %455 = memref.load %arg3[%c58] : memref<288xf32, #tpu.memory_space<smem>>
    %456 = vector.broadcast %455 : f32 to vector<8x1024xf32>
    %457 = arith.mulf %456, %370 : vector<8x1024xf32>
    %458 = arith.addf %442, %457 : vector<8x1024xf32>
    %c94 = arith.constant 94 : index
    %459 = memref.load %arg3[%c94] : memref<288xf32, #tpu.memory_space<smem>>
    %460 = vector.broadcast %459 : f32 to vector<8x1024xf32>
    %461 = arith.mulf %460, %370 : vector<8x1024xf32>
    %462 = arith.addf %446, %461 : vector<8x1024xf32>
    %c130 = arith.constant 130 : index
    %463 = memref.load %arg3[%c130] : memref<288xf32, #tpu.memory_space<smem>>
    %464 = vector.broadcast %463 : f32 to vector<8x1024xf32>
    %465 = arith.mulf %464, %370 : vector<8x1024xf32>
    %466 = arith.addf %450, %465 : vector<8x1024xf32>
    %c1023_i32_85 = arith.constant 1023 : i32
    %467 = tpu.dynamic_rotate %370 by %c1023_i32_85 dim 1 : vector<8x1024xf32>, i32 -> vector<8x1024xf32>
    %c5_86 = arith.constant 5 : index
    %c0_87 = arith.constant 0 : index
    %c0_88 = arith.constant 0 : index
    %468 = vector.load %arg2[%c5_86, %c0_87, %c0_88] : memref<9x8x1024xf32, #tpu.memory_space<vmem>>, vector<1x8x1024xf32>
    %469 = vector.shape_cast %468 : vector<1x8x1024xf32> to vector<8x1024xf32>
    %470 = arith.mulf %467, %469 : vector<8x1024xf32>
    %c23 = arith.constant 23 : index
    %471 = memref.load %arg3[%c23] : memref<288xf32, #tpu.memory_space<smem>>
    %472 = vector.broadcast %471 : f32 to vector<8x1024xf32>
    %473 = arith.mulf %472, %470 : vector<8x1024xf32>
    %474 = arith.addf %454, %473 : vector<8x1024xf32>
    %c59 = arith.constant 59 : index
    %475 = memref.load %arg3[%c59] : memref<288xf32, #tpu.memory_space<smem>>
    %476 = vector.broadcast %475 : f32 to vector<8x1024xf32>
    %477 = arith.mulf %476, %470 : vector<8x1024xf32>
    %478 = arith.addf %458, %477 : vector<8x1024xf32>
    %c95 = arith.constant 95 : index
    %479 = memref.load %arg3[%c95] : memref<288xf32, #tpu.memory_space<smem>>
    %480 = vector.broadcast %479 : f32 to vector<8x1024xf32>
    %481 = arith.mulf %480, %470 : vector<8x1024xf32>
    %482 = arith.addf %462, %481 : vector<8x1024xf32>
    %c131 = arith.constant 131 : index
    %483 = memref.load %arg3[%c131] : memref<288xf32, #tpu.memory_space<smem>>
    %484 = vector.broadcast %483 : f32 to vector<8x1024xf32>
    %485 = arith.mulf %484, %470 : vector<8x1024xf32>
    %486 = arith.addf %466, %485 : vector<8x1024xf32>
    %c993_i32_89 = arith.constant 993 : i32
    %487 = tpu.dynamic_rotate %370 by %c993_i32_89 dim 1 : vector<8x1024xf32>, i32 -> vector<8x1024xf32>
    %c6_90 = arith.constant 6 : index
    %c0_91 = arith.constant 0 : index
    %c0_92 = arith.constant 0 : index
    %488 = vector.load %arg2[%c6_90, %c0_91, %c0_92] : memref<9x8x1024xf32, #tpu.memory_space<vmem>>, vector<1x8x1024xf32>
    %489 = vector.shape_cast %488 : vector<1x8x1024xf32> to vector<8x1024xf32>
    %490 = arith.mulf %487, %489 : vector<8x1024xf32>
    %c24 = arith.constant 24 : index
    %491 = memref.load %arg3[%c24] : memref<288xf32, #tpu.memory_space<smem>>
    %492 = vector.broadcast %491 : f32 to vector<8x1024xf32>
    %493 = arith.mulf %492, %490 : vector<8x1024xf32>
    %494 = arith.addf %474, %493 : vector<8x1024xf32>
    %c60 = arith.constant 60 : index
    %495 = memref.load %arg3[%c60] : memref<288xf32, #tpu.memory_space<smem>>
    %496 = vector.broadcast %495 : f32 to vector<8x1024xf32>
    %497 = arith.mulf %496, %490 : vector<8x1024xf32>
    %498 = arith.addf %478, %497 : vector<8x1024xf32>
    %c96 = arith.constant 96 : index
    %499 = memref.load %arg3[%c96] : memref<288xf32, #tpu.memory_space<smem>>
    %500 = vector.broadcast %499 : f32 to vector<8x1024xf32>
    %501 = arith.mulf %500, %490 : vector<8x1024xf32>
    %502 = arith.addf %482, %501 : vector<8x1024xf32>
    %c132 = arith.constant 132 : index
    %503 = memref.load %arg3[%c132] : memref<288xf32, #tpu.memory_space<smem>>
    %504 = vector.broadcast %503 : f32 to vector<8x1024xf32>
    %505 = arith.mulf %504, %490 : vector<8x1024xf32>
    %506 = arith.addf %486, %505 : vector<8x1024xf32>
    %c992_i32_93 = arith.constant 992 : i32
    %507 = tpu.dynamic_rotate %370 by %c992_i32_93 dim 1 : vector<8x1024xf32>, i32 -> vector<8x1024xf32>
    %c7_94 = arith.constant 7 : index
    %c0_95 = arith.constant 0 : index
    %c0_96 = arith.constant 0 : index
    %508 = vector.load %arg2[%c7_94, %c0_95, %c0_96] : memref<9x8x1024xf32, #tpu.memory_space<vmem>>, vector<1x8x1024xf32>
    %509 = vector.shape_cast %508 : vector<1x8x1024xf32> to vector<8x1024xf32>
    %510 = arith.mulf %507, %509 : vector<8x1024xf32>
    %c25 = arith.constant 25 : index
    %511 = memref.load %arg3[%c25] : memref<288xf32, #tpu.memory_space<smem>>
    %512 = vector.broadcast %511 : f32 to vector<8x1024xf32>
    %513 = arith.mulf %512, %510 : vector<8x1024xf32>
    %514 = arith.addf %494, %513 : vector<8x1024xf32>
    %c61 = arith.constant 61 : index
    %515 = memref.load %arg3[%c61] : memref<288xf32, #tpu.memory_space<smem>>
    %516 = vector.broadcast %515 : f32 to vector<8x1024xf32>
    %517 = arith.mulf %516, %510 : vector<8x1024xf32>
    %518 = arith.addf %498, %517 : vector<8x1024xf32>
    %c97 = arith.constant 97 : index
    %519 = memref.load %arg3[%c97] : memref<288xf32, #tpu.memory_space<smem>>
    %520 = vector.broadcast %519 : f32 to vector<8x1024xf32>
    %521 = arith.mulf %520, %510 : vector<8x1024xf32>
    %522 = arith.addf %502, %521 : vector<8x1024xf32>
    %c133 = arith.constant 133 : index
    %523 = memref.load %arg3[%c133] : memref<288xf32, #tpu.memory_space<smem>>
    %524 = vector.broadcast %523 : f32 to vector<8x1024xf32>
    %525 = arith.mulf %524, %510 : vector<8x1024xf32>
    %526 = arith.addf %506, %525 : vector<8x1024xf32>
    %c991_i32_97 = arith.constant 991 : i32
    %527 = tpu.dynamic_rotate %370 by %c991_i32_97 dim 1 : vector<8x1024xf32>, i32 -> vector<8x1024xf32>
    %c8_98 = arith.constant 8 : index
    %c0_99 = arith.constant 0 : index
    %c0_100 = arith.constant 0 : index
    %528 = vector.load %arg2[%c8_98, %c0_99, %c0_100] : memref<9x8x1024xf32, #tpu.memory_space<vmem>>, vector<1x8x1024xf32>
    %529 = vector.shape_cast %528 : vector<1x8x1024xf32> to vector<8x1024xf32>
    %530 = arith.mulf %527, %529 : vector<8x1024xf32>
    %c26 = arith.constant 26 : index
    %531 = memref.load %arg3[%c26] : memref<288xf32, #tpu.memory_space<smem>>
    %532 = vector.broadcast %531 : f32 to vector<8x1024xf32>
    %533 = arith.mulf %532, %530 : vector<8x1024xf32>
    %534 = arith.addf %514, %533 : vector<8x1024xf32>
    %c62 = arith.constant 62 : index
    %535 = memref.load %arg3[%c62] : memref<288xf32, #tpu.memory_space<smem>>
    %536 = vector.broadcast %535 : f32 to vector<8x1024xf32>
    %537 = arith.mulf %536, %530 : vector<8x1024xf32>
    %538 = arith.addf %518, %537 : vector<8x1024xf32>
    %c98 = arith.constant 98 : index
    %539 = memref.load %arg3[%c98] : memref<288xf32, #tpu.memory_space<smem>>
    %540 = vector.broadcast %539 : f32 to vector<8x1024xf32>
    %541 = arith.mulf %540, %530 : vector<8x1024xf32>
    %542 = arith.addf %522, %541 : vector<8x1024xf32>
    %c134 = arith.constant 134 : index
    %543 = memref.load %arg3[%c134] : memref<288xf32, #tpu.memory_space<smem>>
    %544 = vector.broadcast %543 : f32 to vector<8x1024xf32>
    %545 = arith.mulf %544, %530 : vector<8x1024xf32>
    %546 = arith.addf %526, %545 : vector<8x1024xf32>
    %c3_101 = arith.constant 3 : index
    %547 = arith.index_cast %1 : i32 to index
    %c0_102 = arith.constant 0 : index
    %548 = vector.load %arg1[%c3_101, %547, %c0_102] : memref<4x8x1024xf32, #tpu.memory_space<vmem>>, vector<1x8x1024xf32>
    %549 = vector.shape_cast %548 : vector<1x8x1024xf32> to vector<8x1024xf32>
    %c33_i32_103 = arith.constant 33 : i32
    %550 = tpu.dynamic_rotate %549 by %c33_i32_103 dim 1 : vector<8x1024xf32>, i32 -> vector<8x1024xf32>
    %c0_104 = arith.constant 0 : index
    %c0_105 = arith.constant 0 : index
    %c0_106 = arith.constant 0 : index
    %551 = vector.load %arg2[%c0_104, %c0_105, %c0_106] : memref<9x8x1024xf32, #tpu.memory_space<vmem>>, vector<1x8x1024xf32>
    %552 = vector.shape_cast %551 : vector<1x8x1024xf32> to vector<8x1024xf32>
    %553 = arith.mulf %550, %552 : vector<8x1024xf32>
    %c27 = arith.constant 27 : index
    %554 = memref.load %arg3[%c27] : memref<288xf32, #tpu.memory_space<smem>>
    %555 = vector.broadcast %554 : f32 to vector<8x1024xf32>
    %556 = arith.mulf %555, %553 : vector<8x1024xf32>
    %557 = arith.addf %534, %556 : vector<8x1024xf32>
    %c63 = arith.constant 63 : index
    %558 = memref.load %arg3[%c63] : memref<288xf32, #tpu.memory_space<smem>>
    %559 = vector.broadcast %558 : f32 to vector<8x1024xf32>
    %560 = arith.mulf %559, %553 : vector<8x1024xf32>
    %561 = arith.addf %538, %560 : vector<8x1024xf32>
    %c99 = arith.constant 99 : index
    %562 = memref.load %arg3[%c99] : memref<288xf32, #tpu.memory_space<smem>>
    %563 = vector.broadcast %562 : f32 to vector<8x1024xf32>
    %564 = arith.mulf %563, %553 : vector<8x1024xf32>
    %565 = arith.addf %542, %564 : vector<8x1024xf32>
    %c135 = arith.constant 135 : index
    %566 = memref.load %arg3[%c135] : memref<288xf32, #tpu.memory_space<smem>>
    %567 = vector.broadcast %566 : f32 to vector<8x1024xf32>
    %568 = arith.mulf %567, %553 : vector<8x1024xf32>
    %569 = arith.addf %546, %568 : vector<8x1024xf32>
    %c32_i32_107 = arith.constant 32 : i32
    %570 = tpu.dynamic_rotate %549 by %c32_i32_107 dim 1 : vector<8x1024xf32>, i32 -> vector<8x1024xf32>
    %c1_108 = arith.constant 1 : index
    %c0_109 = arith.constant 0 : index
    %c0_110 = arith.constant 0 : index
    %571 = vector.load %arg2[%c1_108, %c0_109, %c0_110] : memref<9x8x1024xf32, #tpu.memory_space<vmem>>, vector<1x8x1024xf32>
    %572 = vector.shape_cast %571 : vector<1x8x1024xf32> to vector<8x1024xf32>
    %573 = arith.mulf %570, %572 : vector<8x1024xf32>
    %c28 = arith.constant 28 : index
    %574 = memref.load %arg3[%c28] : memref<288xf32, #tpu.memory_space<smem>>
    %575 = vector.broadcast %574 : f32 to vector<8x1024xf32>
    %576 = arith.mulf %575, %573 : vector<8x1024xf32>
    %577 = arith.addf %557, %576 : vector<8x1024xf32>
    %c64 = arith.constant 64 : index
    %578 = memref.load %arg3[%c64] : memref<288xf32, #tpu.memory_space<smem>>
    %579 = vector.broadcast %578 : f32 to vector<8x1024xf32>
    %580 = arith.mulf %579, %573 : vector<8x1024xf32>
    %581 = arith.addf %561, %580 : vector<8x1024xf32>
    %c100 = arith.constant 100 : index
    %582 = memref.load %arg3[%c100] : memref<288xf32, #tpu.memory_space<smem>>
    %583 = vector.broadcast %582 : f32 to vector<8x1024xf32>
    %584 = arith.mulf %583, %573 : vector<8x1024xf32>
    %585 = arith.addf %565, %584 : vector<8x1024xf32>
    %c136 = arith.constant 136 : index
    %586 = memref.load %arg3[%c136] : memref<288xf32, #tpu.memory_space<smem>>
    %587 = vector.broadcast %586 : f32 to vector<8x1024xf32>
    %588 = arith.mulf %587, %573 : vector<8x1024xf32>
    %589 = arith.addf %569, %588 : vector<8x1024xf32>
    %c31_i32_111 = arith.constant 31 : i32
    %590 = tpu.dynamic_rotate %549 by %c31_i32_111 dim 1 : vector<8x1024xf32>, i32 -> vector<8x1024xf32>
    %c2_112 = arith.constant 2 : index
    %c0_113 = arith.constant 0 : index
    %c0_114 = arith.constant 0 : index
    %591 = vector.load %arg2[%c2_112, %c0_113, %c0_114] : memref<9x8x1024xf32, #tpu.memory_space<vmem>>, vector<1x8x1024xf32>
    %592 = vector.shape_cast %591 : vector<1x8x1024xf32> to vector<8x1024xf32>
    %593 = arith.mulf %590, %592 : vector<8x1024xf32>
    %c29 = arith.constant 29 : index
    %594 = memref.load %arg3[%c29] : memref<288xf32, #tpu.memory_space<smem>>
    %595 = vector.broadcast %594 : f32 to vector<8x1024xf32>
    %596 = arith.mulf %595, %593 : vector<8x1024xf32>
    %597 = arith.addf %577, %596 : vector<8x1024xf32>
    %c65 = arith.constant 65 : index
    %598 = memref.load %arg3[%c65] : memref<288xf32, #tpu.memory_space<smem>>
    %599 = vector.broadcast %598 : f32 to vector<8x1024xf32>
    %600 = arith.mulf %599, %593 : vector<8x1024xf32>
    %601 = arith.addf %581, %600 : vector<8x1024xf32>
    %c101 = arith.constant 101 : index
    %602 = memref.load %arg3[%c101] : memref<288xf32, #tpu.memory_space<smem>>
    %603 = vector.broadcast %602 : f32 to vector<8x1024xf32>
    %604 = arith.mulf %603, %593 : vector<8x1024xf32>
    %605 = arith.addf %585, %604 : vector<8x1024xf32>
    %c137 = arith.constant 137 : index
    %606 = memref.load %arg3[%c137] : memref<288xf32, #tpu.memory_space<smem>>
    %607 = vector.broadcast %606 : f32 to vector<8x1024xf32>
    %608 = arith.mulf %607, %593 : vector<8x1024xf32>
    %609 = arith.addf %589, %608 : vector<8x1024xf32>
    %c1_i32_115 = arith.constant 1 : i32
    %610 = tpu.dynamic_rotate %549 by %c1_i32_115 dim 1 : vector<8x1024xf32>, i32 -> vector<8x1024xf32>
    %c3_116 = arith.constant 3 : index
    %c0_117 = arith.constant 0 : index
    %c0_118 = arith.constant 0 : index
    %611 = vector.load %arg2[%c3_116, %c0_117, %c0_118] : memref<9x8x1024xf32, #tpu.memory_space<vmem>>, vector<1x8x1024xf32>
    %612 = vector.shape_cast %611 : vector<1x8x1024xf32> to vector<8x1024xf32>
    %613 = arith.mulf %610, %612 : vector<8x1024xf32>
    %c30 = arith.constant 30 : index
    %614 = memref.load %arg3[%c30] : memref<288xf32, #tpu.memory_space<smem>>
    %615 = vector.broadcast %614 : f32 to vector<8x1024xf32>
    %616 = arith.mulf %615, %613 : vector<8x1024xf32>
    %617 = arith.addf %597, %616 : vector<8x1024xf32>
    %c66 = arith.constant 66 : index
    %618 = memref.load %arg3[%c66] : memref<288xf32, #tpu.memory_space<smem>>
    %619 = vector.broadcast %618 : f32 to vector<8x1024xf32>
    %620 = arith.mulf %619, %613 : vector<8x1024xf32>
    %621 = arith.addf %601, %620 : vector<8x1024xf32>
    %c102 = arith.constant 102 : index
    %622 = memref.load %arg3[%c102] : memref<288xf32, #tpu.memory_space<smem>>
    %623 = vector.broadcast %622 : f32 to vector<8x1024xf32>
    %624 = arith.mulf %623, %613 : vector<8x1024xf32>
    %625 = arith.addf %605, %624 : vector<8x1024xf32>
    %c138 = arith.constant 138 : index
    %626 = memref.load %arg3[%c138] : memref<288xf32, #tpu.memory_space<smem>>
    %627 = vector.broadcast %626 : f32 to vector<8x1024xf32>
    %628 = arith.mulf %627, %613 : vector<8x1024xf32>
    %629 = arith.addf %609, %628 : vector<8x1024xf32>
    %c31 = arith.constant 31 : index
    %630 = memref.load %arg3[%c31] : memref<288xf32, #tpu.memory_space<smem>>
    %631 = vector.broadcast %630 : f32 to vector<8x1024xf32>
    %632 = arith.mulf %631, %549 : vector<8x1024xf32>
    %633 = arith.addf %617, %632 : vector<8x1024xf32>
    %c67 = arith.constant 67 : index
    %634 = memref.load %arg3[%c67] : memref<288xf32, #tpu.memory_space<smem>>
    %635 = vector.broadcast %634 : f32 to vector<8x1024xf32>
    %636 = arith.mulf %635, %549 : vector<8x1024xf32>
    %637 = arith.addf %621, %636 : vector<8x1024xf32>
    %c103 = arith.constant 103 : index
    %638 = memref.load %arg3[%c103] : memref<288xf32, #tpu.memory_space<smem>>
    %639 = vector.broadcast %638 : f32 to vector<8x1024xf32>
    %640 = arith.mulf %639, %549 : vector<8x1024xf32>
    %641 = arith.addf %625, %640 : vector<8x1024xf32>
    %c139 = arith.constant 139 : index
    %642 = memref.load %arg3[%c139] : memref<288xf32, #tpu.memory_space<smem>>
    %643 = vector.broadcast %642 : f32 to vector<8x1024xf32>
    %644 = arith.mulf %643, %549 : vector<8x1024xf32>
    %645 = arith.addf %629, %644 : vector<8x1024xf32>
    %c1023_i32_119 = arith.constant 1023 : i32
    %646 = tpu.dynamic_rotate %549 by %c1023_i32_119 dim 1 : vector<8x1024xf32>, i32 -> vector<8x1024xf32>
    %c5_120 = arith.constant 5 : index
    %c0_121 = arith.constant 0 : index
    %c0_122 = arith.constant 0 : index
    %647 = vector.load %arg2[%c5_120, %c0_121, %c0_122] : memref<9x8x1024xf32, #tpu.memory_space<vmem>>, vector<1x8x1024xf32>
    %648 = vector.shape_cast %647 : vector<1x8x1024xf32> to vector<8x1024xf32>
    %649 = arith.mulf %646, %648 : vector<8x1024xf32>
    %c32 = arith.constant 32 : index
    %650 = memref.load %arg3[%c32] : memref<288xf32, #tpu.memory_space<smem>>
    %651 = vector.broadcast %650 : f32 to vector<8x1024xf32>
    %652 = arith.mulf %651, %649 : vector<8x1024xf32>
    %653 = arith.addf %633, %652 : vector<8x1024xf32>
    %c68 = arith.constant 68 : index
    %654 = memref.load %arg3[%c68] : memref<288xf32, #tpu.memory_space<smem>>
    %655 = vector.broadcast %654 : f32 to vector<8x1024xf32>
    %656 = arith.mulf %655, %649 : vector<8x1024xf32>
    %657 = arith.addf %637, %656 : vector<8x1024xf32>
    %c104 = arith.constant 104 : index
    %658 = memref.load %arg3[%c104] : memref<288xf32, #tpu.memory_space<smem>>
    %659 = vector.broadcast %658 : f32 to vector<8x1024xf32>
    %660 = arith.mulf %659, %649 : vector<8x1024xf32>
    %661 = arith.addf %641, %660 : vector<8x1024xf32>
    %c140 = arith.constant 140 : index
    %662 = memref.load %arg3[%c140] : memref<288xf32, #tpu.memory_space<smem>>
    %663 = vector.broadcast %662 : f32 to vector<8x1024xf32>
    %664 = arith.mulf %663, %649 : vector<8x1024xf32>
    %665 = arith.addf %645, %664 : vector<8x1024xf32>
    %c993_i32_123 = arith.constant 993 : i32
    %666 = tpu.dynamic_rotate %549 by %c993_i32_123 dim 1 : vector<8x1024xf32>, i32 -> vector<8x1024xf32>
    %c6_124 = arith.constant 6 : index
    %c0_125 = arith.constant 0 : index
    %c0_126 = arith.constant 0 : index
    %667 = vector.load %arg2[%c6_124, %c0_125, %c0_126] : memref<9x8x1024xf32, #tpu.memory_space<vmem>>, vector<1x8x1024xf32>
    %668 = vector.shape_cast %667 : vector<1x8x1024xf32> to vector<8x1024xf32>
    %669 = arith.mulf %666, %668 : vector<8x1024xf32>
    %c33 = arith.constant 33 : index
    %670 = memref.load %arg3[%c33] : memref<288xf32, #tpu.memory_space<smem>>
    %671 = vector.broadcast %670 : f32 to vector<8x1024xf32>
    %672 = arith.mulf %671, %669 : vector<8x1024xf32>
    %673 = arith.addf %653, %672 : vector<8x1024xf32>
    %c69 = arith.constant 69 : index
    %674 = memref.load %arg3[%c69] : memref<288xf32, #tpu.memory_space<smem>>
    %675 = vector.broadcast %674 : f32 to vector<8x1024xf32>
    %676 = arith.mulf %675, %669 : vector<8x1024xf32>
    %677 = arith.addf %657, %676 : vector<8x1024xf32>
    %c105 = arith.constant 105 : index
    %678 = memref.load %arg3[%c105] : memref<288xf32, #tpu.memory_space<smem>>
    %679 = vector.broadcast %678 : f32 to vector<8x1024xf32>
    %680 = arith.mulf %679, %669 : vector<8x1024xf32>
    %681 = arith.addf %661, %680 : vector<8x1024xf32>
    %c141 = arith.constant 141 : index
    %682 = memref.load %arg3[%c141] : memref<288xf32, #tpu.memory_space<smem>>
    %683 = vector.broadcast %682 : f32 to vector<8x1024xf32>
    %684 = arith.mulf %683, %669 : vector<8x1024xf32>
    %685 = arith.addf %665, %684 : vector<8x1024xf32>
    %c992_i32_127 = arith.constant 992 : i32
    %686 = tpu.dynamic_rotate %549 by %c992_i32_127 dim 1 : vector<8x1024xf32>, i32 -> vector<8x1024xf32>
    %c7_128 = arith.constant 7 : index
    %c0_129 = arith.constant 0 : index
    %c0_130 = arith.constant 0 : index
    %687 = vector.load %arg2[%c7_128, %c0_129, %c0_130] : memref<9x8x1024xf32, #tpu.memory_space<vmem>>, vector<1x8x1024xf32>
    %688 = vector.shape_cast %687 : vector<1x8x1024xf32> to vector<8x1024xf32>
    %689 = arith.mulf %686, %688 : vector<8x1024xf32>
    %c34 = arith.constant 34 : index
    %690 = memref.load %arg3[%c34] : memref<288xf32, #tpu.memory_space<smem>>
    %691 = vector.broadcast %690 : f32 to vector<8x1024xf32>
    %692 = arith.mulf %691, %689 : vector<8x1024xf32>
    %693 = arith.addf %673, %692 : vector<8x1024xf32>
    %c70 = arith.constant 70 : index
    %694 = memref.load %arg3[%c70] : memref<288xf32, #tpu.memory_space<smem>>
    %695 = vector.broadcast %694 : f32 to vector<8x1024xf32>
    %696 = arith.mulf %695, %689 : vector<8x1024xf32>
    %697 = arith.addf %677, %696 : vector<8x1024xf32>
    %c106 = arith.constant 106 : index
    %698 = memref.load %arg3[%c106] : memref<288xf32, #tpu.memory_space<smem>>
    %699 = vector.broadcast %698 : f32 to vector<8x1024xf32>
    %700 = arith.mulf %699, %689 : vector<8x1024xf32>
    %701 = arith.addf %681, %700 : vector<8x1024xf32>
    %c142 = arith.constant 142 : index
    %702 = memref.load %arg3[%c142] : memref<288xf32, #tpu.memory_space<smem>>
    %703 = vector.broadcast %702 : f32 to vector<8x1024xf32>
    %704 = arith.mulf %703, %689 : vector<8x1024xf32>
    %705 = arith.addf %685, %704 : vector<8x1024xf32>
    %c991_i32_131 = arith.constant 991 : i32
    %706 = tpu.dynamic_rotate %549 by %c991_i32_131 dim 1 : vector<8x1024xf32>, i32 -> vector<8x1024xf32>
    %c8_132 = arith.constant 8 : index
    %c0_133 = arith.constant 0 : index
    %c0_134 = arith.constant 0 : index
    %707 = vector.load %arg2[%c8_132, %c0_133, %c0_134] : memref<9x8x1024xf32, #tpu.memory_space<vmem>>, vector<1x8x1024xf32>
    %708 = vector.shape_cast %707 : vector<1x8x1024xf32> to vector<8x1024xf32>
    %709 = arith.mulf %706, %708 : vector<8x1024xf32>
    %c35 = arith.constant 35 : index
    %710 = memref.load %arg3[%c35] : memref<288xf32, #tpu.memory_space<smem>>
    %711 = vector.broadcast %710 : f32 to vector<8x1024xf32>
    %712 = arith.mulf %711, %709 : vector<8x1024xf32>
    %713 = arith.addf %693, %712 : vector<8x1024xf32>
    %c71 = arith.constant 71 : index
    %714 = memref.load %arg3[%c71] : memref<288xf32, #tpu.memory_space<smem>>
    %715 = vector.broadcast %714 : f32 to vector<8x1024xf32>
    %716 = arith.mulf %715, %709 : vector<8x1024xf32>
    %717 = arith.addf %697, %716 : vector<8x1024xf32>
    %c107 = arith.constant 107 : index
    %718 = memref.load %arg3[%c107] : memref<288xf32, #tpu.memory_space<smem>>
    %719 = vector.broadcast %718 : f32 to vector<8x1024xf32>
    %720 = arith.mulf %719, %709 : vector<8x1024xf32>
    %721 = arith.addf %701, %720 : vector<8x1024xf32>
    %c143 = arith.constant 143 : index
    %722 = memref.load %arg3[%c143] : memref<288xf32, #tpu.memory_space<smem>>
    %723 = vector.broadcast %722 : f32 to vector<8x1024xf32>
    %724 = arith.mulf %723, %709 : vector<8x1024xf32>
    %725 = arith.addf %705, %724 : vector<8x1024xf32>
    %c0_135 = arith.constant 0 : index
    %726 = memref.load %arg4[%c0_135] : memref<8xf32, #tpu.memory_space<smem>>
    %727 = vector.broadcast %726 : f32 to vector<8x1024xf32>
    %728 = arith.addf %713, %727 : vector<8x1024xf32>
    %cst_136 = arith.constant 0.000000e+00 : f32
    %729 = vector.broadcast %cst_136 : f32 to vector<8x1024xf32>
    %730 = arith.maximumf %728, %729 : vector<8x1024xf32>
    %c0_137 = arith.constant 0 : index
    %c0_138 = arith.constant 0 : index
    %c0_139 = arith.constant 0 : index
    %731 = vector.load %arg5[%c0_137, %c0_138, %c0_139] : memref<32x8x1024xf32, #tpu.memory_space<vmem>>, vector<1x8x1024xf32>
    %732 = vector.shape_cast %731 : vector<1x8x1024xf32> to vector<8x1024xf32>
    %733 = arith.mulf %730, %732 : vector<8x1024xf32>
    %cst_140 = arith.constant dense<0.000000e+00> : vector<8xf32>
    %734 = vector.multi_reduction <add>, %733, %cst_140 [1] : vector<8x1024xf32> to vector<8xf32>
    %735 = vector.shape_cast %734 : vector<8xf32> to vector<8x1xf32>
    %736 = arith.addf %2, %735 : vector<8x1xf32>
    %c1_141 = arith.constant 1 : index
    %c0_142 = arith.constant 0 : index
    %c0_143 = arith.constant 0 : index
    %737 = vector.load %arg5[%c1_141, %c0_142, %c0_143] : memref<32x8x1024xf32, #tpu.memory_space<vmem>>, vector<1x8x1024xf32>
    %738 = vector.shape_cast %737 : vector<1x8x1024xf32> to vector<8x1024xf32>
    %739 = arith.mulf %730, %738 : vector<8x1024xf32>
    %cst_144 = arith.constant dense<0.000000e+00> : vector<8xf32>
    %740 = vector.multi_reduction <add>, %739, %cst_144 [1] : vector<8x1024xf32> to vector<8xf32>
    %741 = vector.shape_cast %740 : vector<8xf32> to vector<8x1xf32>
    %742 = arith.addf %3, %741 : vector<8x1xf32>
    %c2_145 = arith.constant 2 : index
    %c0_146 = arith.constant 0 : index
    %c0_147 = arith.constant 0 : index
    %743 = vector.load %arg5[%c2_145, %c0_146, %c0_147] : memref<32x8x1024xf32, #tpu.memory_space<vmem>>, vector<1x8x1024xf32>
    %744 = vector.shape_cast %743 : vector<1x8x1024xf32> to vector<8x1024xf32>
    %745 = arith.mulf %730, %744 : vector<8x1024xf32>
    %cst_148 = arith.constant dense<0.000000e+00> : vector<8xf32>
    %746 = vector.multi_reduction <add>, %745, %cst_148 [1] : vector<8x1024xf32> to vector<8xf32>
    %747 = vector.shape_cast %746 : vector<8xf32> to vector<8x1xf32>
    %748 = arith.addf %4, %747 : vector<8x1xf32>
    %c3_149 = arith.constant 3 : index
    %c0_150 = arith.constant 0 : index
    %c0_151 = arith.constant 0 : index
    %749 = vector.load %arg5[%c3_149, %c0_150, %c0_151] : memref<32x8x1024xf32, #tpu.memory_space<vmem>>, vector<1x8x1024xf32>
    %750 = vector.shape_cast %749 : vector<1x8x1024xf32> to vector<8x1024xf32>
    %751 = arith.mulf %730, %750 : vector<8x1024xf32>
    %cst_152 = arith.constant dense<0.000000e+00> : vector<8xf32>
    %752 = vector.multi_reduction <add>, %751, %cst_152 [1] : vector<8x1024xf32> to vector<8xf32>
    %753 = vector.shape_cast %752 : vector<8xf32> to vector<8x1xf32>
    %754 = arith.addf %5, %753 : vector<8x1xf32>
    %c1_153 = arith.constant 1 : index
    %755 = memref.load %arg4[%c1_153] : memref<8xf32, #tpu.memory_space<smem>>
    %756 = vector.broadcast %755 : f32 to vector<8x1024xf32>
    %757 = arith.addf %717, %756 : vector<8x1024xf32>
    %cst_154 = arith.constant 0.000000e+00 : f32
    %758 = vector.broadcast %cst_154 : f32 to vector<8x1024xf32>
    %759 = arith.maximumf %757, %758 : vector<8x1024xf32>
    %c4_155 = arith.constant 4 : index
    %c0_156 = arith.constant 0 : index
    %c0_157 = arith.constant 0 : index
    %760 = vector.load %arg5[%c4_155, %c0_156, %c0_157] : memref<32x8x1024xf32, #tpu.memory_space<vmem>>, vector<1x8x1024xf32>
    %761 = vector.shape_cast %760 : vector<1x8x1024xf32> to vector<8x1024xf32>
    %762 = arith.mulf %759, %761 : vector<8x1024xf32>
    %cst_158 = arith.constant dense<0.000000e+00> : vector<8xf32>
    %763 = vector.multi_reduction <add>, %762, %cst_158 [1] : vector<8x1024xf32> to vector<8xf32>
    %764 = vector.shape_cast %763 : vector<8xf32> to vector<8x1xf32>
    %765 = arith.addf %736, %764 : vector<8x1xf32>
    %c5_159 = arith.constant 5 : index
    %c0_160 = arith.constant 0 : index
    %c0_161 = arith.constant 0 : index
    %766 = vector.load %arg5[%c5_159, %c0_160, %c0_161] : memref<32x8x1024xf32, #tpu.memory_space<vmem>>, vector<1x8x1024xf32>
    %767 = vector.shape_cast %766 : vector<1x8x1024xf32> to vector<8x1024xf32>
    %768 = arith.mulf %759, %767 : vector<8x1024xf32>
    %cst_162 = arith.constant dense<0.000000e+00> : vector<8xf32>
    %769 = vector.multi_reduction <add>, %768, %cst_162 [1] : vector<8x1024xf32> to vector<8xf32>
    %770 = vector.shape_cast %769 : vector<8xf32> to vector<8x1xf32>
    %771 = arith.addf %742, %770 : vector<8x1xf32>
    %c6_163 = arith.constant 6 : index
    %c0_164 = arith.constant 0 : index
    %c0_165 = arith.constant 0 : index
    %772 = vector.load %arg5[%c6_163, %c0_164, %c0_165] : memref<32x8x1024xf32, #tpu.memory_space<vmem>>, vector<1x8x1024xf32>
    %773 = vector.shape_cast %772 : vector<1x8x1024xf32> to vector<8x1024xf32>
    %774 = arith.mulf %759, %773 : vector<8x1024xf32>
    %cst_166 = arith.constant dense<0.000000e+00> : vector<8xf32>
    %775 = vector.multi_reduction <add>, %774, %cst_166 [1] : vector<8x1024xf32> to vector<8xf32>
    %776 = vector.shape_cast %775 : vector<8xf32> to vector<8x1xf32>
    %777 = arith.addf %748, %776 : vector<8x1xf32>
    %c7_167 = arith.constant 7 : index
    %c0_168 = arith.constant 0 : index
    %c0_169 = arith.constant 0 : index
    %778 = vector.load %arg5[%c7_167, %c0_168, %c0_169] : memref<32x8x1024xf32, #tpu.memory_space<vmem>>, vector<1x8x1024xf32>
    %779 = vector.shape_cast %778 : vector<1x8x1024xf32> to vector<8x1024xf32>
    %780 = arith.mulf %759, %779 : vector<8x1024xf32>
    %cst_170 = arith.constant dense<0.000000e+00> : vector<8xf32>
    %781 = vector.multi_reduction <add>, %780, %cst_170 [1] : vector<8x1024xf32> to vector<8xf32>
    %782 = vector.shape_cast %781 : vector<8xf32> to vector<8x1xf32>
    %783 = arith.addf %754, %782 : vector<8x1xf32>
    %c2_171 = arith.constant 2 : index
    %784 = memref.load %arg4[%c2_171] : memref<8xf32, #tpu.memory_space<smem>>
    %785 = vector.broadcast %784 : f32 to vector<8x1024xf32>
    %786 = arith.addf %721, %785 : vector<8x1024xf32>
    %cst_172 = arith.constant 0.000000e+00 : f32
    %787 = vector.broadcast %cst_172 : f32 to vector<8x1024xf32>
    %788 = arith.maximumf %786, %787 : vector<8x1024xf32>
    %c8_173 = arith.constant 8 : index
    %c0_174 = arith.constant 0 : index
    %c0_175 = arith.constant 0 : index
    %789 = vector.load %arg5[%c8_173, %c0_174, %c0_175] : memref<32x8x1024xf32, #tpu.memory_space<vmem>>, vector<1x8x1024xf32>
    %790 = vector.shape_cast %789 : vector<1x8x1024xf32> to vector<8x1024xf32>
    %791 = arith.mulf %788, %790 : vector<8x1024xf32>
    %cst_176 = arith.constant dense<0.000000e+00> : vector<8xf32>
    %792 = vector.multi_reduction <add>, %791, %cst_176 [1] : vector<8x1024xf32> to vector<8xf32>
    %793 = vector.shape_cast %792 : vector<8xf32> to vector<8x1xf32>
    %794 = arith.addf %765, %793 : vector<8x1xf32>
    %c9_177 = arith.constant 9 : index
    %c0_178 = arith.constant 0 : index
    %c0_179 = arith.constant 0 : index
    %795 = vector.load %arg5[%c9_177, %c0_178, %c0_179] : memref<32x8x1024xf32, #tpu.memory_space<vmem>>, vector<1x8x1024xf32>
    %796 = vector.shape_cast %795 : vector<1x8x1024xf32> to vector<8x1024xf32>
    %797 = arith.mulf %788, %796 : vector<8x1024xf32>
    %cst_180 = arith.constant dense<0.000000e+00> : vector<8xf32>
    %798 = vector.multi_reduction <add>, %797, %cst_180 [1] : vector<8x1024xf32> to vector<8xf32>
    %799 = vector.shape_cast %798 : vector<8xf32> to vector<8x1xf32>
    %800 = arith.addf %771, %799 : vector<8x1xf32>
    %c10_181 = arith.constant 10 : index
    %c0_182 = arith.constant 0 : index
    %c0_183 = arith.constant 0 : index
    %801 = vector.load %arg5[%c10_181, %c0_182, %c0_183] : memref<32x8x1024xf32, #tpu.memory_space<vmem>>, vector<1x8x1024xf32>
    %802 = vector.shape_cast %801 : vector<1x8x1024xf32> to vector<8x1024xf32>
    %803 = arith.mulf %788, %802 : vector<8x1024xf32>
    %cst_184 = arith.constant dense<0.000000e+00> : vector<8xf32>
    %804 = vector.multi_reduction <add>, %803, %cst_184 [1] : vector<8x1024xf32> to vector<8xf32>
    %805 = vector.shape_cast %804 : vector<8xf32> to vector<8x1xf32>
    %806 = arith.addf %777, %805 : vector<8x1xf32>
    %c11_185 = arith.constant 11 : index
    %c0_186 = arith.constant 0 : index
    %c0_187 = arith.constant 0 : index
    %807 = vector.load %arg5[%c11_185, %c0_186, %c0_187] : memref<32x8x1024xf32, #tpu.memory_space<vmem>>, vector<1x8x1024xf32>
    %808 = vector.shape_cast %807 : vector<1x8x1024xf32> to vector<8x1024xf32>
    %809 = arith.mulf %788, %808 : vector<8x1024xf32>
    %cst_188 = arith.constant dense<0.000000e+00> : vector<8xf32>
    %810 = vector.multi_reduction <add>, %809, %cst_188 [1] : vector<8x1024xf32> to vector<8xf32>
    %811 = vector.shape_cast %810 : vector<8xf32> to vector<8x1xf32>
    %812 = arith.addf %783, %811 : vector<8x1xf32>
    %c3_189 = arith.constant 3 : index
    %813 = memref.load %arg4[%c3_189] : memref<8xf32, #tpu.memory_space<smem>>
    %814 = vector.broadcast %813 : f32 to vector<8x1024xf32>
    %815 = arith.addf %725, %814 : vector<8x1024xf32>
    %cst_190 = arith.constant 0.000000e+00 : f32
    %816 = vector.broadcast %cst_190 : f32 to vector<8x1024xf32>
    %817 = arith.maximumf %815, %816 : vector<8x1024xf32>
    %c12_191 = arith.constant 12 : index
    %c0_192 = arith.constant 0 : index
    %c0_193 = arith.constant 0 : index
    %818 = vector.load %arg5[%c12_191, %c0_192, %c0_193] : memref<32x8x1024xf32, #tpu.memory_space<vmem>>, vector<1x8x1024xf32>
    %819 = vector.shape_cast %818 : vector<1x8x1024xf32> to vector<8x1024xf32>
    %820 = arith.mulf %817, %819 : vector<8x1024xf32>
    %cst_194 = arith.constant dense<0.000000e+00> : vector<8xf32>
    %821 = vector.multi_reduction <add>, %820, %cst_194 [1] : vector<8x1024xf32> to vector<8xf32>
    %822 = vector.shape_cast %821 : vector<8xf32> to vector<8x1xf32>
    %823 = arith.addf %794, %822 : vector<8x1xf32>
    %c13_195 = arith.constant 13 : index
    %c0_196 = arith.constant 0 : index
    %c0_197 = arith.constant 0 : index
    %824 = vector.load %arg5[%c13_195, %c0_196, %c0_197] : memref<32x8x1024xf32, #tpu.memory_space<vmem>>, vector<1x8x1024xf32>
    %825 = vector.shape_cast %824 : vector<1x8x1024xf32> to vector<8x1024xf32>
    %826 = arith.mulf %817, %825 : vector<8x1024xf32>
    %cst_198 = arith.constant dense<0.000000e+00> : vector<8xf32>
    %827 = vector.multi_reduction <add>, %826, %cst_198 [1] : vector<8x1024xf32> to vector<8xf32>
    %828 = vector.shape_cast %827 : vector<8xf32> to vector<8x1xf32>
    %829 = arith.addf %800, %828 : vector<8x1xf32>
    %c14_199 = arith.constant 14 : index
    %c0_200 = arith.constant 0 : index
    %c0_201 = arith.constant 0 : index
    %830 = vector.load %arg5[%c14_199, %c0_200, %c0_201] : memref<32x8x1024xf32, #tpu.memory_space<vmem>>, vector<1x8x1024xf32>
    %831 = vector.shape_cast %830 : vector<1x8x1024xf32> to vector<8x1024xf32>
    %832 = arith.mulf %817, %831 : vector<8x1024xf32>
    %cst_202 = arith.constant dense<0.000000e+00> : vector<8xf32>
    %833 = vector.multi_reduction <add>, %832, %cst_202 [1] : vector<8x1024xf32> to vector<8xf32>
    %834 = vector.shape_cast %833 : vector<8xf32> to vector<8x1xf32>
    %835 = arith.addf %806, %834 : vector<8x1xf32>
    %c15_203 = arith.constant 15 : index
    %c0_204 = arith.constant 0 : index
    %c0_205 = arith.constant 0 : index
    %836 = vector.load %arg5[%c15_203, %c0_204, %c0_205] : memref<32x8x1024xf32, #tpu.memory_space<vmem>>, vector<1x8x1024xf32>
    %837 = vector.shape_cast %836 : vector<1x8x1024xf32> to vector<8x1024xf32>
    %838 = arith.mulf %817, %837 : vector<8x1024xf32>
    %cst_206 = arith.constant dense<0.000000e+00> : vector<8xf32>
    %839 = vector.multi_reduction <add>, %838, %cst_206 [1] : vector<8x1024xf32> to vector<8xf32>
    %840 = vector.shape_cast %839 : vector<8xf32> to vector<8x1xf32>
    %841 = arith.addf %812, %840 : vector<8x1xf32>
    %cst_207 = arith.constant 0.000000e+00 : f32
    %842 = vector.broadcast %cst_207 : f32 to vector<8x1024xf32>
    %cst_208 = arith.constant 0.000000e+00 : f32
    %843 = vector.broadcast %cst_208 : f32 to vector<8x1024xf32>
    %cst_209 = arith.constant 0.000000e+00 : f32
    %844 = vector.broadcast %cst_209 : f32 to vector<8x1024xf32>
    %cst_210 = arith.constant 0.000000e+00 : f32
    %845 = vector.broadcast %cst_210 : f32 to vector<8x1024xf32>
    %c0_211 = arith.constant 0 : index
    %846 = arith.index_cast %1 : i32 to index
    %c0_212 = arith.constant 0 : index
    %847 = vector.load %arg1[%c0_211, %846, %c0_212] : memref<4x8x1024xf32, #tpu.memory_space<vmem>>, vector<1x8x1024xf32>
    %848 = vector.shape_cast %847 : vector<1x8x1024xf32> to vector<8x1024xf32>
    %c33_i32_213 = arith.constant 33 : i32
    %849 = tpu.dynamic_rotate %848 by %c33_i32_213 dim 1 : vector<8x1024xf32>, i32 -> vector<8x1024xf32>
    %c0_214 = arith.constant 0 : index
    %c0_215 = arith.constant 0 : index
    %c0_216 = arith.constant 0 : index
    %850 = vector.load %arg2[%c0_214, %c0_215, %c0_216] : memref<9x8x1024xf32, #tpu.memory_space<vmem>>, vector<1x8x1024xf32>
    %851 = vector.shape_cast %850 : vector<1x8x1024xf32> to vector<8x1024xf32>
    %852 = arith.mulf %849, %851 : vector<8x1024xf32>
    %c144 = arith.constant 144 : index
    %853 = memref.load %arg3[%c144] : memref<288xf32, #tpu.memory_space<smem>>
    %854 = vector.broadcast %853 : f32 to vector<8x1024xf32>
    %855 = arith.mulf %854, %852 : vector<8x1024xf32>
    %856 = arith.addf %842, %855 : vector<8x1024xf32>
    %c180 = arith.constant 180 : index
    %857 = memref.load %arg3[%c180] : memref<288xf32, #tpu.memory_space<smem>>
    %858 = vector.broadcast %857 : f32 to vector<8x1024xf32>
    %859 = arith.mulf %858, %852 : vector<8x1024xf32>
    %860 = arith.addf %843, %859 : vector<8x1024xf32>
    %c216 = arith.constant 216 : index
    %861 = memref.load %arg3[%c216] : memref<288xf32, #tpu.memory_space<smem>>
    %862 = vector.broadcast %861 : f32 to vector<8x1024xf32>
    %863 = arith.mulf %862, %852 : vector<8x1024xf32>
    %864 = arith.addf %844, %863 : vector<8x1024xf32>
    %c252 = arith.constant 252 : index
    %865 = memref.load %arg3[%c252] : memref<288xf32, #tpu.memory_space<smem>>
    %866 = vector.broadcast %865 : f32 to vector<8x1024xf32>
    %867 = arith.mulf %866, %852 : vector<8x1024xf32>
    %868 = arith.addf %845, %867 : vector<8x1024xf32>
    %c32_i32_217 = arith.constant 32 : i32
    %869 = tpu.dynamic_rotate %848 by %c32_i32_217 dim 1 : vector<8x1024xf32>, i32 -> vector<8x1024xf32>
    %c1_218 = arith.constant 1 : index
    %c0_219 = arith.constant 0 : index
    %c0_220 = arith.constant 0 : index
    %870 = vector.load %arg2[%c1_218, %c0_219, %c0_220] : memref<9x8x1024xf32, #tpu.memory_space<vmem>>, vector<1x8x1024xf32>
    %871 = vector.shape_cast %870 : vector<1x8x1024xf32> to vector<8x1024xf32>
    %872 = arith.mulf %869, %871 : vector<8x1024xf32>
    %c145 = arith.constant 145 : index
    %873 = memref.load %arg3[%c145] : memref<288xf32, #tpu.memory_space<smem>>
    %874 = vector.broadcast %873 : f32 to vector<8x1024xf32>
    %875 = arith.mulf %874, %872 : vector<8x1024xf32>
    %876 = arith.addf %856, %875 : vector<8x1024xf32>
    %c181 = arith.constant 181 : index
    %877 = memref.load %arg3[%c181] : memref<288xf32, #tpu.memory_space<smem>>
    %878 = vector.broadcast %877 : f32 to vector<8x1024xf32>
    %879 = arith.mulf %878, %872 : vector<8x1024xf32>
    %880 = arith.addf %860, %879 : vector<8x1024xf32>
    %c217 = arith.constant 217 : index
    %881 = memref.load %arg3[%c217] : memref<288xf32, #tpu.memory_space<smem>>
    %882 = vector.broadcast %881 : f32 to vector<8x1024xf32>
    %883 = arith.mulf %882, %872 : vector<8x1024xf32>
    %884 = arith.addf %864, %883 : vector<8x1024xf32>
    %c253 = arith.constant 253 : index
    %885 = memref.load %arg3[%c253] : memref<288xf32, #tpu.memory_space<smem>>
    %886 = vector.broadcast %885 : f32 to vector<8x1024xf32>
    %887 = arith.mulf %886, %872 : vector<8x1024xf32>
    %888 = arith.addf %868, %887 : vector<8x1024xf32>
    %c31_i32_221 = arith.constant 31 : i32
    %889 = tpu.dynamic_rotate %848 by %c31_i32_221 dim 1 : vector<8x1024xf32>, i32 -> vector<8x1024xf32>
    %c2_222 = arith.constant 2 : index
    %c0_223 = arith.constant 0 : index
    %c0_224 = arith.constant 0 : index
    %890 = vector.load %arg2[%c2_222, %c0_223, %c0_224] : memref<9x8x1024xf32, #tpu.memory_space<vmem>>, vector<1x8x1024xf32>
    %891 = vector.shape_cast %890 : vector<1x8x1024xf32> to vector<8x1024xf32>
    %892 = arith.mulf %889, %891 : vector<8x1024xf32>
    %c146 = arith.constant 146 : index
    %893 = memref.load %arg3[%c146] : memref<288xf32, #tpu.memory_space<smem>>
    %894 = vector.broadcast %893 : f32 to vector<8x1024xf32>
    %895 = arith.mulf %894, %892 : vector<8x1024xf32>
    %896 = arith.addf %876, %895 : vector<8x1024xf32>
    %c182 = arith.constant 182 : index
    %897 = memref.load %arg3[%c182] : memref<288xf32, #tpu.memory_space<smem>>
    %898 = vector.broadcast %897 : f32 to vector<8x1024xf32>
    %899 = arith.mulf %898, %892 : vector<8x1024xf32>
    %900 = arith.addf %880, %899 : vector<8x1024xf32>
    %c218 = arith.constant 218 : index
    %901 = memref.load %arg3[%c218] : memref<288xf32, #tpu.memory_space<smem>>
    %902 = vector.broadcast %901 : f32 to vector<8x1024xf32>
    %903 = arith.mulf %902, %892 : vector<8x1024xf32>
    %904 = arith.addf %884, %903 : vector<8x1024xf32>
    %c254 = arith.constant 254 : index
    %905 = memref.load %arg3[%c254] : memref<288xf32, #tpu.memory_space<smem>>
    %906 = vector.broadcast %905 : f32 to vector<8x1024xf32>
    %907 = arith.mulf %906, %892 : vector<8x1024xf32>
    %908 = arith.addf %888, %907 : vector<8x1024xf32>
    %c1_i32_225 = arith.constant 1 : i32
    %909 = tpu.dynamic_rotate %848 by %c1_i32_225 dim 1 : vector<8x1024xf32>, i32 -> vector<8x1024xf32>
    %c3_226 = arith.constant 3 : index
    %c0_227 = arith.constant 0 : index
    %c0_228 = arith.constant 0 : index
    %910 = vector.load %arg2[%c3_226, %c0_227, %c0_228] : memref<9x8x1024xf32, #tpu.memory_space<vmem>>, vector<1x8x1024xf32>
    %911 = vector.shape_cast %910 : vector<1x8x1024xf32> to vector<8x1024xf32>
    %912 = arith.mulf %909, %911 : vector<8x1024xf32>
    %c147 = arith.constant 147 : index
    %913 = memref.load %arg3[%c147] : memref<288xf32, #tpu.memory_space<smem>>
    %914 = vector.broadcast %913 : f32 to vector<8x1024xf32>
    %915 = arith.mulf %914, %912 : vector<8x1024xf32>
    %916 = arith.addf %896, %915 : vector<8x1024xf32>
    %c183 = arith.constant 183 : index
    %917 = memref.load %arg3[%c183] : memref<288xf32, #tpu.memory_space<smem>>
    %918 = vector.broadcast %917 : f32 to vector<8x1024xf32>
    %919 = arith.mulf %918, %912 : vector<8x1024xf32>
    %920 = arith.addf %900, %919 : vector<8x1024xf32>
    %c219 = arith.constant 219 : index
    %921 = memref.load %arg3[%c219] : memref<288xf32, #tpu.memory_space<smem>>
    %922 = vector.broadcast %921 : f32 to vector<8x1024xf32>
    %923 = arith.mulf %922, %912 : vector<8x1024xf32>
    %924 = arith.addf %904, %923 : vector<8x1024xf32>
    %c255 = arith.constant 255 : index
    %925 = memref.load %arg3[%c255] : memref<288xf32, #tpu.memory_space<smem>>
    %926 = vector.broadcast %925 : f32 to vector<8x1024xf32>
    %927 = arith.mulf %926, %912 : vector<8x1024xf32>
    %928 = arith.addf %908, %927 : vector<8x1024xf32>
    %c148 = arith.constant 148 : index
    %929 = memref.load %arg3[%c148] : memref<288xf32, #tpu.memory_space<smem>>
    %930 = vector.broadcast %929 : f32 to vector<8x1024xf32>
    %931 = arith.mulf %930, %848 : vector<8x1024xf32>
    %932 = arith.addf %916, %931 : vector<8x1024xf32>
    %c184 = arith.constant 184 : index
    %933 = memref.load %arg3[%c184] : memref<288xf32, #tpu.memory_space<smem>>
    %934 = vector.broadcast %933 : f32 to vector<8x1024xf32>
    %935 = arith.mulf %934, %848 : vector<8x1024xf32>
    %936 = arith.addf %920, %935 : vector<8x1024xf32>
    %c220 = arith.constant 220 : index
    %937 = memref.load %arg3[%c220] : memref<288xf32, #tpu.memory_space<smem>>
    %938 = vector.broadcast %937 : f32 to vector<8x1024xf32>
    %939 = arith.mulf %938, %848 : vector<8x1024xf32>
    %940 = arith.addf %924, %939 : vector<8x1024xf32>
    %c256 = arith.constant 256 : index
    %941 = memref.load %arg3[%c256] : memref<288xf32, #tpu.memory_space<smem>>
    %942 = vector.broadcast %941 : f32 to vector<8x1024xf32>
    %943 = arith.mulf %942, %848 : vector<8x1024xf32>
    %944 = arith.addf %928, %943 : vector<8x1024xf32>
    %c1023_i32_229 = arith.constant 1023 : i32
    %945 = tpu.dynamic_rotate %848 by %c1023_i32_229 dim 1 : vector<8x1024xf32>, i32 -> vector<8x1024xf32>
    %c5_230 = arith.constant 5 : index
    %c0_231 = arith.constant 0 : index
    %c0_232 = arith.constant 0 : index
    %946 = vector.load %arg2[%c5_230, %c0_231, %c0_232] : memref<9x8x1024xf32, #tpu.memory_space<vmem>>, vector<1x8x1024xf32>
    %947 = vector.shape_cast %946 : vector<1x8x1024xf32> to vector<8x1024xf32>
    %948 = arith.mulf %945, %947 : vector<8x1024xf32>
    %c149 = arith.constant 149 : index
    %949 = memref.load %arg3[%c149] : memref<288xf32, #tpu.memory_space<smem>>
    %950 = vector.broadcast %949 : f32 to vector<8x1024xf32>
    %951 = arith.mulf %950, %948 : vector<8x1024xf32>
    %952 = arith.addf %932, %951 : vector<8x1024xf32>
    %c185 = arith.constant 185 : index
    %953 = memref.load %arg3[%c185] : memref<288xf32, #tpu.memory_space<smem>>
    %954 = vector.broadcast %953 : f32 to vector<8x1024xf32>
    %955 = arith.mulf %954, %948 : vector<8x1024xf32>
    %956 = arith.addf %936, %955 : vector<8x1024xf32>
    %c221 = arith.constant 221 : index
    %957 = memref.load %arg3[%c221] : memref<288xf32, #tpu.memory_space<smem>>
    %958 = vector.broadcast %957 : f32 to vector<8x1024xf32>
    %959 = arith.mulf %958, %948 : vector<8x1024xf32>
    %960 = arith.addf %940, %959 : vector<8x1024xf32>
    %c257 = arith.constant 257 : index
    %961 = memref.load %arg3[%c257] : memref<288xf32, #tpu.memory_space<smem>>
    %962 = vector.broadcast %961 : f32 to vector<8x1024xf32>
    %963 = arith.mulf %962, %948 : vector<8x1024xf32>
    %964 = arith.addf %944, %963 : vector<8x1024xf32>
    %c993_i32_233 = arith.constant 993 : i32
    %965 = tpu.dynamic_rotate %848 by %c993_i32_233 dim 1 : vector<8x1024xf32>, i32 -> vector<8x1024xf32>
    %c6_234 = arith.constant 6 : index
    %c0_235 = arith.constant 0 : index
    %c0_236 = arith.constant 0 : index
    %966 = vector.load %arg2[%c6_234, %c0_235, %c0_236] : memref<9x8x1024xf32, #tpu.memory_space<vmem>>, vector<1x8x1024xf32>
    %967 = vector.shape_cast %966 : vector<1x8x1024xf32> to vector<8x1024xf32>
    %968 = arith.mulf %965, %967 : vector<8x1024xf32>
    %c150 = arith.constant 150 : index
    %969 = memref.load %arg3[%c150] : memref<288xf32, #tpu.memory_space<smem>>
    %970 = vector.broadcast %969 : f32 to vector<8x1024xf32>
    %971 = arith.mulf %970, %968 : vector<8x1024xf32>
    %972 = arith.addf %952, %971 : vector<8x1024xf32>
    %c186 = arith.constant 186 : index
    %973 = memref.load %arg3[%c186] : memref<288xf32, #tpu.memory_space<smem>>
    %974 = vector.broadcast %973 : f32 to vector<8x1024xf32>
    %975 = arith.mulf %974, %968 : vector<8x1024xf32>
    %976 = arith.addf %956, %975 : vector<8x1024xf32>
    %c222 = arith.constant 222 : index
    %977 = memref.load %arg3[%c222] : memref<288xf32, #tpu.memory_space<smem>>
    %978 = vector.broadcast %977 : f32 to vector<8x1024xf32>
    %979 = arith.mulf %978, %968 : vector<8x1024xf32>
    %980 = arith.addf %960, %979 : vector<8x1024xf32>
    %c258 = arith.constant 258 : index
    %981 = memref.load %arg3[%c258] : memref<288xf32, #tpu.memory_space<smem>>
    %982 = vector.broadcast %981 : f32 to vector<8x1024xf32>
    %983 = arith.mulf %982, %968 : vector<8x1024xf32>
    %984 = arith.addf %964, %983 : vector<8x1024xf32>
    %c992_i32_237 = arith.constant 992 : i32
    %985 = tpu.dynamic_rotate %848 by %c992_i32_237 dim 1 : vector<8x1024xf32>, i32 -> vector<8x1024xf32>
    %c7_238 = arith.constant 7 : index
    %c0_239 = arith.constant 0 : index
    %c0_240 = arith.constant 0 : index
    %986 = vector.load %arg2[%c7_238, %c0_239, %c0_240] : memref<9x8x1024xf32, #tpu.memory_space<vmem>>, vector<1x8x1024xf32>
    %987 = vector.shape_cast %986 : vector<1x8x1024xf32> to vector<8x1024xf32>
    %988 = arith.mulf %985, %987 : vector<8x1024xf32>
    %c151 = arith.constant 151 : index
    %989 = memref.load %arg3[%c151] : memref<288xf32, #tpu.memory_space<smem>>
    %990 = vector.broadcast %989 : f32 to vector<8x1024xf32>
    %991 = arith.mulf %990, %988 : vector<8x1024xf32>
    %992 = arith.addf %972, %991 : vector<8x1024xf32>
    %c187 = arith.constant 187 : index
    %993 = memref.load %arg3[%c187] : memref<288xf32, #tpu.memory_space<smem>>
    %994 = vector.broadcast %993 : f32 to vector<8x1024xf32>
    %995 = arith.mulf %994, %988 : vector<8x1024xf32>
    %996 = arith.addf %976, %995 : vector<8x1024xf32>
    %c223 = arith.constant 223 : index
    %997 = memref.load %arg3[%c223] : memref<288xf32, #tpu.memory_space<smem>>
    %998 = vector.broadcast %997 : f32 to vector<8x1024xf32>
    %999 = arith.mulf %998, %988 : vector<8x1024xf32>
    %1000 = arith.addf %980, %999 : vector<8x1024xf32>
    %c259 = arith.constant 259 : index
    %1001 = memref.load %arg3[%c259] : memref<288xf32, #tpu.memory_space<smem>>
    %1002 = vector.broadcast %1001 : f32 to vector<8x1024xf32>
    %1003 = arith.mulf %1002, %988 : vector<8x1024xf32>
    %1004 = arith.addf %984, %1003 : vector<8x1024xf32>
    %c991_i32_241 = arith.constant 991 : i32
    %1005 = tpu.dynamic_rotate %848 by %c991_i32_241 dim 1 : vector<8x1024xf32>, i32 -> vector<8x1024xf32>
    %c8_242 = arith.constant 8 : index
    %c0_243 = arith.constant 0 : index
    %c0_244 = arith.constant 0 : index
    %1006 = vector.load %arg2[%c8_242, %c0_243, %c0_244] : memref<9x8x1024xf32, #tpu.memory_space<vmem>>, vector<1x8x1024xf32>
    %1007 = vector.shape_cast %1006 : vector<1x8x1024xf32> to vector<8x1024xf32>
    %1008 = arith.mulf %1005, %1007 : vector<8x1024xf32>
    %c152 = arith.constant 152 : index
    %1009 = memref.load %arg3[%c152] : memref<288xf32, #tpu.memory_space<smem>>
    %1010 = vector.broadcast %1009 : f32 to vector<8x1024xf32>
    %1011 = arith.mulf %1010, %1008 : vector<8x1024xf32>
    %1012 = arith.addf %992, %1011 : vector<8x1024xf32>
    %c188 = arith.constant 188 : index
    %1013 = memref.load %arg3[%c188] : memref<288xf32, #tpu.memory_space<smem>>
    %1014 = vector.broadcast %1013 : f32 to vector<8x1024xf32>
    %1015 = arith.mulf %1014, %1008 : vector<8x1024xf32>
    %1016 = arith.addf %996, %1015 : vector<8x1024xf32>
    %c224 = arith.constant 224 : index
    %1017 = memref.load %arg3[%c224] : memref<288xf32, #tpu.memory_space<smem>>
    %1018 = vector.broadcast %1017 : f32 to vector<8x1024xf32>
    %1019 = arith.mulf %1018, %1008 : vector<8x1024xf32>
    %1020 = arith.addf %1000, %1019 : vector<8x1024xf32>
    %c260 = arith.constant 260 : index
    %1021 = memref.load %arg3[%c260] : memref<288xf32, #tpu.memory_space<smem>>
    %1022 = vector.broadcast %1021 : f32 to vector<8x1024xf32>
    %1023 = arith.mulf %1022, %1008 : vector<8x1024xf32>
    %1024 = arith.addf %1004, %1023 : vector<8x1024xf32>
    %c1_245 = arith.constant 1 : index
    %1025 = arith.index_cast %1 : i32 to index
    %c0_246 = arith.constant 0 : index
    %1026 = vector.load %arg1[%c1_245, %1025, %c0_246] : memref<4x8x1024xf32, #tpu.memory_space<vmem>>, vector<1x8x1024xf32>
    %1027 = vector.shape_cast %1026 : vector<1x8x1024xf32> to vector<8x1024xf32>
    %c33_i32_247 = arith.constant 33 : i32
    %1028 = tpu.dynamic_rotate %1027 by %c33_i32_247 dim 1 : vector<8x1024xf32>, i32 -> vector<8x1024xf32>
    %c0_248 = arith.constant 0 : index
    %c0_249 = arith.constant 0 : index
    %c0_250 = arith.constant 0 : index
    %1029 = vector.load %arg2[%c0_248, %c0_249, %c0_250] : memref<9x8x1024xf32, #tpu.memory_space<vmem>>, vector<1x8x1024xf32>
    %1030 = vector.shape_cast %1029 : vector<1x8x1024xf32> to vector<8x1024xf32>
    %1031 = arith.mulf %1028, %1030 : vector<8x1024xf32>
    %c153 = arith.constant 153 : index
    %1032 = memref.load %arg3[%c153] : memref<288xf32, #tpu.memory_space<smem>>
    %1033 = vector.broadcast %1032 : f32 to vector<8x1024xf32>
    %1034 = arith.mulf %1033, %1031 : vector<8x1024xf32>
    %1035 = arith.addf %1012, %1034 : vector<8x1024xf32>
    %c189 = arith.constant 189 : index
    %1036 = memref.load %arg3[%c189] : memref<288xf32, #tpu.memory_space<smem>>
    %1037 = vector.broadcast %1036 : f32 to vector<8x1024xf32>
    %1038 = arith.mulf %1037, %1031 : vector<8x1024xf32>
    %1039 = arith.addf %1016, %1038 : vector<8x1024xf32>
    %c225 = arith.constant 225 : index
    %1040 = memref.load %arg3[%c225] : memref<288xf32, #tpu.memory_space<smem>>
    %1041 = vector.broadcast %1040 : f32 to vector<8x1024xf32>
    %1042 = arith.mulf %1041, %1031 : vector<8x1024xf32>
    %1043 = arith.addf %1020, %1042 : vector<8x1024xf32>
    %c261 = arith.constant 261 : index
    %1044 = memref.load %arg3[%c261] : memref<288xf32, #tpu.memory_space<smem>>
    %1045 = vector.broadcast %1044 : f32 to vector<8x1024xf32>
    %1046 = arith.mulf %1045, %1031 : vector<8x1024xf32>
    %1047 = arith.addf %1024, %1046 : vector<8x1024xf32>
    %c32_i32_251 = arith.constant 32 : i32
    %1048 = tpu.dynamic_rotate %1027 by %c32_i32_251 dim 1 : vector<8x1024xf32>, i32 -> vector<8x1024xf32>
    %c1_252 = arith.constant 1 : index
    %c0_253 = arith.constant 0 : index
    %c0_254 = arith.constant 0 : index
    %1049 = vector.load %arg2[%c1_252, %c0_253, %c0_254] : memref<9x8x1024xf32, #tpu.memory_space<vmem>>, vector<1x8x1024xf32>
    %1050 = vector.shape_cast %1049 : vector<1x8x1024xf32> to vector<8x1024xf32>
    %1051 = arith.mulf %1048, %1050 : vector<8x1024xf32>
    %c154 = arith.constant 154 : index
    %1052 = memref.load %arg3[%c154] : memref<288xf32, #tpu.memory_space<smem>>
    %1053 = vector.broadcast %1052 : f32 to vector<8x1024xf32>
    %1054 = arith.mulf %1053, %1051 : vector<8x1024xf32>
    %1055 = arith.addf %1035, %1054 : vector<8x1024xf32>
    %c190 = arith.constant 190 : index
    %1056 = memref.load %arg3[%c190] : memref<288xf32, #tpu.memory_space<smem>>
    %1057 = vector.broadcast %1056 : f32 to vector<8x1024xf32>
    %1058 = arith.mulf %1057, %1051 : vector<8x1024xf32>
    %1059 = arith.addf %1039, %1058 : vector<8x1024xf32>
    %c226 = arith.constant 226 : index
    %1060 = memref.load %arg3[%c226] : memref<288xf32, #tpu.memory_space<smem>>
    %1061 = vector.broadcast %1060 : f32 to vector<8x1024xf32>
    %1062 = arith.mulf %1061, %1051 : vector<8x1024xf32>
    %1063 = arith.addf %1043, %1062 : vector<8x1024xf32>
    %c262 = arith.constant 262 : index
    %1064 = memref.load %arg3[%c262] : memref<288xf32, #tpu.memory_space<smem>>
    %1065 = vector.broadcast %1064 : f32 to vector<8x1024xf32>
    %1066 = arith.mulf %1065, %1051 : vector<8x1024xf32>
    %1067 = arith.addf %1047, %1066 : vector<8x1024xf32>
    %c31_i32_255 = arith.constant 31 : i32
    %1068 = tpu.dynamic_rotate %1027 by %c31_i32_255 dim 1 : vector<8x1024xf32>, i32 -> vector<8x1024xf32>
    %c2_256 = arith.constant 2 : index
    %c0_257 = arith.constant 0 : index
    %c0_258 = arith.constant 0 : index
    %1069 = vector.load %arg2[%c2_256, %c0_257, %c0_258] : memref<9x8x1024xf32, #tpu.memory_space<vmem>>, vector<1x8x1024xf32>
    %1070 = vector.shape_cast %1069 : vector<1x8x1024xf32> to vector<8x1024xf32>
    %1071 = arith.mulf %1068, %1070 : vector<8x1024xf32>
    %c155 = arith.constant 155 : index
    %1072 = memref.load %arg3[%c155] : memref<288xf32, #tpu.memory_space<smem>>
    %1073 = vector.broadcast %1072 : f32 to vector<8x1024xf32>
    %1074 = arith.mulf %1073, %1071 : vector<8x1024xf32>
    %1075 = arith.addf %1055, %1074 : vector<8x1024xf32>
    %c191 = arith.constant 191 : index
    %1076 = memref.load %arg3[%c191] : memref<288xf32, #tpu.memory_space<smem>>
    %1077 = vector.broadcast %1076 : f32 to vector<8x1024xf32>
    %1078 = arith.mulf %1077, %1071 : vector<8x1024xf32>
    %1079 = arith.addf %1059, %1078 : vector<8x1024xf32>
    %c227 = arith.constant 227 : index
    %1080 = memref.load %arg3[%c227] : memref<288xf32, #tpu.memory_space<smem>>
    %1081 = vector.broadcast %1080 : f32 to vector<8x1024xf32>
    %1082 = arith.mulf %1081, %1071 : vector<8x1024xf32>
    %1083 = arith.addf %1063, %1082 : vector<8x1024xf32>
    %c263 = arith.constant 263 : index
    %1084 = memref.load %arg3[%c263] : memref<288xf32, #tpu.memory_space<smem>>
    %1085 = vector.broadcast %1084 : f32 to vector<8x1024xf32>
    %1086 = arith.mulf %1085, %1071 : vector<8x1024xf32>
    %1087 = arith.addf %1067, %1086 : vector<8x1024xf32>
    %c1_i32_259 = arith.constant 1 : i32
    %1088 = tpu.dynamic_rotate %1027 by %c1_i32_259 dim 1 : vector<8x1024xf32>, i32 -> vector<8x1024xf32>
    %c3_260 = arith.constant 3 : index
    %c0_261 = arith.constant 0 : index
    %c0_262 = arith.constant 0 : index
    %1089 = vector.load %arg2[%c3_260, %c0_261, %c0_262] : memref<9x8x1024xf32, #tpu.memory_space<vmem>>, vector<1x8x1024xf32>
    %1090 = vector.shape_cast %1089 : vector<1x8x1024xf32> to vector<8x1024xf32>
    %1091 = arith.mulf %1088, %1090 : vector<8x1024xf32>
    %c156 = arith.constant 156 : index
    %1092 = memref.load %arg3[%c156] : memref<288xf32, #tpu.memory_space<smem>>
    %1093 = vector.broadcast %1092 : f32 to vector<8x1024xf32>
    %1094 = arith.mulf %1093, %1091 : vector<8x1024xf32>
    %1095 = arith.addf %1075, %1094 : vector<8x1024xf32>
    %c192 = arith.constant 192 : index
    %1096 = memref.load %arg3[%c192] : memref<288xf32, #tpu.memory_space<smem>>
    %1097 = vector.broadcast %1096 : f32 to vector<8x1024xf32>
    %1098 = arith.mulf %1097, %1091 : vector<8x1024xf32>
    %1099 = arith.addf %1079, %1098 : vector<8x1024xf32>
    %c228 = arith.constant 228 : index
    %1100 = memref.load %arg3[%c228] : memref<288xf32, #tpu.memory_space<smem>>
    %1101 = vector.broadcast %1100 : f32 to vector<8x1024xf32>
    %1102 = arith.mulf %1101, %1091 : vector<8x1024xf32>
    %1103 = arith.addf %1083, %1102 : vector<8x1024xf32>
    %c264 = arith.constant 264 : index
    %1104 = memref.load %arg3[%c264] : memref<288xf32, #tpu.memory_space<smem>>
    %1105 = vector.broadcast %1104 : f32 to vector<8x1024xf32>
    %1106 = arith.mulf %1105, %1091 : vector<8x1024xf32>
    %1107 = arith.addf %1087, %1106 : vector<8x1024xf32>
    %c157 = arith.constant 157 : index
    %1108 = memref.load %arg3[%c157] : memref<288xf32, #tpu.memory_space<smem>>
    %1109 = vector.broadcast %1108 : f32 to vector<8x1024xf32>
    %1110 = arith.mulf %1109, %1027 : vector<8x1024xf32>
    %1111 = arith.addf %1095, %1110 : vector<8x1024xf32>
    %c193 = arith.constant 193 : index
    %1112 = memref.load %arg3[%c193] : memref<288xf32, #tpu.memory_space<smem>>
    %1113 = vector.broadcast %1112 : f32 to vector<8x1024xf32>
    %1114 = arith.mulf %1113, %1027 : vector<8x1024xf32>
    %1115 = arith.addf %1099, %1114 : vector<8x1024xf32>
    %c229 = arith.constant 229 : index
    %1116 = memref.load %arg3[%c229] : memref<288xf32, #tpu.memory_space<smem>>
    %1117 = vector.broadcast %1116 : f32 to vector<8x1024xf32>
    %1118 = arith.mulf %1117, %1027 : vector<8x1024xf32>
    %1119 = arith.addf %1103, %1118 : vector<8x1024xf32>
    %c265 = arith.constant 265 : index
    %1120 = memref.load %arg3[%c265] : memref<288xf32, #tpu.memory_space<smem>>
    %1121 = vector.broadcast %1120 : f32 to vector<8x1024xf32>
    %1122 = arith.mulf %1121, %1027 : vector<8x1024xf32>
    %1123 = arith.addf %1107, %1122 : vector<8x1024xf32>
    %c1023_i32_263 = arith.constant 1023 : i32
    %1124 = tpu.dynamic_rotate %1027 by %c1023_i32_263 dim 1 : vector<8x1024xf32>, i32 -> vector<8x1024xf32>
    %c5_264 = arith.constant 5 : index
    %c0_265 = arith.constant 0 : index
    %c0_266 = arith.constant 0 : index
    %1125 = vector.load %arg2[%c5_264, %c0_265, %c0_266] : memref<9x8x1024xf32, #tpu.memory_space<vmem>>, vector<1x8x1024xf32>
    %1126 = vector.shape_cast %1125 : vector<1x8x1024xf32> to vector<8x1024xf32>
    %1127 = arith.mulf %1124, %1126 : vector<8x1024xf32>
    %c158 = arith.constant 158 : index
    %1128 = memref.load %arg3[%c158] : memref<288xf32, #tpu.memory_space<smem>>
    %1129 = vector.broadcast %1128 : f32 to vector<8x1024xf32>
    %1130 = arith.mulf %1129, %1127 : vector<8x1024xf32>
    %1131 = arith.addf %1111, %1130 : vector<8x1024xf32>
    %c194 = arith.constant 194 : index
    %1132 = memref.load %arg3[%c194] : memref<288xf32, #tpu.memory_space<smem>>
    %1133 = vector.broadcast %1132 : f32 to vector<8x1024xf32>
    %1134 = arith.mulf %1133, %1127 : vector<8x1024xf32>
    %1135 = arith.addf %1115, %1134 : vector<8x1024xf32>
    %c230 = arith.constant 230 : index
    %1136 = memref.load %arg3[%c230] : memref<288xf32, #tpu.memory_space<smem>>
    %1137 = vector.broadcast %1136 : f32 to vector<8x1024xf32>
    %1138 = arith.mulf %1137, %1127 : vector<8x1024xf32>
    %1139 = arith.addf %1119, %1138 : vector<8x1024xf32>
    %c266 = arith.constant 266 : index
    %1140 = memref.load %arg3[%c266] : memref<288xf32, #tpu.memory_space<smem>>
    %1141 = vector.broadcast %1140 : f32 to vector<8x1024xf32>
    %1142 = arith.mulf %1141, %1127 : vector<8x1024xf32>
    %1143 = arith.addf %1123, %1142 : vector<8x1024xf32>
    %c993_i32_267 = arith.constant 993 : i32
    %1144 = tpu.dynamic_rotate %1027 by %c993_i32_267 dim 1 : vector<8x1024xf32>, i32 -> vector<8x1024xf32>
    %c6_268 = arith.constant 6 : index
    %c0_269 = arith.constant 0 : index
    %c0_270 = arith.constant 0 : index
    %1145 = vector.load %arg2[%c6_268, %c0_269, %c0_270] : memref<9x8x1024xf32, #tpu.memory_space<vmem>>, vector<1x8x1024xf32>
    %1146 = vector.shape_cast %1145 : vector<1x8x1024xf32> to vector<8x1024xf32>
    %1147 = arith.mulf %1144, %1146 : vector<8x1024xf32>
    %c159 = arith.constant 159 : index
    %1148 = memref.load %arg3[%c159] : memref<288xf32, #tpu.memory_space<smem>>
    %1149 = vector.broadcast %1148 : f32 to vector<8x1024xf32>
    %1150 = arith.mulf %1149, %1147 : vector<8x1024xf32>
    %1151 = arith.addf %1131, %1150 : vector<8x1024xf32>
    %c195 = arith.constant 195 : index
    %1152 = memref.load %arg3[%c195] : memref<288xf32, #tpu.memory_space<smem>>
    %1153 = vector.broadcast %1152 : f32 to vector<8x1024xf32>
    %1154 = arith.mulf %1153, %1147 : vector<8x1024xf32>
    %1155 = arith.addf %1135, %1154 : vector<8x1024xf32>
    %c231 = arith.constant 231 : index
    %1156 = memref.load %arg3[%c231] : memref<288xf32, #tpu.memory_space<smem>>
    %1157 = vector.broadcast %1156 : f32 to vector<8x1024xf32>
    %1158 = arith.mulf %1157, %1147 : vector<8x1024xf32>
    %1159 = arith.addf %1139, %1158 : vector<8x1024xf32>
    %c267 = arith.constant 267 : index
    %1160 = memref.load %arg3[%c267] : memref<288xf32, #tpu.memory_space<smem>>
    %1161 = vector.broadcast %1160 : f32 to vector<8x1024xf32>
    %1162 = arith.mulf %1161, %1147 : vector<8x1024xf32>
    %1163 = arith.addf %1143, %1162 : vector<8x1024xf32>
    %c992_i32_271 = arith.constant 992 : i32
    %1164 = tpu.dynamic_rotate %1027 by %c992_i32_271 dim 1 : vector<8x1024xf32>, i32 -> vector<8x1024xf32>
    %c7_272 = arith.constant 7 : index
    %c0_273 = arith.constant 0 : index
    %c0_274 = arith.constant 0 : index
    %1165 = vector.load %arg2[%c7_272, %c0_273, %c0_274] : memref<9x8x1024xf32, #tpu.memory_space<vmem>>, vector<1x8x1024xf32>
    %1166 = vector.shape_cast %1165 : vector<1x8x1024xf32> to vector<8x1024xf32>
    %1167 = arith.mulf %1164, %1166 : vector<8x1024xf32>
    %c160 = arith.constant 160 : index
    %1168 = memref.load %arg3[%c160] : memref<288xf32, #tpu.memory_space<smem>>
    %1169 = vector.broadcast %1168 : f32 to vector<8x1024xf32>
    %1170 = arith.mulf %1169, %1167 : vector<8x1024xf32>
    %1171 = arith.addf %1151, %1170 : vector<8x1024xf32>
    %c196 = arith.constant 196 : index
    %1172 = memref.load %arg3[%c196] : memref<288xf32, #tpu.memory_space<smem>>
    %1173 = vector.broadcast %1172 : f32 to vector<8x1024xf32>
    %1174 = arith.mulf %1173, %1167 : vector<8x1024xf32>
    %1175 = arith.addf %1155, %1174 : vector<8x1024xf32>
    %c232 = arith.constant 232 : index
    %1176 = memref.load %arg3[%c232] : memref<288xf32, #tpu.memory_space<smem>>
    %1177 = vector.broadcast %1176 : f32 to vector<8x1024xf32>
    %1178 = arith.mulf %1177, %1167 : vector<8x1024xf32>
    %1179 = arith.addf %1159, %1178 : vector<8x1024xf32>
    %c268 = arith.constant 268 : index
    %1180 = memref.load %arg3[%c268] : memref<288xf32, #tpu.memory_space<smem>>
    %1181 = vector.broadcast %1180 : f32 to vector<8x1024xf32>
    %1182 = arith.mulf %1181, %1167 : vector<8x1024xf32>
    %1183 = arith.addf %1163, %1182 : vector<8x1024xf32>
    %c991_i32_275 = arith.constant 991 : i32
    %1184 = tpu.dynamic_rotate %1027 by %c991_i32_275 dim 1 : vector<8x1024xf32>, i32 -> vector<8x1024xf32>
    %c8_276 = arith.constant 8 : index
    %c0_277 = arith.constant 0 : index
    %c0_278 = arith.constant 0 : index
    %1185 = vector.load %arg2[%c8_276, %c0_277, %c0_278] : memref<9x8x1024xf32, #tpu.memory_space<vmem>>, vector<1x8x1024xf32>
    %1186 = vector.shape_cast %1185 : vector<1x8x1024xf32> to vector<8x1024xf32>
    %1187 = arith.mulf %1184, %1186 : vector<8x1024xf32>
    %c161 = arith.constant 161 : index
    %1188 = memref.load %arg3[%c161] : memref<288xf32, #tpu.memory_space<smem>>
    %1189 = vector.broadcast %1188 : f32 to vector<8x1024xf32>
    %1190 = arith.mulf %1189, %1187 : vector<8x1024xf32>
    %1191 = arith.addf %1171, %1190 : vector<8x1024xf32>
    %c197 = arith.constant 197 : index
    %1192 = memref.load %arg3[%c197] : memref<288xf32, #tpu.memory_space<smem>>
    %1193 = vector.broadcast %1192 : f32 to vector<8x1024xf32>
    %1194 = arith.mulf %1193, %1187 : vector<8x1024xf32>
    %1195 = arith.addf %1175, %1194 : vector<8x1024xf32>
    %c233 = arith.constant 233 : index
    %1196 = memref.load %arg3[%c233] : memref<288xf32, #tpu.memory_space<smem>>
    %1197 = vector.broadcast %1196 : f32 to vector<8x1024xf32>
    %1198 = arith.mulf %1197, %1187 : vector<8x1024xf32>
    %1199 = arith.addf %1179, %1198 : vector<8x1024xf32>
    %c269 = arith.constant 269 : index
    %1200 = memref.load %arg3[%c269] : memref<288xf32, #tpu.memory_space<smem>>
    %1201 = vector.broadcast %1200 : f32 to vector<8x1024xf32>
    %1202 = arith.mulf %1201, %1187 : vector<8x1024xf32>
    %1203 = arith.addf %1183, %1202 : vector<8x1024xf32>
    %c2_279 = arith.constant 2 : index
    %1204 = arith.index_cast %1 : i32 to index
    %c0_280 = arith.constant 0 : index
    %1205 = vector.load %arg1[%c2_279, %1204, %c0_280] : memref<4x8x1024xf32, #tpu.memory_space<vmem>>, vector<1x8x1024xf32>
    %1206 = vector.shape_cast %1205 : vector<1x8x1024xf32> to vector<8x1024xf32>
    %c33_i32_281 = arith.constant 33 : i32
    %1207 = tpu.dynamic_rotate %1206 by %c33_i32_281 dim 1 : vector<8x1024xf32>, i32 -> vector<8x1024xf32>
    %c0_282 = arith.constant 0 : index
    %c0_283 = arith.constant 0 : index
    %c0_284 = arith.constant 0 : index
    %1208 = vector.load %arg2[%c0_282, %c0_283, %c0_284] : memref<9x8x1024xf32, #tpu.memory_space<vmem>>, vector<1x8x1024xf32>
    %1209 = vector.shape_cast %1208 : vector<1x8x1024xf32> to vector<8x1024xf32>
    %1210 = arith.mulf %1207, %1209 : vector<8x1024xf32>
    %c162 = arith.constant 162 : index
    %1211 = memref.load %arg3[%c162] : memref<288xf32, #tpu.memory_space<smem>>
    %1212 = vector.broadcast %1211 : f32 to vector<8x1024xf32>
    %1213 = arith.mulf %1212, %1210 : vector<8x1024xf32>
    %1214 = arith.addf %1191, %1213 : vector<8x1024xf32>
    %c198 = arith.constant 198 : index
    %1215 = memref.load %arg3[%c198] : memref<288xf32, #tpu.memory_space<smem>>
    %1216 = vector.broadcast %1215 : f32 to vector<8x1024xf32>
    %1217 = arith.mulf %1216, %1210 : vector<8x1024xf32>
    %1218 = arith.addf %1195, %1217 : vector<8x1024xf32>
    %c234 = arith.constant 234 : index
    %1219 = memref.load %arg3[%c234] : memref<288xf32, #tpu.memory_space<smem>>
    %1220 = vector.broadcast %1219 : f32 to vector<8x1024xf32>
    %1221 = arith.mulf %1220, %1210 : vector<8x1024xf32>
    %1222 = arith.addf %1199, %1221 : vector<8x1024xf32>
    %c270 = arith.constant 270 : index
    %1223 = memref.load %arg3[%c270] : memref<288xf32, #tpu.memory_space<smem>>
    %1224 = vector.broadcast %1223 : f32 to vector<8x1024xf32>
    %1225 = arith.mulf %1224, %1210 : vector<8x1024xf32>
    %1226 = arith.addf %1203, %1225 : vector<8x1024xf32>
    %c32_i32_285 = arith.constant 32 : i32
    %1227 = tpu.dynamic_rotate %1206 by %c32_i32_285 dim 1 : vector<8x1024xf32>, i32 -> vector<8x1024xf32>
    %c1_286 = arith.constant 1 : index
    %c0_287 = arith.constant 0 : index
    %c0_288 = arith.constant 0 : index
    %1228 = vector.load %arg2[%c1_286, %c0_287, %c0_288] : memref<9x8x1024xf32, #tpu.memory_space<vmem>>, vector<1x8x1024xf32>
    %1229 = vector.shape_cast %1228 : vector<1x8x1024xf32> to vector<8x1024xf32>
    %1230 = arith.mulf %1227, %1229 : vector<8x1024xf32>
    %c163 = arith.constant 163 : index
    %1231 = memref.load %arg3[%c163] : memref<288xf32, #tpu.memory_space<smem>>
    %1232 = vector.broadcast %1231 : f32 to vector<8x1024xf32>
    %1233 = arith.mulf %1232, %1230 : vector<8x1024xf32>
    %1234 = arith.addf %1214, %1233 : vector<8x1024xf32>
    %c199 = arith.constant 199 : index
    %1235 = memref.load %arg3[%c199] : memref<288xf32, #tpu.memory_space<smem>>
    %1236 = vector.broadcast %1235 : f32 to vector<8x1024xf32>
    %1237 = arith.mulf %1236, %1230 : vector<8x1024xf32>
    %1238 = arith.addf %1218, %1237 : vector<8x1024xf32>
    %c235 = arith.constant 235 : index
    %1239 = memref.load %arg3[%c235] : memref<288xf32, #tpu.memory_space<smem>>
    %1240 = vector.broadcast %1239 : f32 to vector<8x1024xf32>
    %1241 = arith.mulf %1240, %1230 : vector<8x1024xf32>
    %1242 = arith.addf %1222, %1241 : vector<8x1024xf32>
    %c271 = arith.constant 271 : index
    %1243 = memref.load %arg3[%c271] : memref<288xf32, #tpu.memory_space<smem>>
    %1244 = vector.broadcast %1243 : f32 to vector<8x1024xf32>
    %1245 = arith.mulf %1244, %1230 : vector<8x1024xf32>
    %1246 = arith.addf %1226, %1245 : vector<8x1024xf32>
    %c31_i32_289 = arith.constant 31 : i32
    %1247 = tpu.dynamic_rotate %1206 by %c31_i32_289 dim 1 : vector<8x1024xf32>, i32 -> vector<8x1024xf32>
    %c2_290 = arith.constant 2 : index
    %c0_291 = arith.constant 0 : index
    %c0_292 = arith.constant 0 : index
    %1248 = vector.load %arg2[%c2_290, %c0_291, %c0_292] : memref<9x8x1024xf32, #tpu.memory_space<vmem>>, vector<1x8x1024xf32>
    %1249 = vector.shape_cast %1248 : vector<1x8x1024xf32> to vector<8x1024xf32>
    %1250 = arith.mulf %1247, %1249 : vector<8x1024xf32>
    %c164 = arith.constant 164 : index
    %1251 = memref.load %arg3[%c164] : memref<288xf32, #tpu.memory_space<smem>>
    %1252 = vector.broadcast %1251 : f32 to vector<8x1024xf32>
    %1253 = arith.mulf %1252, %1250 : vector<8x1024xf32>
    %1254 = arith.addf %1234, %1253 : vector<8x1024xf32>
    %c200 = arith.constant 200 : index
    %1255 = memref.load %arg3[%c200] : memref<288xf32, #tpu.memory_space<smem>>
    %1256 = vector.broadcast %1255 : f32 to vector<8x1024xf32>
    %1257 = arith.mulf %1256, %1250 : vector<8x1024xf32>
    %1258 = arith.addf %1238, %1257 : vector<8x1024xf32>
    %c236 = arith.constant 236 : index
    %1259 = memref.load %arg3[%c236] : memref<288xf32, #tpu.memory_space<smem>>
    %1260 = vector.broadcast %1259 : f32 to vector<8x1024xf32>
    %1261 = arith.mulf %1260, %1250 : vector<8x1024xf32>
    %1262 = arith.addf %1242, %1261 : vector<8x1024xf32>
    %c272 = arith.constant 272 : index
    %1263 = memref.load %arg3[%c272] : memref<288xf32, #tpu.memory_space<smem>>
    %1264 = vector.broadcast %1263 : f32 to vector<8x1024xf32>
    %1265 = arith.mulf %1264, %1250 : vector<8x1024xf32>
    %1266 = arith.addf %1246, %1265 : vector<8x1024xf32>
    %c1_i32_293 = arith.constant 1 : i32
    %1267 = tpu.dynamic_rotate %1206 by %c1_i32_293 dim 1 : vector<8x1024xf32>, i32 -> vector<8x1024xf32>
    %c3_294 = arith.constant 3 : index
    %c0_295 = arith.constant 0 : index
    %c0_296 = arith.constant 0 : index
    %1268 = vector.load %arg2[%c3_294, %c0_295, %c0_296] : memref<9x8x1024xf32, #tpu.memory_space<vmem>>, vector<1x8x1024xf32>
    %1269 = vector.shape_cast %1268 : vector<1x8x1024xf32> to vector<8x1024xf32>
    %1270 = arith.mulf %1267, %1269 : vector<8x1024xf32>
    %c165 = arith.constant 165 : index
    %1271 = memref.load %arg3[%c165] : memref<288xf32, #tpu.memory_space<smem>>
    %1272 = vector.broadcast %1271 : f32 to vector<8x1024xf32>
    %1273 = arith.mulf %1272, %1270 : vector<8x1024xf32>
    %1274 = arith.addf %1254, %1273 : vector<8x1024xf32>
    %c201 = arith.constant 201 : index
    %1275 = memref.load %arg3[%c201] : memref<288xf32, #tpu.memory_space<smem>>
    %1276 = vector.broadcast %1275 : f32 to vector<8x1024xf32>
    %1277 = arith.mulf %1276, %1270 : vector<8x1024xf32>
    %1278 = arith.addf %1258, %1277 : vector<8x1024xf32>
    %c237 = arith.constant 237 : index
    %1279 = memref.load %arg3[%c237] : memref<288xf32, #tpu.memory_space<smem>>
    %1280 = vector.broadcast %1279 : f32 to vector<8x1024xf32>
    %1281 = arith.mulf %1280, %1270 : vector<8x1024xf32>
    %1282 = arith.addf %1262, %1281 : vector<8x1024xf32>
    %c273 = arith.constant 273 : index
    %1283 = memref.load %arg3[%c273] : memref<288xf32, #tpu.memory_space<smem>>
    %1284 = vector.broadcast %1283 : f32 to vector<8x1024xf32>
    %1285 = arith.mulf %1284, %1270 : vector<8x1024xf32>
    %1286 = arith.addf %1266, %1285 : vector<8x1024xf32>
    %c166 = arith.constant 166 : index
    %1287 = memref.load %arg3[%c166] : memref<288xf32, #tpu.memory_space<smem>>
    %1288 = vector.broadcast %1287 : f32 to vector<8x1024xf32>
    %1289 = arith.mulf %1288, %1206 : vector<8x1024xf32>
    %1290 = arith.addf %1274, %1289 : vector<8x1024xf32>
    %c202 = arith.constant 202 : index
    %1291 = memref.load %arg3[%c202] : memref<288xf32, #tpu.memory_space<smem>>
    %1292 = vector.broadcast %1291 : f32 to vector<8x1024xf32>
    %1293 = arith.mulf %1292, %1206 : vector<8x1024xf32>
    %1294 = arith.addf %1278, %1293 : vector<8x1024xf32>
    %c238 = arith.constant 238 : index
    %1295 = memref.load %arg3[%c238] : memref<288xf32, #tpu.memory_space<smem>>
    %1296 = vector.broadcast %1295 : f32 to vector<8x1024xf32>
    %1297 = arith.mulf %1296, %1206 : vector<8x1024xf32>
    %1298 = arith.addf %1282, %1297 : vector<8x1024xf32>
    %c274 = arith.constant 274 : index
    %1299 = memref.load %arg3[%c274] : memref<288xf32, #tpu.memory_space<smem>>
    %1300 = vector.broadcast %1299 : f32 to vector<8x1024xf32>
    %1301 = arith.mulf %1300, %1206 : vector<8x1024xf32>
    %1302 = arith.addf %1286, %1301 : vector<8x1024xf32>
    %c1023_i32_297 = arith.constant 1023 : i32
    %1303 = tpu.dynamic_rotate %1206 by %c1023_i32_297 dim 1 : vector<8x1024xf32>, i32 -> vector<8x1024xf32>
    %c5_298 = arith.constant 5 : index
    %c0_299 = arith.constant 0 : index
    %c0_300 = arith.constant 0 : index
    %1304 = vector.load %arg2[%c5_298, %c0_299, %c0_300] : memref<9x8x1024xf32, #tpu.memory_space<vmem>>, vector<1x8x1024xf32>
    %1305 = vector.shape_cast %1304 : vector<1x8x1024xf32> to vector<8x1024xf32>
    %1306 = arith.mulf %1303, %1305 : vector<8x1024xf32>
    %c167 = arith.constant 167 : index
    %1307 = memref.load %arg3[%c167] : memref<288xf32, #tpu.memory_space<smem>>
    %1308 = vector.broadcast %1307 : f32 to vector<8x1024xf32>
    %1309 = arith.mulf %1308, %1306 : vector<8x1024xf32>
    %1310 = arith.addf %1290, %1309 : vector<8x1024xf32>
    %c203 = arith.constant 203 : index
    %1311 = memref.load %arg3[%c203] : memref<288xf32, #tpu.memory_space<smem>>
    %1312 = vector.broadcast %1311 : f32 to vector<8x1024xf32>
    %1313 = arith.mulf %1312, %1306 : vector<8x1024xf32>
    %1314 = arith.addf %1294, %1313 : vector<8x1024xf32>
    %c239 = arith.constant 239 : index
    %1315 = memref.load %arg3[%c239] : memref<288xf32, #tpu.memory_space<smem>>
    %1316 = vector.broadcast %1315 : f32 to vector<8x1024xf32>
    %1317 = arith.mulf %1316, %1306 : vector<8x1024xf32>
    %1318 = arith.addf %1298, %1317 : vector<8x1024xf32>
    %c275 = arith.constant 275 : index
    %1319 = memref.load %arg3[%c275] : memref<288xf32, #tpu.memory_space<smem>>
    %1320 = vector.broadcast %1319 : f32 to vector<8x1024xf32>
    %1321 = arith.mulf %1320, %1306 : vector<8x1024xf32>
    %1322 = arith.addf %1302, %1321 : vector<8x1024xf32>
    %c993_i32_301 = arith.constant 993 : i32
    %1323 = tpu.dynamic_rotate %1206 by %c993_i32_301 dim 1 : vector<8x1024xf32>, i32 -> vector<8x1024xf32>
    %c6_302 = arith.constant 6 : index
    %c0_303 = arith.constant 0 : index
    %c0_304 = arith.constant 0 : index
    %1324 = vector.load %arg2[%c6_302, %c0_303, %c0_304] : memref<9x8x1024xf32, #tpu.memory_space<vmem>>, vector<1x8x1024xf32>
    %1325 = vector.shape_cast %1324 : vector<1x8x1024xf32> to vector<8x1024xf32>
    %1326 = arith.mulf %1323, %1325 : vector<8x1024xf32>
    %c168 = arith.constant 168 : index
    %1327 = memref.load %arg3[%c168] : memref<288xf32, #tpu.memory_space<smem>>
    %1328 = vector.broadcast %1327 : f32 to vector<8x1024xf32>
    %1329 = arith.mulf %1328, %1326 : vector<8x1024xf32>
    %1330 = arith.addf %1310, %1329 : vector<8x1024xf32>
    %c204 = arith.constant 204 : index
    %1331 = memref.load %arg3[%c204] : memref<288xf32, #tpu.memory_space<smem>>
    %1332 = vector.broadcast %1331 : f32 to vector<8x1024xf32>
    %1333 = arith.mulf %1332, %1326 : vector<8x1024xf32>
    %1334 = arith.addf %1314, %1333 : vector<8x1024xf32>
    %c240 = arith.constant 240 : index
    %1335 = memref.load %arg3[%c240] : memref<288xf32, #tpu.memory_space<smem>>
    %1336 = vector.broadcast %1335 : f32 to vector<8x1024xf32>
    %1337 = arith.mulf %1336, %1326 : vector<8x1024xf32>
    %1338 = arith.addf %1318, %1337 : vector<8x1024xf32>
    %c276 = arith.constant 276 : index
    %1339 = memref.load %arg3[%c276] : memref<288xf32, #tpu.memory_space<smem>>
    %1340 = vector.broadcast %1339 : f32 to vector<8x1024xf32>
    %1341 = arith.mulf %1340, %1326 : vector<8x1024xf32>
    %1342 = arith.addf %1322, %1341 : vector<8x1024xf32>
    %c992_i32_305 = arith.constant 992 : i32
    %1343 = tpu.dynamic_rotate %1206 by %c992_i32_305 dim 1 : vector<8x1024xf32>, i32 -> vector<8x1024xf32>
    %c7_306 = arith.constant 7 : index
    %c0_307 = arith.constant 0 : index
    %c0_308 = arith.constant 0 : index
    %1344 = vector.load %arg2[%c7_306, %c0_307, %c0_308] : memref<9x8x1024xf32, #tpu.memory_space<vmem>>, vector<1x8x1024xf32>
    %1345 = vector.shape_cast %1344 : vector<1x8x1024xf32> to vector<8x1024xf32>
    %1346 = arith.mulf %1343, %1345 : vector<8x1024xf32>
    %c169 = arith.constant 169 : index
    %1347 = memref.load %arg3[%c169] : memref<288xf32, #tpu.memory_space<smem>>
    %1348 = vector.broadcast %1347 : f32 to vector<8x1024xf32>
    %1349 = arith.mulf %1348, %1346 : vector<8x1024xf32>
    %1350 = arith.addf %1330, %1349 : vector<8x1024xf32>
    %c205 = arith.constant 205 : index
    %1351 = memref.load %arg3[%c205] : memref<288xf32, #tpu.memory_space<smem>>
    %1352 = vector.broadcast %1351 : f32 to vector<8x1024xf32>
    %1353 = arith.mulf %1352, %1346 : vector<8x1024xf32>
    %1354 = arith.addf %1334, %1353 : vector<8x1024xf32>
    %c241 = arith.constant 241 : index
    %1355 = memref.load %arg3[%c241] : memref<288xf32, #tpu.memory_space<smem>>
    %1356 = vector.broadcast %1355 : f32 to vector<8x1024xf32>
    %1357 = arith.mulf %1356, %1346 : vector<8x1024xf32>
    %1358 = arith.addf %1338, %1357 : vector<8x1024xf32>
    %c277 = arith.constant 277 : index
    %1359 = memref.load %arg3[%c277] : memref<288xf32, #tpu.memory_space<smem>>
    %1360 = vector.broadcast %1359 : f32 to vector<8x1024xf32>
    %1361 = arith.mulf %1360, %1346 : vector<8x1024xf32>
    %1362 = arith.addf %1342, %1361 : vector<8x1024xf32>
    %c991_i32_309 = arith.constant 991 : i32
    %1363 = tpu.dynamic_rotate %1206 by %c991_i32_309 dim 1 : vector<8x1024xf32>, i32 -> vector<8x1024xf32>
    %c8_310 = arith.constant 8 : index
    %c0_311 = arith.constant 0 : index
    %c0_312 = arith.constant 0 : index
    %1364 = vector.load %arg2[%c8_310, %c0_311, %c0_312] : memref<9x8x1024xf32, #tpu.memory_space<vmem>>, vector<1x8x1024xf32>
    %1365 = vector.shape_cast %1364 : vector<1x8x1024xf32> to vector<8x1024xf32>
    %1366 = arith.mulf %1363, %1365 : vector<8x1024xf32>
    %c170 = arith.constant 170 : index
    %1367 = memref.load %arg3[%c170] : memref<288xf32, #tpu.memory_space<smem>>
    %1368 = vector.broadcast %1367 : f32 to vector<8x1024xf32>
    %1369 = arith.mulf %1368, %1366 : vector<8x1024xf32>
    %1370 = arith.addf %1350, %1369 : vector<8x1024xf32>
    %c206 = arith.constant 206 : index
    %1371 = memref.load %arg3[%c206] : memref<288xf32, #tpu.memory_space<smem>>
    %1372 = vector.broadcast %1371 : f32 to vector<8x1024xf32>
    %1373 = arith.mulf %1372, %1366 : vector<8x1024xf32>
    %1374 = arith.addf %1354, %1373 : vector<8x1024xf32>
    %c242 = arith.constant 242 : index
    %1375 = memref.load %arg3[%c242] : memref<288xf32, #tpu.memory_space<smem>>
    %1376 = vector.broadcast %1375 : f32 to vector<8x1024xf32>
    %1377 = arith.mulf %1376, %1366 : vector<8x1024xf32>
    %1378 = arith.addf %1358, %1377 : vector<8x1024xf32>
    %c278 = arith.constant 278 : index
    %1379 = memref.load %arg3[%c278] : memref<288xf32, #tpu.memory_space<smem>>
    %1380 = vector.broadcast %1379 : f32 to vector<8x1024xf32>
    %1381 = arith.mulf %1380, %1366 : vector<8x1024xf32>
    %1382 = arith.addf %1362, %1381 : vector<8x1024xf32>
    %c3_313 = arith.constant 3 : index
    %1383 = arith.index_cast %1 : i32 to index
    %c0_314 = arith.constant 0 : index
    %1384 = vector.load %arg1[%c3_313, %1383, %c0_314] : memref<4x8x1024xf32, #tpu.memory_space<vmem>>, vector<1x8x1024xf32>
    %1385 = vector.shape_cast %1384 : vector<1x8x1024xf32> to vector<8x1024xf32>
    %c33_i32_315 = arith.constant 33 : i32
    %1386 = tpu.dynamic_rotate %1385 by %c33_i32_315 dim 1 : vector<8x1024xf32>, i32 -> vector<8x1024xf32>
    %c0_316 = arith.constant 0 : index
    %c0_317 = arith.constant 0 : index
    %c0_318 = arith.constant 0 : index
    %1387 = vector.load %arg2[%c0_316, %c0_317, %c0_318] : memref<9x8x1024xf32, #tpu.memory_space<vmem>>, vector<1x8x1024xf32>
    %1388 = vector.shape_cast %1387 : vector<1x8x1024xf32> to vector<8x1024xf32>
    %1389 = arith.mulf %1386, %1388 : vector<8x1024xf32>
    %c171 = arith.constant 171 : index
    %1390 = memref.load %arg3[%c171] : memref<288xf32, #tpu.memory_space<smem>>
    %1391 = vector.broadcast %1390 : f32 to vector<8x1024xf32>
    %1392 = arith.mulf %1391, %1389 : vector<8x1024xf32>
    %1393 = arith.addf %1370, %1392 : vector<8x1024xf32>
    %c207 = arith.constant 207 : index
    %1394 = memref.load %arg3[%c207] : memref<288xf32, #tpu.memory_space<smem>>
    %1395 = vector.broadcast %1394 : f32 to vector<8x1024xf32>
    %1396 = arith.mulf %1395, %1389 : vector<8x1024xf32>
    %1397 = arith.addf %1374, %1396 : vector<8x1024xf32>
    %c243 = arith.constant 243 : index
    %1398 = memref.load %arg3[%c243] : memref<288xf32, #tpu.memory_space<smem>>
    %1399 = vector.broadcast %1398 : f32 to vector<8x1024xf32>
    %1400 = arith.mulf %1399, %1389 : vector<8x1024xf32>
    %1401 = arith.addf %1378, %1400 : vector<8x1024xf32>
    %c279 = arith.constant 279 : index
    %1402 = memref.load %arg3[%c279] : memref<288xf32, #tpu.memory_space<smem>>
    %1403 = vector.broadcast %1402 : f32 to vector<8x1024xf32>
    %1404 = arith.mulf %1403, %1389 : vector<8x1024xf32>
    %1405 = arith.addf %1382, %1404 : vector<8x1024xf32>
    %c32_i32_319 = arith.constant 32 : i32
    %1406 = tpu.dynamic_rotate %1385 by %c32_i32_319 dim 1 : vector<8x1024xf32>, i32 -> vector<8x1024xf32>
    %c1_320 = arith.constant 1 : index
    %c0_321 = arith.constant 0 : index
    %c0_322 = arith.constant 0 : index
    %1407 = vector.load %arg2[%c1_320, %c0_321, %c0_322] : memref<9x8x1024xf32, #tpu.memory_space<vmem>>, vector<1x8x1024xf32>
    %1408 = vector.shape_cast %1407 : vector<1x8x1024xf32> to vector<8x1024xf32>
    %1409 = arith.mulf %1406, %1408 : vector<8x1024xf32>
    %c172 = arith.constant 172 : index
    %1410 = memref.load %arg3[%c172] : memref<288xf32, #tpu.memory_space<smem>>
    %1411 = vector.broadcast %1410 : f32 to vector<8x1024xf32>
    %1412 = arith.mulf %1411, %1409 : vector<8x1024xf32>
    %1413 = arith.addf %1393, %1412 : vector<8x1024xf32>
    %c208 = arith.constant 208 : index
    %1414 = memref.load %arg3[%c208] : memref<288xf32, #tpu.memory_space<smem>>
    %1415 = vector.broadcast %1414 : f32 to vector<8x1024xf32>
    %1416 = arith.mulf %1415, %1409 : vector<8x1024xf32>
    %1417 = arith.addf %1397, %1416 : vector<8x1024xf32>
    %c244 = arith.constant 244 : index
    %1418 = memref.load %arg3[%c244] : memref<288xf32, #tpu.memory_space<smem>>
    %1419 = vector.broadcast %1418 : f32 to vector<8x1024xf32>
    %1420 = arith.mulf %1419, %1409 : vector<8x1024xf32>
    %1421 = arith.addf %1401, %1420 : vector<8x1024xf32>
    %c280 = arith.constant 280 : index
    %1422 = memref.load %arg3[%c280] : memref<288xf32, #tpu.memory_space<smem>>
    %1423 = vector.broadcast %1422 : f32 to vector<8x1024xf32>
    %1424 = arith.mulf %1423, %1409 : vector<8x1024xf32>
    %1425 = arith.addf %1405, %1424 : vector<8x1024xf32>
    %c31_i32_323 = arith.constant 31 : i32
    %1426 = tpu.dynamic_rotate %1385 by %c31_i32_323 dim 1 : vector<8x1024xf32>, i32 -> vector<8x1024xf32>
    %c2_324 = arith.constant 2 : index
    %c0_325 = arith.constant 0 : index
    %c0_326 = arith.constant 0 : index
    %1427 = vector.load %arg2[%c2_324, %c0_325, %c0_326] : memref<9x8x1024xf32, #tpu.memory_space<vmem>>, vector<1x8x1024xf32>
    %1428 = vector.shape_cast %1427 : vector<1x8x1024xf32> to vector<8x1024xf32>
    %1429 = arith.mulf %1426, %1428 : vector<8x1024xf32>
    %c173 = arith.constant 173 : index
    %1430 = memref.load %arg3[%c173] : memref<288xf32, #tpu.memory_space<smem>>
    %1431 = vector.broadcast %1430 : f32 to vector<8x1024xf32>
    %1432 = arith.mulf %1431, %1429 : vector<8x1024xf32>
    %1433 = arith.addf %1413, %1432 : vector<8x1024xf32>
    %c209 = arith.constant 209 : index
    %1434 = memref.load %arg3[%c209] : memref<288xf32, #tpu.memory_space<smem>>
    %1435 = vector.broadcast %1434 : f32 to vector<8x1024xf32>
    %1436 = arith.mulf %1435, %1429 : vector<8x1024xf32>
    %1437 = arith.addf %1417, %1436 : vector<8x1024xf32>
    %c245 = arith.constant 245 : index
    %1438 = memref.load %arg3[%c245] : memref<288xf32, #tpu.memory_space<smem>>
    %1439 = vector.broadcast %1438 : f32 to vector<8x1024xf32>
    %1440 = arith.mulf %1439, %1429 : vector<8x1024xf32>
    %1441 = arith.addf %1421, %1440 : vector<8x1024xf32>
    %c281 = arith.constant 281 : index
    %1442 = memref.load %arg3[%c281] : memref<288xf32, #tpu.memory_space<smem>>
    %1443 = vector.broadcast %1442 : f32 to vector<8x1024xf32>
    %1444 = arith.mulf %1443, %1429 : vector<8x1024xf32>
    %1445 = arith.addf %1425, %1444 : vector<8x1024xf32>
    %c1_i32_327 = arith.constant 1 : i32
    %1446 = tpu.dynamic_rotate %1385 by %c1_i32_327 dim 1 : vector<8x1024xf32>, i32 -> vector<8x1024xf32>
    %c3_328 = arith.constant 3 : index
    %c0_329 = arith.constant 0 : index
    %c0_330 = arith.constant 0 : index
    %1447 = vector.load %arg2[%c3_328, %c0_329, %c0_330] : memref<9x8x1024xf32, #tpu.memory_space<vmem>>, vector<1x8x1024xf32>
    %1448 = vector.shape_cast %1447 : vector<1x8x1024xf32> to vector<8x1024xf32>
    %1449 = arith.mulf %1446, %1448 : vector<8x1024xf32>
    %c174 = arith.constant 174 : index
    %1450 = memref.load %arg3[%c174] : memref<288xf32, #tpu.memory_space<smem>>
    %1451 = vector.broadcast %1450 : f32 to vector<8x1024xf32>
    %1452 = arith.mulf %1451, %1449 : vector<8x1024xf32>
    %1453 = arith.addf %1433, %1452 : vector<8x1024xf32>
    %c210 = arith.constant 210 : index
    %1454 = memref.load %arg3[%c210] : memref<288xf32, #tpu.memory_space<smem>>
    %1455 = vector.broadcast %1454 : f32 to vector<8x1024xf32>
    %1456 = arith.mulf %1455, %1449 : vector<8x1024xf32>
    %1457 = arith.addf %1437, %1456 : vector<8x1024xf32>
    %c246 = arith.constant 246 : index
    %1458 = memref.load %arg3[%c246] : memref<288xf32, #tpu.memory_space<smem>>
    %1459 = vector.broadcast %1458 : f32 to vector<8x1024xf32>
    %1460 = arith.mulf %1459, %1449 : vector<8x1024xf32>
    %1461 = arith.addf %1441, %1460 : vector<8x1024xf32>
    %c282 = arith.constant 282 : index
    %1462 = memref.load %arg3[%c282] : memref<288xf32, #tpu.memory_space<smem>>
    %1463 = vector.broadcast %1462 : f32 to vector<8x1024xf32>
    %1464 = arith.mulf %1463, %1449 : vector<8x1024xf32>
    %1465 = arith.addf %1445, %1464 : vector<8x1024xf32>
    %c175 = arith.constant 175 : index
    %1466 = memref.load %arg3[%c175] : memref<288xf32, #tpu.memory_space<smem>>
    %1467 = vector.broadcast %1466 : f32 to vector<8x1024xf32>
    %1468 = arith.mulf %1467, %1385 : vector<8x1024xf32>
    %1469 = arith.addf %1453, %1468 : vector<8x1024xf32>
    %c211 = arith.constant 211 : index
    %1470 = memref.load %arg3[%c211] : memref<288xf32, #tpu.memory_space<smem>>
    %1471 = vector.broadcast %1470 : f32 to vector<8x1024xf32>
    %1472 = arith.mulf %1471, %1385 : vector<8x1024xf32>
    %1473 = arith.addf %1457, %1472 : vector<8x1024xf32>
    %c247 = arith.constant 247 : index
    %1474 = memref.load %arg3[%c247] : memref<288xf32, #tpu.memory_space<smem>>
    %1475 = vector.broadcast %1474 : f32 to vector<8x1024xf32>
    %1476 = arith.mulf %1475, %1385 : vector<8x1024xf32>
    %1477 = arith.addf %1461, %1476 : vector<8x1024xf32>
    %c283 = arith.constant 283 : index
    %1478 = memref.load %arg3[%c283] : memref<288xf32, #tpu.memory_space<smem>>
    %1479 = vector.broadcast %1478 : f32 to vector<8x1024xf32>
    %1480 = arith.mulf %1479, %1385 : vector<8x1024xf32>
    %1481 = arith.addf %1465, %1480 : vector<8x1024xf32>
    %c1023_i32_331 = arith.constant 1023 : i32
    %1482 = tpu.dynamic_rotate %1385 by %c1023_i32_331 dim 1 : vector<8x1024xf32>, i32 -> vector<8x1024xf32>
    %c5_332 = arith.constant 5 : index
    %c0_333 = arith.constant 0 : index
    %c0_334 = arith.constant 0 : index
    %1483 = vector.load %arg2[%c5_332, %c0_333, %c0_334] : memref<9x8x1024xf32, #tpu.memory_space<vmem>>, vector<1x8x1024xf32>
    %1484 = vector.shape_cast %1483 : vector<1x8x1024xf32> to vector<8x1024xf32>
    %1485 = arith.mulf %1482, %1484 : vector<8x1024xf32>
    %c176 = arith.constant 176 : index
    %1486 = memref.load %arg3[%c176] : memref<288xf32, #tpu.memory_space<smem>>
    %1487 = vector.broadcast %1486 : f32 to vector<8x1024xf32>
    %1488 = arith.mulf %1487, %1485 : vector<8x1024xf32>
    %1489 = arith.addf %1469, %1488 : vector<8x1024xf32>
    %c212 = arith.constant 212 : index
    %1490 = memref.load %arg3[%c212] : memref<288xf32, #tpu.memory_space<smem>>
    %1491 = vector.broadcast %1490 : f32 to vector<8x1024xf32>
    %1492 = arith.mulf %1491, %1485 : vector<8x1024xf32>
    %1493 = arith.addf %1473, %1492 : vector<8x1024xf32>
    %c248 = arith.constant 248 : index
    %1494 = memref.load %arg3[%c248] : memref<288xf32, #tpu.memory_space<smem>>
    %1495 = vector.broadcast %1494 : f32 to vector<8x1024xf32>
    %1496 = arith.mulf %1495, %1485 : vector<8x1024xf32>
    %1497 = arith.addf %1477, %1496 : vector<8x1024xf32>
    %c284 = arith.constant 284 : index
    %1498 = memref.load %arg3[%c284] : memref<288xf32, #tpu.memory_space<smem>>
    %1499 = vector.broadcast %1498 : f32 to vector<8x1024xf32>
    %1500 = arith.mulf %1499, %1485 : vector<8x1024xf32>
    %1501 = arith.addf %1481, %1500 : vector<8x1024xf32>
    %c993_i32_335 = arith.constant 993 : i32
    %1502 = tpu.dynamic_rotate %1385 by %c993_i32_335 dim 1 : vector<8x1024xf32>, i32 -> vector<8x1024xf32>
    %c6_336 = arith.constant 6 : index
    %c0_337 = arith.constant 0 : index
    %c0_338 = arith.constant 0 : index
    %1503 = vector.load %arg2[%c6_336, %c0_337, %c0_338] : memref<9x8x1024xf32, #tpu.memory_space<vmem>>, vector<1x8x1024xf32>
    %1504 = vector.shape_cast %1503 : vector<1x8x1024xf32> to vector<8x1024xf32>
    %1505 = arith.mulf %1502, %1504 : vector<8x1024xf32>
    %c177 = arith.constant 177 : index
    %1506 = memref.load %arg3[%c177] : memref<288xf32, #tpu.memory_space<smem>>
    %1507 = vector.broadcast %1506 : f32 to vector<8x1024xf32>
    %1508 = arith.mulf %1507, %1505 : vector<8x1024xf32>
    %1509 = arith.addf %1489, %1508 : vector<8x1024xf32>
    %c213 = arith.constant 213 : index
    %1510 = memref.load %arg3[%c213] : memref<288xf32, #tpu.memory_space<smem>>
    %1511 = vector.broadcast %1510 : f32 to vector<8x1024xf32>
    %1512 = arith.mulf %1511, %1505 : vector<8x1024xf32>
    %1513 = arith.addf %1493, %1512 : vector<8x1024xf32>
    %c249 = arith.constant 249 : index
    %1514 = memref.load %arg3[%c249] : memref<288xf32, #tpu.memory_space<smem>>
    %1515 = vector.broadcast %1514 : f32 to vector<8x1024xf32>
    %1516 = arith.mulf %1515, %1505 : vector<8x1024xf32>
    %1517 = arith.addf %1497, %1516 : vector<8x1024xf32>
    %c285 = arith.constant 285 : index
    %1518 = memref.load %arg3[%c285] : memref<288xf32, #tpu.memory_space<smem>>
    %1519 = vector.broadcast %1518 : f32 to vector<8x1024xf32>
    %1520 = arith.mulf %1519, %1505 : vector<8x1024xf32>
    %1521 = arith.addf %1501, %1520 : vector<8x1024xf32>
    %c992_i32_339 = arith.constant 992 : i32
    %1522 = tpu.dynamic_rotate %1385 by %c992_i32_339 dim 1 : vector<8x1024xf32>, i32 -> vector<8x1024xf32>
    %c7_340 = arith.constant 7 : index
    %c0_341 = arith.constant 0 : index
    %c0_342 = arith.constant 0 : index
    %1523 = vector.load %arg2[%c7_340, %c0_341, %c0_342] : memref<9x8x1024xf32, #tpu.memory_space<vmem>>, vector<1x8x1024xf32>
    %1524 = vector.shape_cast %1523 : vector<1x8x1024xf32> to vector<8x1024xf32>
    %1525 = arith.mulf %1522, %1524 : vector<8x1024xf32>
    %c178 = arith.constant 178 : index
    %1526 = memref.load %arg3[%c178] : memref<288xf32, #tpu.memory_space<smem>>
    %1527 = vector.broadcast %1526 : f32 to vector<8x1024xf32>
    %1528 = arith.mulf %1527, %1525 : vector<8x1024xf32>
    %1529 = arith.addf %1509, %1528 : vector<8x1024xf32>
    %c214 = arith.constant 214 : index
    %1530 = memref.load %arg3[%c214] : memref<288xf32, #tpu.memory_space<smem>>
    %1531 = vector.broadcast %1530 : f32 to vector<8x1024xf32>
    %1532 = arith.mulf %1531, %1525 : vector<8x1024xf32>
    %1533 = arith.addf %1513, %1532 : vector<8x1024xf32>
    %c250 = arith.constant 250 : index
    %1534 = memref.load %arg3[%c250] : memref<288xf32, #tpu.memory_space<smem>>
    %1535 = vector.broadcast %1534 : f32 to vector<8x1024xf32>
    %1536 = arith.mulf %1535, %1525 : vector<8x1024xf32>
    %1537 = arith.addf %1517, %1536 : vector<8x1024xf32>
    %c286 = arith.constant 286 : index
    %1538 = memref.load %arg3[%c286] : memref<288xf32, #tpu.memory_space<smem>>
    %1539 = vector.broadcast %1538 : f32 to vector<8x1024xf32>
    %1540 = arith.mulf %1539, %1525 : vector<8x1024xf32>
    %1541 = arith.addf %1521, %1540 : vector<8x1024xf32>
    %c991_i32_343 = arith.constant 991 : i32
    %1542 = tpu.dynamic_rotate %1385 by %c991_i32_343 dim 1 : vector<8x1024xf32>, i32 -> vector<8x1024xf32>
    %c8_344 = arith.constant 8 : index
    %c0_345 = arith.constant 0 : index
    %c0_346 = arith.constant 0 : index
    %1543 = vector.load %arg2[%c8_344, %c0_345, %c0_346] : memref<9x8x1024xf32, #tpu.memory_space<vmem>>, vector<1x8x1024xf32>
    %1544 = vector.shape_cast %1543 : vector<1x8x1024xf32> to vector<8x1024xf32>
    %1545 = arith.mulf %1542, %1544 : vector<8x1024xf32>
    %c179 = arith.constant 179 : index
    %1546 = memref.load %arg3[%c179] : memref<288xf32, #tpu.memory_space<smem>>
    %1547 = vector.broadcast %1546 : f32 to vector<8x1024xf32>
    %1548 = arith.mulf %1547, %1545 : vector<8x1024xf32>
    %1549 = arith.addf %1529, %1548 : vector<8x1024xf32>
    %c215 = arith.constant 215 : index
    %1550 = memref.load %arg3[%c215] : memref<288xf32, #tpu.memory_space<smem>>
    %1551 = vector.broadcast %1550 : f32 to vector<8x1024xf32>
    %1552 = arith.mulf %1551, %1545 : vector<8x1024xf32>
    %1553 = arith.addf %1533, %1552 : vector<8x1024xf32>
    %c251 = arith.constant 251 : index
    %1554 = memref.load %arg3[%c251] : memref<288xf32, #tpu.memory_space<smem>>
    %1555 = vector.broadcast %1554 : f32 to vector<8x1024xf32>
    %1556 = arith.mulf %1555, %1545 : vector<8x1024xf32>
    %1557 = arith.addf %1537, %1556 : vector<8x1024xf32>
    %c287 = arith.constant 287 : index
    %1558 = memref.load %arg3[%c287] : memref<288xf32, #tpu.memory_space<smem>>
    %1559 = vector.broadcast %1558 : f32 to vector<8x1024xf32>
    %1560 = arith.mulf %1559, %1545 : vector<8x1024xf32>
    %1561 = arith.addf %1541, %1560 : vector<8x1024xf32>
    %c4_347 = arith.constant 4 : index
    %1562 = memref.load %arg4[%c4_347] : memref<8xf32, #tpu.memory_space<smem>>
    %1563 = vector.broadcast %1562 : f32 to vector<8x1024xf32>
    %1564 = arith.addf %1549, %1563 : vector<8x1024xf32>
    %cst_348 = arith.constant 0.000000e+00 : f32
    %1565 = vector.broadcast %cst_348 : f32 to vector<8x1024xf32>
    %1566 = arith.maximumf %1564, %1565 : vector<8x1024xf32>
    %c16_349 = arith.constant 16 : index
    %c0_350 = arith.constant 0 : index
    %c0_351 = arith.constant 0 : index
    %1567 = vector.load %arg5[%c16_349, %c0_350, %c0_351] : memref<32x8x1024xf32, #tpu.memory_space<vmem>>, vector<1x8x1024xf32>
    %1568 = vector.shape_cast %1567 : vector<1x8x1024xf32> to vector<8x1024xf32>
    %1569 = arith.mulf %1566, %1568 : vector<8x1024xf32>
    %cst_352 = arith.constant dense<0.000000e+00> : vector<8xf32>
    %1570 = vector.multi_reduction <add>, %1569, %cst_352 [1] : vector<8x1024xf32> to vector<8xf32>
    %1571 = vector.shape_cast %1570 : vector<8xf32> to vector<8x1xf32>
    %1572 = arith.addf %823, %1571 : vector<8x1xf32>
    %c17_353 = arith.constant 17 : index
    %c0_354 = arith.constant 0 : index
    %c0_355 = arith.constant 0 : index
    %1573 = vector.load %arg5[%c17_353, %c0_354, %c0_355] : memref<32x8x1024xf32, #tpu.memory_space<vmem>>, vector<1x8x1024xf32>
    %1574 = vector.shape_cast %1573 : vector<1x8x1024xf32> to vector<8x1024xf32>
    %1575 = arith.mulf %1566, %1574 : vector<8x1024xf32>
    %cst_356 = arith.constant dense<0.000000e+00> : vector<8xf32>
    %1576 = vector.multi_reduction <add>, %1575, %cst_356 [1] : vector<8x1024xf32> to vector<8xf32>
    %1577 = vector.shape_cast %1576 : vector<8xf32> to vector<8x1xf32>
    %1578 = arith.addf %829, %1577 : vector<8x1xf32>
    %c18_357 = arith.constant 18 : index
    %c0_358 = arith.constant 0 : index
    %c0_359 = arith.constant 0 : index
    %1579 = vector.load %arg5[%c18_357, %c0_358, %c0_359] : memref<32x8x1024xf32, #tpu.memory_space<vmem>>, vector<1x8x1024xf32>
    %1580 = vector.shape_cast %1579 : vector<1x8x1024xf32> to vector<8x1024xf32>
    %1581 = arith.mulf %1566, %1580 : vector<8x1024xf32>
    %cst_360 = arith.constant dense<0.000000e+00> : vector<8xf32>
    %1582 = vector.multi_reduction <add>, %1581, %cst_360 [1] : vector<8x1024xf32> to vector<8xf32>
    %1583 = vector.shape_cast %1582 : vector<8xf32> to vector<8x1xf32>
    %1584 = arith.addf %835, %1583 : vector<8x1xf32>
    %c19_361 = arith.constant 19 : index
    %c0_362 = arith.constant 0 : index
    %c0_363 = arith.constant 0 : index
    %1585 = vector.load %arg5[%c19_361, %c0_362, %c0_363] : memref<32x8x1024xf32, #tpu.memory_space<vmem>>, vector<1x8x1024xf32>
    %1586 = vector.shape_cast %1585 : vector<1x8x1024xf32> to vector<8x1024xf32>
    %1587 = arith.mulf %1566, %1586 : vector<8x1024xf32>
    %cst_364 = arith.constant dense<0.000000e+00> : vector<8xf32>
    %1588 = vector.multi_reduction <add>, %1587, %cst_364 [1] : vector<8x1024xf32> to vector<8xf32>
    %1589 = vector.shape_cast %1588 : vector<8xf32> to vector<8x1xf32>
    %1590 = arith.addf %841, %1589 : vector<8x1xf32>
    %c5_365 = arith.constant 5 : index
    %1591 = memref.load %arg4[%c5_365] : memref<8xf32, #tpu.memory_space<smem>>
    %1592 = vector.broadcast %1591 : f32 to vector<8x1024xf32>
    %1593 = arith.addf %1553, %1592 : vector<8x1024xf32>
    %cst_366 = arith.constant 0.000000e+00 : f32
    %1594 = vector.broadcast %cst_366 : f32 to vector<8x1024xf32>
    %1595 = arith.maximumf %1593, %1594 : vector<8x1024xf32>
    %c20_367 = arith.constant 20 : index
    %c0_368 = arith.constant 0 : index
    %c0_369 = arith.constant 0 : index
    %1596 = vector.load %arg5[%c20_367, %c0_368, %c0_369] : memref<32x8x1024xf32, #tpu.memory_space<vmem>>, vector<1x8x1024xf32>
    %1597 = vector.shape_cast %1596 : vector<1x8x1024xf32> to vector<8x1024xf32>
    %1598 = arith.mulf %1595, %1597 : vector<8x1024xf32>
    %cst_370 = arith.constant dense<0.000000e+00> : vector<8xf32>
    %1599 = vector.multi_reduction <add>, %1598, %cst_370 [1] : vector<8x1024xf32> to vector<8xf32>
    %1600 = vector.shape_cast %1599 : vector<8xf32> to vector<8x1xf32>
    %1601 = arith.addf %1572, %1600 : vector<8x1xf32>
    %c21_371 = arith.constant 21 : index
    %c0_372 = arith.constant 0 : index
    %c0_373 = arith.constant 0 : index
    %1602 = vector.load %arg5[%c21_371, %c0_372, %c0_373] : memref<32x8x1024xf32, #tpu.memory_space<vmem>>, vector<1x8x1024xf32>
    %1603 = vector.shape_cast %1602 : vector<1x8x1024xf32> to vector<8x1024xf32>
    %1604 = arith.mulf %1595, %1603 : vector<8x1024xf32>
    %cst_374 = arith.constant dense<0.000000e+00> : vector<8xf32>
    %1605 = vector.multi_reduction <add>, %1604, %cst_374 [1] : vector<8x1024xf32> to vector<8xf32>
    %1606 = vector.shape_cast %1605 : vector<8xf32> to vector<8x1xf32>
    %1607 = arith.addf %1578, %1606 : vector<8x1xf32>
    %c22_375 = arith.constant 22 : index
    %c0_376 = arith.constant 0 : index
    %c0_377 = arith.constant 0 : index
    %1608 = vector.load %arg5[%c22_375, %c0_376, %c0_377] : memref<32x8x1024xf32, #tpu.memory_space<vmem>>, vector<1x8x1024xf32>
    %1609 = vector.shape_cast %1608 : vector<1x8x1024xf32> to vector<8x1024xf32>
    %1610 = arith.mulf %1595, %1609 : vector<8x1024xf32>
    %cst_378 = arith.constant dense<0.000000e+00> : vector<8xf32>
    %1611 = vector.multi_reduction <add>, %1610, %cst_378 [1] : vector<8x1024xf32> to vector<8xf32>
    %1612 = vector.shape_cast %1611 : vector<8xf32> to vector<8x1xf32>
    %1613 = arith.addf %1584, %1612 : vector<8x1xf32>
    %c23_379 = arith.constant 23 : index
    %c0_380 = arith.constant 0 : index
    %c0_381 = arith.constant 0 : index
    %1614 = vector.load %arg5[%c23_379, %c0_380, %c0_381] : memref<32x8x1024xf32, #tpu.memory_space<vmem>>, vector<1x8x1024xf32>
    %1615 = vector.shape_cast %1614 : vector<1x8x1024xf32> to vector<8x1024xf32>
    %1616 = arith.mulf %1595, %1615 : vector<8x1024xf32>
    %cst_382 = arith.constant dense<0.000000e+00> : vector<8xf32>
    %1617 = vector.multi_reduction <add>, %1616, %cst_382 [1] : vector<8x1024xf32> to vector<8xf32>
    %1618 = vector.shape_cast %1617 : vector<8xf32> to vector<8x1xf32>
    %1619 = arith.addf %1590, %1618 : vector<8x1xf32>
    %c6_383 = arith.constant 6 : index
    %1620 = memref.load %arg4[%c6_383] : memref<8xf32, #tpu.memory_space<smem>>
    %1621 = vector.broadcast %1620 : f32 to vector<8x1024xf32>
    %1622 = arith.addf %1557, %1621 : vector<8x1024xf32>
    %cst_384 = arith.constant 0.000000e+00 : f32
    %1623 = vector.broadcast %cst_384 : f32 to vector<8x1024xf32>
    %1624 = arith.maximumf %1622, %1623 : vector<8x1024xf32>
    %c24_385 = arith.constant 24 : index
    %c0_386 = arith.constant 0 : index
    %c0_387 = arith.constant 0 : index
    %1625 = vector.load %arg5[%c24_385, %c0_386, %c0_387] : memref<32x8x1024xf32, #tpu.memory_space<vmem>>, vector<1x8x1024xf32>
    %1626 = vector.shape_cast %1625 : vector<1x8x1024xf32> to vector<8x1024xf32>
    %1627 = arith.mulf %1624, %1626 : vector<8x1024xf32>
    %cst_388 = arith.constant dense<0.000000e+00> : vector<8xf32>
    %1628 = vector.multi_reduction <add>, %1627, %cst_388 [1] : vector<8x1024xf32> to vector<8xf32>
    %1629 = vector.shape_cast %1628 : vector<8xf32> to vector<8x1xf32>
    %1630 = arith.addf %1601, %1629 : vector<8x1xf32>
    %c25_389 = arith.constant 25 : index
    %c0_390 = arith.constant 0 : index
    %c0_391 = arith.constant 0 : index
    %1631 = vector.load %arg5[%c25_389, %c0_390, %c0_391] : memref<32x8x1024xf32, #tpu.memory_space<vmem>>, vector<1x8x1024xf32>
    %1632 = vector.shape_cast %1631 : vector<1x8x1024xf32> to vector<8x1024xf32>
    %1633 = arith.mulf %1624, %1632 : vector<8x1024xf32>
    %cst_392 = arith.constant dense<0.000000e+00> : vector<8xf32>
    %1634 = vector.multi_reduction <add>, %1633, %cst_392 [1] : vector<8x1024xf32> to vector<8xf32>
    %1635 = vector.shape_cast %1634 : vector<8xf32> to vector<8x1xf32>
    %1636 = arith.addf %1607, %1635 : vector<8x1xf32>
    %c26_393 = arith.constant 26 : index
    %c0_394 = arith.constant 0 : index
    %c0_395 = arith.constant 0 : index
    %1637 = vector.load %arg5[%c26_393, %c0_394, %c0_395] : memref<32x8x1024xf32, #tpu.memory_space<vmem>>, vector<1x8x1024xf32>
    %1638 = vector.shape_cast %1637 : vector<1x8x1024xf32> to vector<8x1024xf32>
    %1639 = arith.mulf %1624, %1638 : vector<8x1024xf32>
    %cst_396 = arith.constant dense<0.000000e+00> : vector<8xf32>
    %1640 = vector.multi_reduction <add>, %1639, %cst_396 [1] : vector<8x1024xf32> to vector<8xf32>
    %1641 = vector.shape_cast %1640 : vector<8xf32> to vector<8x1xf32>
    %1642 = arith.addf %1613, %1641 : vector<8x1xf32>
    %c27_397 = arith.constant 27 : index
    %c0_398 = arith.constant 0 : index
    %c0_399 = arith.constant 0 : index
    %1643 = vector.load %arg5[%c27_397, %c0_398, %c0_399] : memref<32x8x1024xf32, #tpu.memory_space<vmem>>, vector<1x8x1024xf32>
    %1644 = vector.shape_cast %1643 : vector<1x8x1024xf32> to vector<8x1024xf32>
    %1645 = arith.mulf %1624, %1644 : vector<8x1024xf32>
    %cst_400 = arith.constant dense<0.000000e+00> : vector<8xf32>
    %1646 = vector.multi_reduction <add>, %1645, %cst_400 [1] : vector<8x1024xf32> to vector<8xf32>
    %1647 = vector.shape_cast %1646 : vector<8xf32> to vector<8x1xf32>
    %1648 = arith.addf %1619, %1647 : vector<8x1xf32>
    %c7_401 = arith.constant 7 : index
    %1649 = memref.load %arg4[%c7_401] : memref<8xf32, #tpu.memory_space<smem>>
    %1650 = vector.broadcast %1649 : f32 to vector<8x1024xf32>
    %1651 = arith.addf %1561, %1650 : vector<8x1024xf32>
    %cst_402 = arith.constant 0.000000e+00 : f32
    %1652 = vector.broadcast %cst_402 : f32 to vector<8x1024xf32>
    %1653 = arith.maximumf %1651, %1652 : vector<8x1024xf32>
    %c28_403 = arith.constant 28 : index
    %c0_404 = arith.constant 0 : index
    %c0_405 = arith.constant 0 : index
    %1654 = vector.load %arg5[%c28_403, %c0_404, %c0_405] : memref<32x8x1024xf32, #tpu.memory_space<vmem>>, vector<1x8x1024xf32>
    %1655 = vector.shape_cast %1654 : vector<1x8x1024xf32> to vector<8x1024xf32>
    %1656 = arith.mulf %1653, %1655 : vector<8x1024xf32>
    %cst_406 = arith.constant dense<0.000000e+00> : vector<8xf32>
    %1657 = vector.multi_reduction <add>, %1656, %cst_406 [1] : vector<8x1024xf32> to vector<8xf32>
    %1658 = vector.shape_cast %1657 : vector<8xf32> to vector<8x1xf32>
    %1659 = arith.addf %1630, %1658 : vector<8x1xf32>
    %c29_407 = arith.constant 29 : index
    %c0_408 = arith.constant 0 : index
    %c0_409 = arith.constant 0 : index
    %1660 = vector.load %arg5[%c29_407, %c0_408, %c0_409] : memref<32x8x1024xf32, #tpu.memory_space<vmem>>, vector<1x8x1024xf32>
    %1661 = vector.shape_cast %1660 : vector<1x8x1024xf32> to vector<8x1024xf32>
    %1662 = arith.mulf %1653, %1661 : vector<8x1024xf32>
    %cst_410 = arith.constant dense<0.000000e+00> : vector<8xf32>
    %1663 = vector.multi_reduction <add>, %1662, %cst_410 [1] : vector<8x1024xf32> to vector<8xf32>
    %1664 = vector.shape_cast %1663 : vector<8xf32> to vector<8x1xf32>
    %1665 = arith.addf %1636, %1664 : vector<8x1xf32>
    %c30_411 = arith.constant 30 : index
    %c0_412 = arith.constant 0 : index
    %c0_413 = arith.constant 0 : index
    %1666 = vector.load %arg5[%c30_411, %c0_412, %c0_413] : memref<32x8x1024xf32, #tpu.memory_space<vmem>>, vector<1x8x1024xf32>
    %1667 = vector.shape_cast %1666 : vector<1x8x1024xf32> to vector<8x1024xf32>
    %1668 = arith.mulf %1653, %1667 : vector<8x1024xf32>
    %cst_414 = arith.constant dense<0.000000e+00> : vector<8xf32>
    %1669 = vector.multi_reduction <add>, %1668, %cst_414 [1] : vector<8x1024xf32> to vector<8xf32>
    %1670 = vector.shape_cast %1669 : vector<8xf32> to vector<8x1xf32>
    %1671 = arith.addf %1642, %1670 : vector<8x1xf32>
    %c31_415 = arith.constant 31 : index
    %c0_416 = arith.constant 0 : index
    %c0_417 = arith.constant 0 : index
    %1672 = vector.load %arg5[%c31_415, %c0_416, %c0_417] : memref<32x8x1024xf32, #tpu.memory_space<vmem>>, vector<1x8x1024xf32>
    %1673 = vector.shape_cast %1672 : vector<1x8x1024xf32> to vector<8x1024xf32>
    %1674 = arith.mulf %1653, %1673 : vector<8x1024xf32>
    %cst_418 = arith.constant dense<0.000000e+00> : vector<8xf32>
    %1675 = vector.multi_reduction <add>, %1674, %cst_418 [1] : vector<8x1024xf32> to vector<8xf32>
    %1676 = vector.shape_cast %1675 : vector<8xf32> to vector<8x1xf32>
    %1677 = arith.addf %1648, %1676 : vector<8x1xf32>
    %c0_419 = arith.constant 0 : index
    %1678 = memref.load %arg6[%c0_419] : memref<4xf32, #tpu.memory_space<smem>>
    %1679 = vector.broadcast %1678 : f32 to vector<8x1xf32>
    %1680 = arith.addf %1659, %1679 : vector<8x1xf32>
    %cst_420 = arith.constant 0.000000e+00 : f32
    %1681 = vector.broadcast %cst_420 : f32 to vector<8x1xf32>
    %1682 = arith.subf %1681, %1680 : vector<8x1xf32>
    %1683 = math.exp %1682 : vector<8x1xf32>
    %cst_421 = arith.constant 1.000000e+00 : f32
    %1684 = vector.broadcast %cst_421 : f32 to vector<8x1xf32>
    %1685 = arith.addf %1684, %1683 : vector<8x1xf32>
    %cst_422 = arith.constant 1.000000e+00 : f32
    %1686 = vector.broadcast %cst_422 : f32 to vector<8x1xf32>
    %1687 = arith.divf %1686, %1685 : vector<8x1xf32>
    %c1_423 = arith.constant 1 : index
    %1688 = memref.load %arg6[%c1_423] : memref<4xf32, #tpu.memory_space<smem>>
    %1689 = vector.broadcast %1688 : f32 to vector<8x1xf32>
    %1690 = arith.addf %1665, %1689 : vector<8x1xf32>
    %cst_424 = arith.constant 0.000000e+00 : f32
    %1691 = vector.broadcast %cst_424 : f32 to vector<8x1xf32>
    %1692 = arith.subf %1691, %1690 : vector<8x1xf32>
    %1693 = math.exp %1692 : vector<8x1xf32>
    %cst_425 = arith.constant 1.000000e+00 : f32
    %1694 = vector.broadcast %cst_425 : f32 to vector<8x1xf32>
    %1695 = arith.addf %1694, %1693 : vector<8x1xf32>
    %cst_426 = arith.constant 1.000000e+00 : f32
    %1696 = vector.broadcast %cst_426 : f32 to vector<8x1xf32>
    %1697 = arith.divf %1696, %1695 : vector<8x1xf32>
    %c2_427 = arith.constant 2 : index
    %1698 = memref.load %arg6[%c2_427] : memref<4xf32, #tpu.memory_space<smem>>
    %1699 = vector.broadcast %1698 : f32 to vector<8x1xf32>
    %1700 = arith.addf %1671, %1699 : vector<8x1xf32>
    %cst_428 = arith.constant 0.000000e+00 : f32
    %1701 = vector.broadcast %cst_428 : f32 to vector<8x1xf32>
    %1702 = arith.subf %1701, %1700 : vector<8x1xf32>
    %1703 = math.exp %1702 : vector<8x1xf32>
    %cst_429 = arith.constant 1.000000e+00 : f32
    %1704 = vector.broadcast %cst_429 : f32 to vector<8x1xf32>
    %1705 = arith.addf %1704, %1703 : vector<8x1xf32>
    %cst_430 = arith.constant 1.000000e+00 : f32
    %1706 = vector.broadcast %cst_430 : f32 to vector<8x1xf32>
    %1707 = arith.divf %1706, %1705 : vector<8x1xf32>
    %c3_431 = arith.constant 3 : index
    %1708 = memref.load %arg6[%c3_431] : memref<4xf32, #tpu.memory_space<smem>>
    %1709 = vector.broadcast %1708 : f32 to vector<8x1xf32>
    %1710 = arith.addf %1677, %1709 : vector<8x1xf32>
    %cst_432 = arith.constant 0.000000e+00 : f32
    %1711 = vector.broadcast %cst_432 : f32 to vector<8x1xf32>
    %1712 = arith.subf %1711, %1710 : vector<8x1xf32>
    %1713 = math.exp %1712 : vector<8x1xf32>
    %cst_433 = arith.constant 1.000000e+00 : f32
    %1714 = vector.broadcast %cst_433 : f32 to vector<8x1xf32>
    %1715 = arith.addf %1714, %1713 : vector<8x1xf32>
    %cst_434 = arith.constant 1.000000e+00 : f32
    %1716 = vector.broadcast %cst_434 : f32 to vector<8x1xf32>
    %1717 = arith.divf %1716, %1715 : vector<8x1xf32>
    %1718 = arith.subf %1687, %1707 : vector<8x1xf32>
    %1719 = arith.addf %1687, %1707 : vector<8x1xf32>
    %1720 = arith.subf %1697, %1717 : vector<8x1xf32>
    %1721 = arith.addf %1697, %1717 : vector<8x1xf32>
    %1722 = tpu.concatenate %1718, %1720, %1719, %1720, %1719, %1721, %1718, %1721 in 1 : vector<8x1xf32>, vector<8x1xf32>, vector<8x1xf32>, vector<8x1xf32>, vector<8x1xf32>, vector<8x1xf32>, vector<8x1xf32>, vector<8x1xf32> -> vector<8x8xf32>
    %cst_435 = arith.constant 0.000000e+00 : f32
    %cst_436 = arith.constant 1.000000e+00 : f32
    %1723 = vector.broadcast %cst_435 : f32 to vector<8x8xf32>
    %1724 = arith.maximumf %1723, %1722 : vector<8x8xf32>
    %1725 = vector.broadcast %cst_436 : f32 to vector<8x8xf32>
    %1726 = arith.minimumf %1725, %1724 : vector<8x8xf32>
    %1727 = arith.index_cast %1 : i32 to index
    %c0_437 = arith.constant 0 : index
    %1728 = vector.load %arg7[%1727, %c0_437] : memref<8x8xf32, #tpu.memory_space<vmem>>, vector<8x8xf32>
    tpu.vector_store %arg7[%1727, %c0_437], %1726 {strides = array<i32>} : memref<8x8xf32, #tpu.memory_space<vmem>>, vector<8x8xf32>,
    %c1_i32_438 = arith.constant 1 : i32
    return
  }
  func.func @transform_0(%arg0: i32) -> (i32, i32, i32) {
    %c0_i32 = arith.constant 0 : i32
    %c0_i32_0 = arith.constant 0 : i32
    %c0_i32_1 = arith.constant 0 : i32
    return %c0_i32, %arg0, %c0_i32_0 : i32, i32, i32
  }
  func.func @transform_1(%arg0: i32) -> (i32, i32, i32) {
    %c0_i32 = arith.constant 0 : i32
    %c0_i32_0 = arith.constant 0 : i32
    %c0_i32_1 = arith.constant 0 : i32
    %c0_i32_2 = arith.constant 0 : i32
    return %c0_i32, %c0_i32_0, %c0_i32_1 : i32, i32, i32
  }
  func.func @transform_2(%arg0: i32) -> i32 {
    %c0_i32 = arith.constant 0 : i32
    %c0_i32_0 = arith.constant 0 : i32
    return %c0_i32 : i32
  }
  func.func @transform_3(%arg0: i32) -> i32 {
    %c0_i32 = arith.constant 0 : i32
    %c0_i32_0 = arith.constant 0 : i32
    return %c0_i32 : i32
  }
  func.func @transform_4(%arg0: i32) -> (i32, i32, i32) {
    %c0_i32 = arith.constant 0 : i32
    %c0_i32_0 = arith.constant 0 : i32
    %c0_i32_1 = arith.constant 0 : i32
    %c0_i32_2 = arith.constant 0 : i32
    return %c0_i32, %c0_i32_0, %c0_i32_1 : i32, i32, i32
  }
  func.func @transform_5(%arg0: i32) -> i32 {
    %c0_i32 = arith.constant 0 : i32
    %c0_i32_0 = arith.constant 0 : i32
    return %c0_i32 : i32
  }
  func.func @transform_6(%arg0: i32) -> (i32, i32) {
    %c0_i32 = arith.constant 0 : i32
    %c0_i32_0 = arith.constant 0 : i32
    return %arg0, %c0_i32 : i32, i32
  }
}

</mosaic_0001>

<llo_original>
// kernel: _lambda_.1
$region0: #{_lambda_.1}
  #allocation0 [shape = 'u32[]', space=smem, size = 0x4, offset = 0x4, fixed_abs, tag = 'smem constant byte address 0x4 - core index']
  #allocation1 [shape = 'u32[144,128]{1,0:T(1,128)}', space=vmem, size = 0x12000, scoped, tag = 'internal scratch']
  %s0 = inlined_call_operand.vmem [shape: f32[4,8,1024], index: 0, kind: input, shape index: {}]
  %s1 = inlined_call_operand.vmem [shape: f32[9,8,1024], index: 1, kind: input, shape index: {}]
  %s2 = inlined_call_operand.vmem [shape: f32[288], index: 2, kind: input, shape index: {}]
  %s3 = inlined_call_operand.vmem [shape: f32[8], index: 3, kind: input, shape index: {}]
  %s4 = inlined_call_operand.hbm [shape: f32[32,8,1024], index: 4, kind: input, shape index: {}]
  %s5 = inlined_call_operand.vmem [shape: f32[4], index: 5, kind: input, shape index: {}]
  %s6 = inlined_call_operand.vmem [shape: f32[8,8], index: 6, kind: output, shape index: {}]
  %s7 = sld [smem:[#allocation0]]
  $region50: #{_lambda_.1} parent=0
    _
  %s9 = ssub.s32 1, %s7
  %s10 = scalar_select 0, %s9, %s7
  $region1: #{_lambda_.1} parent=0
    #allocation2 [shape = 'u8[1536]{0}', space=smem, size = 0x600, scoped, tag = 'input window, operand 2, single buffered']
    #allocation3 [shape = 's32[1]{0}', space=sflag, size = 0x4, scoped, tag = 'scoped memory for _lambda_.1']
    #allocation4 [shape = 's32[1]{0}', space=sflag, size = 0x4, scoped, tag = 'scoped memory for _lambda_.1']
    #allocation5 [shape = 'u8[512]{0}', space=smem, size = 0x200, scoped, tag = 'input window, operand 3, single buffered']
    #allocation6 [shape = 's32[1]{0}', space=sflag, size = 0x4, scoped, tag = 'scoped memory for _lambda_.1']
    #allocation7 [shape = 'u8[1048576]{0}', space=vmem, size = 0x100000, scoped, tag = 'input window, operand 4, single buffered']
    #allocation8 [shape = 'u8[512]{0}', space=smem, size = 0x200, scoped, tag = 'input window, operand 5, single buffered']
    %11 = vsyncpa [#allocation4], 0
    %12 = vsyncpa [#allocation6], 0
    %13 = vsyncpa [#allocation3], 0
    // Predicated region
    $region2: #{_lambda_.1} parent=1 // pred_check
      _
    $region3: #{_lambda_.1} parent=1 // pred_check_branch
      %15 = sbr.rel (0) target = $region5
    $region4: #{_lambda_.1} parent=1 // pred_region
      _
    $region5: #{_lambda_.1} parent=1 // pred_fallthru
      _
    // Predicated region
    $region6: #{_lambda_.1} parent=1 // pred_check
      _
    $region7: #{_lambda_.1} parent=1 // pred_check_branch
      %17 = sbr.rel (0) target = $region9
    $region8: #{_lambda_.1} parent=1 // pred_region
      _
    $region9: #{_lambda_.1} parent=1 // pred_fallthru
      _
    // Predicated region
    $region10: #{_lambda_.1} parent=1 // pred_check
      _
    $region11: #{_lambda_.1} parent=1 // pred_check_branch
      %19 = sbr.rel (0) target = $region13
    $region12: #{_lambda_.1} parent=1 // pred_region
      %s21 = ssub.s32 48, 48
      %22 = vsyncadd [#allocation4], %s21
      %s24 = sshll.u32 %s2, 4
      %s25 = int_to_ptr.vmem [resolvable:$true] %s24
      %27 = dma.vmem_to_smem %s25, 48, [#allocation2], [#allocation4]
    $region13: #{_lambda_.1} parent=1 // pred_fallthru
      _
    // Predicated region
    $region14: #{_lambda_.1} parent=1 // pred_check
      _
    $region15: #{_lambda_.1} parent=1 // pred_check_branch
      %29 = sbr.rel (0) target = $region17
    $region16: #{_lambda_.1} parent=1 // pred_region
      %s31 = ssub.s32 16, 16
      %32 = vsyncadd [#allocation6], %s31
      %s34 = sshll.u32 %s3, 4
      %s35 = int_to_ptr.vmem [resolvable:$true] %s34
      %37 = dma.vmem_to_smem %s35, 16, [#allocation5], [#allocation6]
    $region17: #{_lambda_.1} parent=1 // pred_fallthru
      _
    // Predicated region
    $region18: #{_lambda_.1} parent=1 // pred_check
      _
    $region19: #{_lambda_.1} parent=1 // pred_check_branch
      %39 = sbr.rel (0) target = $region21
    $region20: #{_lambda_.1} parent=1 // pred_region
      %s41 = ssub.s32 32768, 32768
      %42 = vsyncadd [#allocation3], %s41
      %s43 = sshll.u32 [#allocation7], 4
      %s44 = int_to_ptr.vmem [resolvable:$true] %s43
      %49 = dma.hbm_to_vmem [thread:$0]  %s4, 32768, %s44, [#allocation3], 1024, 1024, 64
    $region21: #{_lambda_.1} parent=1 // pred_fallthru
      _
    // Predicated region
    $region22: #{_lambda_.1} parent=1 // pred_check
      _
    $region23: #{_lambda_.1} parent=1 // pred_check_branch
      %51 = sbr.rel (0) target = $region25
    $region24: #{_lambda_.1} parent=1 // pred_region
      %s53 = ssub.s32 16, 16
      %54 = vsyncadd [#allocation6], %s53
      %s56 = sshll.u32 %s5, 4
      %s57 = int_to_ptr.vmem [resolvable:$true] %s56
      %59 = dma.vmem_to_smem %s57, 16, [#allocation8], [#allocation6]
    $region25: #{_lambda_.1} parent=1 // pred_fallthru
      _
    // Predicated region
    $region26: #{_lambda_.1} parent=1 // pred_check
      _
    $region27: #{_lambda_.1} parent=1 // pred_check_branch
      %61 = sbr.rel (0) target = $region29
    $region28: #{_lambda_.1} parent=1 // pred_region
      %62 = dma.done [#allocation4], 48
    $region29: #{_lambda_.1} parent=1 // pred_fallthru
      _
    // Predicated region
    $region30: #{_lambda_.1} parent=1 // pred_check
      _
    $region31: #{_lambda_.1} parent=1 // pred_check_branch
      %64 = sbr.rel (0) target = $region33
    $region32: #{_lambda_.1} parent=1 // pred_region
      %65 = dma.done [#allocation6], 16
    $region33: #{_lambda_.1} parent=1 // pred_fallthru
      _
    // Predicated region
    $region34: #{_lambda_.1} parent=1 // pred_check
      _
    $region35: #{_lambda_.1} parent=1 // pred_check_branch
      %67 = sbr.rel (0) target = $region37
    $region36: #{_lambda_.1} parent=1 // pred_region
      %68 = dma.done [#allocation3], 32768
    $region37: #{_lambda_.1} parent=1 // pred_fallthru
      _
    // Predicated region
    $region38: #{_lambda_.1} parent=1 // pred_check
      _
    $region39: #{_lambda_.1} parent=1 // pred_check_branch
      %70 = sbr.rel (0) target = $region41
    $region40: #{_lambda_.1} parent=1 // pred_region
      %71 = dma.done [#allocation6], 16
    $region41: #{_lambda_.1} parent=1 // pred_fallthru
      _
    %72 = sfence
    %s73 = smul.u32 0, 8
    %s74 = smul.addr %s73, 8
    %s75 = scalar_lea.vmem %s0, %s74
    %v76 = vld [vmem:[%s75] sm:$0xff]
    %v77 = vld [vmem:[%s75 + $0x8] sm:$0xff]
    %v78 = vld [vmem:[%s75 + $0x10] sm:$0xff]
    %v79 = vld [vmem:[%s75 + $0x18] sm:$0xff]
    %v80 = vld [vmem:[%s75 + $0x20] sm:$0xff]
    %v81 = vld [vmem:[%s75 + $0x28] sm:$0xff]
    %v82 = vld [vmem:[%s75 + $0x30] sm:$0xff]
    %v83 = vld [vmem:[%s75 + $0x38] sm:$0xff]
    %84 = vrot.lane.b32.xlu0 %v76, 33
    %v85 = vpop.permute.xlu0 %84
    %86 = vrot.lane.b32.xlu0 %v77, 33
    %v87 = vpop.permute.xlu0 %86
    %88 = vrot.lane.b32.xlu0 %v78, 33
    %v89 = vpop.permute.xlu0 %88
    %90 = vrot.lane.b32.xlu0 %v79, 33
    %v91 = vpop.permute.xlu0 %90
    %92 = vrot.lane.b32.xlu0 %v80, 33
    %v93 = vpop.permute.xlu0 %92
    %94 = vrot.lane.b32.xlu0 %v81, 33
    %v95 = vpop.permute.xlu0 %94
    %96 = vrot.lane.b32.xlu0 %v82, 33
    %v97 = vpop.permute.xlu0 %96
    %98 = vrot.lane.b32.xlu0 %v83, 33
    %v99 = vpop.permute.xlu0 %98
    %v100 = vlaneseq
    %v101 = vand.u32 %v100, 127
    %vm102 = vcmp.lt.s32.totalorder %v101, 33
    %v103 = vsel %vm102, %v97, %v99
    %v104 = vsel %vm102, %v95, %v97
    %v105 = vsel %vm102, %v93, %v95
    %v106 = vsel %vm102, %v91, %v93
    %v107 = vsel %vm102, %v89, %v91
    %v108 = vsel %vm102, %v87, %v89
    %v109 = vsel %vm102, %v85, %v87
    %v110 = vsel %vm102, %v99, %v85
    %v111 = vld [vmem:[%s1] sm:$0xff]
    %v112 = vld [vmem:[%s1 + $0x8] sm:$0xff]
    %v113 = vld [vmem:[%s1 + $0x10] sm:$0xff]
    %v114 = vld [vmem:[%s1 + $0x18] sm:$0xff]
    %v115 = vld [vmem:[%s1 + $0x20] sm:$0xff]
    %v116 = vld [vmem:[%s1 + $0x28] sm:$0xff]
    %v117 = vld [vmem:[%s1 + $0x30] sm:$0xff]
    %v118 = vld [vmem:[%s1 + $0x38] sm:$0xff]
    %v119 = vmul.f32 %v110, %v111
    %v120 = vmul.f32 %v109, %v112
    %v121 = vmul.f32 %v108, %v113
    %v122 = vmul.f32 %v107, %v114
    %v123 = vmul.f32 %v106, %v115
    %v124 = vmul.f32 %v105, %v116
    %v125 = vmul.f32 %v104, %v117
    %v126 = vmul.f32 %v103, %v118
    %s127 = sld [smem:[#allocation2]]
    %v128 = vstv %s127
    %v129 = vmul.f32 %v128, %v119
    %v130 = vmul.f32 %v128, %v120
    %v131 = vmul.f32 %v128, %v121
    %v132 = vmul.f32 %v128, %v122
    %v133 = vmul.f32 %v128, %v123
    %v134 = vmul.f32 %v128, %v124
    %v135 = vmul.f32 %v128, %v125
    %v136 = vmul.f32 %v128, %v126
    %v137 = vadd.f32 %v129, 0.0
    %v138 = vadd.f32 %v130, 0.0
    %v139 = vadd.f32 %v131, 0.0
    %v140 = vadd.f32 %v132, 0.0
    %v141 = vadd.f32 %v133, 0.0
    %v142 = vadd.f32 %v134, 0.0
    %v143 = vadd.f32 %v135, 0.0
    %v144 = vadd.f32 %v136, 0.0
    %s145 = sld [smem:[#allocation2 + $0x24]]
    %v146 = vstv %s145
    %v147 = vmul.f32 %v146, %v119
    %v148 = vmul.f32 %v146, %v120
    %v149 = vmul.f32 %v146, %v121
    %v150 = vmul.f32 %v146, %v122
    %v151 = vmul.f32 %v146, %v123
    %v152 = vmul.f32 %v146, %v124
    %v153 = vmul.f32 %v146, %v125
    %v154 = vmul.f32 %v146, %v126
    %v155 = vadd.f32 %v147, 0.0
    %v156 = vadd.f32 %v148, 0.0
    %v157 = vadd.f32 %v149, 0.0
    %v158 = vadd.f32 %v150, 0.0
    %v159 = vadd.f32 %v151, 0.0
    %v160 = vadd.f32 %v152, 0.0
    %v161 = vadd.f32 %v153, 0.0
    %v162 = vadd.f32 %v154, 0.0
    %s163 = sld [smem:[#allocation2 + $0x48]]
    %v164 = vstv %s163
    %v165 = vmul.f32 %v164, %v119
    %v166 = vmul.f32 %v164, %v120
    %v167 = vmul.f32 %v164, %v121
    %v168 = vmul.f32 %v164, %v122
    %v169 = vmul.f32 %v164, %v123
    %v170 = vmul.f32 %v164, %v124
    %v171 = vmul.f32 %v164, %v125
    %v172 = vmul.f32 %v164, %v126
    %v173 = vadd.f32 %v165, 0.0
    %v174 = vadd.f32 %v166, 0.0
    %v175 = vadd.f32 %v167, 0.0
    %v176 = vadd.f32 %v168, 0.0
    %v177 = vadd.f32 %v169, 0.0
    %v178 = vadd.f32 %v170, 0.0
    %v179 = vadd.f32 %v171, 0.0
    %v180 = vadd.f32 %v172, 0.0
    %s181 = sld [smem:[#allocation2 + $0x6c]]
    %v182 = vstv %s181
    %v183 = vmul.f32 %v182, %v119
    %v184 = vmul.f32 %v182, %v120
    %v185 = vmul.f32 %v182, %v121
    %v186 = vmul.f32 %v182, %v122
    %v187 = vmul.f32 %v182, %v123
    %v188 = vmul.f32 %v182, %v124
    %v189 = vmul.f32 %v182, %v125
    %v190 = vmul.f32 %v182, %v126
    %v191 = vadd.f32 %v183, 0.0
    %v192 = vadd.f32 %v184, 0.0
    %v193 = vadd.f32 %v185, 0.0
    %v194 = vadd.f32 %v186, 0.0
    %v195 = vadd.f32 %v187, 0.0
    %v196 = vadd.f32 %v188, 0.0
    %v197 = vadd.f32 %v189, 0.0
    %v198 = vadd.f32 %v190, 0.0
    %199 = vrot.lane.b32.xlu0 %v76, 32
    %v200 = vpop.permute.xlu0 %199
    %201 = vrot.lane.b32.xlu0 %v77, 32
    %v202 = vpop.permute.xlu0 %201
    %203 = vrot.lane.b32.xlu0 %v78, 32
    %v204 = vpop.permute.xlu0 %203
    %205 = vrot.lane.b32.xlu0 %v79, 32
    %v206 = vpop.permute.xlu0 %205
    %207 = vrot.lane.b32.xlu0 %v80, 32
    %v208 = vpop.permute.xlu0 %207
    %209 = vrot.lane.b32.xlu0 %v81, 32
    %v210 = vpop.permute.xlu0 %209
    %211 = vrot.lane.b32.xlu0 %v82, 32
    %v212 = vpop.permute.xlu0 %211
    %213 = vrot.lane.b32.xlu0 %v83, 32
    %v214 = vpop.permute.xlu0 %213
    %vm215 = vcmp.lt.s32.totalorder %v101, 32
    %v216 = vsel %vm215, %v212, %v214
    %v217 = vsel %vm215, %v210, %v212
    %v218 = vsel %vm215, %v208, %v210
    %v219 = vsel %vm215, %v206, %v208
    %v220 = vsel %vm215, %v204, %v206
    %v221 = vsel %vm215, %v202, %v204
    %v222 = vsel %vm215, %v200, %v202
    %v223 = vsel %vm215, %v214, %v200
    %s224 = scalar_lea.vmem %s1, 64
    %v225 = vld [vmem:[%s224] sm:$0xff]
    %v226 = vld [vmem:[%s224 + $0x8] sm:$0xff]
    %v227 = vld [vmem:[%s224 + $0x10] sm:$0xff]
    %v228 = vld [vmem:[%s224 + $0x18] sm:$0xff]
    %v229 = vld [vmem:[%s224 + $0x20] sm:$0xff]
    %v230 = vld [vmem:[%s224 + $0x28] sm:$0xff]
    %v231 = vld [vmem:[%s224 + $0x30] sm:$0xff]
    %v232 = vld [vmem:[%s224 + $0x38] sm:$0xff]
    %v233 = vmul.f32 %v223, %v225
    %v234 = vmul.f32 %v222, %v226
    %v235 = vmul.f32 %v221, %v227
    %v236 = vmul.f32 %v220, %v228
    %v237 = vmul.f32 %v219, %v229
    %v238 = vmul.f32 %v218, %v230
    %v239 = vmul.f32 %v217, %v231
    %v240 = vmul.f32 %v216, %v232
    %s241 = sld [smem:[#allocation2 + $0x1]]
    %v242 = vstv %s241
    %v243 = vmul.f32 %v242, %v233
    %v244 = vmul.f32 %v242, %v234
    %v245 = vmul.f32 %v242, %v235
    %v246 = vmul.f32 %v242, %v236
    %v247 = vmul.f32 %v242, %v237
    %v248 = vmul.f32 %v242, %v238
    %v249 = vmul.f32 %v242, %v239
    %v250 = vmul.f32 %v242, %v240
    %v251 = vadd.f32 %v137, %v243
    %v252 = vadd.f32 %v138, %v244
    %v253 = vadd.f32 %v139, %v245
    %v254 = vadd.f32 %v140, %v246
    %v255 = vadd.f32 %v141, %v247
    %v256 = vadd.f32 %v142, %v248
    %v257 = vadd.f32 %v143, %v249
    %v258 = vadd.f32 %v144, %v250
    %s259 = sld [smem:[#allocation2 + $0x25]]
    %v260 = vstv %s259
    %v261 = vmul.f32 %v260, %v233
    %v262 = vmul.f32 %v260, %v234
    %v263 = vmul.f32 %v260, %v235
    %v264 = vmul.f32 %v260, %v236
    %v265 = vmul.f32 %v260, %v237
    %v266 = vmul.f32 %v260, %v238
    %v267 = vmul.f32 %v260, %v239
    %v268 = vmul.f32 %v260, %v240
    %v269 = vadd.f32 %v155, %v261
    %v270 = vadd.f32 %v156, %v262
    %v271 = vadd.f32 %v157, %v263
    %v272 = vadd.f32 %v158, %v264
    %v273 = vadd.f32 %v159, %v265
    %v274 = vadd.f32 %v160, %v266
    %v275 = vadd.f32 %v161, %v267
    %v276 = vadd.f32 %v162, %v268
    %s277 = sld [smem:[#allocation2 + $0x49]]
    %v278 = vstv %s277
    %v279 = vmul.f32 %v278, %v233
    %v280 = vmul.f32 %v278, %v234
    %v281 = vmul.f32 %v278, %v235
    %v282 = vmul.f32 %v278, %v236
    %v283 = vmul.f32 %v278, %v237
    %v284 = vmul.f32 %v278, %v238
    %v285 = vmul.f32 %v278, %v239
    %v286 = vmul.f32 %v278, %v240
    %v287 = vadd.f32 %v173, %v279
    %v288 = vadd.f32 %v174, %v280
    %v289 = vadd.f32 %v175, %v281
    %v290 = vadd.f32 %v176, %v282
    %v291 = vadd.f32 %v177, %v283
    %v292 = vadd.f32 %v178, %v284
    %v293 = vadd.f32 %v179, %v285
    %v294 = vadd.f32 %v180, %v286
    %s295 = sld [smem:[#allocation2 + $0x6d]]
    %v296 = vstv %s295
    %v297 = vmul.f32 %v296, %v233
    %v298 = vmul.f32 %v296, %v234
    %v299 = vmul.f32 %v296, %v235
    %v300 = vmul.f32 %v296, %v236
    %v301 = vmul.f32 %v296, %v237
    %v302 = vmul.f32 %v296, %v238
    %v303 = vmul.f32 %v296, %v239
    %v304 = vmul.f32 %v296, %v240
    %v305 = vadd.f32 %v191, %v297
    %v306 = vadd.f32 %v192, %v298
    %v307 = vadd.f32 %v193, %v299
    %v308 = vadd.f32 %v194, %v300
    %v309 = vadd.f32 %v195, %v301
    %v310 = vadd.f32 %v196, %v302
    %v311 = vadd.f32 %v197, %v303
    %v312 = vadd.f32 %v198, %v304
    %313 = vrot.lane.b32.xlu0 %v76, 31
    %v314 = vpop.permute.xlu0 %313
    %315 = vrot.lane.b32.xlu0 %v77, 31
    %v316 = vpop.permute.xlu0 %315
    %317 = vrot.lane.b32.xlu0 %v78, 31
    %v318 = vpop.permute.xlu0 %317
    %319 = vrot.lane.b32.xlu0 %v79, 31
    %v320 = vpop.permute.xlu0 %319
    %321 = vrot.lane.b32.xlu0 %v80, 31
    %v322 = vpop.permute.xlu0 %321
    %323 = vrot.lane.b32.xlu0 %v81, 31
    %v324 = vpop.permute.xlu0 %323
    %325 = vrot.lane.b32.xlu0 %v82, 31
    %v326 = vpop.permute.xlu0 %325
    %327 = vrot.lane.b32.xlu0 %v83, 31
    %v328 = vpop.permute.xlu0 %327
    %vm329 = vcmp.lt.s32.totalorder %v101, 31
    %v330 = vsel %vm329, %v326, %v328
    %v331 = vsel %vm329, %v324, %v326
    %v332 = vsel %vm329, %v322, %v324
    %v333 = vsel %vm329, %v320, %v322
    %v334 = vsel %vm329, %v318, %v320
    %v335 = vsel %vm329, %v316, %v318
    %v336 = vsel %vm329, %v314, %v316
    %v337 = vsel %vm329, %v328, %v314
    %s338 = scalar_lea.vmem %s1, 128
    %v339 = vld [vmem:[%s338] sm:$0xff]
    %v340 = vld [vmem:[%s338 + $0x8] sm:$0xff]
    %v341 = vld [vmem:[%s338 + $0x10] sm:$0xff]
    %v342 = vld [vmem:[%s338 + $0x18] sm:$0xff]
    %v343 = vld [vmem:[%s338 + $0x20] sm:$0xff]
    %v344 = vld [vmem:[%s338 + $0x28] sm:$0xff]
    %v345 = vld [vmem:[%s338 + $0x30] sm:$0xff]
    %v346 = vld [vmem:[%s338 + $0x38] sm:$0xff]
    %v347 = vmul.f32 %v337, %v339
    %v348 = vmul.f32 %v336, %v340
    %v349 = vmul.f32 %v335, %v341
    %v350 = vmul.f32 %v334, %v342
    %v351 = vmul.f32 %v333, %v343
    %v352 = vmul.f32 %v332, %v344
    %v353 = vmul.f32 %v331, %v345
    %v354 = vmul.f32 %v330, %v346
    %s355 = sld [smem:[#allocation2 + $0x2]]
    %v356 = vstv %s355
    %v357 = vmul.f32 %v356, %v347
    %v358 = vmul.f32 %v356, %v348
    %v359 = vmul.f32 %v356, %v349
    %v360 = vmul.f32 %v356, %v350
    %v361 = vmul.f32 %v356, %v351
    %v362 = vmul.f32 %v356, %v352
    %v363 = vmul.f32 %v356, %v353
    %v364 = vmul.f32 %v356, %v354
    %v365 = vadd.f32 %v251, %v357
    %v366 = vadd.f32 %v252, %v358
    %v367 = vadd.f32 %v253, %v359
    %v368 = vadd.f32 %v254, %v360
    %v369 = vadd.f32 %v255, %v361
    %v370 = vadd.f32 %v256, %v362
    %v371 = vadd.f32 %v257, %v363
    %v372 = vadd.f32 %v258, %v364
    %s373 = sld [smem:[#allocation2 + $0x26]]
    %v374 = vstv %s373
    %v375 = vmul.f32 %v374, %v347
    %v376 = vmul.f32 %v374, %v348
    %v377 = vmul.f32 %v374, %v349
    %v378 = vmul.f32 %v374, %v350
    %v379 = vmul.f32 %v374, %v351
    %v380 = vmul.f32 %v374, %v352
    %v381 = vmul.f32 %v374, %v353
    %v382 = vmul.f32 %v374, %v354
    %v383 = vadd.f32 %v269, %v375
    %v384 = vadd.f32 %v270, %v376
    %v385 = vadd.f32 %v271, %v377
    %v386 = vadd.f32 %v272, %v378
    %v387 = vadd.f32 %v273, %v379
    %v388 = vadd.f32 %v274, %v380
    %v389 = vadd.f32 %v275, %v381
    %v390 = vadd.f32 %v276, %v382
    %s391 = sld [smem:[#allocation2 + $0x4a]]
    %v392 = vstv %s391
    %v393 = vmul.f32 %v392, %v347
    %v394 = vmul.f32 %v392, %v348
    %v395 = vmul.f32 %v392, %v349
    %v396 = vmul.f32 %v392, %v350
    %v397 = vmul.f32 %v392, %v351
    %v398 = vmul.f32 %v392, %v352
    %v399 = vmul.f32 %v392, %v353
    %v400 = vmul.f32 %v392, %v354
    %v401 = vadd.f32 %v287, %v393
    %v402 = vadd.f32 %v288, %v394
    %v403 = vadd.f32 %v289, %v395
    %v404 = vadd.f32 %v290, %v396
    %v405 = vadd.f32 %v291, %v397
    %v406 = vadd.f32 %v292, %v398
    %v407 = vadd.f32 %v293, %v399
    %v408 = vadd.f32 %v294, %v400
    %s409 = sld [smem:[#allocation2 + $0x6e]]
    %v410 = vstv %s409
    %v411 = vmul.f32 %v410, %v347
    %v412 = vmul.f32 %v410, %v348
    %v413 = vmul.f32 %v410, %v349
    %v414 = vmul.f32 %v410, %v350
    %v415 = vmul.f32 %v410, %v351
    %v416 = vmul.f32 %v410, %v352
    %v417 = vmul.f32 %v410, %v353
    %v418 = vmul.f32 %v410, %v354
    %v419 = vadd.f32 %v305, %v411
    %v420 = vadd.f32 %v306, %v412
    %v421 = vadd.f32 %v307, %v413
    %v422 = vadd.f32 %v308, %v414
    %v423 = vadd.f32 %v309, %v415
    %v424 = vadd.f32 %v310, %v416
    %v425 = vadd.f32 %v311, %v417
    %v426 = vadd.f32 %v312, %v418
    %427 = vrot.lane.b32.xlu0 %v76, 1
    %v428 = vpop.permute.xlu0 %427
    %429 = vrot.lane.b32.xlu0 %v77, 1
    %v430 = vpop.permute.xlu0 %429
    %431 = vrot.lane.b32.xlu0 %v78, 1
    %v432 = vpop.permute.xlu0 %431
    %433 = vrot.lane.b32.xlu0 %v79, 1
    %v434 = vpop.permute.xlu0 %433
    %435 = vrot.lane.b32.xlu0 %v80, 1
    %v436 = vpop.permute.xlu0 %435
    %437 = vrot.lane.b32.xlu0 %v81, 1
    %v438 = vpop.permute.xlu0 %437
    %439 = vrot.lane.b32.xlu0 %v82, 1
    %v440 = vpop.permute.xlu0 %439
    %441 = vrot.lane.b32.xlu0 %v83, 1
    %v442 = vpop.permute.xlu0 %441
    %vm443 = vcmp.lt.s32.totalorder %v101, 1
    %v444 = vsel %vm443, %v440, %v442
    %v445 = vsel %vm443, %v438, %v440
    %v446 = vsel %vm443, %v436, %v438
    %v447 = vsel %vm443, %v434, %v436
    %v448 = vsel %vm443, %v432, %v434
    %v449 = vsel %vm443, %v430, %v432
    %v450 = vsel %vm443, %v428, %v430
    %v451 = vsel %vm443, %v442, %v428
    %s452 = scalar_lea.vmem %s1, 192
    %v453 = vld [vmem:[%s452] sm:$0xff]
    %v454 = vld [vmem:[%s452 + $0x8] sm:$0xff]
    %v455 = vld [vmem:[%s452 + $0x10] sm:$0xff]
    %v456 = vld [vmem:[%s452 + $0x18] sm:$0xff]
    %v457 = vld [vmem:[%s452 + $0x20] sm:$0xff]
    %v458 = vld [vmem:[%s452 + $0x28] sm:$0xff]
    %v459 = vld [vmem:[%s452 + $0x30] sm:$0xff]
    %v460 = vld [vmem:[%s452 + $0x38] sm:$0xff]
    %v461 = vmul.f32 %v451, %v453
    %v462 = vmul.f32 %v450, %v454
    %v463 = vmul.f32 %v449, %v455
    %v464 = vmul.f32 %v448, %v456
    %v465 = vmul.f32 %v447, %v457
    %v466 = vmul.f32 %v446, %v458
    %v467 = vmul.f32 %v445, %v459
    %v468 = vmul.f32 %v444, %v460
    %s469 = sld [smem:[#allocation2 + $0x3]]
    %v470 = vstv %s469
    %v471 = vmul.f32 %v470, %v461
    %v472 = vmul.f32 %v470, %v462
    %v473 = vmul.f32 %v470, %v463
    %v474 = vmul.f32 %v470, %v464
    %v475 = vmul.f32 %v470, %v465
    %v476 = vmul.f32 %v470, %v466
    %v477 = vmul.f32 %v470, %v467
    %v478 = vmul.f32 %v470, %v468
    %v479 = vadd.f32 %v365, %v471
    %v480 = vadd.f32 %v366, %v472
    %v481 = vadd.f32 %v367, %v473
    %v482 = vadd.f32 %v368, %v474
    %v483 = vadd.f32 %v369, %v475
    %v484 = vadd.f32 %v370, %v476
    %v485 = vadd.f32 %v371, %v477
    %v486 = vadd.f32 %v372, %v478
    %s487 = sld [smem:[#allocation2 + $0x27]]
    %v488 = vstv %s487
    %v489 = vmul.f32 %v488, %v461
    %v490 = vmul.f32 %v488, %v462
    %v491 = vmul.f32 %v488, %v463
    %v492 = vmul.f32 %v488, %v464
    %v493 = vmul.f32 %v488, %v465
    %v494 = vmul.f32 %v488, %v466
    %v495 = vmul.f32 %v488, %v467
    %v496 = vmul.f32 %v488, %v468
    %v497 = vadd.f32 %v383, %v489
    %v498 = vadd.f32 %v384, %v490
    %v499 = vadd.f32 %v385, %v491
    %v500 = vadd.f32 %v386, %v492
    %v501 = vadd.f32 %v387, %v493
    %v502 = vadd.f32 %v388, %v494
    %v503 = vadd.f32 %v389, %v495
    %v504 = vadd.f32 %v390, %v496
    %s505 = sld [smem:[#allocation2 + $0x4b]]
    %v506 = vstv %s505
    %v507 = vmul.f32 %v506, %v461
    %v508 = vmul.f32 %v506, %v462
    %v509 = vmul.f32 %v506, %v463
    %v510 = vmul.f32 %v506, %v464
    %v511 = vmul.f32 %v506, %v465
    %v512 = vmul.f32 %v506, %v466
    %v513 = vmul.f32 %v506, %v467
    %v514 = vmul.f32 %v506, %v468
    %v515 = vadd.f32 %v401, %v507
    %v516 = vadd.f32 %v402, %v508
    %v517 = vadd.f32 %v403, %v509
    %v518 = vadd.f32 %v404, %v510
    %v519 = vadd.f32 %v405, %v511
    %v520 = vadd.f32 %v406, %v512
    %v521 = vadd.f32 %v407, %v513
    %v522 = vadd.f32 %v408, %v514
    %s523 = sld [smem:[#allocation2 + $0x6f]]
    %v524 = vstv %s523
    %v525 = vmul.f32 %v524, %v461
    %v526 = vmul.f32 %v524, %v462
    %v527 = vmul.f32 %v524, %v463
    %v528 = vmul.f32 %v524, %v464
    %v529 = vmul.f32 %v524, %v465
    %v530 = vmul.f32 %v524, %v466
    %v531 = vmul.f32 %v524, %v467
    %v532 = vmul.f32 %v524, %v468
    %v533 = vadd.f32 %v419, %v525
    %v534 = vadd.f32 %v420, %v526
    %v535 = vadd.f32 %v421, %v527
    %v536 = vadd.f32 %v422, %v528
    %v537 = vadd.f32 %v423, %v529
    %v538 = vadd.f32 %v424, %v530
    %v539 = vadd.f32 %v425, %v531
    %v540 = vadd.f32 %v426, %v532
    %s541 = sld [smem:[#allocation2 + $0x4]]
    %v542 = vstv %s541
    %v543 = vmul.f32 %v542, %v76
    %v544 = vmul.f32 %v542, %v77
    %v545 = vmul.f32 %v542, %v78
    %v546 = vmul.f32 %v542, %v79
    %v547 = vmul.f32 %v542, %v80
    %v548 = vmul.f32 %v542, %v81
    %v549 = vmul.f32 %v542, %v82
    %v550 = vmul.f32 %v542, %v83
    %v551 = vadd.f32 %v479, %v543
    %v552 = vadd.f32 %v480, %v544
    %v553 = vadd.f32 %v481, %v545
    %v554 = vadd.f32 %v482, %v546
    %v555 = vadd.f32 %v483, %v547
    %v556 = vadd.f32 %v484, %v548
    %v557 = vadd.f32 %v485, %v549
    %v558 = vadd.f32 %v486, %v550
    %s559 = sld [smem:[#allocation2 + $0x28]]
    %v560 = vstv %s559
    %v561 = vmul.f32 %v560, %v76
    %v562 = vmul.f32 %v560, %v77
    %v563 = vmul.f32 %v560, %v78
    %v564 = vmul.f32 %v560, %v79
    %v565 = vmul.f32 %v560, %v80
    %v566 = vmul.f32 %v560, %v81
    %v567 = vmul.f32 %v560, %v82
    %v568 = vmul.f32 %v560, %v83
    %v569 = vadd.f32 %v497, %v561
    %v570 = vadd.f32 %v498, %v562
    %v571 = vadd.f32 %v499, %v563
    %v572 = vadd.f32 %v500, %v564
    %v573 = vadd.f32 %v501, %v565
    %v574 = vadd.f32 %v502, %v566
    %v575 = vadd.f32 %v503, %v567
    %v576 = vadd.f32 %v504, %v568
    %s577 = sld [smem:[#allocation2 + $0x4c]]
    %v578 = vstv %s577
    %v579 = vmul.f32 %v578, %v76
    %v580 = vmul.f32 %v578, %v77
    %v581 = vmul.f32 %v578, %v78
    %v582 = vmul.f32 %v578, %v79
    %v583 = vmul.f32 %v578, %v80
    %v584 = vmul.f32 %v578, %v81
    %v585 = vmul.f32 %v578, %v82
    %v586 = vmul.f32 %v578, %v83
    %v587 = vadd.f32 %v515, %v579
    %v588 = vadd.f32 %v516, %v580
    %v589 = vadd.f32 %v517, %v581
    %v590 = vadd.f32 %v518, %v582
    %v591 = vadd.f32 %v519, %v583
    %v592 = vadd.f32 %v520, %v584
    %v593 = vadd.f32 %v521, %v585
    %v594 = vadd.f32 %v522, %v586
    %s595 = sld [smem:[#allocation2 + $0x70]]
    %v596 = vstv %s595
    %v597 = vmul.f32 %v596, %v76
    %v598 = vmul.f32 %v596, %v77
    %v599 = vmul.f32 %v596, %v78
    %v600 = vmul.f32 %v596, %v79
    %v601 = vmul.f32 %v596, %v80
    %v602 = vmul.f32 %v596, %v81
    %v603 = vmul.f32 %v596, %v82
    %v604 = vmul.f32 %v596, %v83
    %v605 = vadd.f32 %v533, %v597
    %v606 = vadd.f32 %v534, %v598
    %v607 = vadd.f32 %v535, %v599
    %v608 = vadd.f32 %v536, %v600
    %v609 = vadd.f32 %v537, %v601
    %v610 = vadd.f32 %v538, %v602
    %v611 = vadd.f32 %v539, %v603
    %v612 = vadd.f32 %v540, %v604
    %613 = vrot.lane.b32.xlu0 %v76, 127
    %v614 = vpop.permute.xlu0 %613
    %615 = vrot.lane.b32.xlu0 %v77, 127
    %v616 = vpop.permute.xlu0 %615
    %617 = vrot.lane.b32.xlu0 %v78, 127
    %v618 = vpop.permute.xlu0 %617
    %619 = vrot.lane.b32.xlu0 %v79, 127
    %v620 = vpop.permute.xlu0 %619
    %621 = vrot.lane.b32.xlu0 %v80, 127
    %v622 = vpop.permute.xlu0 %621
    %623 = vrot.lane.b32.xlu0 %v81, 127
    %v624 = vpop.permute.xlu0 %623
    %625 = vrot.lane.b32.xlu0 %v82, 127
    %v626 = vpop.permute.xlu0 %625
    %627 = vrot.lane.b32.xlu0 %v83, 127
    %v628 = vpop.permute.xlu0 %627
    %vm629 = vcmp.lt.s32.totalorder %v101, 127
    %v630 = vsel %vm629, %v626, %v628
    %v631 = vsel %vm629, %v624, %v626
    %v632 = vsel %vm629, %v622, %v624
    %v633 = vsel %vm629, %v620, %v622
    %v634 = vsel %vm629, %v618, %v620
    %v635 = vsel %vm629, %v616, %v618
    %v636 = vsel %vm629, %v614, %v616
    %v637 = vsel %vm629, %v628, %v614
    %s638 = scalar_lea.vmem %s1, 320
    %v639 = vld [vmem:[%s638] sm:$0xff]
    %v640 = vld [vmem:[%s638 + $0x8] sm:$0xff]
    %v641 = vld [vmem:[%s638 + $0x10] sm:$0xff]
    %v642 = vld [vmem:[%s638 + $0x18] sm:$0xff]
    %v643 = vld [vmem:[%s638 + $0x20] sm:$0xff]
    %v644 = vld [vmem:[%s638 + $0x28] sm:$0xff]
    %v645 = vld [vmem:[%s638 + $0x30] sm:$0xff]
    %v646 = vld [vmem:[%s638 + $0x38] sm:$0xff]
    %v647 = vmul.f32 %v636, %v639
    %v648 = vmul.f32 %v635, %v640
    %v649 = vmul.f32 %v634, %v641
    %v650 = vmul.f32 %v633, %v642
    %v651 = vmul.f32 %v632, %v643
    %v652 = vmul.f32 %v631, %v644
    %v653 = vmul.f32 %v630, %v645
    %v654 = vmul.f32 %v637, %v646
    %s655 = sld [smem:[#allocation2 + $0x5]]
    %v656 = vstv %s655
    %v657 = vmul.f32 %v656, %v647
    %v658 = vmul.f32 %v656, %v648
    %v659 = vmul.f32 %v656, %v649
    %v660 = vmul.f32 %v656, %v650
    %v661 = vmul.f32 %v656, %v651
    %v662 = vmul.f32 %v656, %v652
    %v663 = vmul.f32 %v656, %v653
    %v664 = vmul.f32 %v656, %v654
    %v665 = vadd.f32 %v551, %v657
    %v666 = vadd.f32 %v552, %v658
    %v667 = vadd.f32 %v553, %v659
    %v668 = vadd.f32 %v554, %v660
    %v669 = vadd.f32 %v555, %v661
    %v670 = vadd.f32 %v556, %v662
    %v671 = vadd.f32 %v557, %v663
    %v672 = vadd.f32 %v558, %v664
    %s673 = sld [smem:[#allocation2 + $0x29]]
    %v674 = vstv %s673
    %v675 = vmul.f32 %v674, %v647
    %v676 = vmul.f32 %v674, %v648
    %v677 = vmul.f32 %v674, %v649
    %v678 = vmul.f32 %v674, %v650
    %v679 = vmul.f32 %v674, %v651
    %v680 = vmul.f32 %v674, %v652
    %v681 = vmul.f32 %v674, %v653
    %v682 = vmul.f32 %v674, %v654
    %v683 = vadd.f32 %v569, %v675
    %v684 = vadd.f32 %v570, %v676
    %v685 = vadd.f32 %v571, %v677
    %v686 = vadd.f32 %v572, %v678
    %v687 = vadd.f32 %v573, %v679
    %v688 = vadd.f32 %v574, %v680
    %v689 = vadd.f32 %v575, %v681
    %v690 = vadd.f32 %v576, %v682
    %s691 = sld [smem:[#allocation2 + $0x4d]]
    %v692 = vstv %s691
    %v693 = vmul.f32 %v692, %v647
    %v694 = vmul.f32 %v692, %v648
    %v695 = vmul.f32 %v692, %v649
    %v696 = vmul.f32 %v692, %v650
    %v697 = vmul.f32 %v692, %v651
    %v698 = vmul.f32 %v692, %v652
    %v699 = vmul.f32 %v692, %v653
    %v700 = vmul.f32 %v692, %v654
    %v701 = vadd.f32 %v587, %v693
    %v702 = vadd.f32 %v588, %v694
    %v703 = vadd.f32 %v589, %v695
    %v704 = vadd.f32 %v590, %v696
    %v705 = vadd.f32 %v591, %v697
    %v706 = vadd.f32 %v592, %v698
    %v707 = vadd.f32 %v593, %v699
    %v708 = vadd.f32 %v594, %v700
    %s709 = sld [smem:[#allocation2 + $0x71]]
    %v710 = vstv %s709
    %v711 = vmul.f32 %v710, %v647
    %v712 = vmul.f32 %v710, %v648
    %v713 = vmul.f32 %v710, %v649
    %v714 = vmul.f32 %v710, %v650
    %v715 = vmul.f32 %v710, %v651
    %v716 = vmul.f32 %v710, %v652
    %v717 = vmul.f32 %v710, %v653
    %v718 = vmul.f32 %v710, %v654
    %v719 = vadd.f32 %v605, %v711
    %v720 = vadd.f32 %v606, %v712
    %v721 = vadd.f32 %v607, %v713
    %v722 = vadd.f32 %v608, %v714
    %v723 = vadd.f32 %v609, %v715
    %v724 = vadd.f32 %v610, %v716
    %v725 = vadd.f32 %v611, %v717
    %v726 = vadd.f32 %v612, %v718
    %727 = vrot.lane.b32.xlu0 %v76, 97
    %v728 = vpop.permute.xlu0 %727
    %729 = vrot.lane.b32.xlu0 %v77, 97
    %v730 = vpop.permute.xlu0 %729
    %731 = vrot.lane.b32.xlu0 %v78, 97
    %v732 = vpop.permute.xlu0 %731
    %733 = vrot.lane.b32.xlu0 %v79, 97
    %v734 = vpop.permute.xlu0 %733
    %735 = vrot.lane.b32.xlu0 %v80, 97
    %v736 = vpop.permute.xlu0 %735
    %737 = vrot.lane.b32.xlu0 %v81, 97
    %v738 = vpop.permute.xlu0 %737
    %739 = vrot.lane.b32.xlu0 %v82, 97
    %v740 = vpop.permute.xlu0 %739
    %741 = vrot.lane.b32.xlu0 %v83, 97
    %v742 = vpop.permute.xlu0 %741
    %vm743 = vcmp.lt.s32.totalorder %v101, 97
    %v744 = vsel %vm743, %v740, %v742
    %v745 = vsel %vm743, %v738, %v740
    %v746 = vsel %vm743, %v736, %v738
    %v747 = vsel %vm743, %v734, %v736
    %v748 = vsel %vm743, %v732, %v734
    %v749 = vsel %vm743, %v730, %v732
    %v750 = vsel %vm743, %v728, %v730
    %v751 = vsel %vm743, %v742, %v728
    %s752 = scalar_lea.vmem %s1, 384
    %v753 = vld [vmem:[%s752] sm:$0xff]
    %v754 = vld [vmem:[%s752 + $0x8] sm:$0xff]
    %v755 = vld [vmem:[%s752 + $0x10] sm:$0xff]
    %v756 = vld [vmem:[%s752 + $0x18] sm:$0xff]
    %v757 = vld [vmem:[%s752 + $0x20] sm:$0xff]
    %v758 = vld [vmem:[%s752 + $0x28] sm:$0xff]
    %v759 = vld [vmem:[%s752 + $0x30] sm:$0xff]
    %v760 = vld [vmem:[%s752 + $0x38] sm:$0xff]
    %v761 = vmul.f32 %v750, %v753
    %v762 = vmul.f32 %v749, %v754
    %v763 = vmul.f32 %v748, %v755
    %v764 = vmul.f32 %v747, %v756
    %v765 = vmul.f32 %v746, %v757
    %v766 = vmul.f32 %v745, %v758
    %v767 = vmul.f32 %v744, %v759
    %v768 = vmul.f32 %v751, %v760
    %s769 = sld [smem:[#allocation2 + $0x6]]
    %v770 = vstv %s769
    %v771 = vmul.f32 %v770, %v761
    %v772 = vmul.f32 %v770, %v762
    %v773 = vmul.f32 %v770, %v763
    %v774 = vmul.f32 %v770, %v764
    %v775 = vmul.f32 %v770, %v765
    %v776 = vmul.f32 %v770, %v766
    %v777 = vmul.f32 %v770, %v767
    %v778 = vmul.f32 %v770, %v768
    %v779 = vadd.f32 %v665, %v771
    %v780 = vadd.f32 %v666, %v772
    %v781 = vadd.f32 %v667, %v773
    %v782 = vadd.f32 %v668, %v774
    %v783 = vadd.f32 %v669, %v775
    %v784 = vadd.f32 %v670, %v776
    %v785 = vadd.f32 %v671, %v777
    %v786 = vadd.f32 %v672, %v778
    %s787 = sld [smem:[#allocation2 + $0x2a]]
    %v788 = vstv %s787
    %v789 = vmul.f32 %v788, %v761
    %v790 = vmul.f32 %v788, %v762
    %v791 = vmul.f32 %v788, %v763
    %v792 = vmul.f32 %v788, %v764
    %v793 = vmul.f32 %v788, %v765
    %v794 = vmul.f32 %v788, %v766
    %v795 = vmul.f32 %v788, %v767
    %v796 = vmul.f32 %v788, %v768
    %v797 = vadd.f32 %v683, %v789
    %v798 = vadd.f32 %v684, %v790
    %v799 = vadd.f32 %v685, %v791
    %v800 = vadd.f32 %v686, %v792
    %v801 = vadd.f32 %v687, %v793
    %v802 = vadd.f32 %v688, %v794
    %v803 = vadd.f32 %v689, %v795
    %v804 = vadd.f32 %v690, %v796
    %s805 = sld [smem:[#allocation2 + $0x4e]]
    %v806 = vstv %s805
    %v807 = vmul.f32 %v806, %v761
    %v808 = vmul.f32 %v806, %v762
    %v809 = vmul.f32 %v806, %v763
    %v810 = vmul.f32 %v806, %v764
    %v811 = vmul.f32 %v806, %v765
    %v812 = vmul.f32 %v806, %v766
    %v813 = vmul.f32 %v806, %v767
    %v814 = vmul.f32 %v806, %v768
    %v815 = vadd.f32 %v701, %v807
    %v816 = vadd.f32 %v702, %v808
    %v817 = vadd.f32 %v703, %v809
    %v818 = vadd.f32 %v704, %v810
    %v819 = vadd.f32 %v705, %v811
    %v820 = vadd.f32 %v706, %v812
    %v821 = vadd.f32 %v707, %v813
    %v822 = vadd.f32 %v708, %v814
    %s823 = sld [smem:[#allocation2 + $0x72]]
    %v824 = vstv %s823
    %v825 = vmul.f32 %v824, %v761
    %v826 = vmul.f32 %v824, %v762
    %v827 = vmul.f32 %v824, %v763
    %v828 = vmul.f32 %v824, %v764
    %v829 = vmul.f32 %v824, %v765
    %v830 = vmul.f32 %v824, %v766
    %v831 = vmul.f32 %v824, %v767
    %v832 = vmul.f32 %v824, %v768
    %v833 = vadd.f32 %v719, %v825
    %v834 = vadd.f32 %v720, %v826
    %v835 = vadd.f32 %v721, %v827
    %v836 = vadd.f32 %v722, %v828
    %v837 = vadd.f32 %v723, %v829
    %v838 = vadd.f32 %v724, %v830
    %v839 = vadd.f32 %v725, %v831
    %v840 = vadd.f32 %v726, %v832
    %841 = vrot.lane.b32.xlu0 %v76, 96
    %v842 = vpop.permute.xlu0 %841
    %843 = vrot.lane.b32.xlu0 %v77, 96
    %v844 = vpop.permute.xlu0 %843
    %845 = vrot.lane.b32.xlu0 %v78, 96
    %v846 = vpop.permute.xlu0 %845
    %847 = vrot.lane.b32.xlu0 %v79, 96
    %v848 = vpop.permute.xlu0 %847
    %849 = vrot.lane.b32.xlu0 %v80, 96
    %v850 = vpop.permute.xlu0 %849
    %851 = vrot.lane.b32.xlu0 %v81, 96
    %v852 = vpop.permute.xlu0 %851
    %853 = vrot.lane.b32.xlu0 %v82, 96
    %v854 = vpop.permute.xlu0 %853
    %855 = vrot.lane.b32.xlu0 %v83, 96
    %v856 = vpop.permute.xlu0 %855
    %vm857 = vcmp.lt.s32.totalorder %v101, 96
    %v858 = vsel %vm857, %v854, %v856
    %v859 = vsel %vm857, %v852, %v854
    %v860 = vsel %vm857, %v850, %v852
    %v861 = vsel %vm857, %v848, %v850
    %v862 = vsel %vm857, %v846, %v848
    %v863 = vsel %vm857, %v844, %v846
    %v864 = vsel %vm857, %v842, %v844
    %v865 = vsel %vm857, %v856, %v842
    %s866 = scalar_lea.vmem %s1, 448
    %v867 = vld [vmem:[%s866] sm:$0xff]
    %v868 = vld [vmem:[%s866 + $0x8] sm:$0xff]
    %v869 = vld [vmem:[%s866 + $0x10] sm:$0xff]
    %v870 = vld [vmem:[%s866 + $0x18] sm:$0xff]
    %v871 = vld [vmem:[%s866 + $0x20] sm:$0xff]
    %v872 = vld [vmem:[%s866 + $0x28] sm:$0xff]
    %v873 = vld [vmem:[%s866 + $0x30] sm:$0xff]
    %v874 = vld [vmem:[%s866 + $0x38] sm:$0xff]
    %v875 = vmul.f32 %v864, %v867
    %v876 = vmul.f32 %v863, %v868
    %v877 = vmul.f32 %v862, %v869
    %v878 = vmul.f32 %v861, %v870
    %v879 = vmul.f32 %v860, %v871
    %v880 = vmul.f32 %v859, %v872
    %v881 = vmul.f32 %v858, %v873
    %v882 = vmul.f32 %v865, %v874
    %s883 = sld [smem:[#allocation2 + $0x7]]
    %v884 = vstv %s883
    %v885 = vmul.f32 %v884, %v875
    %v886 = vmul.f32 %v884, %v876
    %v887 = vmul.f32 %v884, %v877
    %v888 = vmul.f32 %v884, %v878
    %v889 = vmul.f32 %v884, %v879
    %v890 = vmul.f32 %v884, %v880
    %v891 = vmul.f32 %v884, %v881
    %v892 = vmul.f32 %v884, %v882
    %v893 = vadd.f32 %v779, %v885
    %v894 = vadd.f32 %v780, %v886
    %v895 = vadd.f32 %v781, %v887
    %v896 = vadd.f32 %v782, %v888
    %v897 = vadd.f32 %v783, %v889
    %v898 = vadd.f32 %v784, %v890
    %v899 = vadd.f32 %v785, %v891
    %v900 = vadd.f32 %v786, %v892
    %s901 = sld [smem:[#allocation2 + $0x2b]]
    %v902 = vstv %s901
    %v903 = vmul.f32 %v902, %v875
    %v904 = vmul.f32 %v902, %v876
    %v905 = vmul.f32 %v902, %v877
    %v906 = vmul.f32 %v902, %v878
    %v907 = vmul.f32 %v902, %v879
    %v908 = vmul.f32 %v902, %v880
    %v909 = vmul.f32 %v902, %v881
    %v910 = vmul.f32 %v902, %v882
    %v911 = vadd.f32 %v797, %v903
    %v912 = vadd.f32 %v798, %v904
    %v913 = vadd.f32 %v799, %v905
    %v914 = vadd.f32 %v800, %v906
    %v915 = vadd.f32 %v801, %v907
    %v916 = vadd.f32 %v802, %v908
    %v917 = vadd.f32 %v803, %v909
    %v918 = vadd.f32 %v804, %v910
    %s919 = sld [smem:[#allocation2 + $0x4f]]
    %v920 = vstv %s919
    %v921 = vmul.f32 %v920, %v875
    %v922 = vmul.f32 %v920, %v876
    %v923 = vmul.f32 %v920, %v877
    %v924 = vmul.f32 %v920, %v878
    %v925 = vmul.f32 %v920, %v879
    %v926 = vmul.f32 %v920, %v880
    %v927 = vmul.f32 %v920, %v881
    %v928 = vmul.f32 %v920, %v882
    %v929 = vadd.f32 %v815, %v921
    %v930 = vadd.f32 %v816, %v922
    %v931 = vadd.f32 %v817, %v923
    %v932 = vadd.f32 %v818, %v924
    %v933 = vadd.f32 %v819, %v925
    %v934 = vadd.f32 %v820, %v926
    %v935 = vadd.f32 %v821, %v927
    %v936 = vadd.f32 %v822, %v928
    %s937 = sld [smem:[#allocation2 + $0x73]]
    %v938 = vstv %s937
    %v939 = vmul.f32 %v938, %v875
    %v940 = vmul.f32 %v938, %v876
    %v941 = vmul.f32 %v938, %v877
    %v942 = vmul.f32 %v938, %v878
    %v943 = vmul.f32 %v938, %v879
    %v944 = vmul.f32 %v938, %v880
    %v945 = vmul.f32 %v938, %v881
    %v946 = vmul.f32 %v938, %v882
    %v947 = vadd.f32 %v833, %v939
    %v948 = vadd.f32 %v834, %v940
    %v949 = vadd.f32 %v835, %v941
    %v950 = vadd.f32 %v836, %v942
    %v951 = vadd.f32 %v837, %v943
    %v952 = vadd.f32 %v838, %v944
    %v953 = vadd.f32 %v839, %v945
    %v954 = vadd.f32 %v840, %v946
    %955 = vrot.lane.b32.xlu0 %v76, 95
    %v956 = vpop.permute.xlu0 %955
    %957 = vrot.lane.b32.xlu0 %v77, 95
    %v958 = vpop.permute.xlu0 %957
    %959 = vrot.lane.b32.xlu0 %v78, 95
    %v960 = vpop.permute.xlu0 %959
    %961 = vrot.lane.b32.xlu0 %v79, 95
    %v962 = vpop.permute.xlu0 %961
    %963 = vrot.lane.b32.xlu0 %v80, 95
    %v964 = vpop.permute.xlu0 %963
    %965 = vrot.lane.b32.xlu0 %v81, 95
    %v966 = vpop.permute.xlu0 %965
    %967 = vrot.lane.b32.xlu0 %v82, 95
    %v968 = vpop.permute.xlu0 %967
    %969 = vrot.lane.b32.xlu0 %v83, 95
    %v970 = vpop.permute.xlu0 %969
    %vm971 = vcmp.lt.s32.totalorder %v101, 95
    %v972 = vsel %vm971, %v968, %v970
    %v973 = vsel %vm971, %v966, %v968
    %v974 = vsel %vm971, %v964, %v966
    %v975 = vsel %vm971, %v962, %v964
    %v976 = vsel %vm971, %v960, %v962
    %v977 = vsel %vm971, %v958, %v960
    %v978 = vsel %vm971, %v956, %v958
    %v979 = vsel %vm971, %v970, %v956
    %s980 = scalar_lea.vmem %s1, 512
    %v981 = vld [vmem:[%s980] sm:$0xff]
    %v982 = vld [vmem:[%s980 + $0x8] sm:$0xff]
    %v983 = vld [vmem:[%s980 + $0x10] sm:$0xff]
    %v984 = vld [vmem:[%s980 + $0x18] sm:$0xff]
    %v985 = vld [vmem:[%s980 + $0x20] sm:$0xff]
    %v986 = vld [vmem:[%s980 + $0x28] sm:$0xff]
    %v987 = vld [vmem:[%s980 + $0x30] sm:$0xff]
    %v988 = vld [vmem:[%s980 + $0x38] sm:$0xff]
    %v989 = vmul.f32 %v978, %v981
    %v990 = vmul.f32 %v977, %v982
    %v991 = vmul.f32 %v976, %v983
    %v992 = vmul.f32 %v975, %v984
    %v993 = vmul.f32 %v974, %v985
    %v994 = vmul.f32 %v973, %v986
    %v995 = vmul.f32 %v972, %v987
    %v996 = vmul.f32 %v979, %v988
    %s997 = sld [smem:[#allocation2 + $0x8]]
    %v998 = vstv %s997
    %v999 = vmul.f32 %v998, %v989
    %v1000 = vmul.f32 %v998, %v990
    %v1001 = vmul.f32 %v998, %v991
    %v1002 = vmul.f32 %v998, %v992
    %v1003 = vmul.f32 %v998, %v993
    %v1004 = vmul.f32 %v998, %v994
    %v1005 = vmul.f32 %v998, %v995
    %v1006 = vmul.f32 %v998, %v996
    %v1007 = vadd.f32 %v893, %v999
    %v1008 = vadd.f32 %v894, %v1000
    %v1009 = vadd.f32 %v895, %v1001
    %v1010 = vadd.f32 %v896, %v1002
    %v1011 = vadd.f32 %v897, %v1003
    %v1012 = vadd.f32 %v898, %v1004
    %v1013 = vadd.f32 %v899, %v1005
    %v1014 = vadd.f32 %v900, %v1006
    %s1015 = sld [smem:[#allocation2 + $0x2c]]
    %v1016 = vstv %s1015
    %v1017 = vmul.f32 %v1016, %v989
    %v1018 = vmul.f32 %v1016, %v990
    %v1019 = vmul.f32 %v1016, %v991
    %v1020 = vmul.f32 %v1016, %v992
    %v1021 = vmul.f32 %v1016, %v993
    %v1022 = vmul.f32 %v1016, %v994
    %v1023 = vmul.f32 %v1016, %v995
    %v1024 = vmul.f32 %v1016, %v996
    %v1025 = vadd.f32 %v911, %v1017
    %v1026 = vadd.f32 %v912, %v1018
    %v1027 = vadd.f32 %v913, %v1019
    %v1028 = vadd.f32 %v914, %v1020
    %v1029 = vadd.f32 %v915, %v1021
    %v1030 = vadd.f32 %v916, %v1022
    %v1031 = vadd.f32 %v917, %v1023
    %v1032 = vadd.f32 %v918, %v1024
    %s1033 = sld [smem:[#allocation2 + $0x50]]
    %v1034 = vstv %s1033
    %v1035 = vmul.f32 %v1034, %v989
    %v1036 = vmul.f32 %v1034, %v990
    %v1037 = vmul.f32 %v1034, %v991
    %v1038 = vmul.f32 %v1034, %v992
    %v1039 = vmul.f32 %v1034, %v993
    %v1040 = vmul.f32 %v1034, %v994
    %v1041 = vmul.f32 %v1034, %v995
    %v1042 = vmul.f32 %v1034, %v996
    %v1043 = vadd.f32 %v929, %v1035
    %v1044 = vadd.f32 %v930, %v1036
    %v1045 = vadd.f32 %v931, %v1037
    %v1046 = vadd.f32 %v932, %v1038
    %v1047 = vadd.f32 %v933, %v1039
    %v1048 = vadd.f32 %v934, %v1040
    %v1049 = vadd.f32 %v935, %v1041
    %v1050 = vadd.f32 %v936, %v1042
    %s1051 = sld [smem:[#allocation2 + $0x74]]
    %v1052 = vstv %s1051
    %v1053 = vmul.f32 %v1052, %v989
    %v1054 = vmul.f32 %v1052, %v990
    %v1055 = vmul.f32 %v1052, %v991
    %v1056 = vmul.f32 %v1052, %v992
    %v1057 = vmul.f32 %v1052, %v993
    %v1058 = vmul.f32 %v1052, %v994
    %v1059 = vmul.f32 %v1052, %v995
    %v1060 = vmul.f32 %v1052, %v996
    %v1061 = vadd.f32 %v947, %v1053
    %v1062 = vadd.f32 %v948, %v1054
    %v1063 = vadd.f32 %v949, %v1055
    %v1064 = vadd.f32 %v950, %v1056
    %v1065 = vadd.f32 %v951, %v1057
    %v1066 = vadd.f32 %v952, %v1058
    %v1067 = vadd.f32 %v953, %v1059
    %v1068 = vadd.f32 %v954, %v1060
    %s1069 = sadd.s32 %s73, 8
    %s1070 = smul.addr %s1069, 8
    %s1071 = scalar_lea.vmem %s0, %s1070
    %v1072 = vld [vmem:[%s1071] sm:$0xff]
    %v1073 = vld [vmem:[%s1071 + $0x8] sm:$0xff]
    %v1074 = vld [vmem:[%s1071 + $0x10] sm:$0xff]
    %v1075 = vld [vmem:[%s1071 + $0x18] sm:$0xff]
    %v1076 = vld [vmem:[%s1071 + $0x20] sm:$0xff]
    %v1077 = vld [vmem:[%s1071 + $0x28] sm:$0xff]
    %v1078 = vld [vmem:[%s1071 + $0x30] sm:$0xff]
    %v1079 = vld [vmem:[%s1071 + $0x38] sm:$0xff]
    %1080 = vrot.lane.b32.xlu0 %v1072, 33
    %v1081 = vpop.permute.xlu0 %1080
    %1082 = vrot.lane.b32.xlu0 %v1073, 33
    %v1083 = vpop.permute.xlu0 %1082
    %1084 = vrot.lane.b32.xlu0 %v1074, 33
    %v1085 = vpop.permute.xlu0 %1084
    %1086 = vrot.lane.b32.xlu0 %v1075, 33
    %v1087 = vpop.permute.xlu0 %1086
    %1088 = vrot.lane.b32.xlu0 %v1076, 33
    %v1089 = vpop.permute.xlu0 %1088
    %1090 = vrot.lane.b32.xlu0 %v1077, 33
    %v1091 = vpop.permute.xlu0 %1090
    %1092 = vrot.lane.b32.xlu0 %v1078, 33
    %v1093 = vpop.permute.xlu0 %1092
    %1094 = vrot.lane.b32.xlu0 %v1079, 33
    %v1095 = vpop.permute.xlu0 %1094
    %v1096 = vsel %vm102, %v1093, %v1095
    %v1097 = vsel %vm102, %v1091, %v1093
    %v1098 = vsel %vm102, %v1089, %v1091
    %v1099 = vsel %vm102, %v1087, %v1089
    %v1100 = vsel %vm102, %v1085, %v1087
    %v1101 = vsel %vm102, %v1083, %v1085
    %v1102 = vsel %vm102, %v1081, %v1083
    %v1103 = vsel %vm102, %v1095, %v1081
    %v1104 = vmul.f32 %v1103, %v111
    %v1105 = vmul.f32 %v1102, %v112
    %v1106 = vmul.f32 %v1101, %v113
    %v1107 = vmul.f32 %v1100, %v114
    %v1108 = vmul.f32 %v1099, %v115
    %v1109 = vmul.f32 %v1098, %v116
    %v1110 = vmul.f32 %v1097, %v117
    %v1111 = vmul.f32 %v1096, %v118
    %s1112 = sld [smem:[#allocation2 + $0x9]]
    %v1113 = vstv %s1112
    %v1114 = vmul.f32 %v1113, %v1104
    %v1115 = vmul.f32 %v1113, %v1105
    %v1116 = vmul.f32 %v1113, %v1106
    %v1117 = vmul.f32 %v1113, %v1107
    %v1118 = vmul.f32 %v1113, %v1108
    %v1119 = vmul.f32 %v1113, %v1109
    %v1120 = vmul.f32 %v1113, %v1110
    %v1121 = vmul.f32 %v1113, %v1111
    %v1122 = vadd.f32 %v1007, %v1114
    %v1123 = vadd.f32 %v1008, %v1115
    %v1124 = vadd.f32 %v1009, %v1116
    %v1125 = vadd.f32 %v1010, %v1117
    %v1126 = vadd.f32 %v1011, %v1118
    %v1127 = vadd.f32 %v1012, %v1119
    %v1128 = vadd.f32 %v1013, %v1120
    %v1129 = vadd.f32 %v1014, %v1121
    %s1130 = sld [smem:[#allocation2 + $0x2d]]
    %v1131 = vstv %s1130
    %v1132 = vmul.f32 %v1131, %v1104
    %v1133 = vmul.f32 %v1131, %v1105
    %v1134 = vmul.f32 %v1131, %v1106
    %v1135 = vmul.f32 %v1131, %v1107
    %v1136 = vmul.f32 %v1131, %v1108
    %v1137 = vmul.f32 %v1131, %v1109
    %v1138 = vmul.f32 %v1131, %v1110
    %v1139 = vmul.f32 %v1131, %v1111
    %v1140 = vadd.f32 %v1025, %v1132
    %v1141 = vadd.f32 %v1026, %v1133
    %v1142 = vadd.f32 %v1027, %v1134
    %v1143 = vadd.f32 %v1028, %v1135
    %v1144 = vadd.f32 %v1029, %v1136
    %v1145 = vadd.f32 %v1030, %v1137
    %v1146 = vadd.f32 %v1031, %v1138
    %v1147 = vadd.f32 %v1032, %v1139
    %s1148 = sld [smem:[#allocation2 + $0x51]]
    %v1149 = vstv %s1148
    %v1150 = vmul.f32 %v1149, %v1104
    %v1151 = vmul.f32 %v1149, %v1105
    %v1152 = vmul.f32 %v1149, %v1106
    %v1153 = vmul.f32 %v1149, %v1107
    %v1154 = vmul.f32 %v1149, %v1108
    %v1155 = vmul.f32 %v1149, %v1109
    %v1156 = vmul.f32 %v1149, %v1110
    %v1157 = vmul.f32 %v1149, %v1111
    %v1158 = vadd.f32 %v1043, %v1150
    %v1159 = vadd.f32 %v1044, %v1151
    %v1160 = vadd.f32 %v1045, %v1152
    %v1161 = vadd.f32 %v1046, %v1153
    %v1162 = vadd.f32 %v1047, %v1154
    %v1163 = vadd.f32 %v1048, %v1155
    %v1164 = vadd.f32 %v1049, %v1156
    %v1165 = vadd.f32 %v1050, %v1157
    %s1166 = sld [smem:[#allocation2 + $0x75]]
    %v1167 = vstv %s1166
    %v1168 = vmul.f32 %v1167, %v1104
    %v1169 = vmul.f32 %v1167, %v1105
    %v1170 = vmul.f32 %v1167, %v1106
    %v1171 = vmul.f32 %v1167, %v1107
    %v1172 = vmul.f32 %v1167, %v1108
    %v1173 = vmul.f32 %v1167, %v1109
    %v1174 = vmul.f32 %v1167, %v1110
    %v1175 = vmul.f32 %v1167, %v1111
    %v1176 = vadd.f32 %v1061, %v1168
    %v1177 = vadd.f32 %v1062, %v1169
    %v1178 = vadd.f32 %v1063, %v1170
    %v1179 = vadd.f32 %v1064, %v1171
    %v1180 = vadd.f32 %v1065, %v1172
    %v1181 = vadd.f32 %v1066, %v1173
    %v1182 = vadd.f32 %v1067, %v1174
    %v1183 = vadd.f32 %v1068, %v1175
    %1184 = vrot.lane.b32.xlu0 %v1072, 32
    %v1185 = vpop.permute.xlu0 %1184
    %1186 = vrot.lane.b32.xlu0 %v1073, 32
    %v1187 = vpop.permute.xlu0 %1186
    %1188 = vrot.lane.b32.xlu0 %v1074, 32
    %v1189 = vpop.permute.xlu0 %1188
    %1190 = vrot.lane.b32.xlu0 %v1075, 32
    %v1191 = vpop.permute.xlu0 %1190
    %1192 = vrot.lane.b32.xlu0 %v1076, 32
    %v1193 = vpop.permute.xlu0 %1192
    %1194 = vrot.lane.b32.xlu0 %v1077, 32
    %v1195 = vpop.permute.xlu0 %1194
    %1196 = vrot.lane.b32.xlu0 %v1078, 32
    %v1197 = vpop.permute.xlu0 %1196
    %1198 = vrot.lane.b32.xlu0 %v1079, 32
    %v1199 = vpop.permute.xlu0 %1198
    %v1200 = vsel %vm215, %v1197, %v1199
    %v1201 = vsel %vm215, %v1195, %v1197
    %v1202 = vsel %vm215, %v1193, %v1195
    %v1203 = vsel %vm215, %v1191, %v1193
    %v1204 = vsel %vm215, %v1189, %v1191
    %v1205 = vsel %vm215, %v1187, %v1189
    %v1206 = vsel %vm215, %v1185, %v1187
    %v1207 = vsel %vm215, %v1199, %v1185
    %v1208 = vmul.f32 %v1207, %v225
    %v1209 = vmul.f32 %v1206, %v226
    %v1210 = vmul.f32 %v1205, %v227
    %v1211 = vmul.f32 %v1204, %v228
    %v1212 = vmul.f32 %v1203, %v229
    %v1213 = vmul.f32 %v1202, %v230
    %v1214 = vmul.f32 %v1201, %v231
    %v1215 = vmul.f32 %v1200, %v232
    %s1216 = sld [smem:[#allocation2 + $0xa]]
    %v1217 = vstv %s1216
    %v1218 = vmul.f32 %v1217, %v1208
    %v1219 = vmul.f32 %v1217, %v1209
    %v1220 = vmul.f32 %v1217, %v1210
    %v1221 = vmul.f32 %v1217, %v1211
    %v1222 = vmul.f32 %v1217, %v1212
    %v1223 = vmul.f32 %v1217, %v1213
    %v1224 = vmul.f32 %v1217, %v1214
    %v1225 = vmul.f32 %v1217, %v1215
    %v1226 = vadd.f32 %v1122, %v1218
    %v1227 = vadd.f32 %v1123, %v1219
    %v1228 = vadd.f32 %v1124, %v1220
    %v1229 = vadd.f32 %v1125, %v1221
    %v1230 = vadd.f32 %v1126, %v1222
    %v1231 = vadd.f32 %v1127, %v1223
    %v1232 = vadd.f32 %v1128, %v1224
    %v1233 = vadd.f32 %v1129, %v1225
    %s1234 = sld [smem:[#allocation2 + $0x2e]]
    %v1235 = vstv %s1234
    %v1236 = vmul.f32 %v1235, %v1208
    %v1237 = vmul.f32 %v1235, %v1209
    %v1238 = vmul.f32 %v1235, %v1210
    %v1239 = vmul.f32 %v1235, %v1211
    %v1240 = vmul.f32 %v1235, %v1212
    %v1241 = vmul.f32 %v1235, %v1213
    %v1242 = vmul.f32 %v1235, %v1214
    %v1243 = vmul.f32 %v1235, %v1215
    %v1244 = vadd.f32 %v1140, %v1236
    %v1245 = vadd.f32 %v1141, %v1237
    %v1246 = vadd.f32 %v1142, %v1238
    %v1247 = vadd.f32 %v1143, %v1239
    %v1248 = vadd.f32 %v1144, %v1240
    %v1249 = vadd.f32 %v1145, %v1241
    %v1250 = vadd.f32 %v1146, %v1242
    %v1251 = vadd.f32 %v1147, %v1243
    %s1252 = sld [smem:[#allocation2 + $0x52]]
    %v1253 = vstv %s1252
    %v1254 = vmul.f32 %v1253, %v1208
    %v1255 = vmul.f32 %v1253, %v1209
    %v1256 = vmul.f32 %v1253, %v1210
    %v1257 = vmul.f32 %v1253, %v1211
    %v1258 = vmul.f32 %v1253, %v1212
    %v1259 = vmul.f32 %v1253, %v1213
    %v1260 = vmul.f32 %v1253, %v1214
    %v1261 = vmul.f32 %v1253, %v1215
    %v1262 = vadd.f32 %v1158, %v1254
    %v1263 = vadd.f32 %v1159, %v1255
    %v1264 = vadd.f32 %v1160, %v1256
    %v1265 = vadd.f32 %v1161, %v1257
    %v1266 = vadd.f32 %v1162, %v1258
    %v1267 = vadd.f32 %v1163, %v1259
    %v1268 = vadd.f32 %v1164, %v1260
    %v1269 = vadd.f32 %v1165, %v1261
    %s1270 = sld [smem:[#allocation2 + $0x76]]
    %v1271 = vstv %s1270
    %v1272 = vmul.f32 %v1271, %v1208
    %v1273 = vmul.f32 %v1271, %v1209
    %v1274 = vmul.f32 %v1271, %v1210
    %v1275 = vmul.f32 %v1271, %v1211
    %v1276 = vmul.f32 %v1271, %v1212
    %v1277 = vmul.f32 %v1271, %v1213
    %v1278 = vmul.f32 %v1271, %v1214
    %v1279 = vmul.f32 %v1271, %v1215
    %v1280 = vadd.f32 %v1176, %v1272
    %v1281 = vadd.f32 %v1177, %v1273
    %v1282 = vadd.f32 %v1178, %v1274
    %v1283 = vadd.f32 %v1179, %v1275
    %v1284 = vadd.f32 %v1180, %v1276
    %v1285 = vadd.f32 %v1181, %v1277
    %v1286 = vadd.f32 %v1182, %v1278
    %v1287 = vadd.f32 %v1183, %v1279
    %1288 = vrot.lane.b32.xlu0 %v1072, 31
    %v1289 = vpop.permute.xlu0 %1288
    %1290 = vrot.lane.b32.xlu0 %v1073, 31
    %v1291 = vpop.permute.xlu0 %1290
    %1292 = vrot.lane.b32.xlu0 %v1074, 31
    %v1293 = vpop.permute.xlu0 %1292
    %1294 = vrot.lane.b32.xlu0 %v1075, 31
    %v1295 = vpop.permute.xlu0 %1294
    %1296 = vrot.lane.b32.xlu0 %v1076, 31
    %v1297 = vpop.permute.xlu0 %1296
    %1298 = vrot.lane.b32.xlu0 %v1077, 31
    %v1299 = vpop.permute.xlu0 %1298
    %1300 = vrot.lane.b32.xlu0 %v1078, 31
    %v1301 = vpop.permute.xlu0 %1300
    %1302 = vrot.lane.b32.xlu0 %v1079, 31
    %v1303 = vpop.permute.xlu0 %1302
    %v1304 = vsel %vm329, %v1301, %v1303
    %v1305 = vsel %vm329, %v1299, %v1301
    %v1306 = vsel %vm329, %v1297, %v1299
    %v1307 = vsel %vm329, %v1295, %v1297
    %v1308 = vsel %vm329, %v1293, %v1295
    %v1309 = vsel %vm329, %v1291, %v1293
    %v1310 = vsel %vm329, %v1289, %v1291
    %v1311 = vsel %vm329, %v1303, %v1289
    %v1312 = vmul.f32 %v1311, %v339
    %v1313 = vmul.f32 %v1310, %v340
    %v1314 = vmul.f32 %v1309, %v341
    %v1315 = vmul.f32 %v1308, %v342
    %v1316 = vmul.f32 %v1307, %v343
    %v1317 = vmul.f32 %v1306, %v344
    %v1318 = vmul.f32 %v1305, %v345
    %v1319 = vmul.f32 %v1304, %v346
    %s1320 = sld [smem:[#allocation2 + $0xb]]
    %v1321 = vstv %s1320
    %v1322 = vmul.f32 %v1321, %v1312
    %v1323 = vmul.f32 %v1321, %v1313
    %v1324 = vmul.f32 %v1321, %v1314
    %v1325 = vmul.f32 %v1321, %v1315
    %v1326 = vmul.f32 %v1321, %v1316
    %v1327 = vmul.f32 %v1321, %v1317
    %v1328 = vmul.f32 %v1321, %v1318
    %v1329 = vmul.f32 %v1321, %v1319
    %v1330 = vadd.f32 %v1226, %v1322
    %v1331 = vadd.f32 %v1227, %v1323
    %v1332 = vadd.f32 %v1228, %v1324
    %v1333 = vadd.f32 %v1229, %v1325
    %v1334 = vadd.f32 %v1230, %v1326
    %v1335 = vadd.f32 %v1231, %v1327
    %v1336 = vadd.f32 %v1232, %v1328
    %v1337 = vadd.f32 %v1233, %v1329
    %s1338 = sld [smem:[#allocation2 + $0x2f]]
    %v1339 = vstv %s1338
    %v1340 = vmul.f32 %v1339, %v1312
    %v1341 = vmul.f32 %v1339, %v1313
    %v1342 = vmul.f32 %v1339, %v1314
    %v1343 = vmul.f32 %v1339, %v1315
    %v1344 = vmul.f32 %v1339, %v1316
    %v1345 = vmul.f32 %v1339, %v1317
    %v1346 = vmul.f32 %v1339, %v1318
    %v1347 = vmul.f32 %v1339, %v1319
    %v1348 = vadd.f32 %v1244, %v1340
    %v1349 = vadd.f32 %v1245, %v1341
    %v1350 = vadd.f32 %v1246, %v1342
    %v1351 = vadd.f32 %v1247, %v1343
    %v1352 = vadd.f32 %v1248, %v1344
    %v1353 = vadd.f32 %v1249, %v1345
    %v1354 = vadd.f32 %v1250, %v1346
    %v1355 = vadd.f32 %v1251, %v1347
    %s1356 = sld [smem:[#allocation2 + $0x53]]
    %v1357 = vstv %s1356
    %v1358 = vmul.f32 %v1357, %v1312
    %v1359 = vmul.f32 %v1357, %v1313
    %v1360 = vmul.f32 %v1357, %v1314
    %v1361 = vmul.f32 %v1357, %v1315
    %v1362 = vmul.f32 %v1357, %v1316
    %v1363 = vmul.f32 %v1357, %v1317
    %v1364 = vmul.f32 %v1357, %v1318
    %v1365 = vmul.f32 %v1357, %v1319
    %v1366 = vadd.f32 %v1262, %v1358
    %v1367 = vadd.f32 %v1263, %v1359
    %v1368 = vadd.f32 %v1264, %v1360
    %v1369 = vadd.f32 %v1265, %v1361
    %v1370 = vadd.f32 %v1266, %v1362
    %v1371 = vadd.f32 %v1267, %v1363
    %v1372 = vadd.f32 %v1268, %v1364
    %v1373 = vadd.f32 %v1269, %v1365
    %s1374 = sld [smem:[#allocation2 + $0x77]]
    %v1375 = vstv %s1374
    %v1376 = vmul.f32 %v1375, %v1312
    %v1377 = vmul.f32 %v1375, %v1313
    %v1378 = vmul.f32 %v1375, %v1314
    %v1379 = vmul.f32 %v1375, %v1315
    %v1380 = vmul.f32 %v1375, %v1316
    %v1381 = vmul.f32 %v1375, %v1317
    %v1382 = vmul.f32 %v1375, %v1318
    %v1383 = vmul.f32 %v1375, %v1319
    %v1384 = vadd.f32 %v1280, %v1376
    %v1385 = vadd.f32 %v1281, %v1377
    %v1386 = vadd.f32 %v1282, %v1378
    %v1387 = vadd.f32 %v1283, %v1379
    %v1388 = vadd.f32 %v1284, %v1380
    %v1389 = vadd.f32 %v1285, %v1381
    %v1390 = vadd.f32 %v1286, %v1382
    %v1391 = vadd.f32 %v1287, %v1383
    %1392 = vrot.lane.b32.xlu0 %v1072, 1
    %v1393 = vpop.permute.xlu0 %1392
    %1394 = vrot.lane.b32.xlu0 %v1073, 1
    %v1395 = vpop.permute.xlu0 %1394
    %1396 = vrot.lane.b32.xlu0 %v1074, 1
    %v1397 = vpop.permute.xlu0 %1396
    %1398 = vrot.lane.b32.xlu0 %v1075, 1
    %v1399 = vpop.permute.xlu0 %1398
    %1400 = vrot.lane.b32.xlu0 %v1076, 1
    %v1401 = vpop.permute.xlu0 %1400
    %1402 = vrot.lane.b32.xlu0 %v1077, 1
    %v1403 = vpop.permute.xlu0 %1402
    %1404 = vrot.lane.b32.xlu0 %v1078, 1
    %v1405 = vpop.permute.xlu0 %1404
    %1406 = vrot.lane.b32.xlu0 %v1079, 1
    %v1407 = vpop.permute.xlu0 %1406
    %v1408 = vsel %vm443, %v1405, %v1407
    %v1409 = vsel %vm443, %v1403, %v1405
    %v1410 = vsel %vm443, %v1401, %v1403
    %v1411 = vsel %vm443, %v1399, %v1401
    %v1412 = vsel %vm443, %v1397, %v1399
    %v1413 = vsel %vm443, %v1395, %v1397
    %v1414 = vsel %vm443, %v1393, %v1395
    %v1415 = vsel %vm443, %v1407, %v1393
    %v1416 = vmul.f32 %v1415, %v453
    %v1417 = vmul.f32 %v1414, %v454
    %v1418 = vmul.f32 %v1413, %v455
    %v1419 = vmul.f32 %v1412, %v456
    %v1420 = vmul.f32 %v1411, %v457
    %v1421 = vmul.f32 %v1410, %v458
    %v1422 = vmul.f32 %v1409, %v459
    %v1423 = vmul.f32 %v1408, %v460
    %s1424 = sld [smem:[#allocation2 + $0xc]]
    %v1425 = vstv %s1424
    %v1426 = vmul.f32 %v1425, %v1416
    %v1427 = vmul.f32 %v1425, %v1417
    %v1428 = vmul.f32 %v1425, %v1418
    %v1429 = vmul.f32 %v1425, %v1419
    %v1430 = vmul.f32 %v1425, %v1420
    %v1431 = vmul.f32 %v1425, %v1421
    %v1432 = vmul.f32 %v1425, %v1422
    %v1433 = vmul.f32 %v1425, %v1423
    %v1434 = vadd.f32 %v1330, %v1426
    %v1435 = vadd.f32 %v1331, %v1427
    %v1436 = vadd.f32 %v1332, %v1428
    %v1437 = vadd.f32 %v1333, %v1429
    %v1438 = vadd.f32 %v1334, %v1430
    %v1439 = vadd.f32 %v1335, %v1431
    %v1440 = vadd.f32 %v1336, %v1432
    %v1441 = vadd.f32 %v1337, %v1433
    %s1442 = sld [smem:[#allocation2 + $0x30]]
    %v1443 = vstv %s1442
    %v1444 = vmul.f32 %v1443, %v1416
    %v1445 = vmul.f32 %v1443, %v1417
    %v1446 = vmul.f32 %v1443, %v1418
    %v1447 = vmul.f32 %v1443, %v1419
    %v1448 = vmul.f32 %v1443, %v1420
    %v1449 = vmul.f32 %v1443, %v1421
    %v1450 = vmul.f32 %v1443, %v1422
    %v1451 = vmul.f32 %v1443, %v1423
    %v1452 = vadd.f32 %v1348, %v1444
    %v1453 = vadd.f32 %v1349, %v1445
    %v1454 = vadd.f32 %v1350, %v1446
    %v1455 = vadd.f32 %v1351, %v1447
    %v1456 = vadd.f32 %v1352, %v1448
    %v1457 = vadd.f32 %v1353, %v1449
    %v1458 = vadd.f32 %v1354, %v1450
    %v1459 = vadd.f32 %v1355, %v1451
    %s1460 = sld [smem:[#allocation2 + $0x54]]
    %v1461 = vstv %s1460
    %v1462 = vmul.f32 %v1461, %v1416
    %v1463 = vmul.f32 %v1461, %v1417
    %v1464 = vmul.f32 %v1461, %v1418
    %v1465 = vmul.f32 %v1461, %v1419
    %v1466 = vmul.f32 %v1461, %v1420
    %v1467 = vmul.f32 %v1461, %v1421
    %v1468 = vmul.f32 %v1461, %v1422
    %v1469 = vmul.f32 %v1461, %v1423
    %v1470 = vadd.f32 %v1366, %v1462
    %v1471 = vadd.f32 %v1367, %v1463
    %v1472 = vadd.f32 %v1368, %v1464
    %v1473 = vadd.f32 %v1369, %v1465
    %v1474 = vadd.f32 %v1370, %v1466
    %v1475 = vadd.f32 %v1371, %v1467
    %v1476 = vadd.f32 %v1372, %v1468
    %v1477 = vadd.f32 %v1373, %v1469
    %s1478 = sld [smem:[#allocation2 + $0x78]]
    %v1479 = vstv %s1478
    %v1480 = vmul.f32 %v1479, %v1416
    %v1481 = vmul.f32 %v1479, %v1417
    %v1482 = vmul.f32 %v1479, %v1418
    %v1483 = vmul.f32 %v1479, %v1419
    %v1484 = vmul.f32 %v1479, %v1420
    %v1485 = vmul.f32 %v1479, %v1421
    %v1486 = vmul.f32 %v1479, %v1422
    %v1487 = vmul.f32 %v1479, %v1423
    %v1488 = vadd.f32 %v1384, %v1480
    %v1489 = vadd.f32 %v1385, %v1481
    %v1490 = vadd.f32 %v1386, %v1482
    %v1491 = vadd.f32 %v1387, %v1483
    %v1492 = vadd.f32 %v1388, %v1484
    %v1493 = vadd.f32 %v1389, %v1485
    %v1494 = vadd.f32 %v1390, %v1486
    %v1495 = vadd.f32 %v1391, %v1487
    %s1496 = sld [smem:[#allocation2 + $0xd]]
    %v1497 = vstv %s1496
    %v1498 = vmul.f32 %v1497, %v1072
    %v1499 = vmul.f32 %v1497, %v1073
    %v1500 = vmul.f32 %v1497, %v1074
    %v1501 = vmul.f32 %v1497, %v1075
    %v1502 = vmul.f32 %v1497, %v1076
    %v1503 = vmul.f32 %v1497, %v1077
    %v1504 = vmul.f32 %v1497, %v1078
    %v1505 = vmul.f32 %v1497, %v1079
    %v1506 = vadd.f32 %v1434, %v1498
    %v1507 = vadd.f32 %v1435, %v1499
    %v1508 = vadd.f32 %v1436, %v1500
    %v1509 = vadd.f32 %v1437, %v1501
    %v1510 = vadd.f32 %v1438, %v1502
    %v1511 = vadd.f32 %v1439, %v1503
    %v1512 = vadd.f32 %v1440, %v1504
    %v1513 = vadd.f32 %v1441, %v1505
    %s1514 = sld [smem:[#allocation2 + $0x31]]
    %v1515 = vstv %s1514
    %v1516 = vmul.f32 %v1515, %v1072
    %v1517 = vmul.f32 %v1515, %v1073
    %v1518 = vmul.f32 %v1515, %v1074
    %v1519 = vmul.f32 %v1515, %v1075
    %v1520 = vmul.f32 %v1515, %v1076
    %v1521 = vmul.f32 %v1515, %v1077
    %v1522 = vmul.f32 %v1515, %v1078
    %v1523 = vmul.f32 %v1515, %v1079
    %v1524 = vadd.f32 %v1452, %v1516
    %v1525 = vadd.f32 %v1453, %v1517
    %v1526 = vadd.f32 %v1454, %v1518
    %v1527 = vadd.f32 %v1455, %v1519
    %v1528 = vadd.f32 %v1456, %v1520
    %v1529 = vadd.f32 %v1457, %v1521
    %v1530 = vadd.f32 %v1458, %v1522
    %v1531 = vadd.f32 %v1459, %v1523
    %s1532 = sld [smem:[#allocation2 + $0x55]]
    %v1533 = vstv %s1532
    %v1534 = vmul.f32 %v1533, %v1072
    %v1535 = vmul.f32 %v1533, %v1073
    %v1536 = vmul.f32 %v1533, %v1074
    %v1537 = vmul.f32 %v1533, %v1075
    %v1538 = vmul.f32 %v1533, %v1076
    %v1539 = vmul.f32 %v1533, %v1077
    %v1540 = vmul.f32 %v1533, %v1078
    %v1541 = vmul.f32 %v1533, %v1079
    %v1542 = vadd.f32 %v1470, %v1534
    %v1543 = vadd.f32 %v1471, %v1535
    %v1544 = vadd.f32 %v1472, %v1536
    %v1545 = vadd.f32 %v1473, %v1537
    %v1546 = vadd.f32 %v1474, %v1538
    %v1547 = vadd.f32 %v1475, %v1539
    %v1548 = vadd.f32 %v1476, %v1540
    %v1549 = vadd.f32 %v1477, %v1541
    %s1550 = sld [smem:[#allocation2 + $0x79]]
    %v1551 = vstv %s1550
    %v1552 = vmul.f32 %v1551, %v1072
    %v1553 = vmul.f32 %v1551, %v1073
    %v1554 = vmul.f32 %v1551, %v1074
    %v1555 = vmul.f32 %v1551, %v1075
    %v1556 = vmul.f32 %v1551, %v1076
    %v1557 = vmul.f32 %v1551, %v1077
    %v1558 = vmul.f32 %v1551, %v1078
    %v1559 = vmul.f32 %v1551, %v1079
    %v1560 = vadd.f32 %v1488, %v1552
    %v1561 = vadd.f32 %v1489, %v1553
    %v1562 = vadd.f32 %v1490, %v1554
    %v1563 = vadd.f32 %v1491, %v1555
    %v1564 = vadd.f32 %v1492, %v1556
    %v1565 = vadd.f32 %v1493, %v1557
    %v1566 = vadd.f32 %v1494, %v1558
    %v1567 = vadd.f32 %v1495, %v1559
    %1568 = vrot.lane.b32.xlu0 %v1072, 127
    %v1569 = vpop.permute.xlu0 %1568
    %1570 = vrot.lane.b32.xlu0 %v1073, 127
    %v1571 = vpop.permute.xlu0 %1570
    %1572 = vrot.lane.b32.xlu0 %v1074, 127
    %v1573 = vpop.permute.xlu0 %1572
    %1574 = vrot.lane.b32.xlu0 %v1075, 127
    %v1575 = vpop.permute.xlu0 %1574
    %1576 = vrot.lane.b32.xlu0 %v1076, 127
    %v1577 = vpop.permute.xlu0 %1576
    %1578 = vrot.lane.b32.xlu0 %v1077, 127
    %v1579 = vpop.permute.xlu0 %1578
    %1580 = vrot.lane.b32.xlu0 %v1078, 127
    %v1581 = vpop.permute.xlu0 %1580
    %1582 = vrot.lane.b32.xlu0 %v1079, 127
    %v1583 = vpop.permute.xlu0 %1582
    %v1584 = vsel %vm629, %v1581, %v1583
    %v1585 = vsel %vm629, %v1579, %v1581
    %v1586 = vsel %vm629, %v1577, %v1579
    %v1587 = vsel %vm629, %v1575, %v1577
    %v1588 = vsel %vm629, %v1573, %v1575
    %v1589 = vsel %vm629, %v1571, %v1573
    %v1590 = vsel %vm629, %v1569, %v1571
    %v1591 = vsel %vm629, %v1583, %v1569
    %v1592 = vmul.f32 %v1590, %v639
    %v1593 = vmul.f32 %v1589, %v640
    %v1594 = vmul.f32 %v1588, %v641
    %v1595 = vmul.f32 %v1587, %v642
    %v1596 = vmul.f32 %v1586, %v643
    %v1597 = vmul.f32 %v1585, %v644
    %v1598 = vmul.f32 %v1584, %v645
    %v1599 = vmul.f32 %v1591, %v646
    %s1600 = sld [smem:[#allocation2 + $0xe]]
    %v1601 = vstv %s1600
    %v1602 = vmul.f32 %v1601, %v1592
    %v1603 = vmul.f32 %v1601, %v1593
    %v1604 = vmul.f32 %v1601, %v1594
    %v1605 = vmul.f32 %v1601, %v1595
    %v1606 = vmul.f32 %v1601, %v1596
    %v1607 = vmul.f32 %v1601, %v1597
    %v1608 = vmul.f32 %v1601, %v1598
    %v1609 = vmul.f32 %v1601, %v1599
    %v1610 = vadd.f32 %v1506, %v1602
    %v1611 = vadd.f32 %v1507, %v1603
    %v1612 = vadd.f32 %v1508, %v1604
    %v1613 = vadd.f32 %v1509, %v1605
    %v1614 = vadd.f32 %v1510, %v1606
    %v1615 = vadd.f32 %v1511, %v1607
    %v1616 = vadd.f32 %v1512, %v1608
    %v1617 = vadd.f32 %v1513, %v1609
    %s1618 = sld [smem:[#allocation2 + $0x32]]
    %v1619 = vstv %s1618
    %v1620 = vmul.f32 %v1619, %v1592
    %v1621 = vmul.f32 %v1619, %v1593
    %v1622 = vmul.f32 %v1619, %v1594
    %v1623 = vmul.f32 %v1619, %v1595
    %v1624 = vmul.f32 %v1619, %v1596
    %v1625 = vmul.f32 %v1619, %v1597
    %v1626 = vmul.f32 %v1619, %v1598
    %v1627 = vmul.f32 %v1619, %v1599
    %v1628 = vadd.f32 %v1524, %v1620
    %v1629 = vadd.f32 %v1525, %v1621
    %v1630 = vadd.f32 %v1526, %v1622
    %v1631 = vadd.f32 %v1527, %v1623
    %v1632 = vadd.f32 %v1528, %v1624
    %v1633 = vadd.f32 %v1529, %v1625
    %v1634 = vadd.f32 %v1530, %v1626
    %v1635 = vadd.f32 %v1531, %v1627
    %s1636 = sld [smem:[#allocation2 + $0x56]]
    %v1637 = vstv %s1636
    %v1638 = vmul.f32 %v1637, %v1592
    %v1639 = vmul.f32 %v1637, %v1593
    %v1640 = vmul.f32 %v1637, %v1594
    %v1641 = vmul.f32 %v1637, %v1595
    %v1642 = vmul.f32 %v1637, %v1596
    %v1643 = vmul.f32 %v1637, %v1597
    %v1644 = vmul.f32 %v1637, %v1598
    %v1645 = vmul.f32 %v1637, %v1599
    %v1646 = vadd.f32 %v1542, %v1638
    %v1647 = vadd.f32 %v1543, %v1639
    %v1648 = vadd.f32 %v1544, %v1640
    %v1649 = vadd.f32 %v1545, %v1641
    %v1650 = vadd.f32 %v1546, %v1642
    %v1651 = vadd.f32 %v1547, %v1643
    %v1652 = vadd.f32 %v1548, %v1644
    %v1653 = vadd.f32 %v1549, %v1645
    %s1654 = sld [smem:[#allocation2 + $0x7a]]
    %v1655 = vstv %s1654
    %v1656 = vmul.f32 %v1655, %v1592
    %v1657 = vmul.f32 %v1655, %v1593
    %v1658 = vmul.f32 %v1655, %v1594
    %v1659 = vmul.f32 %v1655, %v1595
    %v1660 = vmul.f32 %v1655, %v1596
    %v1661 = vmul.f32 %v1655, %v1597
    %v1662 = vmul.f32 %v1655, %v1598
    %v1663 = vmul.f32 %v1655, %v1599
    %v1664 = vadd.f32 %v1560, %v1656
    %v1665 = vadd.f32 %v1561, %v1657
    %v1666 = vadd.f32 %v1562, %v1658
    %v1667 = vadd.f32 %v1563, %v1659
    %v1668 = vadd.f32 %v1564, %v1660
    %v1669 = vadd.f32 %v1565, %v1661
    %v1670 = vadd.f32 %v1566, %v1662
    %v1671 = vadd.f32 %v1567, %v1663
    %1672 = vrot.lane.b32.xlu0 %v1072, 97
    %v1673 = vpop.permute.xlu0 %1672
    %1674 = vrot.lane.b32.xlu0 %v1073, 97
    %v1675 = vpop.permute.xlu0 %1674
    %1676 = vrot.lane.b32.xlu0 %v1074, 97
    %v1677 = vpop.permute.xlu0 %1676
    %1678 = vrot.lane.b32.xlu0 %v1075, 97
    %v1679 = vpop.permute.xlu0 %1678
    %1680 = vrot.lane.b32.xlu0 %v1076, 97
    %v1681 = vpop.permute.xlu0 %1680
    %1682 = vrot.lane.b32.xlu0 %v1077, 97
    %v1683 = vpop.permute.xlu0 %1682
    %1684 = vrot.lane.b32.xlu0 %v1078, 97
    %v1685 = vpop.permute.xlu0 %1684
    %1686 = vrot.lane.b32.xlu0 %v1079, 97
    %v1687 = vpop.permute.xlu0 %1686
    %v1688 = vsel %vm743, %v1685, %v1687
    %v1689 = vsel %vm743, %v1683, %v1685
    %v1690 = vsel %vm743, %v1681, %v1683
    %v1691 = vsel %vm743, %v1679, %v1681
    %v1692 = vsel %vm743, %v1677, %v1679
    %v1693 = vsel %vm743, %v1675, %v1677
    %v1694 = vsel %vm743, %v1673, %v1675
    %v1695 = vsel %vm743, %v1687, %v1673
    %v1696 = vmul.f32 %v1694, %v753
    %v1697 = vmul.f32 %v1693, %v754
    %v1698 = vmul.f32 %v1692, %v755
    %v1699 = vmul.f32 %v1691, %v756
    %v1700 = vmul.f32 %v1690, %v757
    %v1701 = vmul.f32 %v1689, %v758
    %v1702 = vmul.f32 %v1688, %v759
    %v1703 = vmul.f32 %v1695, %v760
    %s1704 = sld [smem:[#allocation2 + $0xf]]
    %v1705 = vstv %s1704
    %v1706 = vmul.f32 %v1705, %v1696
    %v1707 = vmul.f32 %v1705, %v1697
    %v1708 = vmul.f32 %v1705, %v1698
    %v1709 = vmul.f32 %v1705, %v1699
    %v1710 = vmul.f32 %v1705, %v1700
    %v1711 = vmul.f32 %v1705, %v1701
    %v1712 = vmul.f32 %v1705, %v1702
    %v1713 = vmul.f32 %v1705, %v1703
    %v1714 = vadd.f32 %v1610, %v1706
    %v1715 = vadd.f32 %v1611, %v1707
    %v1716 = vadd.f32 %v1612, %v1708
    %v1717 = vadd.f32 %v1613, %v1709
    %v1718 = vadd.f32 %v1614, %v1710
    %v1719 = vadd.f32 %v1615, %v1711
    %v1720 = vadd.f32 %v1616, %v1712
    %v1721 = vadd.f32 %v1617, %v1713
    %s1722 = sld [smem:[#allocation2 + $0x33]]
    %v1723 = vstv %s1722
    %v1724 = vmul.f32 %v1723, %v1696
    %v1725 = vmul.f32 %v1723, %v1697
    %v1726 = vmul.f32 %v1723, %v1698
    %v1727 = vmul.f32 %v1723, %v1699
    %v1728 = vmul.f32 %v1723, %v1700
    %v1729 = vmul.f32 %v1723, %v1701
    %v1730 = vmul.f32 %v1723, %v1702
    %v1731 = vmul.f32 %v1723, %v1703
    %v1732 = vadd.f32 %v1628, %v1724
    %v1733 = vadd.f32 %v1629, %v1725
    %v1734 = vadd.f32 %v1630, %v1726
    %v1735 = vadd.f32 %v1631, %v1727
    %v1736 = vadd.f32 %v1632, %v1728
    %v1737 = vadd.f32 %v1633, %v1729
    %v1738 = vadd.f32 %v1634, %v1730
    %v1739 = vadd.f32 %v1635, %v1731
    %s1740 = sld [smem:[#allocation2 + $0x57]]
    %v1741 = vstv %s1740
    %v1742 = vmul.f32 %v1741, %v1696
    %v1743 = vmul.f32 %v1741, %v1697
    %v1744 = vmul.f32 %v1741, %v1698
    %v1745 = vmul.f32 %v1741, %v1699
    %v1746 = vmul.f32 %v1741, %v1700
    %v1747 = vmul.f32 %v1741, %v1701
    %v1748 = vmul.f32 %v1741, %v1702
    %v1749 = vmul.f32 %v1741, %v1703
    %v1750 = vadd.f32 %v1646, %v1742
    %v1751 = vadd.f32 %v1647, %v1743
    %v1752 = vadd.f32 %v1648, %v1744
    %v1753 = vadd.f32 %v1649, %v1745
    %v1754 = vadd.f32 %v1650, %v1746
    %v1755 = vadd.f32 %v1651, %v1747
    %v1756 = vadd.f32 %v1652, %v1748
    %v1757 = vadd.f32 %v1653, %v1749
    %s1758 = sld [smem:[#allocation2 + $0x7b]]
    %v1759 = vstv %s1758
    %v1760 = vmul.f32 %v1759, %v1696
    %v1761 = vmul.f32 %v1759, %v1697
    %v1762 = vmul.f32 %v1759, %v1698
    %v1763 = vmul.f32 %v1759, %v1699
    %v1764 = vmul.f32 %v1759, %v1700
    %v1765 = vmul.f32 %v1759, %v1701
    %v1766 = vmul.f32 %v1759, %v1702
    %v1767 = vmul.f32 %v1759, %v1703
    %v1768 = vadd.f32 %v1664, %v1760
    %v1769 = vadd.f32 %v1665, %v1761
    %v1770 = vadd.f32 %v1666, %v1762
    %v1771 = vadd.f32 %v1667, %v1763
    %v1772 = vadd.f32 %v1668, %v1764
    %v1773 = vadd.f32 %v1669, %v1765
    %v1774 = vadd.f32 %v1670, %v1766
    %v1775 = vadd.f32 %v1671, %v1767
    %1776 = vrot.lane.b32.xlu0 %v1072, 96
    %v1777 = vpop.permute.xlu0 %1776
    %1778 = vrot.lane.b32.xlu0 %v1073, 96
    %v1779 = vpop.permute.xlu0 %1778
    %1780 = vrot.lane.b32.xlu0 %v1074, 96
    %v1781 = vpop.permute.xlu0 %1780
    %1782 = vrot.lane.b32.xlu0 %v1075, 96
    %v1783 = vpop.permute.xlu0 %1782
    %1784 = vrot.lane.b32.xlu0 %v1076, 96
    %v1785 = vpop.permute.xlu0 %1784
    %1786 = vrot.lane.b32.xlu0 %v1077, 96
    %v1787 = vpop.permute.xlu0 %1786
    %1788 = vrot.lane.b32.xlu0 %v1078, 96
    %v1789 = vpop.permute.xlu0 %1788
    %1790 = vrot.lane.b32.xlu0 %v1079, 96
    %v1791 = vpop.permute.xlu0 %1790
    %v1792 = vsel %vm857, %v1789, %v1791
    %v1793 = vsel %vm857, %v1787, %v1789
    %v1794 = vsel %vm857, %v1785, %v1787
    %v1795 = vsel %vm857, %v1783, %v1785
    %v1796 = vsel %vm857, %v1781, %v1783
    %v1797 = vsel %vm857, %v1779, %v1781
    %v1798 = vsel %vm857, %v1777, %v1779
    %v1799 = vsel %vm857, %v1791, %v1777
    %v1800 = vmul.f32 %v1798, %v867
    %v1801 = vmul.f32 %v1797, %v868
    %v1802 = vmul.f32 %v1796, %v869
    %v1803 = vmul.f32 %v1795, %v870
    %v1804 = vmul.f32 %v1794, %v871
    %v1805 = vmul.f32 %v1793, %v872
    %v1806 = vmul.f32 %v1792, %v873
    %v1807 = vmul.f32 %v1799, %v874
    %s1808 = sld [smem:[#allocation2 + $0x10]]
    %v1809 = vstv %s1808
    %v1810 = vmul.f32 %v1809, %v1800
    %v1811 = vmul.f32 %v1809, %v1801
    %v1812 = vmul.f32 %v1809, %v1802
    %v1813 = vmul.f32 %v1809, %v1803
    %v1814 = vmul.f32 %v1809, %v1804
    %v1815 = vmul.f32 %v1809, %v1805
    %v1816 = vmul.f32 %v1809, %v1806
    %v1817 = vmul.f32 %v1809, %v1807
    %v1818 = vadd.f32 %v1714, %v1810
    %v1819 = vadd.f32 %v1715, %v1811
    %v1820 = vadd.f32 %v1716, %v1812
    %v1821 = vadd.f32 %v1717, %v1813
    %v1822 = vadd.f32 %v1718, %v1814
    %v1823 = vadd.f32 %v1719, %v1815
    %v1824 = vadd.f32 %v1720, %v1816
    %v1825 = vadd.f32 %v1721, %v1817
    %s1826 = sld [smem:[#allocation2 + $0x34]]
    %v1827 = vstv %s1826
    %v1828 = vmul.f32 %v1827, %v1800
    %v1829 = vmul.f32 %v1827, %v1801
    %v1830 = vmul.f32 %v1827, %v1802
    %v1831 = vmul.f32 %v1827, %v1803
    %v1832 = vmul.f32 %v1827, %v1804
    %v1833 = vmul.f32 %v1827, %v1805
    %v1834 = vmul.f32 %v1827, %v1806
    %v1835 = vmul.f32 %v1827, %v1807
    %v1836 = vadd.f32 %v1732, %v1828
    %v1837 = vadd.f32 %v1733, %v1829
    %v1838 = vadd.f32 %v1734, %v1830
    %v1839 = vadd.f32 %v1735, %v1831
    %v1840 = vadd.f32 %v1736, %v1832
    %v1841 = vadd.f32 %v1737, %v1833
    %v1842 = vadd.f32 %v1738, %v1834
    %v1843 = vadd.f32 %v1739, %v1835
    %s1844 = sld [smem:[#allocation2 + $0x58]]
    %v1845 = vstv %s1844
    %v1846 = vmul.f32 %v1845, %v1800
    %v1847 = vmul.f32 %v1845, %v1801
    %v1848 = vmul.f32 %v1845, %v1802
    %v1849 = vmul.f32 %v1845, %v1803
    %v1850 = vmul.f32 %v1845, %v1804
    %v1851 = vmul.f32 %v1845, %v1805
    %v1852 = vmul.f32 %v1845, %v1806
    %v1853 = vmul.f32 %v1845, %v1807
    %v1854 = vadd.f32 %v1750, %v1846
    %v1855 = vadd.f32 %v1751, %v1847
    %v1856 = vadd.f32 %v1752, %v1848
    %v1857 = vadd.f32 %v1753, %v1849
    %v1858 = vadd.f32 %v1754, %v1850
    %v1859 = vadd.f32 %v1755, %v1851
    %v1860 = vadd.f32 %v1756, %v1852
    %v1861 = vadd.f32 %v1757, %v1853
    %s1862 = sld [smem:[#allocation2 + $0x7c]]
    %v1863 = vstv %s1862
    %v1864 = vmul.f32 %v1863, %v1800
    %v1865 = vmul.f32 %v1863, %v1801
    %v1866 = vmul.f32 %v1863, %v1802
    %v1867 = vmul.f32 %v1863, %v1803
    %v1868 = vmul.f32 %v1863, %v1804
    %v1869 = vmul.f32 %v1863, %v1805
    %v1870 = vmul.f32 %v1863, %v1806
    %v1871 = vmul.f32 %v1863, %v1807
    %v1872 = vadd.f32 %v1768, %v1864
    %v1873 = vadd.f32 %v1769, %v1865
    %v1874 = vadd.f32 %v1770, %v1866
    %v1875 = vadd.f32 %v1771, %v1867
    %v1876 = vadd.f32 %v1772, %v1868
    %v1877 = vadd.f32 %v1773, %v1869
    %v1878 = vadd.f32 %v1774, %v1870
    %v1879 = vadd.f32 %v1775, %v1871
    %1880 = vrot.lane.b32.xlu0 %v1072, 95
    %v1881 = vpop.permute.xlu0 %1880
    %1882 = vrot.lane.b32.xlu0 %v1073, 95
    %v1883 = vpop.permute.xlu0 %1882
    %1884 = vrot.lane.b32.xlu0 %v1074, 95
    %v1885 = vpop.permute.xlu0 %1884
    %1886 = vrot.lane.b32.xlu0 %v1075, 95
    %v1887 = vpop.permute.xlu0 %1886
    %1888 = vrot.lane.b32.xlu0 %v1076, 95
    %v1889 = vpop.permute.xlu0 %1888
    %1890 = vrot.lane.b32.xlu0 %v1077, 95
    %v1891 = vpop.permute.xlu0 %1890
    %1892 = vrot.lane.b32.xlu0 %v1078, 95
    %v1893 = vpop.permute.xlu0 %1892
    %1894 = vrot.lane.b32.xlu0 %v1079, 95
    %v1895 = vpop.permute.xlu0 %1894
    %v1896 = vsel %vm971, %v1893, %v1895
    %v1897 = vsel %vm971, %v1891, %v1893
    %v1898 = vsel %vm971, %v1889, %v1891
    %v1899 = vsel %vm971, %v1887, %v1889
    %v1900 = vsel %vm971, %v1885, %v1887
    %v1901 = vsel %vm971, %v1883, %v1885
    %v1902 = vsel %vm971, %v1881, %v1883
    %v1903 = vsel %vm971, %v1895, %v1881
    %v1904 = vmul.f32 %v1902, %v981
    %v1905 = vmul.f32 %v1901, %v982
    %v1906 = vmul.f32 %v1900, %v983
    %v1907 = vmul.f32 %v1899, %v984
    %v1908 = vmul.f32 %v1898, %v985
    %v1909 = vmul.f32 %v1897, %v986
    %v1910 = vmul.f32 %v1896, %v987
    %v1911 = vmul.f32 %v1903, %v988
    %s1912 = sld [smem:[#allocation2 + $0x11]]
    %v1913 = vstv %s1912
    %v1914 = vmul.f32 %v1913, %v1904
    %v1915 = vmul.f32 %v1913, %v1905
    %v1916 = vmul.f32 %v1913, %v1906
    %v1917 = vmul.f32 %v1913, %v1907
    %v1918 = vmul.f32 %v1913, %v1908
    %v1919 = vmul.f32 %v1913, %v1909
    %v1920 = vmul.f32 %v1913, %v1910
    %v1921 = vmul.f32 %v1913, %v1911
    %v1922 = vadd.f32 %v1818, %v1914
    %v1923 = vadd.f32 %v1819, %v1915
    %v1924 = vadd.f32 %v1820, %v1916
    %v1925 = vadd.f32 %v1821, %v1917
    %v1926 = vadd.f32 %v1822, %v1918
    %v1927 = vadd.f32 %v1823, %v1919
    %v1928 = vadd.f32 %v1824, %v1920
    %v1929 = vadd.f32 %v1825, %v1921
    %s1930 = sld [smem:[#allocation2 + $0x35]]
    %v1931 = vstv %s1930
    %v1932 = vmul.f32 %v1931, %v1904
    %v1933 = vmul.f32 %v1931, %v1905
    %v1934 = vmul.f32 %v1931, %v1906
    %v1935 = vmul.f32 %v1931, %v1907
    %v1936 = vmul.f32 %v1931, %v1908
    %v1937 = vmul.f32 %v1931, %v1909
    %v1938 = vmul.f32 %v1931, %v1910
    %v1939 = vmul.f32 %v1931, %v1911
    %v1940 = vadd.f32 %v1836, %v1932
    %v1941 = vadd.f32 %v1837, %v1933
    %v1942 = vadd.f32 %v1838, %v1934
    %v1943 = vadd.f32 %v1839, %v1935
    %v1944 = vadd.f32 %v1840, %v1936
    %v1945 = vadd.f32 %v1841, %v1937
    %v1946 = vadd.f32 %v1842, %v1938
    %v1947 = vadd.f32 %v1843, %v1939
    %s1948 = sld [smem:[#allocation2 + $0x59]]
    %v1949 = vstv %s1948
    %v1950 = vmul.f32 %v1949, %v1904
    %v1951 = vmul.f32 %v1949, %v1905
    %v1952 = vmul.f32 %v1949, %v1906
    %v1953 = vmul.f32 %v1949, %v1907
    %v1954 = vmul.f32 %v1949, %v1908
    %v1955 = vmul.f32 %v1949, %v1909
    %v1956 = vmul.f32 %v1949, %v1910
    %v1957 = vmul.f32 %v1949, %v1911
    %v1958 = vadd.f32 %v1854, %v1950
    %v1959 = vadd.f32 %v1855, %v1951
    %v1960 = vadd.f32 %v1856, %v1952
    %v1961 = vadd.f32 %v1857, %v1953
    %v1962 = vadd.f32 %v1858, %v1954
    %v1963 = vadd.f32 %v1859, %v1955
    %v1964 = vadd.f32 %v1860, %v1956
    %v1965 = vadd.f32 %v1861, %v1957
    %s1966 = sld [smem:[#allocation2 + $0x7d]]
    %v1967 = vstv %s1966
    %v1968 = vmul.f32 %v1967, %v1904
    %v1969 = vmul.f32 %v1967, %v1905
    %v1970 = vmul.f32 %v1967, %v1906
    %v1971 = vmul.f32 %v1967, %v1907
    %v1972 = vmul.f32 %v1967, %v1908
    %v1973 = vmul.f32 %v1967, %v1909
    %v1974 = vmul.f32 %v1967, %v1910
    %v1975 = vmul.f32 %v1967, %v1911
    %v1976 = vadd.f32 %v1872, %v1968
    %v1977 = vadd.f32 %v1873, %v1969
    %v1978 = vadd.f32 %v1874, %v1970
    %v1979 = vadd.f32 %v1875, %v1971
    %v1980 = vadd.f32 %v1876, %v1972
    %v1981 = vadd.f32 %v1877, %v1973
    %v1982 = vadd.f32 %v1878, %v1974
    %v1983 = vadd.f32 %v1879, %v1975
    %s1984 = sadd.s32 %s73, 16
    %s1985 = smul.addr %s1984, 8
    %s1986 = scalar_lea.vmem %s0, %s1985
    %v1987 = vld [vmem:[%s1986] sm:$0xff]
    %v1988 = vld [vmem:[%s1986 + $0x8] sm:$0xff]
    %v1989 = vld [vmem:[%s1986 + $0x10] sm:$0xff]
    %v1990 = vld [vmem:[%s1986 + $0x18] sm:$0xff]
    %v1991 = vld [vmem:[%s1986 + $0x20] sm:$0xff]
    %v1992 = vld [vmem:[%s1986 + $0x28] sm:$0xff]
    %v1993 = vld [vmem:[%s1986 + $0x30] sm:$0xff]
    %v1994 = vld [vmem:[%s1986 + $0x38] sm:$0xff]
    %1995 = vrot.lane.b32.xlu0 %v1987, 33
    %v1996 = vpop.permute.xlu0 %1995
    %1997 = vrot.lane.b32.xlu0 %v1988, 33
    %v1998 = vpop.permute.xlu0 %1997
    %1999 = vrot.lane.b32.xlu0 %v1989, 33
    %v2000 = vpop.permute.xlu0 %1999
    %2001 = vrot.lane.b32.xlu0 %v1990, 33
    %v2002 = vpop.permute.xlu0 %2001
    %2003 = vrot.lane.b32.xlu0 %v1991, 33
    %v2004 = vpop.permute.xlu0 %2003
    %2005 = vrot.lane.b32.xlu0 %v1992, 33
    %v2006 = vpop.permute.xlu0 %2005
    %2007 = vrot.lane.b32.xlu0 %v1993, 33
    %v2008 = vpop.permute.xlu0 %2007
    %2009 = vrot.lane.b32.xlu0 %v1994, 33
    %v2010 = vpop.permute.xlu0 %2009
    %v2011 = vsel %vm102, %v2008, %v2010
    %v2012 = vsel %vm102, %v2006, %v2008
    %v2013 = vsel %vm102, %v2004, %v2006
    %v2014 = vsel %vm102, %v2002, %v2004
    %v2015 = vsel %vm102, %v2000, %v2002
    %v2016 = vsel %vm102, %v1998, %v2000
    %v2017 = vsel %vm102, %v1996, %v1998
    %v2018 = vsel %vm102, %v2010, %v1996
    %v2019 = vmul.f32 %v2018, %v111
    %v2020 = vmul.f32 %v2017, %v112
    %v2021 = vmul.f32 %v2016, %v113
    %v2022 = vmul.f32 %v2015, %v114
    %v2023 = vmul.f32 %v2014, %v115
    %v2024 = vmul.f32 %v2013, %v116
    %v2025 = vmul.f32 %v2012, %v117
    %v2026 = vmul.f32 %v2011, %v118
    %s2027 = sld [smem:[#allocation2 + $0x12]]
    %v2028 = vstv %s2027
    %v2029 = vmul.f32 %v2028, %v2019
    %v2030 = vmul.f32 %v2028, %v2020
    %v2031 = vmul.f32 %v2028, %v2021
    %v2032 = vmul.f32 %v2028, %v2022
    %v2033 = vmul.f32 %v2028, %v2023
    %v2034 = vmul.f32 %v2028, %v2024
    %v2035 = vmul.f32 %v2028, %v2025
    %v2036 = vmul.f32 %v2028, %v2026
    %v2037 = vadd.f32 %v1922, %v2029
    %v2038 = vadd.f32 %v1923, %v2030
    %v2039 = vadd.f32 %v1924, %v2031
    %v2040 = vadd.f32 %v1925, %v2032
    %v2041 = vadd.f32 %v1926, %v2033
    %v2042 = vadd.f32 %v1927, %v2034
    %v2043 = vadd.f32 %v1928, %v2035
    %v2044 = vadd.f32 %v1929, %v2036
    %s2045 = sld [smem:[#allocation2 + $0x36]]
    %v2046 = vstv %s2045
    %v2047 = vmul.f32 %v2046, %v2019
    %v2048 = vmul.f32 %v2046, %v2020
    %v2049 = vmul.f32 %v2046, %v2021
    %v2050 = vmul.f32 %v2046, %v2022
    %v2051 = vmul.f32 %v2046, %v2023
    %v2052 = vmul.f32 %v2046, %v2024
    %v2053 = vmul.f32 %v2046, %v2025
    %v2054 = vmul.f32 %v2046, %v2026
    %v2055 = vadd.f32 %v1940, %v2047
    %v2056 = vadd.f32 %v1941, %v2048
    %v2057 = vadd.f32 %v1942, %v2049
    %v2058 = vadd.f32 %v1943, %v2050
    %v2059 = vadd.f32 %v1944, %v2051
    %v2060 = vadd.f32 %v1945, %v2052
    %v2061 = vadd.f32 %v1946, %v2053
    %v2062 = vadd.f32 %v1947, %v2054
    %s2063 = sld [smem:[#allocation2 + $0x5a]]
    %v2064 = vstv %s2063
    %v2065 = vmul.f32 %v2064, %v2019
    %v2066 = vmul.f32 %v2064, %v2020
    %v2067 = vmul.f32 %v2064, %v2021
    %v2068 = vmul.f32 %v2064, %v2022
    %v2069 = vmul.f32 %v2064, %v2023
    %v2070 = vmul.f32 %v2064, %v2024
    %v2071 = vmul.f32 %v2064, %v2025
    %v2072 = vmul.f32 %v2064, %v2026
    %v2073 = vadd.f32 %v1958, %v2065
    %v2074 = vadd.f32 %v1959, %v2066
    %v2075 = vadd.f32 %v1960, %v2067
    %v2076 = vadd.f32 %v1961, %v2068
    %v2077 = vadd.f32 %v1962, %v2069
    %v2078 = vadd.f32 %v1963, %v2070
    %v2079 = vadd.f32 %v1964, %v2071
    %v2080 = vadd.f32 %v1965, %v2072
    %s2081 = sld [smem:[#allocation2 + $0x7e]]
    %v2082 = vstv %s2081
    %v2083 = vmul.f32 %v2082, %v2019
    %v2084 = vmul.f32 %v2082, %v2020
    %v2085 = vmul.f32 %v2082, %v2021
    %v2086 = vmul.f32 %v2082, %v2022
    %v2087 = vmul.f32 %v2082, %v2023
    %v2088 = vmul.f32 %v2082, %v2024
    %v2089 = vmul.f32 %v2082, %v2025
    %v2090 = vmul.f32 %v2082, %v2026
    %v2091 = vadd.f32 %v1976, %v2083
    %v2092 = vadd.f32 %v1977, %v2084
    %v2093 = vadd.f32 %v1978, %v2085
    %v2094 = vadd.f32 %v1979, %v2086
    %v2095 = vadd.f32 %v1980, %v2087
    %v2096 = vadd.f32 %v1981, %v2088
    %v2097 = vadd.f32 %v1982, %v2089
    %v2098 = vadd.f32 %v1983, %v2090
    %2099 = vrot.lane.b32.xlu0 %v1987, 32
    %v2100 = vpop.permute.xlu0 %2099
    %2101 = vrot.lane.b32.xlu0 %v1988, 32
    %v2102 = vpop.permute.xlu0 %2101
    %2103 = vrot.lane.b32.xlu0 %v1989, 32
    %v2104 = vpop.permute.xlu0 %2103
    %2105 = vrot.lane.b32.xlu0 %v1990, 32
    %v2106 = vpop.permute.xlu0 %2105
    %2107 = vrot.lane.b32.xlu0 %v1991, 32
    %v2108 = vpop.permute.xlu0 %2107
    %2109 = vrot.lane.b32.xlu0 %v1992, 32
    %v2110 = vpop.permute.xlu0 %2109
    %2111 = vrot.lane.b32.xlu0 %v1993, 32
    %v2112 = vpop.permute.xlu0 %2111
    %2113 = vrot.lane.b32.xlu0 %v1994, 32
    %v2114 = vpop.permute.xlu0 %2113
    %v2115 = vsel %vm215, %v2112, %v2114
    %v2116 = vsel %vm215, %v2110, %v2112
    %v2117 = vsel %vm215, %v2108, %v2110
    %v2118 = vsel %vm215, %v2106, %v2108
    %v2119 = vsel %vm215, %v2104, %v2106
    %v2120 = vsel %vm215, %v2102, %v2104
    %v2121 = vsel %vm215, %v2100, %v2102
    %v2122 = vsel %vm215, %v2114, %v2100
    %v2123 = vmul.f32 %v2122, %v225
    %v2124 = vmul.f32 %v2121, %v226
    %v2125 = vmul.f32 %v2120, %v227
    %v2126 = vmul.f32 %v2119, %v228
    %v2127 = vmul.f32 %v2118, %v229
    %v2128 = vmul.f32 %v2117, %v230
    %v2129 = vmul.f32 %v2116, %v231
    %v2130 = vmul.f32 %v2115, %v232
    %s2131 = sld [smem:[#allocation2 + $0x13]]
    %v2132 = vstv %s2131
    %v2133 = vmul.f32 %v2132, %v2123
    %v2134 = vmul.f32 %v2132, %v2124
    %v2135 = vmul.f32 %v2132, %v2125
    %v2136 = vmul.f32 %v2132, %v2126
    %v2137 = vmul.f32 %v2132, %v2127
    %v2138 = vmul.f32 %v2132, %v2128
    %v2139 = vmul.f32 %v2132, %v2129
    %v2140 = vmul.f32 %v2132, %v2130
    %v2141 = vadd.f32 %v2037, %v2133
    %v2142 = vadd.f32 %v2038, %v2134
    %v2143 = vadd.f32 %v2039, %v2135
    %v2144 = vadd.f32 %v2040, %v2136
    %v2145 = vadd.f32 %v2041, %v2137
    %v2146 = vadd.f32 %v2042, %v2138
    %v2147 = vadd.f32 %v2043, %v2139
    %v2148 = vadd.f32 %v2044, %v2140
    %s2149 = sld [smem:[#allocation2 + $0x37]]
    %v2150 = vstv %s2149
    %v2151 = vmul.f32 %v2150, %v2123
    %v2152 = vmul.f32 %v2150, %v2124
    %v2153 = vmul.f32 %v2150, %v2125
    %v2154 = vmul.f32 %v2150, %v2126
    %v2155 = vmul.f32 %v2150, %v2127
    %v2156 = vmul.f32 %v2150, %v2128
    %v2157 = vmul.f32 %v2150, %v2129
    %v2158 = vmul.f32 %v2150, %v2130
    %v2159 = vadd.f32 %v2055, %v2151
    %v2160 = vadd.f32 %v2056, %v2152
    %v2161 = vadd.f32 %v2057, %v2153
    %v2162 = vadd.f32 %v2058, %v2154
    %v2163 = vadd.f32 %v2059, %v2155
    %v2164 = vadd.f32 %v2060, %v2156
    %v2165 = vadd.f32 %v2061, %v2157
    %v2166 = vadd.f32 %v2062, %v2158
    %s2167 = sld [smem:[#allocation2 + $0x5b]]
    %v2168 = vstv %s2167
    %v2169 = vmul.f32 %v2168, %v2123
    %v2170 = vmul.f32 %v2168, %v2124
    %v2171 = vmul.f32 %v2168, %v2125
    %v2172 = vmul.f32 %v2168, %v2126
    %v2173 = vmul.f32 %v2168, %v2127
    %v2174 = vmul.f32 %v2168, %v2128
    %v2175 = vmul.f32 %v2168, %v2129
    %v2176 = vmul.f32 %v2168, %v2130
    %v2177 = vadd.f32 %v2073, %v2169
    %v2178 = vadd.f32 %v2074, %v2170
    %v2179 = vadd.f32 %v2075, %v2171
    %v2180 = vadd.f32 %v2076, %v2172
    %v2181 = vadd.f32 %v2077, %v2173
    %v2182 = vadd.f32 %v2078, %v2174
    %v2183 = vadd.f32 %v2079, %v2175
    %v2184 = vadd.f32 %v2080, %v2176
    %s2185 = sld [smem:[#allocation2 + $0x7f]]
    %v2186 = vstv %s2185
    %v2187 = vmul.f32 %v2186, %v2123
    %v2188 = vmul.f32 %v2186, %v2124
    %v2189 = vmul.f32 %v2186, %v2125
    %v2190 = vmul.f32 %v2186, %v2126
    %v2191 = vmul.f32 %v2186, %v2127
    %v2192 = vmul.f32 %v2186, %v2128
    %v2193 = vmul.f32 %v2186, %v2129
    %v2194 = vmul.f32 %v2186, %v2130
    %v2195 = vadd.f32 %v2091, %v2187
    %v2196 = vadd.f32 %v2092, %v2188
    %v2197 = vadd.f32 %v2093, %v2189
    %v2198 = vadd.f32 %v2094, %v2190
    %v2199 = vadd.f32 %v2095, %v2191
    %v2200 = vadd.f32 %v2096, %v2192
    %v2201 = vadd.f32 %v2097, %v2193
    %v2202 = vadd.f32 %v2098, %v2194
    %2203 = vrot.lane.b32.xlu0 %v1987, 31
    %v2204 = vpop.permute.xlu0 %2203
    %2205 = vrot.lane.b32.xlu0 %v1988, 31
    %v2206 = vpop.permute.xlu0 %2205
    %2207 = vrot.lane.b32.xlu0 %v1989, 31
    %v2208 = vpop.permute.xlu0 %2207
    %2209 = vrot.lane.b32.xlu0 %v1990, 31
    %v2210 = vpop.permute.xlu0 %2209
    %2211 = vrot.lane.b32.xlu0 %v1991, 31
    %v2212 = vpop.permute.xlu0 %2211
    %2213 = vrot.lane.b32.xlu0 %v1992, 31
    %v2214 = vpop.permute.xlu0 %2213
    %2215 = vrot.lane.b32.xlu0 %v1993, 31
    %v2216 = vpop.permute.xlu0 %2215
    %2217 = vrot.lane.b32.xlu0 %v1994, 31
    %v2218 = vpop.permute.xlu0 %2217
    %v2219 = vsel %vm329, %v2216, %v2218
    %v2220 = vsel %vm329, %v2214, %v2216
    %v2221 = vsel %vm329, %v2212, %v2214
    %v2222 = vsel %vm329, %v2210, %v2212
    %v2223 = vsel %vm329, %v2208, %v2210
    %v2224 = vsel %vm329, %v2206, %v2208
    %v2225 = vsel %vm329, %v2204, %v2206
    %v2226 = vsel %vm329, %v2218, %v2204
    %v2227 = vmul.f32 %v2226, %v339
    %v2228 = vmul.f32 %v2225, %v340
    %v2229 = vmul.f32 %v2224, %v341
    %v2230 = vmul.f32 %v2223, %v342
    %v2231 = vmul.f32 %v2222, %v343
    %v2232 = vmul.f32 %v2221, %v344
    %v2233 = vmul.f32 %v2220, %v345
    %v2234 = vmul.f32 %v2219, %v346
    %s2235 = sld [smem:[#allocation2 + $0x14]]
    %v2236 = vstv %s2235
    %v2237 = vmul.f32 %v2236, %v2227
    %v2238 = vmul.f32 %v2236, %v2228
    %v2239 = vmul.f32 %v2236, %v2229
    %v2240 = vmul.f32 %v2236, %v2230
    %v2241 = vmul.f32 %v2236, %v2231
    %v2242 = vmul.f32 %v2236, %v2232
    %v2243 = vmul.f32 %v2236, %v2233
    %v2244 = vmul.f32 %v2236, %v2234
    %v2245 = vadd.f32 %v2141, %v2237
    %v2246 = vadd.f32 %v2142, %v2238
    %v2247 = vadd.f32 %v2143, %v2239
    %v2248 = vadd.f32 %v2144, %v2240
    %v2249 = vadd.f32 %v2145, %v2241
    %v2250 = vadd.f32 %v2146, %v2242
    %v2251 = vadd.f32 %v2147, %v2243
    %v2252 = vadd.f32 %v2148, %v2244
    %s2253 = sld [smem:[#allocation2 + $0x38]]
    %v2254 = vstv %s2253
    %v2255 = vmul.f32 %v2254, %v2227
    %v2256 = vmul.f32 %v2254, %v2228
    %v2257 = vmul.f32 %v2254, %v2229
    %v2258 = vmul.f32 %v2254, %v2230
    %v2259 = vmul.f32 %v2254, %v2231
    %v2260 = vmul.f32 %v2254, %v2232
    %v2261 = vmul.f32 %v2254, %v2233
    %v2262 = vmul.f32 %v2254, %v2234
    %v2263 = vadd.f32 %v2159, %v2255
    %v2264 = vadd.f32 %v2160, %v2256
    %v2265 = vadd.f32 %v2161, %v2257
    %v2266 = vadd.f32 %v2162, %v2258
    %v2267 = vadd.f32 %v2163, %v2259
    %v2268 = vadd.f32 %v2164, %v2260
    %v2269 = vadd.f32 %v2165, %v2261
    %v2270 = vadd.f32 %v2166, %v2262
    %s2271 = sld [smem:[#allocation2 + $0x5c]]
    %v2272 = vstv %s2271
    %v2273 = vmul.f32 %v2272, %v2227
    %v2274 = vmul.f32 %v2272, %v2228
    %v2275 = vmul.f32 %v2272, %v2229
    %v2276 = vmul.f32 %v2272, %v2230
    %v2277 = vmul.f32 %v2272, %v2231
    %v2278 = vmul.f32 %v2272, %v2232
    %v2279 = vmul.f32 %v2272, %v2233
    %v2280 = vmul.f32 %v2272, %v2234
    %v2281 = vadd.f32 %v2177, %v2273
    %v2282 = vadd.f32 %v2178, %v2274
    %v2283 = vadd.f32 %v2179, %v2275
    %v2284 = vadd.f32 %v2180, %v2276
    %v2285 = vadd.f32 %v2181, %v2277
    %v2286 = vadd.f32 %v2182, %v2278
    %v2287 = vadd.f32 %v2183, %v2279
    %v2288 = vadd.f32 %v2184, %v2280
    %s2289 = sld [smem:[#allocation2 + $0x80]]
    %v2290 = vstv %s2289
    %v2291 = vmul.f32 %v2290, %v2227
    %v2292 = vmul.f32 %v2290, %v2228
    %v2293 = vmul.f32 %v2290, %v2229
    %v2294 = vmul.f32 %v2290, %v2230
    %v2295 = vmul.f32 %v2290, %v2231
    %v2296 = vmul.f32 %v2290, %v2232
    %v2297 = vmul.f32 %v2290, %v2233
    %v2298 = vmul.f32 %v2290, %v2234
    %v2299 = vadd.f32 %v2195, %v2291
    %v2300 = vadd.f32 %v2196, %v2292
    %v2301 = vadd.f32 %v2197, %v2293
    %v2302 = vadd.f32 %v2198, %v2294
    %v2303 = vadd.f32 %v2199, %v2295
    %v2304 = vadd.f32 %v2200, %v2296
    %v2305 = vadd.f32 %v2201, %v2297
    %v2306 = vadd.f32 %v2202, %v2298
    %2307 = vrot.lane.b32.xlu0 %v1987, 1
    %v2308 = vpop.permute.xlu0 %2307
    %2309 = vrot.lane.b32.xlu0 %v1988, 1
    %v2310 = vpop.permute.xlu0 %2309
    %2311 = vrot.lane.b32.xlu0 %v1989, 1
    %v2312 = vpop.permute.xlu0 %2311
    %2313 = vrot.lane.b32.xlu0 %v1990, 1
    %v2314 = vpop.permute.xlu0 %2313
    %2315 = vrot.lane.b32.xlu0 %v1991, 1
    %v2316 = vpop.permute.xlu0 %2315
    %2317 = vrot.lane.b32.xlu0 %v1992, 1
    %v2318 = vpop.permute.xlu0 %2317
    %2319 = vrot.lane.b32.xlu0 %v1993, 1
    %v2320 = vpop.permute.xlu0 %2319
    %2321 = vrot.lane.b32.xlu0 %v1994, 1
    %v2322 = vpop.permute.xlu0 %2321
    %v2323 = vsel %vm443, %v2320, %v2322
    %v2324 = vsel %vm443, %v2318, %v2320
    %v2325 = vsel %vm443, %v2316, %v2318
    %v2326 = vsel %vm443, %v2314, %v2316
    %v2327 = vsel %vm443, %v2312, %v2314
    %v2328 = vsel %vm443, %v2310, %v2312
    %v2329 = vsel %vm443, %v2308, %v2310
    %v2330 = vsel %vm443, %v2322, %v2308
    %v2331 = vmul.f32 %v2330, %v453
    %v2332 = vmul.f32 %v2329, %v454
    %v2333 = vmul.f32 %v2328, %v455
    %v2334 = vmul.f32 %v2327, %v456
    %v2335 = vmul.f32 %v2326, %v457
    %v2336 = vmul.f32 %v2325, %v458
    %v2337 = vmul.f32 %v2324, %v459
    %v2338 = vmul.f32 %v2323, %v460
    %s2339 = sld [smem:[#allocation2 + $0x15]]
    %v2340 = vstv %s2339
    %v2341 = vmul.f32 %v2340, %v2331
    %v2342 = vmul.f32 %v2340, %v2332
    %v2343 = vmul.f32 %v2340, %v2333
    %v2344 = vmul.f32 %v2340, %v2334
    %v2345 = vmul.f32 %v2340, %v2335
    %v2346 = vmul.f32 %v2340, %v2336
    %v2347 = vmul.f32 %v2340, %v2337
    %v2348 = vmul.f32 %v2340, %v2338
    %v2349 = vadd.f32 %v2245, %v2341
    %v2350 = vadd.f32 %v2246, %v2342
    %v2351 = vadd.f32 %v2247, %v2343
    %v2352 = vadd.f32 %v2248, %v2344
    %v2353 = vadd.f32 %v2249, %v2345
    %v2354 = vadd.f32 %v2250, %v2346
    %v2355 = vadd.f32 %v2251, %v2347
    %v2356 = vadd.f32 %v2252, %v2348
    %s2357 = sld [smem:[#allocation2 + $0x39]]
    %v2358 = vstv %s2357
    %v2359 = vmul.f32 %v2358, %v2331
    %v2360 = vmul.f32 %v2358, %v2332
    %v2361 = vmul.f32 %v2358, %v2333
    %v2362 = vmul.f32 %v2358, %v2334
    %v2363 = vmul.f32 %v2358, %v2335
    %v2364 = vmul.f32 %v2358, %v2336
    %v2365 = vmul.f32 %v2358, %v2337
    %v2366 = vmul.f32 %v2358, %v2338
    %v2367 = vadd.f32 %v2263, %v2359
    %v2368 = vadd.f32 %v2264, %v2360
    %v2369 = vadd.f32 %v2265, %v2361
    %v2370 = vadd.f32 %v2266, %v2362
    %v2371 = vadd.f32 %v2267, %v2363
    %v2372 = vadd.f32 %v2268, %v2364
    %v2373 = vadd.f32 %v2269, %v2365
    %v2374 = vadd.f32 %v2270, %v2366
    %s2375 = sld [smem:[#allocation2 + $0x5d]]
    %v2376 = vstv %s2375
    %v2377 = vmul.f32 %v2376, %v2331
    %v2378 = vmul.f32 %v2376, %v2332
    %v2379 = vmul.f32 %v2376, %v2333
    %v2380 = vmul.f32 %v2376, %v2334
    %v2381 = vmul.f32 %v2376, %v2335
    %v2382 = vmul.f32 %v2376, %v2336
    %v2383 = vmul.f32 %v2376, %v2337
    %v2384 = vmul.f32 %v2376, %v2338
    %v2385 = vadd.f32 %v2281, %v2377
    %v2386 = vadd.f32 %v2282, %v2378
    %v2387 = vadd.f32 %v2283, %v2379
    %v2388 = vadd.f32 %v2284, %v2380
    %v2389 = vadd.f32 %v2285, %v2381
    %v2390 = vadd.f32 %v2286, %v2382
    %v2391 = vadd.f32 %v2287, %v2383
    %v2392 = vadd.f32 %v2288, %v2384
    %s2393 = sld [smem:[#allocation2 + $0x81]]
    %v2394 = vstv %s2393
    %v2395 = vmul.f32 %v2394, %v2331
    %v2396 = vmul.f32 %v2394, %v2332
    %v2397 = vmul.f32 %v2394, %v2333
    %v2398 = vmul.f32 %v2394, %v2334
    %v2399 = vmul.f32 %v2394, %v2335
    %v2400 = vmul.f32 %v2394, %v2336
    %v2401 = vmul.f32 %v2394, %v2337
    %v2402 = vmul.f32 %v2394, %v2338
    %v2403 = vadd.f32 %v2299, %v2395
    %v2404 = vadd.f32 %v2300, %v2396
    %v2405 = vadd.f32 %v2301, %v2397
    %v2406 = vadd.f32 %v2302, %v2398
    %v2407 = vadd.f32 %v2303, %v2399
    %v2408 = vadd.f32 %v2304, %v2400
    %v2409 = vadd.f32 %v2305, %v2401
    %v2410 = vadd.f32 %v2306, %v2402
    %s2411 = sld [smem:[#allocation2 + $0x16]]
    %v2412 = vstv %s2411
    %v2413 = vmul.f32 %v2412, %v1987
    %v2414 = vmul.f32 %v2412, %v1988
    %v2415 = vmul.f32 %v2412, %v1989
    %v2416 = vmul.f32 %v2412, %v1990
    %v2417 = vmul.f32 %v2412, %v1991
    %v2418 = vmul.f32 %v2412, %v1992
    %v2419 = vmul.f32 %v2412, %v1993
    %v2420 = vmul.f32 %v2412, %v1994
    %v2421 = vadd.f32 %v2349, %v2413
    %v2422 = vadd.f32 %v2350, %v2414
    %v2423 = vadd.f32 %v2351, %v2415
    %v2424 = vadd.f32 %v2352, %v2416
    %v2425 = vadd.f32 %v2353, %v2417
    %v2426 = vadd.f32 %v2354, %v2418
    %v2427 = vadd.f32 %v2355, %v2419
    %v2428 = vadd.f32 %v2356, %v2420
    %s2429 = sld [smem:[#allocation2 + $0x3a]]
    %v2430 = vstv %s2429
    %v2431 = vmul.f32 %v2430, %v1987
    %v2432 = vmul.f32 %v2430, %v1988
    %v2433 = vmul.f32 %v2430, %v1989
    %v2434 = vmul.f32 %v2430, %v1990
    %v2435 = vmul.f32 %v2430, %v1991
    %v2436 = vmul.f32 %v2430, %v1992
    %v2437 = vmul.f32 %v2430, %v1993
    %v2438 = vmul.f32 %v2430, %v1994
    %v2439 = vadd.f32 %v2367, %v2431
    %v2440 = vadd.f32 %v2368, %v2432
    %v2441 = vadd.f32 %v2369, %v2433
    %v2442 = vadd.f32 %v2370, %v2434
    %v2443 = vadd.f32 %v2371, %v2435
    %v2444 = vadd.f32 %v2372, %v2436
    %v2445 = vadd.f32 %v2373, %v2437
    %v2446 = vadd.f32 %v2374, %v2438
    %s2447 = sld [smem:[#allocation2 + $0x5e]]
    %v2448 = vstv %s2447
    %v2449 = vmul.f32 %v2448, %v1987
    %v2450 = vmul.f32 %v2448, %v1988
    %v2451 = vmul.f32 %v2448, %v1989
    %v2452 = vmul.f32 %v2448, %v1990
    %v2453 = vmul.f32 %v2448, %v1991
    %v2454 = vmul.f32 %v2448, %v1992
    %v2455 = vmul.f32 %v2448, %v1993
    %v2456 = vmul.f32 %v2448, %v1994
    %v2457 = vadd.f32 %v2385, %v2449
    %v2458 = vadd.f32 %v2386, %v2450
    %v2459 = vadd.f32 %v2387, %v2451
    %v2460 = vadd.f32 %v2388, %v2452
    %v2461 = vadd.f32 %v2389, %v2453
    %v2462 = vadd.f32 %v2390, %v2454
    %v2463 = vadd.f32 %v2391, %v2455
    %v2464 = vadd.f32 %v2392, %v2456
    %s2465 = sld [smem:[#allocation2 + $0x82]]
    %v2466 = vstv %s2465
    %v2467 = vmul.f32 %v2466, %v1987
    %v2468 = vmul.f32 %v2466, %v1988
    %v2469 = vmul.f32 %v2466, %v1989
    %v2470 = vmul.f32 %v2466, %v1990
    %v2471 = vmul.f32 %v2466, %v1991
    %v2472 = vmul.f32 %v2466, %v1992
    %v2473 = vmul.f32 %v2466, %v1993
    %v2474 = vmul.f32 %v2466, %v1994
    %v2475 = vadd.f32 %v2403, %v2467
    %v2476 = vadd.f32 %v2404, %v2468
    %v2477 = vadd.f32 %v2405, %v2469
    %v2478 = vadd.f32 %v2406, %v2470
    %v2479 = vadd.f32 %v2407, %v2471
    %v2480 = vadd.f32 %v2408, %v2472
    %v2481 = vadd.f32 %v2409, %v2473
    %v2482 = vadd.f32 %v2410, %v2474
    %2483 = vrot.lane.b32.xlu0 %v1987, 127
    %v2484 = vpop.permute.xlu0 %2483
    %2485 = vrot.lane.b32.xlu0 %v1988, 127
    %v2486 = vpop.permute.xlu0 %2485
    %2487 = vrot.lane.b32.xlu0 %v1989, 127
    %v2488 = vpop.permute.xlu0 %2487
    %2489 = vrot.lane.b32.xlu0 %v1990, 127
    %v2490 = vpop.permute.xlu0 %2489
    %2491 = vrot.lane.b32.xlu0 %v1991, 127
    %v2492 = vpop.permute.xlu0 %2491
    %2493 = vrot.lane.b32.xlu0 %v1992, 127
    %v2494 = vpop.permute.xlu0 %2493
    %2495 = vrot.lane.b32.xlu0 %v1993, 127
    %v2496 = vpop.permute.xlu0 %2495
    %2497 = vrot.lane.b32.xlu0 %v1994, 127
    %v2498 = vpop.permute.xlu0 %2497
    %v2499 = vsel %vm629, %v2496, %v2498
    %v2500 = vsel %vm629, %v2494, %v2496
    %v2501 = vsel %vm629, %v2492, %v2494
    %v2502 = vsel %vm629, %v2490, %v2492
    %v2503 = vsel %vm629, %v2488, %v2490
    %v2504 = vsel %vm629, %v2486, %v2488
    %v2505 = vsel %vm629, %v2484, %v2486
    %v2506 = vsel %vm629, %v2498, %v2484
    %v2507 = vmul.f32 %v2505, %v639
    %v2508 = vmul.f32 %v2504, %v640
    %v2509 = vmul.f32 %v2503, %v641
    %v2510 = vmul.f32 %v2502, %v642
    %v2511 = vmul.f32 %v2501, %v643
    %v2512 = vmul.f32 %v2500, %v644
    %v2513 = vmul.f32 %v2499, %v645
    %v2514 = vmul.f32 %v2506, %v646
    %s2515 = sld [smem:[#allocation2 + $0x17]]
    %v2516 = vstv %s2515
    %v2517 = vmul.f32 %v2516, %v2507
    %v2518 = vmul.f32 %v2516, %v2508
    %v2519 = vmul.f32 %v2516, %v2509
    %v2520 = vmul.f32 %v2516, %v2510
    %v2521 = vmul.f32 %v2516, %v2511
    %v2522 = vmul.f32 %v2516, %v2512
    %v2523 = vmul.f32 %v2516, %v2513
    %v2524 = vmul.f32 %v2516, %v2514
    %v2525 = vadd.f32 %v2421, %v2517
    %v2526 = vadd.f32 %v2422, %v2518
    %v2527 = vadd.f32 %v2423, %v2519
    %v2528 = vadd.f32 %v2424, %v2520
    %v2529 = vadd.f32 %v2425, %v2521
    %v2530 = vadd.f32 %v2426, %v2522
    %v2531 = vadd.f32 %v2427, %v2523
    %v2532 = vadd.f32 %v2428, %v2524
    %s2533 = sld [smem:[#allocation2 + $0x3b]]
    %v2534 = vstv %s2533
    %v2535 = vmul.f32 %v2534, %v2507
    %v2536 = vmul.f32 %v2534, %v2508
    %v2537 = vmul.f32 %v2534, %v2509
    %v2538 = vmul.f32 %v2534, %v2510
    %v2539 = vmul.f32 %v2534, %v2511
    %v2540 = vmul.f32 %v2534, %v2512
    %v2541 = vmul.f32 %v2534, %v2513
    %v2542 = vmul.f32 %v2534, %v2514
    %v2543 = vadd.f32 %v2439, %v2535
    %v2544 = vadd.f32 %v2440, %v2536
    %v2545 = vadd.f32 %v2441, %v2537
    %v2546 = vadd.f32 %v2442, %v2538
    %v2547 = vadd.f32 %v2443, %v2539
    %v2548 = vadd.f32 %v2444, %v2540
    %v2549 = vadd.f32 %v2445, %v2541
    %v2550 = vadd.f32 %v2446, %v2542
    %s2551 = sld [smem:[#allocation2 + $0x5f]]
    %v2552 = vstv %s2551
    %v2553 = vmul.f32 %v2552, %v2507
    %v2554 = vmul.f32 %v2552, %v2508
    %v2555 = vmul.f32 %v2552, %v2509
    %v2556 = vmul.f32 %v2552, %v2510
    %v2557 = vmul.f32 %v2552, %v2511
    %v2558 = vmul.f32 %v2552, %v2512
    %v2559 = vmul.f32 %v2552, %v2513
    %v2560 = vmul.f32 %v2552, %v2514
    %v2561 = vadd.f32 %v2457, %v2553
    %v2562 = vadd.f32 %v2458, %v2554
    %v2563 = vadd.f32 %v2459, %v2555
    %v2564 = vadd.f32 %v2460, %v2556
    %v2565 = vadd.f32 %v2461, %v2557
    %v2566 = vadd.f32 %v2462, %v2558
    %v2567 = vadd.f32 %v2463, %v2559
    %v2568 = vadd.f32 %v2464, %v2560
    %s2569 = sld [smem:[#allocation2 + $0x83]]
    %v2570 = vstv %s2569
    %v2571 = vmul.f32 %v2570, %v2507
    %v2572 = vmul.f32 %v2570, %v2508
    %v2573 = vmul.f32 %v2570, %v2509
    %v2574 = vmul.f32 %v2570, %v2510
    %v2575 = vmul.f32 %v2570, %v2511
    %v2576 = vmul.f32 %v2570, %v2512
    %v2577 = vmul.f32 %v2570, %v2513
    %v2578 = vmul.f32 %v2570, %v2514
    %v2579 = vadd.f32 %v2475, %v2571
    %v2580 = vadd.f32 %v2476, %v2572
    %v2581 = vadd.f32 %v2477, %v2573
    %v2582 = vadd.f32 %v2478, %v2574
    %v2583 = vadd.f32 %v2479, %v2575
    %v2584 = vadd.f32 %v2480, %v2576
    %v2585 = vadd.f32 %v2481, %v2577
    %v2586 = vadd.f32 %v2482, %v2578
    %2587 = vrot.lane.b32.xlu0 %v1987, 97
    %v2588 = vpop.permute.xlu0 %2587
    %2589 = vrot.lane.b32.xlu0 %v1988, 97
    %v2590 = vpop.permute.xlu0 %2589
    %2591 = vrot.lane.b32.xlu0 %v1989, 97
    %v2592 = vpop.permute.xlu0 %2591
    %2593 = vrot.lane.b32.xlu0 %v1990, 97
    %v2594 = vpop.permute.xlu0 %2593
    %2595 = vrot.lane.b32.xlu0 %v1991, 97
    %v2596 = vpop.permute.xlu0 %2595
    %2597 = vrot.lane.b32.xlu0 %v1992, 97
    %v2598 = vpop.permute.xlu0 %2597
    %2599 = vrot.lane.b32.xlu0 %v1993, 97
    %v2600 = vpop.permute.xlu0 %2599
    %2601 = vrot.lane.b32.xlu0 %v1994, 97
    %v2602 = vpop.permute.xlu0 %2601
    %v2603 = vsel %vm743, %v2600, %v2602
    %v2604 = vsel %vm743, %v2598, %v2600
    %v2605 = vsel %vm743, %v2596, %v2598
    %v2606 = vsel %vm743, %v2594, %v2596
    %v2607 = vsel %vm743, %v2592, %v2594
    %v2608 = vsel %vm743, %v2590, %v2592
    %v2609 = vsel %vm743, %v2588, %v2590
    %v2610 = vsel %vm743, %v2602, %v2588
    %v2611 = vmul.f32 %v2609, %v753
    %v2612 = vmul.f32 %v2608, %v754
    %v2613 = vmul.f32 %v2607, %v755
    %v2614 = vmul.f32 %v2606, %v756
    %v2615 = vmul.f32 %v2605, %v757
    %v2616 = vmul.f32 %v2604, %v758
    %v2617 = vmul.f32 %v2603, %v759
    %v2618 = vmul.f32 %v2610, %v760
    %s2619 = sld [smem:[#allocation2 + $0x18]]
    %v2620 = vstv %s2619
    %v2621 = vmul.f32 %v2620, %v2611
    %v2622 = vmul.f32 %v2620, %v2612
    %v2623 = vmul.f32 %v2620, %v2613
    %v2624 = vmul.f32 %v2620, %v2614
    %v2625 = vmul.f32 %v2620, %v2615
    %v2626 = vmul.f32 %v2620, %v2616
    %v2627 = vmul.f32 %v2620, %v2617
    %v2628 = vmul.f32 %v2620, %v2618
    %v2629 = vadd.f32 %v2525, %v2621
    %v2630 = vadd.f32 %v2526, %v2622
    %v2631 = vadd.f32 %v2527, %v2623
    %v2632 = vadd.f32 %v2528, %v2624
    %v2633 = vadd.f32 %v2529, %v2625
    %v2634 = vadd.f32 %v2530, %v2626
    %v2635 = vadd.f32 %v2531, %v2627
    %v2636 = vadd.f32 %v2532, %v2628
    %s2637 = sld [smem:[#allocation2 + $0x3c]]
    %v2638 = vstv %s2637
    %v2639 = vmul.f32 %v2638, %v2611
    %v2640 = vmul.f32 %v2638, %v2612
    %v2641 = vmul.f32 %v2638, %v2613
    %v2642 = vmul.f32 %v2638, %v2614
    %v2643 = vmul.f32 %v2638, %v2615
    %v2644 = vmul.f32 %v2638, %v2616
    %v2645 = vmul.f32 %v2638, %v2617
    %v2646 = vmul.f32 %v2638, %v2618
    %v2647 = vadd.f32 %v2543, %v2639
    %v2648 = vadd.f32 %v2544, %v2640
    %v2649 = vadd.f32 %v2545, %v2641
    %v2650 = vadd.f32 %v2546, %v2642
    %v2651 = vadd.f32 %v2547, %v2643
    %v2652 = vadd.f32 %v2548, %v2644
    %v2653 = vadd.f32 %v2549, %v2645
    %v2654 = vadd.f32 %v2550, %v2646
    %s2655 = sld [smem:[#allocation2 + $0x60]]
    %v2656 = vstv %s2655
    %v2657 = vmul.f32 %v2656, %v2611
    %v2658 = vmul.f32 %v2656, %v2612
    %v2659 = vmul.f32 %v2656, %v2613
    %v2660 = vmul.f32 %v2656, %v2614
    %v2661 = vmul.f32 %v2656, %v2615
    %v2662 = vmul.f32 %v2656, %v2616
    %v2663 = vmul.f32 %v2656, %v2617
    %v2664 = vmul.f32 %v2656, %v2618
    %v2665 = vadd.f32 %v2561, %v2657
    %v2666 = vadd.f32 %v2562, %v2658
    %v2667 = vadd.f32 %v2563, %v2659
    %v2668 = vadd.f32 %v2564, %v2660
    %v2669 = vadd.f32 %v2565, %v2661
    %v2670 = vadd.f32 %v2566, %v2662
    %v2671 = vadd.f32 %v2567, %v2663
    %v2672 = vadd.f32 %v2568, %v2664
    %s2673 = sld [smem:[#allocation2 + $0x84]]
    %v2674 = vstv %s2673
    %v2675 = vmul.f32 %v2674, %v2611
    %v2676 = vmul.f32 %v2674, %v2612
    %v2677 = vmul.f32 %v2674, %v2613
    %v2678 = vmul.f32 %v2674, %v2614
    %v2679 = vmul.f32 %v2674, %v2615
    %v2680 = vmul.f32 %v2674, %v2616
    %v2681 = vmul.f32 %v2674, %v2617
    %v2682 = vmul.f32 %v2674, %v2618
    %v2683 = vadd.f32 %v2579, %v2675
    %v2684 = vadd.f32 %v2580, %v2676
    %v2685 = vadd.f32 %v2581, %v2677
    %v2686 = vadd.f32 %v2582, %v2678
    %v2687 = vadd.f32 %v2583, %v2679
    %v2688 = vadd.f32 %v2584, %v2680
    %v2689 = vadd.f32 %v2585, %v2681
    %v2690 = vadd.f32 %v2586, %v2682
    %2691 = vrot.lane.b32.xlu0 %v1987, 96
    %v2692 = vpop.permute.xlu0 %2691
    %2693 = vrot.lane.b32.xlu0 %v1988, 96
    %v2694 = vpop.permute.xlu0 %2693
    %2695 = vrot.lane.b32.xlu0 %v1989, 96
    %v2696 = vpop.permute.xlu0 %2695
    %2697 = vrot.lane.b32.xlu0 %v1990, 96
    %v2698 = vpop.permute.xlu0 %2697
    %2699 = vrot.lane.b32.xlu0 %v1991, 96
    %v2700 = vpop.permute.xlu0 %2699
    %2701 = vrot.lane.b32.xlu0 %v1992, 96
    %v2702 = vpop.permute.xlu0 %2701
    %2703 = vrot.lane.b32.xlu0 %v1993, 96
    %v2704 = vpop.permute.xlu0 %2703
    %2705 = vrot.lane.b32.xlu0 %v1994, 96
    %v2706 = vpop.permute.xlu0 %2705
    %v2707 = vsel %vm857, %v2704, %v2706
    %v2708 = vsel %vm857, %v2702, %v2704
    %v2709 = vsel %vm857, %v2700, %v2702
    %v2710 = vsel %vm857, %v2698, %v2700
    %v2711 = vsel %vm857, %v2696, %v2698
    %v2712 = vsel %vm857, %v2694, %v2696
    %v2713 = vsel %vm857, %v2692, %v2694
    %v2714 = vsel %vm857, %v2706, %v2692
    %v2715 = vmul.f32 %v2713, %v867
    %v2716 = vmul.f32 %v2712, %v868
    %v2717 = vmul.f32 %v2711, %v869
    %v2718 = vmul.f32 %v2710, %v870
    %v2719 = vmul.f32 %v2709, %v871
    %v2720 = vmul.f32 %v2708, %v872
    %v2721 = vmul.f32 %v2707, %v873
    %v2722 = vmul.f32 %v2714, %v874
    %s2723 = sld [smem:[#allocation2 + $0x19]]
    %v2724 = vstv %s2723
    %v2725 = vmul.f32 %v2724, %v2715
    %v2726 = vmul.f32 %v2724, %v2716
    %v2727 = vmul.f32 %v2724, %v2717
    %v2728 = vmul.f32 %v2724, %v2718
    %v2729 = vmul.f32 %v2724, %v2719
    %v2730 = vmul.f32 %v2724, %v2720
    %v2731 = vmul.f32 %v2724, %v2721
    %v2732 = vmul.f32 %v2724, %v2722
    %v2733 = vadd.f32 %v2629, %v2725
    %v2734 = vadd.f32 %v2630, %v2726
    %v2735 = vadd.f32 %v2631, %v2727
    %v2736 = vadd.f32 %v2632, %v2728
    %v2737 = vadd.f32 %v2633, %v2729
    %v2738 = vadd.f32 %v2634, %v2730
    %v2739 = vadd.f32 %v2635, %v2731
    %v2740 = vadd.f32 %v2636, %v2732
    %s2741 = sld [smem:[#allocation2 + $0x3d]]
    %v2742 = vstv %s2741
    %v2743 = vmul.f32 %v2742, %v2715
    %v2744 = vmul.f32 %v2742, %v2716
    %v2745 = vmul.f32 %v2742, %v2717
    %v2746 = vmul.f32 %v2742, %v2718
    %v2747 = vmul.f32 %v2742, %v2719
    %v2748 = vmul.f32 %v2742, %v2720
    %v2749 = vmul.f32 %v2742, %v2721
    %v2750 = vmul.f32 %v2742, %v2722
    %v2751 = vadd.f32 %v2647, %v2743
    %v2752 = vadd.f32 %v2648, %v2744
    %v2753 = vadd.f32 %v2649, %v2745
    %v2754 = vadd.f32 %v2650, %v2746
    %v2755 = vadd.f32 %v2651, %v2747
    %v2756 = vadd.f32 %v2652, %v2748
    %v2757 = vadd.f32 %v2653, %v2749
    %v2758 = vadd.f32 %v2654, %v2750
    %s2759 = sld [smem:[#allocation2 + $0x61]]
    %v2760 = vstv %s2759
    %v2761 = vmul.f32 %v2760, %v2715
    %v2762 = vmul.f32 %v2760, %v2716
    %v2763 = vmul.f32 %v2760, %v2717
    %v2764 = vmul.f32 %v2760, %v2718
    %v2765 = vmul.f32 %v2760, %v2719
    %v2766 = vmul.f32 %v2760, %v2720
    %v2767 = vmul.f32 %v2760, %v2721
    %v2768 = vmul.f32 %v2760, %v2722
    %v2769 = vadd.f32 %v2665, %v2761
    %v2770 = vadd.f32 %v2666, %v2762
    %v2771 = vadd.f32 %v2667, %v2763
    %v2772 = vadd.f32 %v2668, %v2764
    %v2773 = vadd.f32 %v2669, %v2765
    %v2774 = vadd.f32 %v2670, %v2766
    %v2775 = vadd.f32 %v2671, %v2767
    %v2776 = vadd.f32 %v2672, %v2768
    %s2777 = sld [smem:[#allocation2 + $0x85]]
    %v2778 = vstv %s2777
    %v2779 = vmul.f32 %v2778, %v2715
    %v2780 = vmul.f32 %v2778, %v2716
    %v2781 = vmul.f32 %v2778, %v2717
    %v2782 = vmul.f32 %v2778, %v2718
    %v2783 = vmul.f32 %v2778, %v2719
    %v2784 = vmul.f32 %v2778, %v2720
    %v2785 = vmul.f32 %v2778, %v2721
    %v2786 = vmul.f32 %v2778, %v2722
    %v2787 = vadd.f32 %v2683, %v2779
    %v2788 = vadd.f32 %v2684, %v2780
    %v2789 = vadd.f32 %v2685, %v2781
    %v2790 = vadd.f32 %v2686, %v2782
    %v2791 = vadd.f32 %v2687, %v2783
    %v2792 = vadd.f32 %v2688, %v2784
    %v2793 = vadd.f32 %v2689, %v2785
    %v2794 = vadd.f32 %v2690, %v2786
    %2795 = vrot.lane.b32.xlu0 %v1987, 95
    %v2796 = vpop.permute.xlu0 %2795
    %2797 = vrot.lane.b32.xlu0 %v1988, 95
    %v2798 = vpop.permute.xlu0 %2797
    %2799 = vrot.lane.b32.xlu0 %v1989, 95
    %v2800 = vpop.permute.xlu0 %2799
    %2801 = vrot.lane.b32.xlu0 %v1990, 95
    %v2802 = vpop.permute.xlu0 %2801
    %2803 = vrot.lane.b32.xlu0 %v1991, 95
    %v2804 = vpop.permute.xlu0 %2803
    %2805 = vrot.lane.b32.xlu0 %v1992, 95
    %v2806 = vpop.permute.xlu0 %2805
    %2807 = vrot.lane.b32.xlu0 %v1993, 95
    %v2808 = vpop.permute.xlu0 %2807
    %2809 = vrot.lane.b32.xlu0 %v1994, 95
    %v2810 = vpop.permute.xlu0 %2809
    %v2811 = vsel %vm971, %v2808, %v2810
    %v2812 = vsel %vm971, %v2806, %v2808
    %v2813 = vsel %vm971, %v2804, %v2806
    %v2814 = vsel %vm971, %v2802, %v2804
    %v2815 = vsel %vm971, %v2800, %v2802
    %v2816 = vsel %vm971, %v2798, %v2800
    %v2817 = vsel %vm971, %v2796, %v2798
    %v2818 = vsel %vm971, %v2810, %v2796
    %v2819 = vmul.f32 %v2817, %v981
    %v2820 = vmul.f32 %v2816, %v982
    %v2821 = vmul.f32 %v2815, %v983
    %v2822 = vmul.f32 %v2814, %v984
    %v2823 = vmul.f32 %v2813, %v985
    %v2824 = vmul.f32 %v2812, %v986
    %v2825 = vmul.f32 %v2811, %v987
    %v2826 = vmul.f32 %v2818, %v988
    %s2827 = sld [smem:[#allocation2 + $0x1a]]
    %v2828 = vstv %s2827
    %v2829 = vmul.f32 %v2828, %v2819
    %v2830 = vmul.f32 %v2828, %v2820
    %v2831 = vmul.f32 %v2828, %v2821
    %v2832 = vmul.f32 %v2828, %v2822
    %v2833 = vmul.f32 %v2828, %v2823
    %v2834 = vmul.f32 %v2828, %v2824
    %v2835 = vmul.f32 %v2828, %v2825
    %v2836 = vmul.f32 %v2828, %v2826
    %v2837 = vadd.f32 %v2733, %v2829
    %v2838 = vadd.f32 %v2734, %v2830
    %v2839 = vadd.f32 %v2735, %v2831
    %v2840 = vadd.f32 %v2736, %v2832
    %v2841 = vadd.f32 %v2737, %v2833
    %v2842 = vadd.f32 %v2738, %v2834
    %v2843 = vadd.f32 %v2739, %v2835
    %v2844 = vadd.f32 %v2740, %v2836
    %s2845 = sld [smem:[#allocation2 + $0x3e]]
    %v2846 = vstv %s2845
    %v2847 = vmul.f32 %v2846, %v2819
    %v2848 = vmul.f32 %v2846, %v2820
    %v2849 = vmul.f32 %v2846, %v2821
    %v2850 = vmul.f32 %v2846, %v2822
    %v2851 = vmul.f32 %v2846, %v2823
    %v2852 = vmul.f32 %v2846, %v2824
    %v2853 = vmul.f32 %v2846, %v2825
    %v2854 = vmul.f32 %v2846, %v2826
    %v2855 = vadd.f32 %v2751, %v2847
    %v2856 = vadd.f32 %v2752, %v2848
    %v2857 = vadd.f32 %v2753, %v2849
    %v2858 = vadd.f32 %v2754, %v2850
    %v2859 = vadd.f32 %v2755, %v2851
    %v2860 = vadd.f32 %v2756, %v2852
    %v2861 = vadd.f32 %v2757, %v2853
    %v2862 = vadd.f32 %v2758, %v2854
    %s2863 = sld [smem:[#allocation2 + $0x62]]
    %v2864 = vstv %s2863
    %v2865 = vmul.f32 %v2864, %v2819
    %v2866 = vmul.f32 %v2864, %v2820
    %v2867 = vmul.f32 %v2864, %v2821
    %v2868 = vmul.f32 %v2864, %v2822
    %v2869 = vmul.f32 %v2864, %v2823
    %v2870 = vmul.f32 %v2864, %v2824
    %v2871 = vmul.f32 %v2864, %v2825
    %v2872 = vmul.f32 %v2864, %v2826
    %v2873 = vadd.f32 %v2769, %v2865
    %v2874 = vadd.f32 %v2770, %v2866
    %v2875 = vadd.f32 %v2771, %v2867
    %v2876 = vadd.f32 %v2772, %v2868
    %v2877 = vadd.f32 %v2773, %v2869
    %v2878 = vadd.f32 %v2774, %v2870
    %v2879 = vadd.f32 %v2775, %v2871
    %v2880 = vadd.f32 %v2776, %v2872
    %s2881 = sld [smem:[#allocation2 + $0x86]]
    %v2882 = vstv %s2881
    %v2883 = vmul.f32 %v2882, %v2819
    %v2884 = vmul.f32 %v2882, %v2820
    %v2885 = vmul.f32 %v2882, %v2821
    %v2886 = vmul.f32 %v2882, %v2822
    %v2887 = vmul.f32 %v2882, %v2823
    %v2888 = vmul.f32 %v2882, %v2824
    %v2889 = vmul.f32 %v2882, %v2825
    %v2890 = vmul.f32 %v2882, %v2826
    %v2891 = vadd.f32 %v2787, %v2883
    %v2892 = vadd.f32 %v2788, %v2884
    %v2893 = vadd.f32 %v2789, %v2885
    %v2894 = vadd.f32 %v2790, %v2886
    %v2895 = vadd.f32 %v2791, %v2887
    %v2896 = vadd.f32 %v2792, %v2888
    %v2897 = vadd.f32 %v2793, %v2889
    %v2898 = vadd.f32 %v2794, %v2890
    %s2899 = sadd.s32 %s73, 24
    %s2900 = smul.addr %s2899, 8
    %s2901 = scalar_lea.vmem %s0, %s2900
    %v2902 = vld [vmem:[%s2901] sm:$0xff]
    %v2903 = vld [vmem:[%s2901 + $0x8] sm:$0xff]
    %v2904 = vld [vmem:[%s2901 + $0x10] sm:$0xff]
    %v2905 = vld [vmem:[%s2901 + $0x18] sm:$0xff]
    %v2906 = vld [vmem:[%s2901 + $0x20] sm:$0xff]
    %v2907 = vld [vmem:[%s2901 + $0x28] sm:$0xff]
    %v2908 = vld [vmem:[%s2901 + $0x30] sm:$0xff]
    %v2909 = vld [vmem:[%s2901 + $0x38] sm:$0xff]
    %2910 = vrot.lane.b32.xlu0 %v2902, 33
    %v2911 = vpop.permute.xlu0 %2910
    %2912 = vrot.lane.b32.xlu0 %v2903, 33
    %v2913 = vpop.permute.xlu0 %2912
    %2914 = vrot.lane.b32.xlu0 %v2904, 33
    %v2915 = vpop.permute.xlu0 %2914
    %2916 = vrot.lane.b32.xlu0 %v2905, 33
    %v2917 = vpop.permute.xlu0 %2916
    %2918 = vrot.lane.b32.xlu0 %v2906, 33
    %v2919 = vpop.permute.xlu0 %2918
    %2920 = vrot.lane.b32.xlu0 %v2907, 33
    %v2921 = vpop.permute.xlu0 %2920
    %2922 = vrot.lane.b32.xlu0 %v2908, 33
    %v2923 = vpop.permute.xlu0 %2922
    %2924 = vrot.lane.b32.xlu0 %v2909, 33
    %v2925 = vpop.permute.xlu0 %2924
    %v2926 = vsel %vm102, %v2923, %v2925
    %v2927 = vsel %vm102, %v2921, %v2923
    %v2928 = vsel %vm102, %v2919, %v2921
    %v2929 = vsel %vm102, %v2917, %v2919
    %v2930 = vsel %vm102, %v2915, %v2917
    %v2931 = vsel %vm102, %v2913, %v2915
    %v2932 = vsel %vm102, %v2911, %v2913
    %v2933 = vsel %vm102, %v2925, %v2911
    %v2934 = vmul.f32 %v2933, %v111
    %v2935 = vmul.f32 %v2932, %v112
    %v2936 = vmul.f32 %v2931, %v113
    %v2937 = vmul.f32 %v2930, %v114
    %v2938 = vmul.f32 %v2929, %v115
    %v2939 = vmul.f32 %v2928, %v116
    %v2940 = vmul.f32 %v2927, %v117
    %v2941 = vmul.f32 %v2926, %v118
    %s2942 = sld [smem:[#allocation2 + $0x1b]]
    %v2943 = vstv %s2942
    %v2944 = vmul.f32 %v2943, %v2934
    %v2945 = vmul.f32 %v2943, %v2935
    %v2946 = vmul.f32 %v2943, %v2936
    %v2947 = vmul.f32 %v2943, %v2937
    %v2948 = vmul.f32 %v2943, %v2938
    %v2949 = vmul.f32 %v2943, %v2939
    %v2950 = vmul.f32 %v2943, %v2940
    %v2951 = vmul.f32 %v2943, %v2941
    %v2952 = vadd.f32 %v2837, %v2944
    %v2953 = vadd.f32 %v2838, %v2945
    %v2954 = vadd.f32 %v2839, %v2946
    %v2955 = vadd.f32 %v2840, %v2947
    %v2956 = vadd.f32 %v2841, %v2948
    %v2957 = vadd.f32 %v2842, %v2949
    %v2958 = vadd.f32 %v2843, %v2950
    %v2959 = vadd.f32 %v2844, %v2951
    %s2960 = sld [smem:[#allocation2 + $0x3f]]
    %v2961 = vstv %s2960
    %v2962 = vmul.f32 %v2961, %v2934
    %v2963 = vmul.f32 %v2961, %v2935
    %v2964 = vmul.f32 %v2961, %v2936
    %v2965 = vmul.f32 %v2961, %v2937
    %v2966 = vmul.f32 %v2961, %v2938
    %v2967 = vmul.f32 %v2961, %v2939
    %v2968 = vmul.f32 %v2961, %v2940
    %v2969 = vmul.f32 %v2961, %v2941
    %v2970 = vadd.f32 %v2855, %v2962
    %v2971 = vadd.f32 %v2856, %v2963
    %v2972 = vadd.f32 %v2857, %v2964
    %v2973 = vadd.f32 %v2858, %v2965
    %v2974 = vadd.f32 %v2859, %v2966
    %v2975 = vadd.f32 %v2860, %v2967
    %v2976 = vadd.f32 %v2861, %v2968
    %v2977 = vadd.f32 %v2862, %v2969
    %s2978 = sld [smem:[#allocation2 + $0x63]]
    %v2979 = vstv %s2978
    %v2980 = vmul.f32 %v2979, %v2934
    %v2981 = vmul.f32 %v2979, %v2935
    %v2982 = vmul.f32 %v2979, %v2936
    %v2983 = vmul.f32 %v2979, %v2937
    %v2984 = vmul.f32 %v2979, %v2938
    %v2985 = vmul.f32 %v2979, %v2939
    %v2986 = vmul.f32 %v2979, %v2940
    %v2987 = vmul.f32 %v2979, %v2941
    %v2988 = vadd.f32 %v2873, %v2980
    %v2989 = vadd.f32 %v2874, %v2981
    %v2990 = vadd.f32 %v2875, %v2982
    %v2991 = vadd.f32 %v2876, %v2983
    %v2992 = vadd.f32 %v2877, %v2984
    %v2993 = vadd.f32 %v2878, %v2985
    %v2994 = vadd.f32 %v2879, %v2986
    %v2995 = vadd.f32 %v2880, %v2987
    %s2996 = sld [smem:[#allocation2 + $0x87]]
    %v2997 = vstv %s2996
    %v2998 = vmul.f32 %v2997, %v2934
    %v2999 = vmul.f32 %v2997, %v2935
    %v3000 = vmul.f32 %v2997, %v2936
    %v3001 = vmul.f32 %v2997, %v2937
    %v3002 = vmul.f32 %v2997, %v2938
    %v3003 = vmul.f32 %v2997, %v2939
    %v3004 = vmul.f32 %v2997, %v2940
    %v3005 = vmul.f32 %v2997, %v2941
    %v3006 = vadd.f32 %v2891, %v2998
    %v3007 = vadd.f32 %v2892, %v2999
    %v3008 = vadd.f32 %v2893, %v3000
    %v3009 = vadd.f32 %v2894, %v3001
    %v3010 = vadd.f32 %v2895, %v3002
    %v3011 = vadd.f32 %v2896, %v3003
    %v3012 = vadd.f32 %v2897, %v3004
    %v3013 = vadd.f32 %v2898, %v3005
    %3014 = vrot.lane.b32.xlu0 %v2902, 32
    %v3015 = vpop.permute.xlu0 %3014
    %3016 = vrot.lane.b32.xlu0 %v2903, 32
    %v3017 = vpop.permute.xlu0 %3016
    %3018 = vrot.lane.b32.xlu0 %v2904, 32
    %v3019 = vpop.permute.xlu0 %3018
    %3020 = vrot.lane.b32.xlu0 %v2905, 32
    %v3021 = vpop.permute.xlu0 %3020
    %3022 = vrot.lane.b32.xlu0 %v2906, 32
    %v3023 = vpop.permute.xlu0 %3022
    %3024 = vrot.lane.b32.xlu0 %v2907, 32
    %v3025 = vpop.permute.xlu0 %3024
    %3026 = vrot.lane.b32.xlu0 %v2908, 32
    %v3027 = vpop.permute.xlu0 %3026
    %3028 = vrot.lane.b32.xlu0 %v2909, 32
    %v3029 = vpop.permute.xlu0 %3028
    %v3030 = vsel %vm215, %v3027, %v3029
    %v3031 = vsel %vm215, %v3025, %v3027
    %v3032 = vsel %vm215, %v3023, %v3025
    %v3033 = vsel %vm215, %v3021, %v3023
    %v3034 = vsel %vm215, %v3019, %v3021
    %v3035 = vsel %vm215, %v3017, %v3019
    %v3036 = vsel %vm215, %v3015, %v3017
    %v3037 = vsel %vm215, %v3029, %v3015
    %v3038 = vmul.f32 %v3037, %v225
    %v3039 = vmul.f32 %v3036, %v226
    %v3040 = vmul.f32 %v3035, %v227
    %v3041 = vmul.f32 %v3034, %v228
    %v3042 = vmul.f32 %v3033, %v229
    %v3043 = vmul.f32 %v3032, %v230
    %v3044 = vmul.f32 %v3031, %v231
    %v3045 = vmul.f32 %v3030, %v232
    %s3046 = sld [smem:[#allocation2 + $0x1c]]
    %v3047 = vstv %s3046
    %v3048 = vmul.f32 %v3047, %v3038
    %v3049 = vmul.f32 %v3047, %v3039
    %v3050 = vmul.f32 %v3047, %v3040
    %v3051 = vmul.f32 %v3047, %v3041
    %v3052 = vmul.f32 %v3047, %v3042
    %v3053 = vmul.f32 %v3047, %v3043
    %v3054 = vmul.f32 %v3047, %v3044
    %v3055 = vmul.f32 %v3047, %v3045
    %v3056 = vadd.f32 %v2952, %v3048
    %v3057 = vadd.f32 %v2953, %v3049
    %v3058 = vadd.f32 %v2954, %v3050
    %v3059 = vadd.f32 %v2955, %v3051
    %v3060 = vadd.f32 %v2956, %v3052
    %v3061 = vadd.f32 %v2957, %v3053
    %v3062 = vadd.f32 %v2958, %v3054
    %v3063 = vadd.f32 %v2959, %v3055
    %s3064 = sld [smem:[#allocation2 + $0x40]]
    %v3065 = vstv %s3064
    %v3066 = vmul.f32 %v3065, %v3038
    %v3067 = vmul.f32 %v3065, %v3039
    %v3068 = vmul.f32 %v3065, %v3040
    %v3069 = vmul.f32 %v3065, %v3041
    %v3070 = vmul.f32 %v3065, %v3042
    %v3071 = vmul.f32 %v3065, %v3043
    %v3072 = vmul.f32 %v3065, %v3044
    %v3073 = vmul.f32 %v3065, %v3045
    %v3074 = vadd.f32 %v2970, %v3066
    %v3075 = vadd.f32 %v2971, %v3067
    %v3076 = vadd.f32 %v2972, %v3068
    %v3077 = vadd.f32 %v2973, %v3069
    %v3078 = vadd.f32 %v2974, %v3070
    %v3079 = vadd.f32 %v2975, %v3071
    %v3080 = vadd.f32 %v2976, %v3072
    %v3081 = vadd.f32 %v2977, %v3073
    %s3082 = sld [smem:[#allocation2 + $0x64]]
    %v3083 = vstv %s3082
    %v3084 = vmul.f32 %v3083, %v3038
    %v3085 = vmul.f32 %v3083, %v3039
    %v3086 = vmul.f32 %v3083, %v3040
    %v3087 = vmul.f32 %v3083, %v3041
    %v3088 = vmul.f32 %v3083, %v3042
    %v3089 = vmul.f32 %v3083, %v3043
    %v3090 = vmul.f32 %v3083, %v3044
    %v3091 = vmul.f32 %v3083, %v3045
    %v3092 = vadd.f32 %v2988, %v3084
    %v3093 = vadd.f32 %v2989, %v3085
    %v3094 = vadd.f32 %v2990, %v3086
    %v3095 = vadd.f32 %v2991, %v3087
    %v3096 = vadd.f32 %v2992, %v3088
    %v3097 = vadd.f32 %v2993, %v3089
    %v3098 = vadd.f32 %v2994, %v3090
    %v3099 = vadd.f32 %v2995, %v3091
    %s3100 = sld [smem:[#allocation2 + $0x88]]
    %v3101 = vstv %s3100
    %v3102 = vmul.f32 %v3101, %v3038
    %v3103 = vmul.f32 %v3101, %v3039
    %v3104 = vmul.f32 %v3101, %v3040
    %v3105 = vmul.f32 %v3101, %v3041
    %v3106 = vmul.f32 %v3101, %v3042
    %v3107 = vmul.f32 %v3101, %v3043
    %v3108 = vmul.f32 %v3101, %v3044
    %v3109 = vmul.f32 %v3101, %v3045
    %v3110 = vadd.f32 %v3006, %v3102
    %v3111 = vadd.f32 %v3007, %v3103
    %v3112 = vadd.f32 %v3008, %v3104
    %v3113 = vadd.f32 %v3009, %v3105
    %v3114 = vadd.f32 %v3010, %v3106
    %v3115 = vadd.f32 %v3011, %v3107
    %v3116 = vadd.f32 %v3012, %v3108
    %v3117 = vadd.f32 %v3013, %v3109
    %3118 = vrot.lane.b32.xlu0 %v2902, 31
    %v3119 = vpop.permute.xlu0 %3118
    %3120 = vrot.lane.b32.xlu0 %v2903, 31
    %v3121 = vpop.permute.xlu0 %3120
    %3122 = vrot.lane.b32.xlu0 %v2904, 31
    %v3123 = vpop.permute.xlu0 %3122
    %3124 = vrot.lane.b32.xlu0 %v2905, 31
    %v3125 = vpop.permute.xlu0 %3124
    %3126 = vrot.lane.b32.xlu0 %v2906, 31
    %v3127 = vpop.permute.xlu0 %3126
    %3128 = vrot.lane.b32.xlu0 %v2907, 31
    %v3129 = vpop.permute.xlu0 %3128
    %3130 = vrot.lane.b32.xlu0 %v2908, 31
    %v3131 = vpop.permute.xlu0 %3130
    %3132 = vrot.lane.b32.xlu0 %v2909, 31
    %v3133 = vpop.permute.xlu0 %3132
    %v3134 = vsel %vm329, %v3131, %v3133
    %v3135 = vsel %vm329, %v3129, %v3131
    %v3136 = vsel %vm329, %v3127, %v3129
    %v3137 = vsel %vm329, %v3125, %v3127
    %v3138 = vsel %vm329, %v3123, %v3125
    %v3139 = vsel %vm329, %v3121, %v3123
    %v3140 = vsel %vm329, %v3119, %v3121
    %v3141 = vsel %vm329, %v3133, %v3119
    %v3142 = vmul.f32 %v3141, %v339
    %v3143 = vmul.f32 %v3140, %v340
    %v3144 = vmul.f32 %v3139, %v341
    %v3145 = vmul.f32 %v3138, %v342
    %v3146 = vmul.f32 %v3137, %v343
    %v3147 = vmul.f32 %v3136, %v344
    %v3148 = vmul.f32 %v3135, %v345
    %v3149 = vmul.f32 %v3134, %v346
    %s3150 = sld [smem:[#allocation2 + $0x1d]]
    %v3151 = vstv %s3150
    %v3152 = vmul.f32 %v3151, %v3142
    %v3153 = vmul.f32 %v3151, %v3143
    %v3154 = vmul.f32 %v3151, %v3144
    %v3155 = vmul.f32 %v3151, %v3145
    %v3156 = vmul.f32 %v3151, %v3146
    %v3157 = vmul.f32 %v3151, %v3147
    %v3158 = vmul.f32 %v3151, %v3148
    %v3159 = vmul.f32 %v3151, %v3149
    %v3160 = vadd.f32 %v3056, %v3152
    %v3161 = vadd.f32 %v3057, %v3153
    %v3162 = vadd.f32 %v3058, %v3154
    %v3163 = vadd.f32 %v3059, %v3155
    %v3164 = vadd.f32 %v3060, %v3156
    %v3165 = vadd.f32 %v3061, %v3157
    %v3166 = vadd.f32 %v3062, %v3158
    %v3167 = vadd.f32 %v3063, %v3159
    %s3168 = sld [smem:[#allocation2 + $0x41]]
    %v3169 = vstv %s3168
    %v3170 = vmul.f32 %v3169, %v3142
    %v3171 = vmul.f32 %v3169, %v3143
    %v3172 = vmul.f32 %v3169, %v3144
    %v3173 = vmul.f32 %v3169, %v3145
    %v3174 = vmul.f32 %v3169, %v3146
    %v3175 = vmul.f32 %v3169, %v3147
    %v3176 = vmul.f32 %v3169, %v3148
    %v3177 = vmul.f32 %v3169, %v3149
    %v3178 = vadd.f32 %v3074, %v3170
    %v3179 = vadd.f32 %v3075, %v3171
    %v3180 = vadd.f32 %v3076, %v3172
    %v3181 = vadd.f32 %v3077, %v3173
    %v3182 = vadd.f32 %v3078, %v3174
    %v3183 = vadd.f32 %v3079, %v3175
    %v3184 = vadd.f32 %v3080, %v3176
    %v3185 = vadd.f32 %v3081, %v3177
    %s3186 = sld [smem:[#allocation2 + $0x65]]
    %v3187 = vstv %s3186
    %v3188 = vmul.f32 %v3187, %v3142
    %v3189 = vmul.f32 %v3187, %v3143
    %v3190 = vmul.f32 %v3187, %v3144
    %v3191 = vmul.f32 %v3187, %v3145
    %v3192 = vmul.f32 %v3187, %v3146
    %v3193 = vmul.f32 %v3187, %v3147
    %v3194 = vmul.f32 %v3187, %v3148
    %v3195 = vmul.f32 %v3187, %v3149
    %v3196 = vadd.f32 %v3092, %v3188
    %v3197 = vadd.f32 %v3093, %v3189
    %v3198 = vadd.f32 %v3094, %v3190
    %v3199 = vadd.f32 %v3095, %v3191
    %v3200 = vadd.f32 %v3096, %v3192
    %v3201 = vadd.f32 %v3097, %v3193
    %v3202 = vadd.f32 %v3098, %v3194
    %v3203 = vadd.f32 %v3099, %v3195
    %s3204 = sld [smem:[#allocation2 + $0x89]]
    %v3205 = vstv %s3204
    %v3206 = vmul.f32 %v3205, %v3142
    %v3207 = vmul.f32 %v3205, %v3143
    %v3208 = vmul.f32 %v3205, %v3144
    %v3209 = vmul.f32 %v3205, %v3145
    %v3210 = vmul.f32 %v3205, %v3146
    %v3211 = vmul.f32 %v3205, %v3147
    %v3212 = vmul.f32 %v3205, %v3148
    %v3213 = vmul.f32 %v3205, %v3149
    %v3214 = vadd.f32 %v3110, %v3206
    %v3215 = vadd.f32 %v3111, %v3207
    %v3216 = vadd.f32 %v3112, %v3208
    %v3217 = vadd.f32 %v3113, %v3209
    %v3218 = vadd.f32 %v3114, %v3210
    %v3219 = vadd.f32 %v3115, %v3211
    %v3220 = vadd.f32 %v3116, %v3212
    %v3221 = vadd.f32 %v3117, %v3213
    %3222 = vrot.lane.b32.xlu0 %v2902, 1
    %v3223 = vpop.permute.xlu0 %3222
    %3224 = vrot.lane.b32.xlu0 %v2903, 1
    %v3225 = vpop.permute.xlu0 %3224
    %3226 = vrot.lane.b32.xlu0 %v2904, 1
    %v3227 = vpop.permute.xlu0 %3226
    %3228 = vrot.lane.b32.xlu0 %v2905, 1
    %v3229 = vpop.permute.xlu0 %3228
    %3230 = vrot.lane.b32.xlu0 %v2906, 1
    %v3231 = vpop.permute.xlu0 %3230
    %3232 = vrot.lane.b32.xlu0 %v2907, 1
    %v3233 = vpop.permute.xlu0 %3232
    %3234 = vrot.lane.b32.xlu0 %v2908, 1
    %v3235 = vpop.permute.xlu0 %3234
    %3236 = vrot.lane.b32.xlu0 %v2909, 1
    %v3237 = vpop.permute.xlu0 %3236
    %v3238 = vsel %vm443, %v3235, %v3237
    %v3239 = vsel %vm443, %v3233, %v3235
    %v3240 = vsel %vm443, %v3231, %v3233
    %v3241 = vsel %vm443, %v3229, %v3231
    %v3242 = vsel %vm443, %v3227, %v3229
    %v3243 = vsel %vm443, %v3225, %v3227
    %v3244 = vsel %vm443, %v3223, %v3225
    %v3245 = vsel %vm443, %v3237, %v3223
    %v3246 = vmul.f32 %v3245, %v453
    %v3247 = vmul.f32 %v3244, %v454
    %v3248 = vmul.f32 %v3243, %v455
    %v3249 = vmul.f32 %v3242, %v456
    %v3250 = vmul.f32 %v3241, %v457
    %v3251 = vmul.f32 %v3240, %v458
    %v3252 = vmul.f32 %v3239, %v459
    %v3253 = vmul.f32 %v3238, %v460
    %s3254 = sld [smem:[#allocation2 + $0x1e]]
    %v3255 = vstv %s3254
    %v3256 = vmul.f32 %v3255, %v3246
    %v3257 = vmul.f32 %v3255, %v3247
    %v3258 = vmul.f32 %v3255, %v3248
    %v3259 = vmul.f32 %v3255, %v3249
    %v3260 = vmul.f32 %v3255, %v3250
    %v3261 = vmul.f32 %v3255, %v3251
    %v3262 = vmul.f32 %v3255, %v3252
    %v3263 = vmul.f32 %v3255, %v3253
    %v3264 = vadd.f32 %v3160, %v3256
    %v3265 = vadd.f32 %v3161, %v3257
    %v3266 = vadd.f32 %v3162, %v3258
    %v3267 = vadd.f32 %v3163, %v3259
    %v3268 = vadd.f32 %v3164, %v3260
    %v3269 = vadd.f32 %v3165, %v3261
    %v3270 = vadd.f32 %v3166, %v3262
    %v3271 = vadd.f32 %v3167, %v3263
    %s3272 = sld [smem:[#allocation2 + $0x42]]
    %v3273 = vstv %s3272
    %v3274 = vmul.f32 %v3273, %v3246
    %v3275 = vmul.f32 %v3273, %v3247
    %v3276 = vmul.f32 %v3273, %v3248
    %v3277 = vmul.f32 %v3273, %v3249
    %v3278 = vmul.f32 %v3273, %v3250
    %v3279 = vmul.f32 %v3273, %v3251
    %v3280 = vmul.f32 %v3273, %v3252
    %v3281 = vmul.f32 %v3273, %v3253
    %v3282 = vadd.f32 %v3178, %v3274
    %v3283 = vadd.f32 %v3179, %v3275
    %v3284 = vadd.f32 %v3180, %v3276
    %v3285 = vadd.f32 %v3181, %v3277
    %v3286 = vadd.f32 %v3182, %v3278
    %v3287 = vadd.f32 %v3183, %v3279
    %v3288 = vadd.f32 %v3184, %v3280
    %v3289 = vadd.f32 %v3185, %v3281
    %s3290 = sld [smem:[#allocation2 + $0x66]]
    %v3291 = vstv %s3290
    %v3292 = vmul.f32 %v3291, %v3246
    %v3293 = vmul.f32 %v3291, %v3247
    %v3294 = vmul.f32 %v3291, %v3248
    %v3295 = vmul.f32 %v3291, %v3249
    %v3296 = vmul.f32 %v3291, %v3250
    %v3297 = vmul.f32 %v3291, %v3251
    %v3298 = vmul.f32 %v3291, %v3252
    %v3299 = vmul.f32 %v3291, %v3253
    %v3300 = vadd.f32 %v3196, %v3292
    %v3301 = vadd.f32 %v3197, %v3293
    %v3302 = vadd.f32 %v3198, %v3294
    %v3303 = vadd.f32 %v3199, %v3295
    %v3304 = vadd.f32 %v3200, %v3296
    %v3305 = vadd.f32 %v3201, %v3297
    %v3306 = vadd.f32 %v3202, %v3298
    %v3307 = vadd.f32 %v3203, %v3299
    %s3308 = sld [smem:[#allocation2 + $0x8a]]
    %v3309 = vstv %s3308
    %v3310 = vmul.f32 %v3309, %v3246
    %v3311 = vmul.f32 %v3309, %v3247
    %v3312 = vmul.f32 %v3309, %v3248
    %v3313 = vmul.f32 %v3309, %v3249
    %v3314 = vmul.f32 %v3309, %v3250
    %v3315 = vmul.f32 %v3309, %v3251
    %v3316 = vmul.f32 %v3309, %v3252
    %v3317 = vmul.f32 %v3309, %v3253
    %v3318 = vadd.f32 %v3214, %v3310
    %v3319 = vadd.f32 %v3215, %v3311
    %v3320 = vadd.f32 %v3216, %v3312
    %v3321 = vadd.f32 %v3217, %v3313
    %v3322 = vadd.f32 %v3218, %v3314
    %v3323 = vadd.f32 %v3219, %v3315
    %v3324 = vadd.f32 %v3220, %v3316
    %v3325 = vadd.f32 %v3221, %v3317
    %s3326 = sld [smem:[#allocation2 + $0x1f]]
    %v3327 = vstv %s3326
    %v3328 = vmul.f32 %v3327, %v2902
    %v3329 = vmul.f32 %v3327, %v2903
    %v3330 = vmul.f32 %v3327, %v2904
    %v3331 = vmul.f32 %v3327, %v2905
    %v3332 = vmul.f32 %v3327, %v2906
    %v3333 = vmul.f32 %v3327, %v2907
    %v3334 = vmul.f32 %v3327, %v2908
    %v3335 = vmul.f32 %v3327, %v2909
    %v3336 = vadd.f32 %v3264, %v3328
    %v3337 = vadd.f32 %v3265, %v3329
    %v3338 = vadd.f32 %v3266, %v3330
    %v3339 = vadd.f32 %v3267, %v3331
    %v3340 = vadd.f32 %v3268, %v3332
    %v3341 = vadd.f32 %v3269, %v3333
    %v3342 = vadd.f32 %v3270, %v3334
    %v3343 = vadd.f32 %v3271, %v3335
    %s3344 = sld [smem:[#allocation2 + $0x43]]
    %v3345 = vstv %s3344
    %v3346 = vmul.f32 %v3345, %v2902
    %v3347 = vmul.f32 %v3345, %v2903
    %v3348 = vmul.f32 %v3345, %v2904
    %v3349 = vmul.f32 %v3345, %v2905
    %v3350 = vmul.f32 %v3345, %v2906
    %v3351 = vmul.f32 %v3345, %v2907
    %v3352 = vmul.f32 %v3345, %v2908
    %v3353 = vmul.f32 %v3345, %v2909
    %v3354 = vadd.f32 %v3282, %v3346
    %v3355 = vadd.f32 %v3283, %v3347
    %v3356 = vadd.f32 %v3284, %v3348
    %v3357 = vadd.f32 %v3285, %v3349
    %v3358 = vadd.f32 %v3286, %v3350
    %v3359 = vadd.f32 %v3287, %v3351
    %v3360 = vadd.f32 %v3288, %v3352
    %v3361 = vadd.f32 %v3289, %v3353
    %s3362 = sld [smem:[#allocation2 + $0x67]]
    %v3363 = vstv %s3362
    %v3364 = vmul.f32 %v3363, %v2902
    %v3365 = vmul.f32 %v3363, %v2903
    %v3366 = vmul.f32 %v3363, %v2904
    %v3367 = vmul.f32 %v3363, %v2905
    %v3368 = vmul.f32 %v3363, %v2906
    %v3369 = vmul.f32 %v3363, %v2907
    %v3370 = vmul.f32 %v3363, %v2908
    %v3371 = vmul.f32 %v3363, %v2909
    %v3372 = vadd.f32 %v3300, %v3364
    %v3373 = vadd.f32 %v3301, %v3365
    %v3374 = vadd.f32 %v3302, %v3366
    %v3375 = vadd.f32 %v3303, %v3367
    %v3376 = vadd.f32 %v3304, %v3368
    %v3377 = vadd.f32 %v3305, %v3369
    %v3378 = vadd.f32 %v3306, %v3370
    %v3379 = vadd.f32 %v3307, %v3371
    %s3380 = sld [smem:[#allocation2 + $0x8b]]
    %v3381 = vstv %s3380
    %v3382 = vmul.f32 %v3381, %v2902
    %v3383 = vmul.f32 %v3381, %v2903
    %v3384 = vmul.f32 %v3381, %v2904
    %v3385 = vmul.f32 %v3381, %v2905
    %v3386 = vmul.f32 %v3381, %v2906
    %v3387 = vmul.f32 %v3381, %v2907
    %v3388 = vmul.f32 %v3381, %v2908
    %v3389 = vmul.f32 %v3381, %v2909
    %v3390 = vadd.f32 %v3318, %v3382
    %v3391 = vadd.f32 %v3319, %v3383
    %v3392 = vadd.f32 %v3320, %v3384
    %v3393 = vadd.f32 %v3321, %v3385
    %v3394 = vadd.f32 %v3322, %v3386
    %v3395 = vadd.f32 %v3323, %v3387
    %v3396 = vadd.f32 %v3324, %v3388
    %v3397 = vadd.f32 %v3325, %v3389
    %3398 = vrot.lane.b32.xlu0 %v2902, 127
    %v3399 = vpop.permute.xlu0 %3398
    %3400 = vrot.lane.b32.xlu0 %v2903, 127
    %v3401 = vpop.permute.xlu0 %3400
    %3402 = vrot.lane.b32.xlu0 %v2904, 127
    %v3403 = vpop.permute.xlu0 %3402
    %3404 = vrot.lane.b32.xlu0 %v2905, 127
    %v3405 = vpop.permute.xlu0 %3404
    %3406 = vrot.lane.b32.xlu0 %v2906, 127
    %v3407 = vpop.permute.xlu0 %3406
    %3408 = vrot.lane.b32.xlu0 %v2907, 127
    %v3409 = vpop.permute.xlu0 %3408
    %3410 = vrot.lane.b32.xlu0 %v2908, 127
    %v3411 = vpop.permute.xlu0 %3410
    %3412 = vrot.lane.b32.xlu0 %v2909, 127
    %v3413 = vpop.permute.xlu0 %3412
    %v3414 = vsel %vm629, %v3411, %v3413
    %v3415 = vsel %vm629, %v3409, %v3411
    %v3416 = vsel %vm629, %v3407, %v3409
    %v3417 = vsel %vm629, %v3405, %v3407
    %v3418 = vsel %vm629, %v3403, %v3405
    %v3419 = vsel %vm629, %v3401, %v3403
    %v3420 = vsel %vm629, %v3399, %v3401
    %v3421 = vsel %vm629, %v3413, %v3399
    %v3422 = vmul.f32 %v3420, %v639
    %v3423 = vmul.f32 %v3419, %v640
    %v3424 = vmul.f32 %v3418, %v641
    %v3425 = vmul.f32 %v3417, %v642
    %v3426 = vmul.f32 %v3416, %v643
    %v3427 = vmul.f32 %v3415, %v644
    %v3428 = vmul.f32 %v3414, %v645
    %v3429 = vmul.f32 %v3421, %v646
    %s3430 = sld [smem:[#allocation2 + $0x20]]
    %v3431 = vstv %s3430
    %v3432 = vmul.f32 %v3431, %v3422
    %v3433 = vmul.f32 %v3431, %v3423
    %v3434 = vmul.f32 %v3431, %v3424
    %v3435 = vmul.f32 %v3431, %v3425
    %v3436 = vmul.f32 %v3431, %v3426
    %v3437 = vmul.f32 %v3431, %v3427
    %v3438 = vmul.f32 %v3431, %v3428
    %v3439 = vmul.f32 %v3431, %v3429
    %v3440 = vadd.f32 %v3336, %v3432
    %v3441 = vadd.f32 %v3337, %v3433
    %v3442 = vadd.f32 %v3338, %v3434
    %v3443 = vadd.f32 %v3339, %v3435
    %v3444 = vadd.f32 %v3340, %v3436
    %v3445 = vadd.f32 %v3341, %v3437
    %v3446 = vadd.f32 %v3342, %v3438
    %v3447 = vadd.f32 %v3343, %v3439
    %s3448 = sld [smem:[#allocation2 + $0x44]]
    %v3449 = vstv %s3448
    %v3450 = vmul.f32 %v3449, %v3422
    %v3451 = vmul.f32 %v3449, %v3423
    %v3452 = vmul.f32 %v3449, %v3424
    %v3453 = vmul.f32 %v3449, %v3425
    %v3454 = vmul.f32 %v3449, %v3426
    %v3455 = vmul.f32 %v3449, %v3427
    %v3456 = vmul.f32 %v3449, %v3428
    %v3457 = vmul.f32 %v3449, %v3429
    %v3458 = vadd.f32 %v3354, %v3450
    %v3459 = vadd.f32 %v3355, %v3451
    %v3460 = vadd.f32 %v3356, %v3452
    %v3461 = vadd.f32 %v3357, %v3453
    %v3462 = vadd.f32 %v3358, %v3454
    %v3463 = vadd.f32 %v3359, %v3455
    %v3464 = vadd.f32 %v3360, %v3456
    %v3465 = vadd.f32 %v3361, %v3457
    %s3466 = sld [smem:[#allocation2 + $0x68]]
    %v3467 = vstv %s3466
    %v3468 = vmul.f32 %v3467, %v3422
    %v3469 = vmul.f32 %v3467, %v3423
    %v3470 = vmul.f32 %v3467, %v3424
    %v3471 = vmul.f32 %v3467, %v3425
    %v3472 = vmul.f32 %v3467, %v3426
    %v3473 = vmul.f32 %v3467, %v3427
    %v3474 = vmul.f32 %v3467, %v3428
    %v3475 = vmul.f32 %v3467, %v3429
    %v3476 = vadd.f32 %v3372, %v3468
    %v3477 = vadd.f32 %v3373, %v3469
    %v3478 = vadd.f32 %v3374, %v3470
    %v3479 = vadd.f32 %v3375, %v3471
    %v3480 = vadd.f32 %v3376, %v3472
    %v3481 = vadd.f32 %v3377, %v3473
    %v3482 = vadd.f32 %v3378, %v3474
    %v3483 = vadd.f32 %v3379, %v3475
    %s3484 = sld [smem:[#allocation2 + $0x8c]]
    %v3485 = vstv %s3484
    %v3486 = vmul.f32 %v3485, %v3422
    %v3487 = vmul.f32 %v3485, %v3423
    %v3488 = vmul.f32 %v3485, %v3424
    %v3489 = vmul.f32 %v3485, %v3425
    %v3490 = vmul.f32 %v3485, %v3426
    %v3491 = vmul.f32 %v3485, %v3427
    %v3492 = vmul.f32 %v3485, %v3428
    %v3493 = vmul.f32 %v3485, %v3429
    %v3494 = vadd.f32 %v3390, %v3486
    %v3495 = vadd.f32 %v3391, %v3487
    %v3496 = vadd.f32 %v3392, %v3488
    %v3497 = vadd.f32 %v3393, %v3489
    %v3498 = vadd.f32 %v3394, %v3490
    %v3499 = vadd.f32 %v3395, %v3491
    %v3500 = vadd.f32 %v3396, %v3492
    %v3501 = vadd.f32 %v3397, %v3493
    %3502 = vrot.lane.b32.xlu0 %v2902, 97
    %v3503 = vpop.permute.xlu0 %3502
    %3504 = vrot.lane.b32.xlu0 %v2903, 97
    %v3505 = vpop.permute.xlu0 %3504
    %3506 = vrot.lane.b32.xlu0 %v2904, 97
    %v3507 = vpop.permute.xlu0 %3506
    %3508 = vrot.lane.b32.xlu0 %v2905, 97
    %v3509 = vpop.permute.xlu0 %3508
    %3510 = vrot.lane.b32.xlu0 %v2906, 97
    %v3511 = vpop.permute.xlu0 %3510
    %3512 = vrot.lane.b32.xlu0 %v2907, 97
    %v3513 = vpop.permute.xlu0 %3512
    %3514 = vrot.lane.b32.xlu0 %v2908, 97
    %v3515 = vpop.permute.xlu0 %3514
    %3516 = vrot.lane.b32.xlu0 %v2909, 97
    %v3517 = vpop.permute.xlu0 %3516
    %v3518 = vsel %vm743, %v3515, %v3517
    %v3519 = vsel %vm743, %v3513, %v3515
    %v3520 = vsel %vm743, %v3511, %v3513
    %v3521 = vsel %vm743, %v3509, %v3511
    %v3522 = vsel %vm743, %v3507, %v3509
    %v3523 = vsel %vm743, %v3505, %v3507
    %v3524 = vsel %vm743, %v3503, %v3505
    %v3525 = vsel %vm743, %v3517, %v3503
    %v3526 = vmul.f32 %v3524, %v753
    %v3527 = vmul.f32 %v3523, %v754
    %v3528 = vmul.f32 %v3522, %v755
    %v3529 = vmul.f32 %v3521, %v756
    %v3530 = vmul.f32 %v3520, %v757
    %v3531 = vmul.f32 %v3519, %v758
    %v3532 = vmul.f32 %v3518, %v759
    %v3533 = vmul.f32 %v3525, %v760
    %s3534 = sld [smem:[#allocation2 + $0x21]]
    %v3535 = vstv %s3534
    %v3536 = vmul.f32 %v3535, %v3526
    %v3537 = vmul.f32 %v3535, %v3527
    %v3538 = vmul.f32 %v3535, %v3528
    %v3539 = vmul.f32 %v3535, %v3529
    %v3540 = vmul.f32 %v3535, %v3530
    %v3541 = vmul.f32 %v3535, %v3531
    %v3542 = vmul.f32 %v3535, %v3532
    %v3543 = vmul.f32 %v3535, %v3533
    %v3544 = vadd.f32 %v3440, %v3536
    %v3545 = vadd.f32 %v3441, %v3537
    %v3546 = vadd.f32 %v3442, %v3538
    %v3547 = vadd.f32 %v3443, %v3539
    %v3548 = vadd.f32 %v3444, %v3540
    %v3549 = vadd.f32 %v3445, %v3541
    %v3550 = vadd.f32 %v3446, %v3542
    %v3551 = vadd.f32 %v3447, %v3543
    %s3552 = sld [smem:[#allocation2 + $0x45]]
    %v3553 = vstv %s3552
    %v3554 = vmul.f32 %v3553, %v3526
    %v3555 = vmul.f32 %v3553, %v3527
    %v3556 = vmul.f32 %v3553, %v3528
    %v3557 = vmul.f32 %v3553, %v3529
    %v3558 = vmul.f32 %v3553, %v3530
    %v3559 = vmul.f32 %v3553, %v3531
    %v3560 = vmul.f32 %v3553, %v3532
    %v3561 = vmul.f32 %v3553, %v3533
    %v3562 = vadd.f32 %v3458, %v3554
    %v3563 = vadd.f32 %v3459, %v3555
    %v3564 = vadd.f32 %v3460, %v3556
    %v3565 = vadd.f32 %v3461, %v3557
    %v3566 = vadd.f32 %v3462, %v3558
    %v3567 = vadd.f32 %v3463, %v3559
    %v3568 = vadd.f32 %v3464, %v3560
    %v3569 = vadd.f32 %v3465, %v3561
    %s3570 = sld [smem:[#allocation2 + $0x69]]
    %v3571 = vstv %s3570
    %v3572 = vmul.f32 %v3571, %v3526
    %v3573 = vmul.f32 %v3571, %v3527
    %v3574 = vmul.f32 %v3571, %v3528
    %v3575 = vmul.f32 %v3571, %v3529
    %v3576 = vmul.f32 %v3571, %v3530
    %v3577 = vmul.f32 %v3571, %v3531
    %v3578 = vmul.f32 %v3571, %v3532
    %v3579 = vmul.f32 %v3571, %v3533
    %v3580 = vadd.f32 %v3476, %v3572
    %v3581 = vadd.f32 %v3477, %v3573
    %v3582 = vadd.f32 %v3478, %v3574
    %v3583 = vadd.f32 %v3479, %v3575
    %v3584 = vadd.f32 %v3480, %v3576
    %v3585 = vadd.f32 %v3481, %v3577
    %v3586 = vadd.f32 %v3482, %v3578
    %v3587 = vadd.f32 %v3483, %v3579
    %s3588 = sld [smem:[#allocation2 + $0x8d]]
    %v3589 = vstv %s3588
    %v3590 = vmul.f32 %v3589, %v3526
    %v3591 = vmul.f32 %v3589, %v3527
    %v3592 = vmul.f32 %v3589, %v3528
    %v3593 = vmul.f32 %v3589, %v3529
    %v3594 = vmul.f32 %v3589, %v3530
    %v3595 = vmul.f32 %v3589, %v3531
    %v3596 = vmul.f32 %v3589, %v3532
    %v3597 = vmul.f32 %v3589, %v3533
    %v3598 = vadd.f32 %v3494, %v3590
    %v3599 = vadd.f32 %v3495, %v3591
    %v3600 = vadd.f32 %v3496, %v3592
    %v3601 = vadd.f32 %v3497, %v3593
    %v3602 = vadd.f32 %v3498, %v3594
    %v3603 = vadd.f32 %v3499, %v3595
    %v3604 = vadd.f32 %v3500, %v3596
    %v3605 = vadd.f32 %v3501, %v3597
    %3606 = vrot.lane.b32.xlu0 %v2902, 96
    %v3607 = vpop.permute.xlu0 %3606
    %3608 = vrot.lane.b32.xlu0 %v2903, 96
    %v3609 = vpop.permute.xlu0 %3608
    %3610 = vrot.lane.b32.xlu0 %v2904, 96
    %v3611 = vpop.permute.xlu0 %3610
    %3612 = vrot.lane.b32.xlu0 %v2905, 96
    %v3613 = vpop.permute.xlu0 %3612
    %3614 = vrot.lane.b32.xlu0 %v2906, 96
    %v3615 = vpop.permute.xlu0 %3614
    %3616 = vrot.lane.b32.xlu0 %v2907, 96
    %v3617 = vpop.permute.xlu0 %3616
    %3618 = vrot.lane.b32.xlu0 %v2908, 96
    %v3619 = vpop.permute.xlu0 %3618
    %3620 = vrot.lane.b32.xlu0 %v2909, 96
    %v3621 = vpop.permute.xlu0 %3620
    %v3622 = vsel %vm857, %v3619, %v3621
    %v3623 = vsel %vm857, %v3617, %v3619
    %v3624 = vsel %vm857, %v3615, %v3617
    %v3625 = vsel %vm857, %v3613, %v3615
    %v3626 = vsel %vm857, %v3611, %v3613
    %v3627 = vsel %vm857, %v3609, %v3611
    %v3628 = vsel %vm857, %v3607, %v3609
    %v3629 = vsel %vm857, %v3621, %v3607
    %v3630 = vmul.f32 %v3628, %v867
    %v3631 = vmul.f32 %v3627, %v868
    %v3632 = vmul.f32 %v3626, %v869
    %v3633 = vmul.f32 %v3625, %v870
    %v3634 = vmul.f32 %v3624, %v871
    %v3635 = vmul.f32 %v3623, %v872
    %v3636 = vmul.f32 %v3622, %v873
    %v3637 = vmul.f32 %v3629, %v874
    %s3638 = sld [smem:[#allocation2 + $0x22]]
    %v3639 = vstv %s3638
    %v3640 = vmul.f32 %v3639, %v3630
    %v3641 = vmul.f32 %v3639, %v3631
    %v3642 = vmul.f32 %v3639, %v3632
    %v3643 = vmul.f32 %v3639, %v3633
    %v3644 = vmul.f32 %v3639, %v3634
    %v3645 = vmul.f32 %v3639, %v3635
    %v3646 = vmul.f32 %v3639, %v3636
    %v3647 = vmul.f32 %v3639, %v3637
    %v3648 = vadd.f32 %v3544, %v3640
    %v3649 = vadd.f32 %v3545, %v3641
    %v3650 = vadd.f32 %v3546, %v3642
    %v3651 = vadd.f32 %v3547, %v3643
    %v3652 = vadd.f32 %v3548, %v3644
    %v3653 = vadd.f32 %v3549, %v3645
    %v3654 = vadd.f32 %v3550, %v3646
    %v3655 = vadd.f32 %v3551, %v3647
    %s3656 = sld [smem:[#allocation2 + $0x46]]
    %v3657 = vstv %s3656
    %v3658 = vmul.f32 %v3657, %v3630
    %v3659 = vmul.f32 %v3657, %v3631
    %v3660 = vmul.f32 %v3657, %v3632
    %v3661 = vmul.f32 %v3657, %v3633
    %v3662 = vmul.f32 %v3657, %v3634
    %v3663 = vmul.f32 %v3657, %v3635
    %v3664 = vmul.f32 %v3657, %v3636
    %v3665 = vmul.f32 %v3657, %v3637
    %v3666 = vadd.f32 %v3562, %v3658
    %v3667 = vadd.f32 %v3563, %v3659
    %v3668 = vadd.f32 %v3564, %v3660
    %v3669 = vadd.f32 %v3565, %v3661
    %v3670 = vadd.f32 %v3566, %v3662
    %v3671 = vadd.f32 %v3567, %v3663
    %v3672 = vadd.f32 %v3568, %v3664
    %v3673 = vadd.f32 %v3569, %v3665
    %s3674 = sld [smem:[#allocation2 + $0x6a]]
    %v3675 = vstv %s3674
    %v3676 = vmul.f32 %v3675, %v3630
    %v3677 = vmul.f32 %v3675, %v3631
    %v3678 = vmul.f32 %v3675, %v3632
    %v3679 = vmul.f32 %v3675, %v3633
    %v3680 = vmul.f32 %v3675, %v3634
    %v3681 = vmul.f32 %v3675, %v3635
    %v3682 = vmul.f32 %v3675, %v3636
    %v3683 = vmul.f32 %v3675, %v3637
    %v3684 = vadd.f32 %v3580, %v3676
    %v3685 = vadd.f32 %v3581, %v3677
    %v3686 = vadd.f32 %v3582, %v3678
    %v3687 = vadd.f32 %v3583, %v3679
    %v3688 = vadd.f32 %v3584, %v3680
    %v3689 = vadd.f32 %v3585, %v3681
    %v3690 = vadd.f32 %v3586, %v3682
    %v3691 = vadd.f32 %v3587, %v3683
    %s3692 = sld [smem:[#allocation2 + $0x8e]]
    %v3693 = vstv %s3692
    %v3694 = vmul.f32 %v3693, %v3630
    %v3695 = vmul.f32 %v3693, %v3631
    %v3696 = vmul.f32 %v3693, %v3632
    %v3697 = vmul.f32 %v3693, %v3633
    %v3698 = vmul.f32 %v3693, %v3634
    %v3699 = vmul.f32 %v3693, %v3635
    %v3700 = vmul.f32 %v3693, %v3636
    %v3701 = vmul.f32 %v3693, %v3637
    %v3702 = vadd.f32 %v3598, %v3694
    %v3703 = vadd.f32 %v3599, %v3695
    %v3704 = vadd.f32 %v3600, %v3696
    %v3705 = vadd.f32 %v3601, %v3697
    %v3706 = vadd.f32 %v3602, %v3698
    %v3707 = vadd.f32 %v3603, %v3699
    %v3708 = vadd.f32 %v3604, %v3700
    %v3709 = vadd.f32 %v3605, %v3701
    %3710 = vrot.lane.b32.xlu0 %v2902, 95
    %v3711 = vpop.permute.xlu0 %3710
    %3712 = vrot.lane.b32.xlu0 %v2903, 95
    %v3713 = vpop.permute.xlu0 %3712
    %3714 = vrot.lane.b32.xlu0 %v2904, 95
    %v3715 = vpop.permute.xlu0 %3714
    %3716 = vrot.lane.b32.xlu0 %v2905, 95
    %v3717 = vpop.permute.xlu0 %3716
    %3718 = vrot.lane.b32.xlu0 %v2906, 95
    %v3719 = vpop.permute.xlu0 %3718
    %3720 = vrot.lane.b32.xlu0 %v2907, 95
    %v3721 = vpop.permute.xlu0 %3720
    %3722 = vrot.lane.b32.xlu0 %v2908, 95
    %v3723 = vpop.permute.xlu0 %3722
    %3724 = vrot.lane.b32.xlu0 %v2909, 95
    %v3725 = vpop.permute.xlu0 %3724
    %v3726 = vsel %vm971, %v3723, %v3725
    %v3727 = vsel %vm971, %v3721, %v3723
    %v3728 = vsel %vm971, %v3719, %v3721
    %v3729 = vsel %vm971, %v3717, %v3719
    %v3730 = vsel %vm971, %v3715, %v3717
    %v3731 = vsel %vm971, %v3713, %v3715
    %v3732 = vsel %vm971, %v3711, %v3713
    %v3733 = vsel %vm971, %v3725, %v3711
    %v3734 = vmul.f32 %v3732, %v981
    %v3735 = vmul.f32 %v3731, %v982
    %v3736 = vmul.f32 %v3730, %v983
    %v3737 = vmul.f32 %v3729, %v984
    %v3738 = vmul.f32 %v3728, %v985
    %v3739 = vmul.f32 %v3727, %v986
    %v3740 = vmul.f32 %v3726, %v987
    %v3741 = vmul.f32 %v3733, %v988
    %s3742 = sld [smem:[#allocation2 + $0x23]]
    %v3743 = vstv %s3742
    %v3744 = vmul.f32 %v3743, %v3734
    %v3745 = vmul.f32 %v3743, %v3735
    %v3746 = vmul.f32 %v3743, %v3736
    %v3747 = vmul.f32 %v3743, %v3737
    %v3748 = vmul.f32 %v3743, %v3738
    %v3749 = vmul.f32 %v3743, %v3739
    %v3750 = vmul.f32 %v3743, %v3740
    %v3751 = vmul.f32 %v3743, %v3741
    %v3752 = vadd.f32 %v3648, %v3744
    %v3753 = vadd.f32 %v3649, %v3745
    %v3754 = vadd.f32 %v3650, %v3746
    %v3755 = vadd.f32 %v3651, %v3747
    %v3756 = vadd.f32 %v3652, %v3748
    %v3757 = vadd.f32 %v3653, %v3749
    %v3758 = vadd.f32 %v3654, %v3750
    %v3759 = vadd.f32 %v3655, %v3751
    %s3760 = sld [smem:[#allocation2 + $0x47]]
    %v3761 = vstv %s3760
    %v3762 = vmul.f32 %v3761, %v3734
    %v3763 = vmul.f32 %v3761, %v3735
    %v3764 = vmul.f32 %v3761, %v3736
    %v3765 = vmul.f32 %v3761, %v3737
    %v3766 = vmul.f32 %v3761, %v3738
    %v3767 = vmul.f32 %v3761, %v3739
    %v3768 = vmul.f32 %v3761, %v3740
    %v3769 = vmul.f32 %v3761, %v3741
    %v3770 = vadd.f32 %v3666, %v3762
    %v3771 = vadd.f32 %v3667, %v3763
    %v3772 = vadd.f32 %v3668, %v3764
    %v3773 = vadd.f32 %v3669, %v3765
    %v3774 = vadd.f32 %v3670, %v3766
    %v3775 = vadd.f32 %v3671, %v3767
    %v3776 = vadd.f32 %v3672, %v3768
    %v3777 = vadd.f32 %v3673, %v3769
    %s3778 = sld [smem:[#allocation2 + $0x6b]]
    %v3779 = vstv %s3778
    %v3780 = vmul.f32 %v3779, %v3734
    %v3781 = vmul.f32 %v3779, %v3735
    %v3782 = vmul.f32 %v3779, %v3736
    %v3783 = vmul.f32 %v3779, %v3737
    %v3784 = vmul.f32 %v3779, %v3738
    %v3785 = vmul.f32 %v3779, %v3739
    %v3786 = vmul.f32 %v3779, %v3740
    %v3787 = vmul.f32 %v3779, %v3741
    %v3788 = vadd.f32 %v3684, %v3780
    %v3789 = vadd.f32 %v3685, %v3781
    %v3790 = vadd.f32 %v3686, %v3782
    %v3791 = vadd.f32 %v3687, %v3783
    %v3792 = vadd.f32 %v3688, %v3784
    %v3793 = vadd.f32 %v3689, %v3785
    %v3794 = vadd.f32 %v3690, %v3786
    %v3795 = vadd.f32 %v3691, %v3787
    %s3796 = sld [smem:[#allocation2 + $0x8f]]
    %v3797 = vstv %s3796
    %v3798 = vmul.f32 %v3797, %v3734
    %v3799 = vmul.f32 %v3797, %v3735
    %v3800 = vmul.f32 %v3797, %v3736
    %v3801 = vmul.f32 %v3797, %v3737
    %v3802 = vmul.f32 %v3797, %v3738
    %v3803 = vmul.f32 %v3797, %v3739
    %v3804 = vmul.f32 %v3797, %v3740
    %v3805 = vmul.f32 %v3797, %v3741
    %v3806 = vadd.f32 %v3702, %v3798
    %v3807 = vadd.f32 %v3703, %v3799
    %v3808 = vadd.f32 %v3704, %v3800
    %v3809 = vadd.f32 %v3705, %v3801
    %v3810 = vadd.f32 %v3706, %v3802
    %v3811 = vadd.f32 %v3707, %v3803
    %v3812 = vadd.f32 %v3708, %v3804
    %v3813 = vadd.f32 %v3709, %v3805
    %s3814 = sld [smem:[#allocation5]]
    %v3815 = vstv %s3814
    %v3816 = vadd.f32 %v3752, %v3815
    %v3817 = vadd.f32 %v3753, %v3815
    %v3818 = vadd.f32 %v3754, %v3815
    %v3819 = vadd.f32 %v3755, %v3815
    %v3820 = vadd.f32 %v3756, %v3815
    %v3821 = vadd.f32 %v3757, %v3815
    %v3822 = vadd.f32 %v3758, %v3815
    %v3823 = vadd.f32 %v3759, %v3815
    %v3824 = vmax.f32 %v3816, 0.0
    %v3825 = vmax.f32 %v3817, 0.0
    %v3826 = vmax.f32 %v3818, 0.0
    %v3827 = vmax.f32 %v3819, 0.0
    %v3828 = vmax.f32 %v3820, 0.0
    %v3829 = vmax.f32 %v3821, 0.0
    %v3830 = vmax.f32 %v3822, 0.0
    %v3831 = vmax.f32 %v3823, 0.0
    %v3832 = vld [vmem:[#allocation7] sm:$0xff]
    %v3833 = vld [vmem:[#allocation7 + $0x8] sm:$0xff]
    %v3834 = vld [vmem:[#allocation7 + $0x10] sm:$0xff]
    %v3835 = vld [vmem:[#allocation7 + $0x18] sm:$0xff]
    %v3836 = vld [vmem:[#allocation7 + $0x20] sm:$0xff]
    %v3837 = vld [vmem:[#allocation7 + $0x28] sm:$0xff]
    %v3838 = vld [vmem:[#allocation7 + $0x30] sm:$0xff]
    %v3839 = vld [vmem:[#allocation7 + $0x38] sm:$0xff]
    %v3840 = vmul.f32 %v3824, %v3832
    %v3841 = vmul.f32 %v3825, %v3833
    %v3842 = vmul.f32 %v3826, %v3834
    %v3843 = vmul.f32 %v3827, %v3835
    %v3844 = vmul.f32 %v3828, %v3836
    %v3845 = vmul.f32 %v3829, %v3837
    %v3846 = vmul.f32 %v3830, %v3838
    %v3847 = vmul.f32 %v3831, %v3839
    %v3848 = vadd.f32 %v3840, %v3841
    %v3849 = vadd.f32 %v3848, %v3842
    %v3850 = vadd.f32 %v3849, %v3843
    %v3851 = vadd.f32 %v3850, %v3844
    %v3852 = vadd.f32 %v3851, %v3845
    %v3853 = vadd.f32 %v3852, %v3846
    %v3854 = vadd.f32 %v3853, %v3847
    %3855 = vadd.xlane.f32.xlu0 %v3854
    %v3856 = vpop.xlane.xlu0 %3855
    %v3857 = vadd.f32 %v3856, 0.0
    %s3858 = scalar_lea.vmem [#allocation7], 64
    %v3859 = vld [vmem:[%s3858] sm:$0xff]
    %v3860 = vld [vmem:[%s3858 + $0x8] sm:$0xff]
    %v3861 = vld [vmem:[%s3858 + $0x10] sm:$0xff]
    %v3862 = vld [vmem:[%s3858 + $0x18] sm:$0xff]
    %v3863 = vld [vmem:[%s3858 + $0x20] sm:$0xff]
    %v3864 = vld [vmem:[%s3858 + $0x28] sm:$0xff]
    %v3865 = vld [vmem:[%s3858 + $0x30] sm:$0xff]
    %v3866 = vld [vmem:[%s3858 + $0x38] sm:$0xff]
    %v3867 = vmul.f32 %v3824, %v3859
    %v3868 = vmul.f32 %v3825, %v3860
    %v3869 = vmul.f32 %v3826, %v3861
    %v3870 = vmul.f32 %v3827, %v3862
    %v3871 = vmul.f32 %v3828, %v3863
    %v3872 = vmul.f32 %v3829, %v3864
    %v3873 = vmul.f32 %v3830, %v3865
    %v3874 = vmul.f32 %v3831, %v3866
    %v3875 = vadd.f32 %v3867, %v3868
    %v3876 = vadd.f32 %v3875, %v3869
    %v3877 = vadd.f32 %v3876, %v3870
    %v3878 = vadd.f32 %v3877, %v3871
    %v3879 = vadd.f32 %v3878, %v3872
    %v3880 = vadd.f32 %v3879, %v3873
    %v3881 = vadd.f32 %v3880, %v3874
    %3882 = vadd.xlane.f32.xlu0 %v3881
    %v3883 = vpop.xlane.xlu0 %3882
    %v3884 = vadd.f32 %v3883, 0.0
    %s3885 = scalar_lea.vmem [#allocation7], 128
    %v3886 = vld [vmem:[%s3885] sm:$0xff]
    %v3887 = vld [vmem:[%s3885 + $0x8] sm:$0xff]
    %v3888 = vld [vmem:[%s3885 + $0x10] sm:$0xff]
    %v3889 = vld [vmem:[%s3885 + $0x18] sm:$0xff]
    %v3890 = vld [vmem:[%s3885 + $0x20] sm:$0xff]
    %v3891 = vld [vmem:[%s3885 + $0x28] sm:$0xff]
    %v3892 = vld [vmem:[%s3885 + $0x30] sm:$0xff]
    %v3893 = vld [vmem:[%s3885 + $0x38] sm:$0xff]
    %v3894 = vmul.f32 %v3824, %v3886
    %v3895 = vmul.f32 %v3825, %v3887
    %v3896 = vmul.f32 %v3826, %v3888
    %v3897 = vmul.f32 %v3827, %v3889
    %v3898 = vmul.f32 %v3828, %v3890
    %v3899 = vmul.f32 %v3829, %v3891
    %v3900 = vmul.f32 %v3830, %v3892
    %v3901 = vmul.f32 %v3831, %v3893
    %v3902 = vadd.f32 %v3894, %v3895
    %v3903 = vadd.f32 %v3902, %v3896
    %v3904 = vadd.f32 %v3903, %v3897
    %v3905 = vadd.f32 %v3904, %v3898
    %v3906 = vadd.f32 %v3905, %v3899
    %v3907 = vadd.f32 %v3906, %v3900
    %v3908 = vadd.f32 %v3907, %v3901
    %3909 = vadd.xlane.f32.xlu0 %v3908
    %v3910 = vpop.xlane.xlu0 %3909
    %v3911 = vadd.f32 %v3910, 0.0
    %s3912 = scalar_lea.vmem [#allocation7], 192
    %v3913 = vld [vmem:[%s3912] sm:$0xff]
    %v3914 = vld [vmem:[%s3912 + $0x8] sm:$0xff]
    %v3915 = vld [vmem:[%s3912 + $0x10] sm:$0xff]
    %v3916 = vld [vmem:[%s3912 + $0x18] sm:$0xff]
    %v3917 = vld [vmem:[%s3912 + $0x20] sm:$0xff]
    %v3918 = vld [vmem:[%s3912 + $0x28] sm:$0xff]
    %v3919 = vld [vmem:[%s3912 + $0x30] sm:$0xff]
    %v3920 = vld [vmem:[%s3912 + $0x38] sm:$0xff]
    %v3921 = vmul.f32 %v3824, %v3913
    %v3922 = vmul.f32 %v3825, %v3914
    %v3923 = vmul.f32 %v3826, %v3915
    %v3924 = vmul.f32 %v3827, %v3916
    %v3925 = vmul.f32 %v3828, %v3917
    %v3926 = vmul.f32 %v3829, %v3918
    %v3927 = vmul.f32 %v3830, %v3919
    %v3928 = vmul.f32 %v3831, %v3920
    %v3929 = vadd.f32 %v3921, %v3922
    %v3930 = vadd.f32 %v3929, %v3923
    %v3931 = vadd.f32 %v3930, %v3924
    %v3932 = vadd.f32 %v3931, %v3925
    %v3933 = vadd.f32 %v3932, %v3926
    %v3934 = vadd.f32 %v3933, %v3927
    %v3935 = vadd.f32 %v3934, %v3928
    %3936 = vadd.xlane.f32.xlu0 %v3935
    %v3937 = vpop.xlane.xlu0 %3936
    %v3938 = vadd.f32 %v3937, 0.0
    %s3939 = sld [smem:[#allocation5 + $0x1]]
    %v3940 = vstv %s3939
    %v3941 = vadd.f32 %v3770, %v3940
    %v3942 = vadd.f32 %v3771, %v3940
    %v3943 = vadd.f32 %v3772, %v3940
    %v3944 = vadd.f32 %v3773, %v3940
    %v3945 = vadd.f32 %v3774, %v3940
    %v3946 = vadd.f32 %v3775, %v3940
    %v3947 = vadd.f32 %v3776, %v3940
    %v3948 = vadd.f32 %v3777, %v3940
    %v3949 = vmax.f32 %v3941, 0.0
    %v3950 = vmax.f32 %v3942, 0.0
    %v3951 = vmax.f32 %v3943, 0.0
    %v3952 = vmax.f32 %v3944, 0.0
    %v3953 = vmax.f32 %v3945, 0.0
    %v3954 = vmax.f32 %v3946, 0.0
    %v3955 = vmax.f32 %v3947, 0.0
    %v3956 = vmax.f32 %v3948, 0.0
    %s3957 = scalar_lea.vmem [#allocation7], 256
    %v3958 = vld [vmem:[%s3957] sm:$0xff]
    %v3959 = vld [vmem:[%s3957 + $0x8] sm:$0xff]
    %v3960 = vld [vmem:[%s3957 + $0x10] sm:$0xff]
    %v3961 = vld [vmem:[%s3957 + $0x18] sm:$0xff]
    %v3962 = vld [vmem:[%s3957 + $0x20] sm:$0xff]
    %v3963 = vld [vmem:[%s3957 + $0x28] sm:$0xff]
    %v3964 = vld [vmem:[%s3957 + $0x30] sm:$0xff]
    %v3965 = vld [vmem:[%s3957 + $0x38] sm:$0xff]
    %v3966 = vmul.f32 %v3949, %v3958
    %v3967 = vmul.f32 %v3950, %v3959
    %v3968 = vmul.f32 %v3951, %v3960
    %v3969 = vmul.f32 %v3952, %v3961
    %v3970 = vmul.f32 %v3953, %v3962
    %v3971 = vmul.f32 %v3954, %v3963
    %v3972 = vmul.f32 %v3955, %v3964
    %v3973 = vmul.f32 %v3956, %v3965
    %v3974 = vadd.f32 %v3966, %v3967
    %v3975 = vadd.f32 %v3974, %v3968
    %v3976 = vadd.f32 %v3975, %v3969
    %v3977 = vadd.f32 %v3976, %v3970
    %v3978 = vadd.f32 %v3977, %v3971
    %v3979 = vadd.f32 %v3978, %v3972
    %v3980 = vadd.f32 %v3979, %v3973
    %3981 = vadd.xlane.f32.xlu0 %v3980
    %v3982 = vpop.xlane.xlu0 %3981
    %v3983 = vadd.f32 %v3857, %v3982
    %s3984 = scalar_lea.vmem [#allocation7], 320
    %v3985 = vld [vmem:[%s3984] sm:$0xff]
    %v3986 = vld [vmem:[%s3984 + $0x8] sm:$0xff]
    %v3987 = vld [vmem:[%s3984 + $0x10] sm:$0xff]
    %v3988 = vld [vmem:[%s3984 + $0x18] sm:$0xff]
    %v3989 = vld [vmem:[%s3984 + $0x20] sm:$0xff]
    %v3990 = vld [vmem:[%s3984 + $0x28] sm:$0xff]
    %v3991 = vld [vmem:[%s3984 + $0x30] sm:$0xff]
    %v3992 = vld [vmem:[%s3984 + $0x38] sm:$0xff]
    %v3993 = vmul.f32 %v3949, %v3985
    %v3994 = vmul.f32 %v3950, %v3986
    %v3995 = vmul.f32 %v3951, %v3987
    %v3996 = vmul.f32 %v3952, %v3988
    %v3997 = vmul.f32 %v3953, %v3989
    %v3998 = vmul.f32 %v3954, %v3990
    %v3999 = vmul.f32 %v3955, %v3991
    %v4000 = vmul.f32 %v3956, %v3992
    %v4001 = vadd.f32 %v3993, %v3994
    %v4002 = vadd.f32 %v4001, %v3995
    %v4003 = vadd.f32 %v4002, %v3996
    %v4004 = vadd.f32 %v4003, %v3997
    %v4005 = vadd.f32 %v4004, %v3998
    %v4006 = vadd.f32 %v4005, %v3999
    %v4007 = vadd.f32 %v4006, %v4000
    %4008 = vadd.xlane.f32.xlu0 %v4007
    %v4009 = vpop.xlane.xlu0 %4008
    %v4010 = vadd.f32 %v3884, %v4009
    %s4011 = scalar_lea.vmem [#allocation7], 384
    %v4012 = vld [vmem:[%s4011] sm:$0xff]
    %v4013 = vld [vmem:[%s4011 + $0x8] sm:$0xff]
    %v4014 = vld [vmem:[%s4011 + $0x10] sm:$0xff]
    %v4015 = vld [vmem:[%s4011 + $0x18] sm:$0xff]
    %v4016 = vld [vmem:[%s4011 + $0x20] sm:$0xff]
    %v4017 = vld [vmem:[%s4011 + $0x28] sm:$0xff]
    %v4018 = vld [vmem:[%s4011 + $0x30] sm:$0xff]
    %v4019 = vld [vmem:[%s4011 + $0x38] sm:$0xff]
    %v4020 = vmul.f32 %v3949, %v4012
    %v4021 = vmul.f32 %v3950, %v4013
    %v4022 = vmul.f32 %v3951, %v4014
    %v4023 = vmul.f32 %v3952, %v4015
    %v4024 = vmul.f32 %v3953, %v4016
    %v4025 = vmul.f32 %v3954, %v4017
    %v4026 = vmul.f32 %v3955, %v4018
    %v4027 = vmul.f32 %v3956, %v4019
    %v4028 = vadd.f32 %v4020, %v4021
    %v4029 = vadd.f32 %v4028, %v4022
    %v4030 = vadd.f32 %v4029, %v4023
    %v4031 = vadd.f32 %v4030, %v4024
    %v4032 = vadd.f32 %v4031, %v4025
    %v4033 = vadd.f32 %v4032, %v4026
    %v4034 = vadd.f32 %v4033, %v4027
    %4035 = vadd.xlane.f32.xlu0 %v4034
    %v4036 = vpop.xlane.xlu0 %4035
    %v4037 = vadd.f32 %v3911, %v4036
    %s4038 = scalar_lea.vmem [#allocation7], 448
    %v4039 = vld [vmem:[%s4038] sm:$0xff]
    %v4040 = vld [vmem:[%s4038 + $0x8] sm:$0xff]
    %v4041 = vld [vmem:[%s4038 + $0x10] sm:$0xff]
    %v4042 = vld [vmem:[%s4038 + $0x18] sm:$0xff]
    %v4043 = vld [vmem:[%s4038 + $0x20] sm:$0xff]
    %v4044 = vld [vmem:[%s4038 + $0x28] sm:$0xff]
    %v4045 = vld [vmem:[%s4038 + $0x30] sm:$0xff]
    %v4046 = vld [vmem:[%s4038 + $0x38] sm:$0xff]
    %v4047 = vmul.f32 %v3949, %v4039
    %v4048 = vmul.f32 %v3950, %v4040
    %v4049 = vmul.f32 %v3951, %v4041
    %v4050 = vmul.f32 %v3952, %v4042
    %v4051 = vmul.f32 %v3953, %v4043
    %v4052 = vmul.f32 %v3954, %v4044
    %v4053 = vmul.f32 %v3955, %v4045
    %v4054 = vmul.f32 %v3956, %v4046
    %v4055 = vadd.f32 %v4047, %v4048
    %v4056 = vadd.f32 %v4055, %v4049
    %v4057 = vadd.f32 %v4056, %v4050
    %v4058 = vadd.f32 %v4057, %v4051
    %v4059 = vadd.f32 %v4058, %v4052
    %v4060 = vadd.f32 %v4059, %v4053
    %v4061 = vadd.f32 %v4060, %v4054
    %4062 = vadd.xlane.f32.xlu0 %v4061
    %v4063 = vpop.xlane.xlu0 %4062
    %v4064 = vadd.f32 %v3938, %v4063
    %s4065 = sld [smem:[#allocation5 + $0x2]]
    %v4066 = vstv %s4065
    %v4067 = vadd.f32 %v3788, %v4066
    %v4068 = vadd.f32 %v3789, %v4066
    %v4069 = vadd.f32 %v3790, %v4066
    %v4070 = vadd.f32 %v3791, %v4066
    %v4071 = vadd.f32 %v3792, %v4066
    %v4072 = vadd.f32 %v3793, %v4066
    %v4073 = vadd.f32 %v3794, %v4066
    %v4074 = vadd.f32 %v3795, %v4066
    %v4075 = vmax.f32 %v4067, 0.0
    %v4076 = vmax.f32 %v4068, 0.0
    %v4077 = vmax.f32 %v4069, 0.0
    %v4078 = vmax.f32 %v4070, 0.0
    %v4079 = vmax.f32 %v4071, 0.0
    %v4080 = vmax.f32 %v4072, 0.0
    %v4081 = vmax.f32 %v4073, 0.0
    %v4082 = vmax.f32 %v4074, 0.0
    %s4083 = scalar_lea.vmem [#allocation7], 512
    %v4084 = vld [vmem:[%s4083] sm:$0xff]
    %v4085 = vld [vmem:[%s4083 + $0x8] sm:$0xff]
    %v4086 = vld [vmem:[%s4083 + $0x10] sm:$0xff]
    %v4087 = vld [vmem:[%s4083 + $0x18] sm:$0xff]
    %v4088 = vld [vmem:[%s4083 + $0x20] sm:$0xff]
    %v4089 = vld [vmem:[%s4083 + $0x28] sm:$0xff]
    %v4090 = vld [vmem:[%s4083 + $0x30] sm:$0xff]
    %v4091 = vld [vmem:[%s4083 + $0x38] sm:$0xff]
    %v4092 = vmul.f32 %v4075, %v4084
    %v4093 = vmul.f32 %v4076, %v4085
    %v4094 = vmul.f32 %v4077, %v4086
    %v4095 = vmul.f32 %v4078, %v4087
    %v4096 = vmul.f32 %v4079, %v4088
    %v4097 = vmul.f32 %v4080, %v4089
    %v4098 = vmul.f32 %v4081, %v4090
    %v4099 = vmul.f32 %v4082, %v4091
    %v4100 = vadd.f32 %v4092, %v4093
    %v4101 = vadd.f32 %v4100, %v4094
    %v4102 = vadd.f32 %v4101, %v4095
    %v4103 = vadd.f32 %v4102, %v4096
    %v4104 = vadd.f32 %v4103, %v4097
    %v4105 = vadd.f32 %v4104, %v4098
    %v4106 = vadd.f32 %v4105, %v4099
    %4107 = vadd.xlane.f32.xlu0 %v4106
    %v4108 = vpop.xlane.xlu0 %4107
    %v4109 = vadd.f32 %v3983, %v4108
    %s4110 = scalar_lea.vmem [#allocation7], 576
    %v4111 = vld [vmem:[%s4110] sm:$0xff]
    %v4112 = vld [vmem:[%s4110 + $0x8] sm:$0xff]
    %v4113 = vld [vmem:[%s4110 + $0x10] sm:$0xff]
    %v4114 = vld [vmem:[%s4110 + $0x18] sm:$0xff]
    %v4115 = vld [vmem:[%s4110 + $0x20] sm:$0xff]
    %v4116 = vld [vmem:[%s4110 + $0x28] sm:$0xff]
    %v4117 = vld [vmem:[%s4110 + $0x30] sm:$0xff]
    %v4118 = vld [vmem:[%s4110 + $0x38] sm:$0xff]
    %v4119 = vmul.f32 %v4075, %v4111
    %v4120 = vmul.f32 %v4076, %v4112
    %v4121 = vmul.f32 %v4077, %v4113
    %v4122 = vmul.f32 %v4078, %v4114
    %v4123 = vmul.f32 %v4079, %v4115
    %v4124 = vmul.f32 %v4080, %v4116
    %v4125 = vmul.f32 %v4081, %v4117
    %v4126 = vmul.f32 %v4082, %v4118
    %v4127 = vadd.f32 %v4119, %v4120
    %v4128 = vadd.f32 %v4127, %v4121
    %v4129 = vadd.f32 %v4128, %v4122
    %v4130 = vadd.f32 %v4129, %v4123
    %v4131 = vadd.f32 %v4130, %v4124
    %v4132 = vadd.f32 %v4131, %v4125
    %v4133 = vadd.f32 %v4132, %v4126
    %4134 = vadd.xlane.f32.xlu0 %v4133
    %v4135 = vpop.xlane.xlu0 %4134
    %v4136 = vadd.f32 %v4010, %v4135
    %s4137 = scalar_lea.vmem [#allocation7], 640
    %v4138 = vld [vmem:[%s4137] sm:$0xff]
    %v4139 = vld [vmem:[%s4137 + $0x8] sm:$0xff]
    %v4140 = vld [vmem:[%s4137 + $0x10] sm:$0xff]
    %v4141 = vld [vmem:[%s4137 + $0x18] sm:$0xff]
    %v4142 = vld [vmem:[%s4137 + $0x20] sm:$0xff]
    %v4143 = vld [vmem:[%s4137 + $0x28] sm:$0xff]
    %v4144 = vld [vmem:[%s4137 + $0x30] sm:$0xff]
    %v4145 = vld [vmem:[%s4137 + $0x38] sm:$0xff]
    %v4146 = vmul.f32 %v4075, %v4138
    %v4147 = vmul.f32 %v4076, %v4139
    %v4148 = vmul.f32 %v4077, %v4140
    %v4149 = vmul.f32 %v4078, %v4141
    %v4150 = vmul.f32 %v4079, %v4142
    %v4151 = vmul.f32 %v4080, %v4143
    %v4152 = vmul.f32 %v4081, %v4144
    %v4153 = vmul.f32 %v4082, %v4145
    %v4154 = vadd.f32 %v4146, %v4147
    %v4155 = vadd.f32 %v4154, %v4148
    %v4156 = vadd.f32 %v4155, %v4149
    %v4157 = vadd.f32 %v4156, %v4150
    %v4158 = vadd.f32 %v4157, %v4151
    %v4159 = vadd.f32 %v4158, %v4152
    %v4160 = vadd.f32 %v4159, %v4153
    %4161 = vadd.xlane.f32.xlu0 %v4160
    %v4162 = vpop.xlane.xlu0 %4161
    %v4163 = vadd.f32 %v4037, %v4162
    %s4164 = scalar_lea.vmem [#allocation7], 704
    %v4165 = vld [vmem:[%s4164] sm:$0xff]
    %v4166 = vld [vmem:[%s4164 + $0x8] sm:$0xff]
    %v4167 = vld [vmem:[%s4164 + $0x10] sm:$0xff]
    %v4168 = vld [vmem:[%s4164 + $0x18] sm:$0xff]
    %v4169 = vld [vmem:[%s4164 + $0x20] sm:$0xff]
    %v4170 = vld [vmem:[%s4164 + $0x28] sm:$0xff]
    %v4171 = vld [vmem:[%s4164 + $0x30] sm:$0xff]
    %v4172 = vld [vmem:[%s4164 + $0x38] sm:$0xff]
    %v4173 = vmul.f32 %v4075, %v4165
    %v4174 = vmul.f32 %v4076, %v4166
    %v4175 = vmul.f32 %v4077, %v4167
    %v4176 = vmul.f32 %v4078, %v4168
    %v4177 = vmul.f32 %v4079, %v4169
    %v4178 = vmul.f32 %v4080, %v4170
    %v4179 = vmul.f32 %v4081, %v4171
    %v4180 = vmul.f32 %v4082, %v4172
    %v4181 = vadd.f32 %v4173, %v4174
    %v4182 = vadd.f32 %v4181, %v4175
    %v4183 = vadd.f32 %v4182, %v4176
    %v4184 = vadd.f32 %v4183, %v4177
    %v4185 = vadd.f32 %v4184, %v4178
    %v4186 = vadd.f32 %v4185, %v4179
    %v4187 = vadd.f32 %v4186, %v4180
    %4188 = vadd.xlane.f32.xlu0 %v4187
    %v4189 = vpop.xlane.xlu0 %4188
    %v4190 = vadd.f32 %v4064, %v4189
    %s4191 = sld [smem:[#allocation5 + $0x3]]
    %v4192 = vstv %s4191
    %v4193 = vadd.f32 %v3806, %v4192
    %v4194 = vadd.f32 %v3807, %v4192
    %v4195 = vadd.f32 %v3808, %v4192
    %v4196 = vadd.f32 %v3809, %v4192
    %v4197 = vadd.f32 %v3810, %v4192
    %v4198 = vadd.f32 %v3811, %v4192
    %v4199 = vadd.f32 %v3812, %v4192
    %v4200 = vadd.f32 %v3813, %v4192
    %v4201 = vmax.f32 %v4193, 0.0
    %v4202 = vmax.f32 %v4194, 0.0
    %v4203 = vmax.f32 %v4195, 0.0
    %v4204 = vmax.f32 %v4196, 0.0
    %v4205 = vmax.f32 %v4197, 0.0
    %v4206 = vmax.f32 %v4198, 0.0
    %v4207 = vmax.f32 %v4199, 0.0
    %v4208 = vmax.f32 %v4200, 0.0
    %s4209 = scalar_lea.vmem [#allocation7], 768
    %v4210 = vld [vmem:[%s4209] sm:$0xff]
    %v4211 = vld [vmem:[%s4209 + $0x8] sm:$0xff]
    %v4212 = vld [vmem:[%s4209 + $0x10] sm:$0xff]
    %v4213 = vld [vmem:[%s4209 + $0x18] sm:$0xff]
    %v4214 = vld [vmem:[%s4209 + $0x20] sm:$0xff]
    %v4215 = vld [vmem:[%s4209 + $0x28] sm:$0xff]
    %v4216 = vld [vmem:[%s4209 + $0x30] sm:$0xff]
    %v4217 = vld [vmem:[%s4209 + $0x38] sm:$0xff]
    %v4218 = vmul.f32 %v4201, %v4210
    %v4219 = vmul.f32 %v4202, %v4211
    %v4220 = vmul.f32 %v4203, %v4212
    %v4221 = vmul.f32 %v4204, %v4213
    %v4222 = vmul.f32 %v4205, %v4214
    %v4223 = vmul.f32 %v4206, %v4215
    %v4224 = vmul.f32 %v4207, %v4216
    %v4225 = vmul.f32 %v4208, %v4217
    %v4226 = vadd.f32 %v4218, %v4219
    %v4227 = vadd.f32 %v4226, %v4220
    %v4228 = vadd.f32 %v4227, %v4221
    %v4229 = vadd.f32 %v4228, %v4222
    %v4230 = vadd.f32 %v4229, %v4223
    %v4231 = vadd.f32 %v4230, %v4224
    %v4232 = vadd.f32 %v4231, %v4225
    %4233 = vadd.xlane.f32.xlu0 %v4232
    %v4234 = vpop.xlane.xlu0 %4233
    %v4235 = vadd.f32 %v4109, %v4234
    %s4236 = scalar_lea.vmem [#allocation7], 832
    %v4237 = vld [vmem:[%s4236] sm:$0xff]
    %v4238 = vld [vmem:[%s4236 + $0x8] sm:$0xff]
    %v4239 = vld [vmem:[%s4236 + $0x10] sm:$0xff]
    %v4240 = vld [vmem:[%s4236 + $0x18] sm:$0xff]
    %v4241 = vld [vmem:[%s4236 + $0x20] sm:$0xff]
    %v4242 = vld [vmem:[%s4236 + $0x28] sm:$0xff]
    %v4243 = vld [vmem:[%s4236 + $0x30] sm:$0xff]
    %v4244 = vld [vmem:[%s4236 + $0x38] sm:$0xff]
    %v4245 = vmul.f32 %v4201, %v4237
    %v4246 = vmul.f32 %v4202, %v4238
    %v4247 = vmul.f32 %v4203, %v4239
    %v4248 = vmul.f32 %v4204, %v4240
    %v4249 = vmul.f32 %v4205, %v4241
    %v4250 = vmul.f32 %v4206, %v4242
    %v4251 = vmul.f32 %v4207, %v4243
    %v4252 = vmul.f32 %v4208, %v4244
    %v4253 = vadd.f32 %v4245, %v4246
    %v4254 = vadd.f32 %v4253, %v4247
    %v4255 = vadd.f32 %v4254, %v4248
    %v4256 = vadd.f32 %v4255, %v4249
    %v4257 = vadd.f32 %v4256, %v4250
    %v4258 = vadd.f32 %v4257, %v4251
    %v4259 = vadd.f32 %v4258, %v4252
    %4260 = vadd.xlane.f32.xlu0 %v4259
    %v4261 = vpop.xlane.xlu0 %4260
    %v4262 = vadd.f32 %v4136, %v4261
    %s4263 = scalar_lea.vmem [#allocation7], 896
    %v4264 = vld [vmem:[%s4263] sm:$0xff]
    %v4265 = vld [vmem:[%s4263 + $0x8] sm:$0xff]
    %v4266 = vld [vmem:[%s4263 + $0x10] sm:$0xff]
    %v4267 = vld [vmem:[%s4263 + $0x18] sm:$0xff]
    %v4268 = vld [vmem:[%s4263 + $0x20] sm:$0xff]
    %v4269 = vld [vmem:[%s4263 + $0x28] sm:$0xff]
    %v4270 = vld [vmem:[%s4263 + $0x30] sm:$0xff]
    %v4271 = vld [vmem:[%s4263 + $0x38] sm:$0xff]
    %v4272 = vmul.f32 %v4201, %v4264
    %v4273 = vmul.f32 %v4202, %v4265
    %v4274 = vmul.f32 %v4203, %v4266
    %v4275 = vmul.f32 %v4204, %v4267
    %v4276 = vmul.f32 %v4205, %v4268
    %v4277 = vmul.f32 %v4206, %v4269
    %v4278 = vmul.f32 %v4207, %v4270
    %v4279 = vmul.f32 %v4208, %v4271
    %v4280 = vadd.f32 %v4272, %v4273
    %v4281 = vadd.f32 %v4280, %v4274
    %v4282 = vadd.f32 %v4281, %v4275
    %v4283 = vadd.f32 %v4282, %v4276
    %v4284 = vadd.f32 %v4283, %v4277
    %v4285 = vadd.f32 %v4284, %v4278
    %v4286 = vadd.f32 %v4285, %v4279
    %4287 = vadd.xlane.f32.xlu0 %v4286
    %v4288 = vpop.xlane.xlu0 %4287
    %v4289 = vadd.f32 %v4163, %v4288
    %s4290 = scalar_lea.vmem [#allocation7], 960
    %v4291 = vld [vmem:[%s4290] sm:$0xff]
    %v4292 = vld [vmem:[%s4290 + $0x8] sm:$0xff]
    %v4293 = vld [vmem:[%s4290 + $0x10] sm:$0xff]
    %v4294 = vld [vmem:[%s4290 + $0x18] sm:$0xff]
    %v4295 = vld [vmem:[%s4290 + $0x20] sm:$0xff]
    %v4296 = vld [vmem:[%s4290 + $0x28] sm:$0xff]
    %v4297 = vld [vmem:[%s4290 + $0x30] sm:$0xff]
    %v4298 = vld [vmem:[%s4290 + $0x38] sm:$0xff]
    %v4299 = vmul.f32 %v4201, %v4291
    %v4300 = vmul.f32 %v4202, %v4292
    %v4301 = vmul.f32 %v4203, %v4293
    %v4302 = vmul.f32 %v4204, %v4294
    %v4303 = vmul.f32 %v4205, %v4295
    %v4304 = vmul.f32 %v4206, %v4296
    %v4305 = vmul.f32 %v4207, %v4297
    %v4306 = vmul.f32 %v4208, %v4298
    %v4307 = vadd.f32 %v4299, %v4300
    %v4308 = vadd.f32 %v4307, %v4301
    %v4309 = vadd.f32 %v4308, %v4302
    %v4310 = vadd.f32 %v4309, %v4303
    %v4311 = vadd.f32 %v4310, %v4304
    %v4312 = vadd.f32 %v4311, %v4305
    %v4313 = vadd.f32 %v4312, %v4306
    %4314 = vadd.xlane.f32.xlu0 %v4313
    %v4315 = vpop.xlane.xlu0 %4314
    %v4316 = vadd.f32 %v4190, %v4315
    %s4317 = sld [smem:[#allocation2 + $0x90]]
    %v4318 = vstv %s4317
    %v4319 = vmul.f32 %v4318, %v119
    %v4320 = vmul.f32 %v4318, %v120
    %v4321 = vmul.f32 %v4318, %v121
    %v4322 = vmul.f32 %v4318, %v122
    %v4323 = vmul.f32 %v4318, %v123
    %v4324 = vmul.f32 %v4318, %v124
    %v4325 = vmul.f32 %v4318, %v125
    %v4326 = vmul.f32 %v4318, %v126
    %v4327 = vadd.f32 %v4319, 0.0
    %v4328 = vadd.f32 %v4320, 0.0
    %v4329 = vadd.f32 %v4321, 0.0
    %v4330 = vadd.f32 %v4322, 0.0
    %v4331 = vadd.f32 %v4323, 0.0
    %v4332 = vadd.f32 %v4324, 0.0
    %v4333 = vadd.f32 %v4325, 0.0
    %v4334 = vadd.f32 %v4326, 0.0
    %s4335 = sld [smem:[#allocation2 + $0xb4]]
    %v4336 = vstv %s4335
    %v4337 = vmul.f32 %v4336, %v119
    %v4338 = vmul.f32 %v4336, %v120
    %v4339 = vmul.f32 %v4336, %v121
    %v4340 = vmul.f32 %v4336, %v122
    %v4341 = vmul.f32 %v4336, %v123
    %v4342 = vmul.f32 %v4336, %v124
    %v4343 = vmul.f32 %v4336, %v125
    %v4344 = vmul.f32 %v4336, %v126
    %v4345 = vadd.f32 %v4337, 0.0
    %v4346 = vadd.f32 %v4338, 0.0
    %v4347 = vadd.f32 %v4339, 0.0
    %v4348 = vadd.f32 %v4340, 0.0
    %v4349 = vadd.f32 %v4341, 0.0
    %v4350 = vadd.f32 %v4342, 0.0
    %v4351 = vadd.f32 %v4343, 0.0
    %v4352 = vadd.f32 %v4344, 0.0
    %s4353 = sld [smem:[#allocation2 + $0xd8]]
    %v4354 = vstv %s4353
    %v4355 = vmul.f32 %v4354, %v119
    %v4356 = vmul.f32 %v4354, %v120
    %v4357 = vmul.f32 %v4354, %v121
    %v4358 = vmul.f32 %v4354, %v122
    %v4359 = vmul.f32 %v4354, %v123
    %v4360 = vmul.f32 %v4354, %v124
    %v4361 = vmul.f32 %v4354, %v125
    %v4362 = vmul.f32 %v4354, %v126
    %v4363 = vadd.f32 %v4355, 0.0
    %v4364 = vadd.f32 %v4356, 0.0
    %v4365 = vadd.f32 %v4357, 0.0
    %v4366 = vadd.f32 %v4358, 0.0
    %v4367 = vadd.f32 %v4359, 0.0
    %v4368 = vadd.f32 %v4360, 0.0
    %v4369 = vadd.f32 %v4361, 0.0
    %v4370 = vadd.f32 %v4362, 0.0
    %s4371 = sld [smem:[#allocation2 + $0xfc]]
    %v4372 = vstv %s4371
    %v4373 = vmul.f32 %v4372, %v119
    %v4374 = vmul.f32 %v4372, %v120
    %v4375 = vmul.f32 %v4372, %v121
    %v4376 = vmul.f32 %v4372, %v122
    %v4377 = vmul.f32 %v4372, %v123
    %v4378 = vmul.f32 %v4372, %v124
    %v4379 = vmul.f32 %v4372, %v125
    %v4380 = vmul.f32 %v4372, %v126
    %v4381 = vadd.f32 %v4373, 0.0
    %v4382 = vadd.f32 %v4374, 0.0
    %v4383 = vadd.f32 %v4375, 0.0
    %v4384 = vadd.f32 %v4376, 0.0
    %v4385 = vadd.f32 %v4377, 0.0
    %v4386 = vadd.f32 %v4378, 0.0
    %v4387 = vadd.f32 %v4379, 0.0
    %v4388 = vadd.f32 %v4380, 0.0
    %s4389 = sld [smem:[#allocation2 + $0x91]]
    %v4390 = vstv %s4389
    %v4391 = vmul.f32 %v4390, %v233
    %v4392 = vmul.f32 %v4390, %v234
    %v4393 = vmul.f32 %v4390, %v235
    %v4394 = vmul.f32 %v4390, %v236
    %v4395 = vmul.f32 %v4390, %v237
    %v4396 = vmul.f32 %v4390, %v238
    %v4397 = vmul.f32 %v4390, %v239
    %v4398 = vmul.f32 %v4390, %v240
    %v4399 = vadd.f32 %v4327, %v4391
    %v4400 = vadd.f32 %v4328, %v4392
    %v4401 = vadd.f32 %v4329, %v4393
    %v4402 = vadd.f32 %v4330, %v4394
    %v4403 = vadd.f32 %v4331, %v4395
    %v4404 = vadd.f32 %v4332, %v4396
    %v4405 = vadd.f32 %v4333, %v4397
    %v4406 = vadd.f32 %v4334, %v4398
    %s4407 = sld [smem:[#allocation2 + $0xb5]]
    %v4408 = vstv %s4407
    %v4409 = vmul.f32 %v4408, %v233
    %v4410 = vmul.f32 %v4408, %v234
    %v4411 = vmul.f32 %v4408, %v235
    %v4412 = vmul.f32 %v4408, %v236
    %v4413 = vmul.f32 %v4408, %v237
    %v4414 = vmul.f32 %v4408, %v238
    %v4415 = vmul.f32 %v4408, %v239
    %v4416 = vmul.f32 %v4408, %v240
    %v4417 = vadd.f32 %v4345, %v4409
    %v4418 = vadd.f32 %v4346, %v4410
    %v4419 = vadd.f32 %v4347, %v4411
    %v4420 = vadd.f32 %v4348, %v4412
    %v4421 = vadd.f32 %v4349, %v4413
    %v4422 = vadd.f32 %v4350, %v4414
    %v4423 = vadd.f32 %v4351, %v4415
    %v4424 = vadd.f32 %v4352, %v4416
    %s4425 = sld [smem:[#allocation2 + $0xd9]]
    %v4426 = vstv %s4425
    %v4427 = vmul.f32 %v4426, %v233
    %v4428 = vmul.f32 %v4426, %v234
    %v4429 = vmul.f32 %v4426, %v235
    %v4430 = vmul.f32 %v4426, %v236
    %v4431 = vmul.f32 %v4426, %v237
    %v4432 = vmul.f32 %v4426, %v238
    %v4433 = vmul.f32 %v4426, %v239
    %v4434 = vmul.f32 %v4426, %v240
    %v4435 = vadd.f32 %v4363, %v4427
    %v4436 = vadd.f32 %v4364, %v4428
    %v4437 = vadd.f32 %v4365, %v4429
    %v4438 = vadd.f32 %v4366, %v4430
    %v4439 = vadd.f32 %v4367, %v4431
    %v4440 = vadd.f32 %v4368, %v4432
    %v4441 = vadd.f32 %v4369, %v4433
    %v4442 = vadd.f32 %v4370, %v4434
    %s4443 = sld [smem:[#allocation2 + $0xfd]]
    %v4444 = vstv %s4443
    %v4445 = vmul.f32 %v4444, %v233
    %v4446 = vmul.f32 %v4444, %v234
    %v4447 = vmul.f32 %v4444, %v235
    %v4448 = vmul.f32 %v4444, %v236
    %v4449 = vmul.f32 %v4444, %v237
    %v4450 = vmul.f32 %v4444, %v238
    %v4451 = vmul.f32 %v4444, %v239
    %v4452 = vmul.f32 %v4444, %v240
    %v4453 = vadd.f32 %v4381, %v4445
    %v4454 = vadd.f32 %v4382, %v4446
    %v4455 = vadd.f32 %v4383, %v4447
    %v4456 = vadd.f32 %v4384, %v4448
    %v4457 = vadd.f32 %v4385, %v4449
    %v4458 = vadd.f32 %v4386, %v4450
    %v4459 = vadd.f32 %v4387, %v4451
    %v4460 = vadd.f32 %v4388, %v4452
    %s4461 = sld [smem:[#allocation2 + $0x92]]
    %v4462 = vstv %s4461
    %v4463 = vmul.f32 %v4462, %v347
    %v4464 = vmul.f32 %v4462, %v348
    %v4465 = vmul.f32 %v4462, %v349
    %v4466 = vmul.f32 %v4462, %v350
    %v4467 = vmul.f32 %v4462, %v351
    %v4468 = vmul.f32 %v4462, %v352
    %v4469 = vmul.f32 %v4462, %v353
    %v4470 = vmul.f32 %v4462, %v354
    %v4471 = vadd.f32 %v4399, %v4463
    %v4472 = vadd.f32 %v4400, %v4464
    %v4473 = vadd.f32 %v4401, %v4465
    %v4474 = vadd.f32 %v4402, %v4466
    %v4475 = vadd.f32 %v4403, %v4467
    %v4476 = vadd.f32 %v4404, %v4468
    %v4477 = vadd.f32 %v4405, %v4469
    %v4478 = vadd.f32 %v4406, %v4470
    %s4479 = sld [smem:[#allocation2 + $0xb6]]
    %v4480 = vstv %s4479
    %v4481 = vmul.f32 %v4480, %v347
    %v4482 = vmul.f32 %v4480, %v348
    %v4483 = vmul.f32 %v4480, %v349
    %v4484 = vmul.f32 %v4480, %v350
    %v4485 = vmul.f32 %v4480, %v351
    %v4486 = vmul.f32 %v4480, %v352
    %v4487 = vmul.f32 %v4480, %v353
    %v4488 = vmul.f32 %v4480, %v354
    %v4489 = vadd.f32 %v4417, %v4481
    %v4490 = vadd.f32 %v4418, %v4482
    %v4491 = vadd.f32 %v4419, %v4483
    %v4492 = vadd.f32 %v4420, %v4484
    %v4493 = vadd.f32 %v4421, %v4485
    %v4494 = vadd.f32 %v4422, %v4486
    %v4495 = vadd.f32 %v4423, %v4487
    %v4496 = vadd.f32 %v4424, %v4488
    %s4497 = sld [smem:[#allocation2 + $0xda]]
    %v4498 = vstv %s4497
    %v4499 = vmul.f32 %v4498, %v347
    %v4500 = vmul.f32 %v4498, %v348
    %v4501 = vmul.f32 %v4498, %v349
    %v4502 = vmul.f32 %v4498, %v350
    %v4503 = vmul.f32 %v4498, %v351
    %v4504 = vmul.f32 %v4498, %v352
    %v4505 = vmul.f32 %v4498, %v353
    %v4506 = vmul.f32 %v4498, %v354
    %v4507 = vadd.f32 %v4435, %v4499
    %v4508 = vadd.f32 %v4436, %v4500
    %v4509 = vadd.f32 %v4437, %v4501
    %v4510 = vadd.f32 %v4438, %v4502
    %v4511 = vadd.f32 %v4439, %v4503
    %v4512 = vadd.f32 %v4440, %v4504
    %v4513 = vadd.f32 %v4441, %v4505
    %v4514 = vadd.f32 %v4442, %v4506
    %s4515 = sld [smem:[#allocation2 + $0xfe]]
    %v4516 = vstv %s4515
    %v4517 = vmul.f32 %v4516, %v347
    %v4518 = vmul.f32 %v4516, %v348
    %v4519 = vmul.f32 %v4516, %v349
    %v4520 = vmul.f32 %v4516, %v350
    %v4521 = vmul.f32 %v4516, %v351
    %v4522 = vmul.f32 %v4516, %v352
    %v4523 = vmul.f32 %v4516, %v353
    %v4524 = vmul.f32 %v4516, %v354
    %v4525 = vadd.f32 %v4453, %v4517
    %v4526 = vadd.f32 %v4454, %v4518
    %v4527 = vadd.f32 %v4455, %v4519
    %v4528 = vadd.f32 %v4456, %v4520
    %v4529 = vadd.f32 %v4457, %v4521
    %v4530 = vadd.f32 %v4458, %v4522
    %v4531 = vadd.f32 %v4459, %v4523
    %v4532 = vadd.f32 %v4460, %v4524
    %s4533 = sld [smem:[#allocation2 + $0x93]]
    %v4534 = vstv %s4533
    %v4535 = vmul.f32 %v4534, %v461
    %v4536 = vmul.f32 %v4534, %v462
    %v4537 = vmul.f32 %v4534, %v463
    %v4538 = vmul.f32 %v4534, %v464
    %v4539 = vmul.f32 %v4534, %v465
    %v4540 = vmul.f32 %v4534, %v466
    %v4541 = vmul.f32 %v4534, %v467
    %v4542 = vmul.f32 %v4534, %v468
    %v4543 = vadd.f32 %v4471, %v4535
    %v4544 = vadd.f32 %v4472, %v4536
    %v4545 = vadd.f32 %v4473, %v4537
    %v4546 = vadd.f32 %v4474, %v4538
    %v4547 = vadd.f32 %v4475, %v4539
    %v4548 = vadd.f32 %v4476, %v4540
    %v4549 = vadd.f32 %v4477, %v4541
    %v4550 = vadd.f32 %v4478, %v4542
    %s4551 = sld [smem:[#allocation2 + $0xb7]]
    %v4552 = vstv %s4551
    %v4553 = vmul.f32 %v4552, %v461
    %v4554 = vmul.f32 %v4552, %v462
    %v4555 = vmul.f32 %v4552, %v463
    %v4556 = vmul.f32 %v4552, %v464
    %v4557 = vmul.f32 %v4552, %v465
    %v4558 = vmul.f32 %v4552, %v466
    %v4559 = vmul.f32 %v4552, %v467
    %v4560 = vmul.f32 %v4552, %v468
    %v4561 = vadd.f32 %v4489, %v4553
    %v4562 = vadd.f32 %v4490, %v4554
    %v4563 = vadd.f32 %v4491, %v4555
    %v4564 = vadd.f32 %v4492, %v4556
    %v4565 = vadd.f32 %v4493, %v4557
    %v4566 = vadd.f32 %v4494, %v4558
    %v4567 = vadd.f32 %v4495, %v4559
    %v4568 = vadd.f32 %v4496, %v4560
    %s4569 = sld [smem:[#allocation2 + $0xdb]]
    %v4570 = vstv %s4569
    %v4571 = vmul.f32 %v4570, %v461
    %v4572 = vmul.f32 %v4570, %v462
    %v4573 = vmul.f32 %v4570, %v463
    %v4574 = vmul.f32 %v4570, %v464
    %v4575 = vmul.f32 %v4570, %v465
    %v4576 = vmul.f32 %v4570, %v466
    %v4577 = vmul.f32 %v4570, %v467
    %v4578 = vmul.f32 %v4570, %v468
    %v4579 = vadd.f32 %v4507, %v4571
    %v4580 = vadd.f32 %v4508, %v4572
    %v4581 = vadd.f32 %v4509, %v4573
    %v4582 = vadd.f32 %v4510, %v4574
    %v4583 = vadd.f32 %v4511, %v4575
    %v4584 = vadd.f32 %v4512, %v4576
    %v4585 = vadd.f32 %v4513, %v4577
    %v4586 = vadd.f32 %v4514, %v4578
    %s4587 = sld [smem:[#allocation2 + $0xff]]
    %v4588 = vstv %s4587
    %v4589 = vmul.f32 %v4588, %v461
    %v4590 = vmul.f32 %v4588, %v462
    %v4591 = vmul.f32 %v4588, %v463
    %v4592 = vmul.f32 %v4588, %v464
    %v4593 = vmul.f32 %v4588, %v465
    %v4594 = vmul.f32 %v4588, %v466
    %v4595 = vmul.f32 %v4588, %v467
    %v4596 = vmul.f32 %v4588, %v468
    %v4597 = vadd.f32 %v4525, %v4589
    %v4598 = vadd.f32 %v4526, %v4590
    %v4599 = vadd.f32 %v4527, %v4591
    %v4600 = vadd.f32 %v4528, %v4592
    %v4601 = vadd.f32 %v4529, %v4593
    %v4602 = vadd.f32 %v4530, %v4594
    %v4603 = vadd.f32 %v4531, %v4595
    %v4604 = vadd.f32 %v4532, %v4596
    %s4605 = sld [smem:[#allocation2 + $0x94]]
    %v4606 = vstv %s4605
    %v4607 = vmul.f32 %v4606, %v76
    %v4608 = vmul.f32 %v4606, %v77
    %v4609 = vmul.f32 %v4606, %v78
    %v4610 = vmul.f32 %v4606, %v79
    %v4611 = vmul.f32 %v4606, %v80
    %v4612 = vmul.f32 %v4606, %v81
    %v4613 = vmul.f32 %v4606, %v82
    %v4614 = vmul.f32 %v4606, %v83
    %v4615 = vadd.f32 %v4543, %v4607
    %v4616 = vadd.f32 %v4544, %v4608
    %v4617 = vadd.f32 %v4545, %v4609
    %v4618 = vadd.f32 %v4546, %v4610
    %v4619 = vadd.f32 %v4547, %v4611
    %v4620 = vadd.f32 %v4548, %v4612
    %v4621 = vadd.f32 %v4549, %v4613
    %v4622 = vadd.f32 %v4550, %v4614
    %s4623 = sld [smem:[#allocation2 + $0xb8]]
    %v4624 = vstv %s4623
    %v4625 = vmul.f32 %v4624, %v76
    %v4626 = vmul.f32 %v4624, %v77
    %v4627 = vmul.f32 %v4624, %v78
    %v4628 = vmul.f32 %v4624, %v79
    %v4629 = vmul.f32 %v4624, %v80
    %v4630 = vmul.f32 %v4624, %v81
    %v4631 = vmul.f32 %v4624, %v82
    %v4632 = vmul.f32 %v4624, %v83
    %v4633 = vadd.f32 %v4561, %v4625
    %v4634 = vadd.f32 %v4562, %v4626
    %v4635 = vadd.f32 %v4563, %v4627
    %v4636 = vadd.f32 %v4564, %v4628
    %v4637 = vadd.f32 %v4565, %v4629
    %v4638 = vadd.f32 %v4566, %v4630
    %v4639 = vadd.f32 %v4567, %v4631
    %v4640 = vadd.f32 %v4568, %v4632
    %s4641 = sld [smem:[#allocation2 + $0xdc]]
    %v4642 = vstv %s4641
    %v4643 = vmul.f32 %v4642, %v76
    %v4644 = vmul.f32 %v4642, %v77
    %v4645 = vmul.f32 %v4642, %v78
    %v4646 = vmul.f32 %v4642, %v79
    %v4647 = vmul.f32 %v4642, %v80
    %v4648 = vmul.f32 %v4642, %v81
    %v4649 = vmul.f32 %v4642, %v82
    %v4650 = vmul.f32 %v4642, %v83
    %v4651 = vadd.f32 %v4579, %v4643
    %v4652 = vadd.f32 %v4580, %v4644
    %v4653 = vadd.f32 %v4581, %v4645
    %v4654 = vadd.f32 %v4582, %v4646
    %v4655 = vadd.f32 %v4583, %v4647
    %v4656 = vadd.f32 %v4584, %v4648
    %v4657 = vadd.f32 %v4585, %v4649
    %v4658 = vadd.f32 %v4586, %v4650
    %s4659 = sld [smem:[#allocation2 + $0x100]]
    %v4660 = vstv %s4659
    %v4661 = vmul.f32 %v4660, %v76
    %v4662 = vmul.f32 %v4660, %v77
    %v4663 = vmul.f32 %v4660, %v78
    %v4664 = vmul.f32 %v4660, %v79
    %v4665 = vmul.f32 %v4660, %v80
    %v4666 = vmul.f32 %v4660, %v81
    %v4667 = vmul.f32 %v4660, %v82
    %v4668 = vmul.f32 %v4660, %v83
    %v4669 = vadd.f32 %v4597, %v4661
    %v4670 = vadd.f32 %v4598, %v4662
    %v4671 = vadd.f32 %v4599, %v4663
    %v4672 = vadd.f32 %v4600, %v4664
    %v4673 = vadd.f32 %v4601, %v4665
    %v4674 = vadd.f32 %v4602, %v4666
    %v4675 = vadd.f32 %v4603, %v4667
    %v4676 = vadd.f32 %v4604, %v4668
    %s4677 = sld [smem:[#allocation2 + $0x95]]
    %v4678 = vstv %s4677
    %v4679 = vmul.f32 %v4678, %v647
    %v4680 = vmul.f32 %v4678, %v648
    %v4681 = vmul.f32 %v4678, %v649
    %v4682 = vmul.f32 %v4678, %v650
    %v4683 = vmul.f32 %v4678, %v651
    %v4684 = vmul.f32 %v4678, %v652
    %v4685 = vmul.f32 %v4678, %v653
    %v4686 = vmul.f32 %v4678, %v654
    %v4687 = vadd.f32 %v4615, %v4679
    %v4688 = vadd.f32 %v4616, %v4680
    %v4689 = vadd.f32 %v4617, %v4681
    %v4690 = vadd.f32 %v4618, %v4682
    %v4691 = vadd.f32 %v4619, %v4683
    %v4692 = vadd.f32 %v4620, %v4684
    %v4693 = vadd.f32 %v4621, %v4685
    %v4694 = vadd.f32 %v4622, %v4686
    %s4695 = sld [smem:[#allocation2 + $0xb9]]
    %v4696 = vstv %s4695
    %v4697 = vmul.f32 %v4696, %v647
    %v4698 = vmul.f32 %v4696, %v648
    %v4699 = vmul.f32 %v4696, %v649
    %v4700 = vmul.f32 %v4696, %v650
    %v4701 = vmul.f32 %v4696, %v651
    %v4702 = vmul.f32 %v4696, %v652
    %v4703 = vmul.f32 %v4696, %v653
    %v4704 = vmul.f32 %v4696, %v654
    %v4705 = vadd.f32 %v4633, %v4697
    %v4706 = vadd.f32 %v4634, %v4698
    %v4707 = vadd.f32 %v4635, %v4699
    %v4708 = vadd.f32 %v4636, %v4700
    %v4709 = vadd.f32 %v4637, %v4701
    %v4710 = vadd.f32 %v4638, %v4702
    %v4711 = vadd.f32 %v4639, %v4703
    %v4712 = vadd.f32 %v4640, %v4704
    %s4713 = sld [smem:[#allocation2 + $0xdd]]
    %v4714 = vstv %s4713
    %v4715 = vmul.f32 %v4714, %v647
    %v4716 = vmul.f32 %v4714, %v648
    %v4717 = vmul.f32 %v4714, %v649
    %v4718 = vmul.f32 %v4714, %v650
    %v4719 = vmul.f32 %v4714, %v651
    %v4720 = vmul.f32 %v4714, %v652
    %v4721 = vmul.f32 %v4714, %v653
    %v4722 = vmul.f32 %v4714, %v654
    %v4723 = vadd.f32 %v4651, %v4715
    %v4724 = vadd.f32 %v4652, %v4716
    %v4725 = vadd.f32 %v4653, %v4717
    %v4726 = vadd.f32 %v4654, %v4718
    %v4727 = vadd.f32 %v4655, %v4719
    %v4728 = vadd.f32 %v4656, %v4720
    %v4729 = vadd.f32 %v4657, %v4721
    %v4730 = vadd.f32 %v4658, %v4722
    %s4731 = sld [smem:[#allocation2 + $0x101]]
    %v4732 = vstv %s4731
    %v4733 = vmul.f32 %v4732, %v647
    %v4734 = vmul.f32 %v4732, %v648
    %v4735 = vmul.f32 %v4732, %v649
    %v4736 = vmul.f32 %v4732, %v650
    %v4737 = vmul.f32 %v4732, %v651
    %v4738 = vmul.f32 %v4732, %v652
    %v4739 = vmul.f32 %v4732, %v653
    %v4740 = vmul.f32 %v4732, %v654
    %v4741 = vadd.f32 %v4669, %v4733
    %v4742 = vadd.f32 %v4670, %v4734
    %v4743 = vadd.f32 %v4671, %v4735
    %v4744 = vadd.f32 %v4672, %v4736
    %v4745 = vadd.f32 %v4673, %v4737
    %v4746 = vadd.f32 %v4674, %v4738
    %v4747 = vadd.f32 %v4675, %v4739
    %v4748 = vadd.f32 %v4676, %v4740
    %s4749 = sld [smem:[#allocation2 + $0x96]]
    %v4750 = vstv %s4749
    %v4751 = vmul.f32 %v4750, %v761
    %v4752 = vmul.f32 %v4750, %v762
    %v4753 = vmul.f32 %v4750, %v763
    %v4754 = vmul.f32 %v4750, %v764
    %v4755 = vmul.f32 %v4750, %v765
    %v4756 = vmul.f32 %v4750, %v766
    %v4757 = vmul.f32 %v4750, %v767
    %v4758 = vmul.f32 %v4750, %v768
    %v4759 = vadd.f32 %v4687, %v4751
    %v4760 = vadd.f32 %v4688, %v4752
    %v4761 = vadd.f32 %v4689, %v4753
    %v4762 = vadd.f32 %v4690, %v4754
    %v4763 = vadd.f32 %v4691, %v4755
    %v4764 = vadd.f32 %v4692, %v4756
    %v4765 = vadd.f32 %v4693, %v4757
    %v4766 = vadd.f32 %v4694, %v4758
    %s4767 = sld [smem:[#allocation2 + $0xba]]
    %v4768 = vstv %s4767
    %v4769 = vmul.f32 %v4768, %v761
    %v4770 = vmul.f32 %v4768, %v762
    %v4771 = vmul.f32 %v4768, %v763
    %v4772 = vmul.f32 %v4768, %v764
    %v4773 = vmul.f32 %v4768, %v765
    %v4774 = vmul.f32 %v4768, %v766
    %v4775 = vmul.f32 %v4768, %v767
    %v4776 = vmul.f32 %v4768, %v768
    %v4777 = vadd.f32 %v4705, %v4769
    %v4778 = vadd.f32 %v4706, %v4770
    %v4779 = vadd.f32 %v4707, %v4771
    %v4780 = vadd.f32 %v4708, %v4772
    %v4781 = vadd.f32 %v4709, %v4773
    %v4782 = vadd.f32 %v4710, %v4774
    %v4783 = vadd.f32 %v4711, %v4775
    %v4784 = vadd.f32 %v4712, %v4776
    %s4785 = sld [smem:[#allocation2 + $0xde]]
    %v4786 = vstv %s4785
    %v4787 = vmul.f32 %v4786, %v761
    %v4788 = vmul.f32 %v4786, %v762
    %v4789 = vmul.f32 %v4786, %v763
    %v4790 = vmul.f32 %v4786, %v764
    %v4791 = vmul.f32 %v4786, %v765
    %v4792 = vmul.f32 %v4786, %v766
    %v4793 = vmul.f32 %v4786, %v767
    %v4794 = vmul.f32 %v4786, %v768
    %v4795 = vadd.f32 %v4723, %v4787
    %v4796 = vadd.f32 %v4724, %v4788
    %v4797 = vadd.f32 %v4725, %v4789
    %v4798 = vadd.f32 %v4726, %v4790
    %v4799 = vadd.f32 %v4727, %v4791
    %v4800 = vadd.f32 %v4728, %v4792
    %v4801 = vadd.f32 %v4729, %v4793
    %v4802 = vadd.f32 %v4730, %v4794
    %s4803 = sld [smem:[#allocation2 + $0x102]]
    %v4804 = vstv %s4803
    %v4805 = vmul.f32 %v4804, %v761
    %v4806 = vmul.f32 %v4804, %v762
    %v4807 = vmul.f32 %v4804, %v763
    %v4808 = vmul.f32 %v4804, %v764
    %v4809 = vmul.f32 %v4804, %v765
    %v4810 = vmul.f32 %v4804, %v766
    %v4811 = vmul.f32 %v4804, %v767
    %v4812 = vmul.f32 %v4804, %v768
    %v4813 = vadd.f32 %v4741, %v4805
    %v4814 = vadd.f32 %v4742, %v4806
    %v4815 = vadd.f32 %v4743, %v4807
    %v4816 = vadd.f32 %v4744, %v4808
    %v4817 = vadd.f32 %v4745, %v4809
    %v4818 = vadd.f32 %v4746, %v4810
    %v4819 = vadd.f32 %v4747, %v4811
    %v4820 = vadd.f32 %v4748, %v4812
    %s4821 = sld [smem:[#allocation2 + $0x97]]
    %v4822 = vstv %s4821
    %v4823 = vmul.f32 %v4822, %v875
    %v4824 = vmul.f32 %v4822, %v876
    %v4825 = vmul.f32 %v4822, %v877
    %v4826 = vmul.f32 %v4822, %v878
    %v4827 = vmul.f32 %v4822, %v879
    %v4828 = vmul.f32 %v4822, %v880
    %v4829 = vmul.f32 %v4822, %v881
    %v4830 = vmul.f32 %v4822, %v882
    %v4831 = vadd.f32 %v4759, %v4823
    %v4832 = vadd.f32 %v4760, %v4824
    %v4833 = vadd.f32 %v4761, %v4825
    %v4834 = vadd.f32 %v4762, %v4826
    %v4835 = vadd.f32 %v4763, %v4827
    %v4836 = vadd.f32 %v4764, %v4828
    %v4837 = vadd.f32 %v4765, %v4829
    %v4838 = vadd.f32 %v4766, %v4830
    %s4839 = sld [smem:[#allocation2 + $0xbb]]
    %v4840 = vstv %s4839
    %v4841 = vmul.f32 %v4840, %v875
    %v4842 = vmul.f32 %v4840, %v876
    %v4843 = vmul.f32 %v4840, %v877
    %v4844 = vmul.f32 %v4840, %v878
    %v4845 = vmul.f32 %v4840, %v879
    %v4846 = vmul.f32 %v4840, %v880
    %v4847 = vmul.f32 %v4840, %v881
    %v4848 = vmul.f32 %v4840, %v882
    %v4849 = vadd.f32 %v4777, %v4841
    %v4850 = vadd.f32 %v4778, %v4842
    %v4851 = vadd.f32 %v4779, %v4843
    %v4852 = vadd.f32 %v4780, %v4844
    %v4853 = vadd.f32 %v4781, %v4845
    %v4854 = vadd.f32 %v4782, %v4846
    %v4855 = vadd.f32 %v4783, %v4847
    %v4856 = vadd.f32 %v4784, %v4848
    %s4857 = sld [smem:[#allocation2 + $0xdf]]
    %v4858 = vstv %s4857
    %v4859 = vmul.f32 %v4858, %v875
    %v4860 = vmul.f32 %v4858, %v876
    %v4861 = vmul.f32 %v4858, %v877
    %v4862 = vmul.f32 %v4858, %v878
    %v4863 = vmul.f32 %v4858, %v879
    %v4864 = vmul.f32 %v4858, %v880
    %v4865 = vmul.f32 %v4858, %v881
    %v4866 = vmul.f32 %v4858, %v882
    %v4867 = vadd.f32 %v4795, %v4859
    %v4868 = vadd.f32 %v4796, %v4860
    %v4869 = vadd.f32 %v4797, %v4861
    %v4870 = vadd.f32 %v4798, %v4862
    %v4871 = vadd.f32 %v4799, %v4863
    %v4872 = vadd.f32 %v4800, %v4864
    %v4873 = vadd.f32 %v4801, %v4865
    %v4874 = vadd.f32 %v4802, %v4866
    %s4875 = sld [smem:[#allocation2 + $0x103]]
    %v4876 = vstv %s4875
    %v4877 = vmul.f32 %v4876, %v875
    %v4878 = vmul.f32 %v4876, %v876
    %v4879 = vmul.f32 %v4876, %v877
    %v4880 = vmul.f32 %v4876, %v878
    %v4881 = vmul.f32 %v4876, %v879
    %v4882 = vmul.f32 %v4876, %v880
    %v4883 = vmul.f32 %v4876, %v881
    %v4884 = vmul.f32 %v4876, %v882
    %v4885 = vadd.f32 %v4813, %v4877
    %v4886 = vadd.f32 %v4814, %v4878
    %v4887 = vadd.f32 %v4815, %v4879
    %v4888 = vadd.f32 %v4816, %v4880
    %v4889 = vadd.f32 %v4817, %v4881
    %v4890 = vadd.f32 %v4818, %v4882
    %v4891 = vadd.f32 %v4819, %v4883
    %v4892 = vadd.f32 %v4820, %v4884
    %s4893 = sld [smem:[#allocation2 + $0x98]]
    %v4894 = vstv %s4893
    %v4895 = vmul.f32 %v4894, %v989
    %v4896 = vmul.f32 %v4894, %v990
    %v4897 = vmul.f32 %v4894, %v991
    %v4898 = vmul.f32 %v4894, %v992
    %v4899 = vmul.f32 %v4894, %v993
    %v4900 = vmul.f32 %v4894, %v994
    %v4901 = vmul.f32 %v4894, %v995
    %v4902 = vmul.f32 %v4894, %v996
    %v4903 = vadd.f32 %v4831, %v4895
    %v4904 = vadd.f32 %v4832, %v4896
    %v4905 = vadd.f32 %v4833, %v4897
    %v4906 = vadd.f32 %v4834, %v4898
    %v4907 = vadd.f32 %v4835, %v4899
    %v4908 = vadd.f32 %v4836, %v4900
    %v4909 = vadd.f32 %v4837, %v4901
    %v4910 = vadd.f32 %v4838, %v4902
    %s4911 = sld [smem:[#allocation2 + $0xbc]]
    %v4912 = vstv %s4911
    %v4913 = vmul.f32 %v4912, %v989
    %v4914 = vmul.f32 %v4912, %v990
    %v4915 = vmul.f32 %v4912, %v991
    %v4916 = vmul.f32 %v4912, %v992
    %v4917 = vmul.f32 %v4912, %v993
    %v4918 = vmul.f32 %v4912, %v994
    %v4919 = vmul.f32 %v4912, %v995
    %v4920 = vmul.f32 %v4912, %v996
    %v4921 = vadd.f32 %v4849, %v4913
    %v4922 = vadd.f32 %v4850, %v4914
    %v4923 = vadd.f32 %v4851, %v4915
    %v4924 = vadd.f32 %v4852, %v4916
    %v4925 = vadd.f32 %v4853, %v4917
    %v4926 = vadd.f32 %v4854, %v4918
    %v4927 = vadd.f32 %v4855, %v4919
    %v4928 = vadd.f32 %v4856, %v4920
    %s4929 = sld [smem:[#allocation2 + $0xe0]]
    %v4930 = vstv %s4929
    %v4931 = vmul.f32 %v4930, %v989
    %v4932 = vmul.f32 %v4930, %v990
    %v4933 = vmul.f32 %v4930, %v991
    %v4934 = vmul.f32 %v4930, %v992
    %v4935 = vmul.f32 %v4930, %v993
    %v4936 = vmul.f32 %v4930, %v994
    %v4937 = vmul.f32 %v4930, %v995
    %v4938 = vmul.f32 %v4930, %v996
    %v4939 = vadd.f32 %v4867, %v4931
    %v4940 = vadd.f32 %v4868, %v4932
    %v4941 = vadd.f32 %v4869, %v4933
    %v4942 = vadd.f32 %v4870, %v4934
    %v4943 = vadd.f32 %v4871, %v4935
    %v4944 = vadd.f32 %v4872, %v4936
    %v4945 = vadd.f32 %v4873, %v4937
    %v4946 = vadd.f32 %v4874, %v4938
    %s4947 = sld [smem:[#allocation2 + $0x104]]
    %v4948 = vstv %s4947
    %v4949 = vmul.f32 %v4948, %v989
    %v4950 = vmul.f32 %v4948, %v990
    %v4951 = vmul.f32 %v4948, %v991
    %v4952 = vmul.f32 %v4948, %v992
    %v4953 = vmul.f32 %v4948, %v993
    %v4954 = vmul.f32 %v4948, %v994
    %v4955 = vmul.f32 %v4948, %v995
    %v4956 = vmul.f32 %v4948, %v996
    %v4957 = vadd.f32 %v4885, %v4949
    %v4958 = vadd.f32 %v4886, %v4950
    %v4959 = vadd.f32 %v4887, %v4951
    %v4960 = vadd.f32 %v4888, %v4952
    %v4961 = vadd.f32 %v4889, %v4953
    %v4962 = vadd.f32 %v4890, %v4954
    %v4963 = vadd.f32 %v4891, %v4955
    %v4964 = vadd.f32 %v4892, %v4956
    %s4965 = sld [smem:[#allocation2 + $0x99]]
    %v4966 = vstv %s4965
    %v4967 = vmul.f32 %v4966, %v1104
    %v4968 = vmul.f32 %v4966, %v1105
    %v4969 = vmul.f32 %v4966, %v1106
    %v4970 = vmul.f32 %v4966, %v1107
    %v4971 = vmul.f32 %v4966, %v1108
    %v4972 = vmul.f32 %v4966, %v1109
    %v4973 = vmul.f32 %v4966, %v1110
    %v4974 = vmul.f32 %v4966, %v1111
    %v4975 = vadd.f32 %v4903, %v4967
    %v4976 = vadd.f32 %v4904, %v4968
    %v4977 = vadd.f32 %v4905, %v4969
    %v4978 = vadd.f32 %v4906, %v4970
    %v4979 = vadd.f32 %v4907, %v4971
    %v4980 = vadd.f32 %v4908, %v4972
    %v4981 = vadd.f32 %v4909, %v4973
    %v4982 = vadd.f32 %v4910, %v4974
    %s4983 = sld [smem:[#allocation2 + $0xbd]]
    %v4984 = vstv %s4983
    %v4985 = vmul.f32 %v4984, %v1104
    %v4986 = vmul.f32 %v4984, %v1105
    %v4987 = vmul.f32 %v4984, %v1106
    %v4988 = vmul.f32 %v4984, %v1107
    %v4989 = vmul.f32 %v4984, %v1108
    %v4990 = vmul.f32 %v4984, %v1109
    %v4991 = vmul.f32 %v4984, %v1110
    %v4992 = vmul.f32 %v4984, %v1111
    %v4993 = vadd.f32 %v4921, %v4985
    %v4994 = vadd.f32 %v4922, %v4986
    %v4995 = vadd.f32 %v4923, %v4987
    %v4996 = vadd.f32 %v4924, %v4988
    %v4997 = vadd.f32 %v4925, %v4989
    %v4998 = vadd.f32 %v4926, %v4990
    %v4999 = vadd.f32 %v4927, %v4991
    %v5000 = vadd.f32 %v4928, %v4992
    %s5001 = sld [smem:[#allocation2 + $0xe1]]
    %v5002 = vstv %s5001
    %v5003 = vmul.f32 %v5002, %v1104
    %v5004 = vmul.f32 %v5002, %v1105
    %v5005 = vmul.f32 %v5002, %v1106
    %v5006 = vmul.f32 %v5002, %v1107
    %v5007 = vmul.f32 %v5002, %v1108
    %v5008 = vmul.f32 %v5002, %v1109
    %v5009 = vmul.f32 %v5002, %v1110
    %v5010 = vmul.f32 %v5002, %v1111
    %v5011 = vadd.f32 %v4939, %v5003
    %v5012 = vadd.f32 %v4940, %v5004
    %v5013 = vadd.f32 %v4941, %v5005
    %v5014 = vadd.f32 %v4942, %v5006
    %v5015 = vadd.f32 %v4943, %v5007
    %v5016 = vadd.f32 %v4944, %v5008
    %v5017 = vadd.f32 %v4945, %v5009
    %v5018 = vadd.f32 %v4946, %v5010
    %s5019 = sld [smem:[#allocation2 + $0x105]]
    %v5020 = vstv %s5019
    %v5021 = vmul.f32 %v5020, %v1104
    %v5022 = vmul.f32 %v5020, %v1105
    %v5023 = vmul.f32 %v5020, %v1106
    %v5024 = vmul.f32 %v5020, %v1107
    %v5025 = vmul.f32 %v5020, %v1108
    %v5026 = vmul.f32 %v5020, %v1109
    %v5027 = vmul.f32 %v5020, %v1110
    %v5028 = vmul.f32 %v5020, %v1111
    %v5029 = vadd.f32 %v4957, %v5021
    %v5030 = vadd.f32 %v4958, %v5022
    %v5031 = vadd.f32 %v4959, %v5023
    %v5032 = vadd.f32 %v4960, %v5024
    %v5033 = vadd.f32 %v4961, %v5025
    %v5034 = vadd.f32 %v4962, %v5026
    %v5035 = vadd.f32 %v4963, %v5027
    %v5036 = vadd.f32 %v4964, %v5028
    %s5037 = sld [smem:[#allocation2 + $0x9a]]
    %v5038 = vstv %s5037
    %v5039 = vmul.f32 %v5038, %v1208
    %v5040 = vmul.f32 %v5038, %v1209
    %v5041 = vmul.f32 %v5038, %v1210
    %v5042 = vmul.f32 %v5038, %v1211
    %v5043 = vmul.f32 %v5038, %v1212
    %v5044 = vmul.f32 %v5038, %v1213
    %v5045 = vmul.f32 %v5038, %v1214
    %v5046 = vmul.f32 %v5038, %v1215
    %v5047 = vadd.f32 %v4975, %v5039
    %v5048 = vadd.f32 %v4976, %v5040
    %v5049 = vadd.f32 %v4977, %v5041
    %v5050 = vadd.f32 %v4978, %v5042
    %v5051 = vadd.f32 %v4979, %v5043
    %v5052 = vadd.f32 %v4980, %v5044
    %v5053 = vadd.f32 %v4981, %v5045
    %v5054 = vadd.f32 %v4982, %v5046
    %s5055 = sld [smem:[#allocation2 + $0xbe]]
    %v5056 = vstv %s5055
    %v5057 = vmul.f32 %v5056, %v1208
    %v5058 = vmul.f32 %v5056, %v1209
    %v5059 = vmul.f32 %v5056, %v1210
    %v5060 = vmul.f32 %v5056, %v1211
    %v5061 = vmul.f32 %v5056, %v1212
    %v5062 = vmul.f32 %v5056, %v1213
    %v5063 = vmul.f32 %v5056, %v1214
    %v5064 = vmul.f32 %v5056, %v1215
    %v5065 = vadd.f32 %v4993, %v5057
    %v5066 = vadd.f32 %v4994, %v5058
    %v5067 = vadd.f32 %v4995, %v5059
    %v5068 = vadd.f32 %v4996, %v5060
    %v5069 = vadd.f32 %v4997, %v5061
    %v5070 = vadd.f32 %v4998, %v5062
    %v5071 = vadd.f32 %v4999, %v5063
    %v5072 = vadd.f32 %v5000, %v5064
    %s5073 = sld [smem:[#allocation2 + $0xe2]]
    %v5074 = vstv %s5073
    %v5075 = vmul.f32 %v5074, %v1208
    %v5076 = vmul.f32 %v5074, %v1209
    %v5077 = vmul.f32 %v5074, %v1210
    %v5078 = vmul.f32 %v5074, %v1211
    %v5079 = vmul.f32 %v5074, %v1212
    %v5080 = vmul.f32 %v5074, %v1213
    %v5081 = vmul.f32 %v5074, %v1214
    %v5082 = vmul.f32 %v5074, %v1215
    %v5083 = vadd.f32 %v5011, %v5075
    %v5084 = vadd.f32 %v5012, %v5076
    %v5085 = vadd.f32 %v5013, %v5077
    %v5086 = vadd.f32 %v5014, %v5078
    %v5087 = vadd.f32 %v5015, %v5079
    %v5088 = vadd.f32 %v5016, %v5080
    %v5089 = vadd.f32 %v5017, %v5081
    %v5090 = vadd.f32 %v5018, %v5082
    %s5091 = sld [smem:[#allocation2 + $0x106]]
    %v5092 = vstv %s5091
    %v5093 = vmul.f32 %v5092, %v1208
    %v5094 = vmul.f32 %v5092, %v1209
    %v5095 = vmul.f32 %v5092, %v1210
    %v5096 = vmul.f32 %v5092, %v1211
    %v5097 = vmul.f32 %v5092, %v1212
    %v5098 = vmul.f32 %v5092, %v1213
    %v5099 = vmul.f32 %v5092, %v1214
    %v5100 = vmul.f32 %v5092, %v1215
    %v5101 = vadd.f32 %v5029, %v5093
    %v5102 = vadd.f32 %v5030, %v5094
    %v5103 = vadd.f32 %v5031, %v5095
    %v5104 = vadd.f32 %v5032, %v5096
    %v5105 = vadd.f32 %v5033, %v5097
    %v5106 = vadd.f32 %v5034, %v5098
    %v5107 = vadd.f32 %v5035, %v5099
    %v5108 = vadd.f32 %v5036, %v5100
    %s5109 = sld [smem:[#allocation2 + $0x9b]]
    %v5110 = vstv %s5109
    %v5111 = vmul.f32 %v5110, %v1312
    %v5112 = vmul.f32 %v5110, %v1313
    %v5113 = vmul.f32 %v5110, %v1314
    %v5114 = vmul.f32 %v5110, %v1315
    %v5115 = vmul.f32 %v5110, %v1316
    %v5116 = vmul.f32 %v5110, %v1317
    %v5117 = vmul.f32 %v5110, %v1318
    %v5118 = vmul.f32 %v5110, %v1319
    %v5119 = vadd.f32 %v5047, %v5111
    %v5120 = vadd.f32 %v5048, %v5112
    %v5121 = vadd.f32 %v5049, %v5113
    %v5122 = vadd.f32 %v5050, %v5114
    %v5123 = vadd.f32 %v5051, %v5115
    %v5124 = vadd.f32 %v5052, %v5116
    %v5125 = vadd.f32 %v5053, %v5117
    %v5126 = vadd.f32 %v5054, %v5118
    %s5127 = sld [smem:[#allocation2 + $0xbf]]
    %v5128 = vstv %s5127
    %v5129 = vmul.f32 %v5128, %v1312
    %v5130 = vmul.f32 %v5128, %v1313
    %v5131 = vmul.f32 %v5128, %v1314
    %v5132 = vmul.f32 %v5128, %v1315
    %v5133 = vmul.f32 %v5128, %v1316
    %v5134 = vmul.f32 %v5128, %v1317
    %v5135 = vmul.f32 %v5128, %v1318
    %v5136 = vmul.f32 %v5128, %v1319
    %v5137 = vadd.f32 %v5065, %v5129
    %v5138 = vadd.f32 %v5066, %v5130
    %v5139 = vadd.f32 %v5067, %v5131
    %v5140 = vadd.f32 %v5068, %v5132
    %v5141 = vadd.f32 %v5069, %v5133
    %v5142 = vadd.f32 %v5070, %v5134
    %v5143 = vadd.f32 %v5071, %v5135
    %v5144 = vadd.f32 %v5072, %v5136
    %s5145 = sld [smem:[#allocation2 + $0xe3]]
    %v5146 = vstv %s5145
    %v5147 = vmul.f32 %v5146, %v1312
    %v5148 = vmul.f32 %v5146, %v1313
    %v5149 = vmul.f32 %v5146, %v1314
    %v5150 = vmul.f32 %v5146, %v1315
    %v5151 = vmul.f32 %v5146, %v1316
    %v5152 = vmul.f32 %v5146, %v1317
    %v5153 = vmul.f32 %v5146, %v1318
    %v5154 = vmul.f32 %v5146, %v1319
    %v5155 = vadd.f32 %v5083, %v5147
    %v5156 = vadd.f32 %v5084, %v5148
    %v5157 = vadd.f32 %v5085, %v5149
    %v5158 = vadd.f32 %v5086, %v5150
    %v5159 = vadd.f32 %v5087, %v5151
    %v5160 = vadd.f32 %v5088, %v5152
    %v5161 = vadd.f32 %v5089, %v5153
    %v5162 = vadd.f32 %v5090, %v5154
    %s5163 = sld [smem:[#allocation2 + $0x107]]
    %v5164 = vstv %s5163
    %v5165 = vmul.f32 %v5164, %v1312
    %v5166 = vmul.f32 %v5164, %v1313
    %v5167 = vmul.f32 %v5164, %v1314
    %v5168 = vmul.f32 %v5164, %v1315
    %v5169 = vmul.f32 %v5164, %v1316
    %v5170 = vmul.f32 %v5164, %v1317
    %v5171 = vmul.f32 %v5164, %v1318
    %v5172 = vmul.f32 %v5164, %v1319
    %v5173 = vadd.f32 %v5101, %v5165
    %v5174 = vadd.f32 %v5102, %v5166
    %v5175 = vadd.f32 %v5103, %v5167
    %v5176 = vadd.f32 %v5104, %v5168
    %v5177 = vadd.f32 %v5105, %v5169
    %v5178 = vadd.f32 %v5106, %v5170
    %v5179 = vadd.f32 %v5107, %v5171
    %v5180 = vadd.f32 %v5108, %v5172
    %s5181 = sld [smem:[#allocation2 + $0x9c]]
    %v5182 = vstv %s5181
    %v5183 = vmul.f32 %v5182, %v1416
    %v5184 = vmul.f32 %v5182, %v1417
    %v5185 = vmul.f32 %v5182, %v1418
    %v5186 = vmul.f32 %v5182, %v1419
    %v5187 = vmul.f32 %v5182, %v1420
    %v5188 = vmul.f32 %v5182, %v1421
    %v5189 = vmul.f32 %v5182, %v1422
    %v5190 = vmul.f32 %v5182, %v1423
    %v5191 = vadd.f32 %v5119, %v5183
    %v5192 = vadd.f32 %v5120, %v5184
    %v5193 = vadd.f32 %v5121, %v5185
    %v5194 = vadd.f32 %v5122, %v5186
    %v5195 = vadd.f32 %v5123, %v5187
    %v5196 = vadd.f32 %v5124, %v5188
    %v5197 = vadd.f32 %v5125, %v5189
    %v5198 = vadd.f32 %v5126, %v5190
    %s5199 = sld [smem:[#allocation2 + $0xc0]]
    %v5200 = vstv %s5199
    %v5201 = vmul.f32 %v5200, %v1416
    %v5202 = vmul.f32 %v5200, %v1417
    %v5203 = vmul.f32 %v5200, %v1418
    %v5204 = vmul.f32 %v5200, %v1419
    %v5205 = vmul.f32 %v5200, %v1420
    %v5206 = vmul.f32 %v5200, %v1421
    %v5207 = vmul.f32 %v5200, %v1422
    %v5208 = vmul.f32 %v5200, %v1423
    %v5209 = vadd.f32 %v5137, %v5201
    %v5210 = vadd.f32 %v5138, %v5202
    %v5211 = vadd.f32 %v5139, %v5203
    %v5212 = vadd.f32 %v5140, %v5204
    %v5213 = vadd.f32 %v5141, %v5205
    %v5214 = vadd.f32 %v5142, %v5206
    %v5215 = vadd.f32 %v5143, %v5207
    %v5216 = vadd.f32 %v5144, %v5208
    %s5217 = sld [smem:[#allocation2 + $0xe4]]
    %v5218 = vstv %s5217
    %v5219 = vmul.f32 %v5218, %v1416
    %v5220 = vmul.f32 %v5218, %v1417
    %v5221 = vmul.f32 %v5218, %v1418
    %v5222 = vmul.f32 %v5218, %v1419
    %v5223 = vmul.f32 %v5218, %v1420
    %v5224 = vmul.f32 %v5218, %v1421
    %v5225 = vmul.f32 %v5218, %v1422
    %v5226 = vmul.f32 %v5218, %v1423
    %v5227 = vadd.f32 %v5155, %v5219
    %v5228 = vadd.f32 %v5156, %v5220
    %v5229 = vadd.f32 %v5157, %v5221
    %v5230 = vadd.f32 %v5158, %v5222
    %v5231 = vadd.f32 %v5159, %v5223
    %v5232 = vadd.f32 %v5160, %v5224
    %v5233 = vadd.f32 %v5161, %v5225
    %v5234 = vadd.f32 %v5162, %v5226
    %s5235 = sld [smem:[#allocation2 + $0x108]]
    %v5236 = vstv %s5235
    %v5237 = vmul.f32 %v5236, %v1416
    %v5238 = vmul.f32 %v5236, %v1417
    %v5239 = vmul.f32 %v5236, %v1418
    %v5240 = vmul.f32 %v5236, %v1419
    %v5241 = vmul.f32 %v5236, %v1420
    %v5242 = vmul.f32 %v5236, %v1421
    %v5243 = vmul.f32 %v5236, %v1422
    %v5244 = vmul.f32 %v5236, %v1423
    %v5245 = vadd.f32 %v5173, %v5237
    %v5246 = vadd.f32 %v5174, %v5238
    %v5247 = vadd.f32 %v5175, %v5239
    %v5248 = vadd.f32 %v5176, %v5240
    %v5249 = vadd.f32 %v5177, %v5241
    %v5250 = vadd.f32 %v5178, %v5242
    %v5251 = vadd.f32 %v5179, %v5243
    %v5252 = vadd.f32 %v5180, %v5244
    %s5253 = sld [smem:[#allocation2 + $0x9d]]
    %v5254 = vstv %s5253
    %v5255 = vmul.f32 %v5254, %v1072
    %v5256 = vmul.f32 %v5254, %v1073
    %v5257 = vmul.f32 %v5254, %v1074
    %v5258 = vmul.f32 %v5254, %v1075
    %v5259 = vmul.f32 %v5254, %v1076
    %v5260 = vmul.f32 %v5254, %v1077
    %v5261 = vmul.f32 %v5254, %v1078
    %v5262 = vmul.f32 %v5254, %v1079
    %v5263 = vadd.f32 %v5191, %v5255
    %v5264 = vadd.f32 %v5192, %v5256
    %v5265 = vadd.f32 %v5193, %v5257
    %v5266 = vadd.f32 %v5194, %v5258
    %v5267 = vadd.f32 %v5195, %v5259
    %v5268 = vadd.f32 %v5196, %v5260
    %v5269 = vadd.f32 %v5197, %v5261
    %v5270 = vadd.f32 %v5198, %v5262
    %s5271 = sld [smem:[#allocation2 + $0xc1]]
    %v5272 = vstv %s5271
    %v5273 = vmul.f32 %v5272, %v1072
    %v5274 = vmul.f32 %v5272, %v1073
    %v5275 = vmul.f32 %v5272, %v1074
    %v5276 = vmul.f32 %v5272, %v1075
    %v5277 = vmul.f32 %v5272, %v1076
    %v5278 = vmul.f32 %v5272, %v1077
    %v5279 = vmul.f32 %v5272, %v1078
    %v5280 = vmul.f32 %v5272, %v1079
    %v5281 = vadd.f32 %v5209, %v5273
    %v5282 = vadd.f32 %v5210, %v5274
    %v5283 = vadd.f32 %v5211, %v5275
    %v5284 = vadd.f32 %v5212, %v5276
    %v5285 = vadd.f32 %v5213, %v5277
    %v5286 = vadd.f32 %v5214, %v5278
    %v5287 = vadd.f32 %v5215, %v5279
    %v5288 = vadd.f32 %v5216, %v5280
    %s5289 = sld [smem:[#allocation2 + $0xe5]]
    %v5290 = vstv %s5289
    %v5291 = vmul.f32 %v5290, %v1072
    %v5292 = vmul.f32 %v5290, %v1073
    %v5293 = vmul.f32 %v5290, %v1074
    %v5294 = vmul.f32 %v5290, %v1075
    %v5295 = vmul.f32 %v5290, %v1076
    %v5296 = vmul.f32 %v5290, %v1077
    %v5297 = vmul.f32 %v5290, %v1078
    %v5298 = vmul.f32 %v5290, %v1079
    %v5299 = vadd.f32 %v5227, %v5291
    %v5300 = vadd.f32 %v5228, %v5292
    %v5301 = vadd.f32 %v5229, %v5293
    %v5302 = vadd.f32 %v5230, %v5294
    %v5303 = vadd.f32 %v5231, %v5295
    %v5304 = vadd.f32 %v5232, %v5296
    %v5305 = vadd.f32 %v5233, %v5297
    %v5306 = vadd.f32 %v5234, %v5298
    %s5307 = sld [smem:[#allocation2 + $0x109]]
    %v5308 = vstv %s5307
    %v5309 = vmul.f32 %v5308, %v1072
    %v5310 = vmul.f32 %v5308, %v1073
    %v5311 = vmul.f32 %v5308, %v1074
    %v5312 = vmul.f32 %v5308, %v1075
    %v5313 = vmul.f32 %v5308, %v1076
    %v5314 = vmul.f32 %v5308, %v1077
    %v5315 = vmul.f32 %v5308, %v1078
    %v5316 = vmul.f32 %v5308, %v1079
    %v5317 = vadd.f32 %v5245, %v5309
    %v5318 = vadd.f32 %v5246, %v5310
    %v5319 = vadd.f32 %v5247, %v5311
    %v5320 = vadd.f32 %v5248, %v5312
    %v5321 = vadd.f32 %v5249, %v5313
    %v5322 = vadd.f32 %v5250, %v5314
    %v5323 = vadd.f32 %v5251, %v5315
    %v5324 = vadd.f32 %v5252, %v5316
    %s5325 = sld [smem:[#allocation2 + $0x9e]]
    %v5326 = vstv %s5325
    %v5327 = vmul.f32 %v5326, %v1592
    %v5328 = vmul.f32 %v5326, %v1593
    %v5329 = vmul.f32 %v5326, %v1594
    %v5330 = vmul.f32 %v5326, %v1595
    %v5331 = vmul.f32 %v5326, %v1596
    %v5332 = vmul.f32 %v5326, %v1597
    %v5333 = vmul.f32 %v5326, %v1598
    %v5334 = vmul.f32 %v5326, %v1599
    %v5335 = vadd.f32 %v5263, %v5327
    %v5336 = vadd.f32 %v5264, %v5328
    %v5337 = vadd.f32 %v5265, %v5329
    %v5338 = vadd.f32 %v5266, %v5330
    %v5339 = vadd.f32 %v5267, %v5331
    %v5340 = vadd.f32 %v5268, %v5332
    %v5341 = vadd.f32 %v5269, %v5333
    %v5342 = vadd.f32 %v5270, %v5334
    %s5343 = sld [smem:[#allocation2 + $0xc2]]
    %v5344 = vstv %s5343
    %v5345 = vmul.f32 %v5344, %v1592
    %v5346 = vmul.f32 %v5344, %v1593
    %v5347 = vmul.f32 %v5344, %v1594
    %v5348 = vmul.f32 %v5344, %v1595
    %v5349 = vmul.f32 %v5344, %v1596
    %v5350 = vmul.f32 %v5344, %v1597
    %v5351 = vmul.f32 %v5344, %v1598
    %v5352 = vmul.f32 %v5344, %v1599
    %v5353 = vadd.f32 %v5281, %v5345
    %v5354 = vadd.f32 %v5282, %v5346
    %v5355 = vadd.f32 %v5283, %v5347
    %v5356 = vadd.f32 %v5284, %v5348
    %v5357 = vadd.f32 %v5285, %v5349
    %v5358 = vadd.f32 %v5286, %v5350
    %v5359 = vadd.f32 %v5287, %v5351
    %v5360 = vadd.f32 %v5288, %v5352
    %s5361 = sld [smem:[#allocation2 + $0xe6]]
    %v5362 = vstv %s5361
    %v5363 = vmul.f32 %v5362, %v1592
    %v5364 = vmul.f32 %v5362, %v1593
    %v5365 = vmul.f32 %v5362, %v1594
    %v5366 = vmul.f32 %v5362, %v1595
    %v5367 = vmul.f32 %v5362, %v1596
    %v5368 = vmul.f32 %v5362, %v1597
    %v5369 = vmul.f32 %v5362, %v1598
    %v5370 = vmul.f32 %v5362, %v1599
    %v5371 = vadd.f32 %v5299, %v5363
    %v5372 = vadd.f32 %v5300, %v5364
    %v5373 = vadd.f32 %v5301, %v5365
    %v5374 = vadd.f32 %v5302, %v5366
    %v5375 = vadd.f32 %v5303, %v5367
    %v5376 = vadd.f32 %v5304, %v5368
    %v5377 = vadd.f32 %v5305, %v5369
    %v5378 = vadd.f32 %v5306, %v5370
    %s5379 = sld [smem:[#allocation2 + $0x10a]]
    %v5380 = vstv %s5379
    %v5381 = vmul.f32 %v5380, %v1592
    %v5382 = vmul.f32 %v5380, %v1593
    %v5383 = vmul.f32 %v5380, %v1594
    %v5384 = vmul.f32 %v5380, %v1595
    %v5385 = vmul.f32 %v5380, %v1596
    %v5386 = vmul.f32 %v5380, %v1597
    %v5387 = vmul.f32 %v5380, %v1598
    %v5388 = vmul.f32 %v5380, %v1599
    %v5389 = vadd.f32 %v5317, %v5381
    %v5390 = vadd.f32 %v5318, %v5382
    %v5391 = vadd.f32 %v5319, %v5383
    %v5392 = vadd.f32 %v5320, %v5384
    %v5393 = vadd.f32 %v5321, %v5385
    %v5394 = vadd.f32 %v5322, %v5386
    %v5395 = vadd.f32 %v5323, %v5387
    %v5396 = vadd.f32 %v5324, %v5388
    %s5397 = sld [smem:[#allocation2 + $0x9f]]
    %v5398 = vstv %s5397
    %v5399 = vmul.f32 %v5398, %v1696
    %v5400 = vmul.f32 %v5398, %v1697
    %v5401 = vmul.f32 %v5398, %v1698
    %v5402 = vmul.f32 %v5398, %v1699
    %v5403 = vmul.f32 %v5398, %v1700
    %v5404 = vmul.f32 %v5398, %v1701
    %v5405 = vmul.f32 %v5398, %v1702
    %v5406 = vmul.f32 %v5398, %v1703
    %v5407 = vadd.f32 %v5335, %v5399
    %v5408 = vadd.f32 %v5336, %v5400
    %v5409 = vadd.f32 %v5337, %v5401
    %v5410 = vadd.f32 %v5338, %v5402
    %v5411 = vadd.f32 %v5339, %v5403
    %v5412 = vadd.f32 %v5340, %v5404
    %v5413 = vadd.f32 %v5341, %v5405
    %v5414 = vadd.f32 %v5342, %v5406
    %s5415 = sld [smem:[#allocation2 + $0xc3]]
    %v5416 = vstv %s5415
    %v5417 = vmul.f32 %v5416, %v1696
    %v5418 = vmul.f32 %v5416, %v1697
    %v5419 = vmul.f32 %v5416, %v1698
    %v5420 = vmul.f32 %v5416, %v1699
    %v5421 = vmul.f32 %v5416, %v1700
    %v5422 = vmul.f32 %v5416, %v1701
    %v5423 = vmul.f32 %v5416, %v1702
    %v5424 = vmul.f32 %v5416, %v1703
    %v5425 = vadd.f32 %v5353, %v5417
    %v5426 = vadd.f32 %v5354, %v5418
    %v5427 = vadd.f32 %v5355, %v5419
    %v5428 = vadd.f32 %v5356, %v5420
    %v5429 = vadd.f32 %v5357, %v5421
    %v5430 = vadd.f32 %v5358, %v5422
    %v5431 = vadd.f32 %v5359, %v5423
    %v5432 = vadd.f32 %v5360, %v5424
    %s5433 = sld [smem:[#allocation2 + $0xe7]]
    %v5434 = vstv %s5433
    %v5435 = vmul.f32 %v5434, %v1696
    %v5436 = vmul.f32 %v5434, %v1697
    %v5437 = vmul.f32 %v5434, %v1698
    %v5438 = vmul.f32 %v5434, %v1699
    %v5439 = vmul.f32 %v5434, %v1700
    %v5440 = vmul.f32 %v5434, %v1701
    %v5441 = vmul.f32 %v5434, %v1702
    %v5442 = vmul.f32 %v5434, %v1703
    %v5443 = vadd.f32 %v5371, %v5435
    %v5444 = vadd.f32 %v5372, %v5436
    %v5445 = vadd.f32 %v5373, %v5437
    %v5446 = vadd.f32 %v5374, %v5438
    %v5447 = vadd.f32 %v5375, %v5439
    %v5448 = vadd.f32 %v5376, %v5440
    %v5449 = vadd.f32 %v5377, %v5441
    %v5450 = vadd.f32 %v5378, %v5442
    %s5451 = sld [smem:[#allocation2 + $0x10b]]
    %v5452 = vstv %s5451
    %v5453 = vmul.f32 %v5452, %v1696
    %v5454 = vmul.f32 %v5452, %v1697
    %v5455 = vmul.f32 %v5452, %v1698
    %v5456 = vmul.f32 %v5452, %v1699
    %v5457 = vmul.f32 %v5452, %v1700
    %v5458 = vmul.f32 %v5452, %v1701
    %v5459 = vmul.f32 %v5452, %v1702
    %v5460 = vmul.f32 %v5452, %v1703
    %v5461 = vadd.f32 %v5389, %v5453
    %v5462 = vadd.f32 %v5390, %v5454
    %v5463 = vadd.f32 %v5391, %v5455
    %v5464 = vadd.f32 %v5392, %v5456
    %v5465 = vadd.f32 %v5393, %v5457
    %v5466 = vadd.f32 %v5394, %v5458
    %v5467 = vadd.f32 %v5395, %v5459
    %v5468 = vadd.f32 %v5396, %v5460
    %s5469 = sld [smem:[#allocation2 + $0xa0]]
    %v5470 = vstv %s5469
    %v5471 = vmul.f32 %v5470, %v1800
    %v5472 = vmul.f32 %v5470, %v1801
    %v5473 = vmul.f32 %v5470, %v1802
    %v5474 = vmul.f32 %v5470, %v1803
    %v5475 = vmul.f32 %v5470, %v1804
    %v5476 = vmul.f32 %v5470, %v1805
    %v5477 = vmul.f32 %v5470, %v1806
    %v5478 = vmul.f32 %v5470, %v1807
    %v5479 = vadd.f32 %v5407, %v5471
    %v5480 = vadd.f32 %v5408, %v5472
    %v5481 = vadd.f32 %v5409, %v5473
    %v5482 = vadd.f32 %v5410, %v5474
    %v5483 = vadd.f32 %v5411, %v5475
    %v5484 = vadd.f32 %v5412, %v5476
    %v5485 = vadd.f32 %v5413, %v5477
    %v5486 = vadd.f32 %v5414, %v5478
    %s5487 = sld [smem:[#allocation2 + $0xc4]]
    %v5488 = vstv %s5487
    %v5489 = vmul.f32 %v5488, %v1800
    %v5490 = vmul.f32 %v5488, %v1801
    %v5491 = vmul.f32 %v5488, %v1802
    %v5492 = vmul.f32 %v5488, %v1803
    %v5493 = vmul.f32 %v5488, %v1804
    %v5494 = vmul.f32 %v5488, %v1805
    %v5495 = vmul.f32 %v5488, %v1806
    %v5496 = vmul.f32 %v5488, %v1807
    %v5497 = vadd.f32 %v5425, %v5489
    %v5498 = vadd.f32 %v5426, %v5490
    %v5499 = vadd.f32 %v5427, %v5491
    %v5500 = vadd.f32 %v5428, %v5492
    %v5501 = vadd.f32 %v5429, %v5493
    %v5502 = vadd.f32 %v5430, %v5494
    %v5503 = vadd.f32 %v5431, %v5495
    %v5504 = vadd.f32 %v5432, %v5496
    %s5505 = sld [smem:[#allocation2 + $0xe8]]
    %v5506 = vstv %s5505
    %v5507 = vmul.f32 %v5506, %v1800
    %v5508 = vmul.f32 %v5506, %v1801
    %v5509 = vmul.f32 %v5506, %v1802
    %v5510 = vmul.f32 %v5506, %v1803
    %v5511 = vmul.f32 %v5506, %v1804
    %v5512 = vmul.f32 %v5506, %v1805
    %v5513 = vmul.f32 %v5506, %v1806
    %v5514 = vmul.f32 %v5506, %v1807
    %v5515 = vadd.f32 %v5443, %v5507
    %v5516 = vadd.f32 %v5444, %v5508
    %v5517 = vadd.f32 %v5445, %v5509
    %v5518 = vadd.f32 %v5446, %v5510
    %v5519 = vadd.f32 %v5447, %v5511
    %v5520 = vadd.f32 %v5448, %v5512
    %v5521 = vadd.f32 %v5449, %v5513
    %v5522 = vadd.f32 %v5450, %v5514
    %s5523 = sld [smem:[#allocation2 + $0x10c]]
    %v5524 = vstv %s5523
    %v5525 = vmul.f32 %v5524, %v1800
    %v5526 = vmul.f32 %v5524, %v1801
    %v5527 = vmul.f32 %v5524, %v1802
    %v5528 = vmul.f32 %v5524, %v1803
    %v5529 = vmul.f32 %v5524, %v1804
    %v5530 = vmul.f32 %v5524, %v1805
    %v5531 = vmul.f32 %v5524, %v1806
    %v5532 = vmul.f32 %v5524, %v1807
    %v5533 = vadd.f32 %v5461, %v5525
    %v5534 = vadd.f32 %v5462, %v5526
    %v5535 = vadd.f32 %v5463, %v5527
    %v5536 = vadd.f32 %v5464, %v5528
    %v5537 = vadd.f32 %v5465, %v5529
    %v5538 = vadd.f32 %v5466, %v5530
    %v5539 = vadd.f32 %v5467, %v5531
    %v5540 = vadd.f32 %v5468, %v5532
    %s5541 = sld [smem:[#allocation2 + $0xa1]]
    %v5542 = vstv %s5541
    %v5543 = vmul.f32 %v5542, %v1904
    %v5544 = vmul.f32 %v5542, %v1905
    %v5545 = vmul.f32 %v5542, %v1906
    %v5546 = vmul.f32 %v5542, %v1907
    %v5547 = vmul.f32 %v5542, %v1908
    %v5548 = vmul.f32 %v5542, %v1909
    %v5549 = vmul.f32 %v5542, %v1910
    %v5550 = vmul.f32 %v5542, %v1911
    %v5551 = vadd.f32 %v5479, %v5543
    %v5552 = vadd.f32 %v5480, %v5544
    %v5553 = vadd.f32 %v5481, %v5545
    %v5554 = vadd.f32 %v5482, %v5546
    %v5555 = vadd.f32 %v5483, %v5547
    %v5556 = vadd.f32 %v5484, %v5548
    %v5557 = vadd.f32 %v5485, %v5549
    %v5558 = vadd.f32 %v5486, %v5550
    %s5559 = sld [smem:[#allocation2 + $0xc5]]
    %v5560 = vstv %s5559
    %v5561 = vmul.f32 %v5560, %v1904
    %v5562 = vmul.f32 %v5560, %v1905
    %v5563 = vmul.f32 %v5560, %v1906
    %v5564 = vmul.f32 %v5560, %v1907
    %v5565 = vmul.f32 %v5560, %v1908
    %v5566 = vmul.f32 %v5560, %v1909
    %v5567 = vmul.f32 %v5560, %v1910
    %v5568 = vmul.f32 %v5560, %v1911
    %v5569 = vadd.f32 %v5497, %v5561
    %v5570 = vadd.f32 %v5498, %v5562
    %v5571 = vadd.f32 %v5499, %v5563
    %v5572 = vadd.f32 %v5500, %v5564
    %v5573 = vadd.f32 %v5501, %v5565
    %v5574 = vadd.f32 %v5502, %v5566
    %v5575 = vadd.f32 %v5503, %v5567
    %v5576 = vadd.f32 %v5504, %v5568
    %s5577 = sld [smem:[#allocation2 + $0xe9]]
    %v5578 = vstv %s5577
    %v5579 = vmul.f32 %v5578, %v1904
    %v5580 = vmul.f32 %v5578, %v1905
    %v5581 = vmul.f32 %v5578, %v1906
    %v5582 = vmul.f32 %v5578, %v1907
    %v5583 = vmul.f32 %v5578, %v1908
    %v5584 = vmul.f32 %v5578, %v1909
    %v5585 = vmul.f32 %v5578, %v1910
    %v5586 = vmul.f32 %v5578, %v1911
    %v5587 = vadd.f32 %v5515, %v5579
    %v5588 = vadd.f32 %v5516, %v5580
    %v5589 = vadd.f32 %v5517, %v5581
    %v5590 = vadd.f32 %v5518, %v5582
    %v5591 = vadd.f32 %v5519, %v5583
    %v5592 = vadd.f32 %v5520, %v5584
    %v5593 = vadd.f32 %v5521, %v5585
    %v5594 = vadd.f32 %v5522, %v5586
    %s5595 = sld [smem:[#allocation2 + $0x10d]]
    %v5596 = vstv %s5595
    %v5597 = vmul.f32 %v5596, %v1904
    %v5598 = vmul.f32 %v5596, %v1905
    %v5599 = vmul.f32 %v5596, %v1906
    %v5600 = vmul.f32 %v5596, %v1907
    %v5601 = vmul.f32 %v5596, %v1908
    %v5602 = vmul.f32 %v5596, %v1909
    %v5603 = vmul.f32 %v5596, %v1910
    %v5604 = vmul.f32 %v5596, %v1911
    %v5605 = vadd.f32 %v5533, %v5597
    %v5606 = vadd.f32 %v5534, %v5598
    %v5607 = vadd.f32 %v5535, %v5599
    %v5608 = vadd.f32 %v5536, %v5600
    %v5609 = vadd.f32 %v5537, %v5601
    %v5610 = vadd.f32 %v5538, %v5602
    %v5611 = vadd.f32 %v5539, %v5603
    %v5612 = vadd.f32 %v5540, %v5604
    %s5613 = sld [smem:[#allocation2 + $0xa2]]
    %v5614 = vstv %s5613
    %v5615 = vmul.f32 %v5614, %v2019
    %v5616 = vmul.f32 %v5614, %v2020
    %v5617 = vmul.f32 %v5614, %v2021
    %v5618 = vmul.f32 %v5614, %v2022
    %v5619 = vmul.f32 %v5614, %v2023
    %v5620 = vmul.f32 %v5614, %v2024
    %v5621 = vmul.f32 %v5614, %v2025
    %v5622 = vmul.f32 %v5614, %v2026
    %v5623 = vadd.f32 %v5551, %v5615
    %v5624 = vadd.f32 %v5552, %v5616
    %v5625 = vadd.f32 %v5553, %v5617
    %v5626 = vadd.f32 %v5554, %v5618
    %v5627 = vadd.f32 %v5555, %v5619
    %v5628 = vadd.f32 %v5556, %v5620
    %v5629 = vadd.f32 %v5557, %v5621
    %v5630 = vadd.f32 %v5558, %v5622
    %s5631 = sld [smem:[#allocation2 + $0xc6]]
    %v5632 = vstv %s5631
    %v5633 = vmul.f32 %v5632, %v2019
    %v5634 = vmul.f32 %v5632, %v2020
    %v5635 = vmul.f32 %v5632, %v2021
    %v5636 = vmul.f32 %v5632, %v2022
    %v5637 = vmul.f32 %v5632, %v2023
    %v5638 = vmul.f32 %v5632, %v2024
    %v5639 = vmul.f32 %v5632, %v2025
    %v5640 = vmul.f32 %v5632, %v2026
    %v5641 = vadd.f32 %v5569, %v5633
    %v5642 = vadd.f32 %v5570, %v5634
    %v5643 = vadd.f32 %v5571, %v5635
    %v5644 = vadd.f32 %v5572, %v5636
    %v5645 = vadd.f32 %v5573, %v5637
    %v5646 = vadd.f32 %v5574, %v5638
    %v5647 = vadd.f32 %v5575, %v5639
    %v5648 = vadd.f32 %v5576, %v5640
    %s5649 = sld [smem:[#allocation2 + $0xea]]
    %v5650 = vstv %s5649
    %v5651 = vmul.f32 %v5650, %v2019
    %v5652 = vmul.f32 %v5650, %v2020
    %v5653 = vmul.f32 %v5650, %v2021
    %v5654 = vmul.f32 %v5650, %v2022
    %v5655 = vmul.f32 %v5650, %v2023
    %v5656 = vmul.f32 %v5650, %v2024
    %v5657 = vmul.f32 %v5650, %v2025
    %v5658 = vmul.f32 %v5650, %v2026
    %v5659 = vadd.f32 %v5587, %v5651
    %v5660 = vadd.f32 %v5588, %v5652
    %v5661 = vadd.f32 %v5589, %v5653
    %v5662 = vadd.f32 %v5590, %v5654
    %v5663 = vadd.f32 %v5591, %v5655
    %v5664 = vadd.f32 %v5592, %v5656
    %v5665 = vadd.f32 %v5593, %v5657
    %v5666 = vadd.f32 %v5594, %v5658
    %s5667 = sld [smem:[#allocation2 + $0x10e]]
    %v5668 = vstv %s5667
    %v5669 = vmul.f32 %v5668, %v2019
    %v5670 = vmul.f32 %v5668, %v2020
    %v5671 = vmul.f32 %v5668, %v2021
    %v5672 = vmul.f32 %v5668, %v2022
    %v5673 = vmul.f32 %v5668, %v2023
    %v5674 = vmul.f32 %v5668, %v2024
    %v5675 = vmul.f32 %v5668, %v2025
    %v5676 = vmul.f32 %v5668, %v2026
    %v5677 = vadd.f32 %v5605, %v5669
    %v5678 = vadd.f32 %v5606, %v5670
    %v5679 = vadd.f32 %v5607, %v5671
    %v5680 = vadd.f32 %v5608, %v5672
    %v5681 = vadd.f32 %v5609, %v5673
    %v5682 = vadd.f32 %v5610, %v5674
    %v5683 = vadd.f32 %v5611, %v5675
    %v5684 = vadd.f32 %v5612, %v5676
    %s5685 = sld [smem:[#allocation2 + $0xa3]]
    %v5686 = vstv %s5685
    %v5687 = vmul.f32 %v5686, %v2123
    %v5688 = vmul.f32 %v5686, %v2124
    %v5689 = vmul.f32 %v5686, %v2125
    %v5690 = vmul.f32 %v5686, %v2126
    %v5691 = vmul.f32 %v5686, %v2127
    %v5692 = vmul.f32 %v5686, %v2128
    %v5693 = vmul.f32 %v5686, %v2129
    %v5694 = vmul.f32 %v5686, %v2130
    %v5695 = vadd.f32 %v5623, %v5687
    %v5696 = vadd.f32 %v5624, %v5688
    %v5697 = vadd.f32 %v5625, %v5689
    %v5698 = vadd.f32 %v5626, %v5690
    %v5699 = vadd.f32 %v5627, %v5691
    %v5700 = vadd.f32 %v5628, %v5692
    %v5701 = vadd.f32 %v5629, %v5693
    %v5702 = vadd.f32 %v5630, %v5694
    %s5703 = sld [smem:[#allocation2 + $0xc7]]
    %v5704 = vstv %s5703
    %v5705 = vmul.f32 %v5704, %v2123
    %v5706 = vmul.f32 %v5704, %v2124
    %v5707 = vmul.f32 %v5704, %v2125
    %v5708 = vmul.f32 %v5704, %v2126
    %v5709 = vmul.f32 %v5704, %v2127
    %v5710 = vmul.f32 %v5704, %v2128
    %v5711 = vmul.f32 %v5704, %v2129
    %v5712 = vmul.f32 %v5704, %v2130
    %v5713 = vadd.f32 %v5641, %v5705
    %v5714 = vadd.f32 %v5642, %v5706
    %v5715 = vadd.f32 %v5643, %v5707
    %v5716 = vadd.f32 %v5644, %v5708
    %v5717 = vadd.f32 %v5645, %v5709
    %v5718 = vadd.f32 %v5646, %v5710
    %v5719 = vadd.f32 %v5647, %v5711
    %v5720 = vadd.f32 %v5648, %v5712
    %s5721 = sld [smem:[#allocation2 + $0xeb]]
    %v5722 = vstv %s5721
    %v5723 = vmul.f32 %v5722, %v2123
    %v5724 = vmul.f32 %v5722, %v2124
    %v5725 = vmul.f32 %v5722, %v2125
    %v5726 = vmul.f32 %v5722, %v2126
    %v5727 = vmul.f32 %v5722, %v2127
    %v5728 = vmul.f32 %v5722, %v2128
    %v5729 = vmul.f32 %v5722, %v2129
    %v5730 = vmul.f32 %v5722, %v2130
    %v5731 = vadd.f32 %v5659, %v5723
    %v5732 = vadd.f32 %v5660, %v5724
    %v5733 = vadd.f32 %v5661, %v5725
    %v5734 = vadd.f32 %v5662, %v5726
    %v5735 = vadd.f32 %v5663, %v5727
    %v5736 = vadd.f32 %v5664, %v5728
    %v5737 = vadd.f32 %v5665, %v5729
    %v5738 = vadd.f32 %v5666, %v5730
    %s5739 = sld [smem:[#allocation2 + $0x10f]]
    %v5740 = vstv %s5739
    %v5741 = vmul.f32 %v5740, %v2123
    %v5742 = vmul.f32 %v5740, %v2124
    %v5743 = vmul.f32 %v5740, %v2125
    %v5744 = vmul.f32 %v5740, %v2126
    %v5745 = vmul.f32 %v5740, %v2127
    %v5746 = vmul.f32 %v5740, %v2128
    %v5747 = vmul.f32 %v5740, %v2129
    %v5748 = vmul.f32 %v5740, %v2130
    %v5749 = vadd.f32 %v5677, %v5741
    %v5750 = vadd.f32 %v5678, %v5742
    %v5751 = vadd.f32 %v5679, %v5743
    %v5752 = vadd.f32 %v5680, %v5744
    %v5753 = vadd.f32 %v5681, %v5745
    %v5754 = vadd.f32 %v5682, %v5746
    %v5755 = vadd.f32 %v5683, %v5747
    %v5756 = vadd.f32 %v5684, %v5748
    %s5757 = sld [smem:[#allocation2 + $0xa4]]
    %v5758 = vstv %s5757
    %v5759 = vmul.f32 %v5758, %v2227
    %v5760 = vmul.f32 %v5758, %v2228
    %v5761 = vmul.f32 %v5758, %v2229
    %v5762 = vmul.f32 %v5758, %v2230
    %v5763 = vmul.f32 %v5758, %v2231
    %v5764 = vmul.f32 %v5758, %v2232
    %v5765 = vmul.f32 %v5758, %v2233
    %v5766 = vmul.f32 %v5758, %v2234
    %v5767 = vadd.f32 %v5695, %v5759
    %v5768 = vadd.f32 %v5696, %v5760
    %v5769 = vadd.f32 %v5697, %v5761
    %v5770 = vadd.f32 %v5698, %v5762
    %v5771 = vadd.f32 %v5699, %v5763
    %v5772 = vadd.f32 %v5700, %v5764
    %v5773 = vadd.f32 %v5701, %v5765
    %v5774 = vadd.f32 %v5702, %v5766
    %s5775 = sld [smem:[#allocation2 + $0xc8]]
    %v5776 = vstv %s5775
    %v5777 = vmul.f32 %v5776, %v2227
    %v5778 = vmul.f32 %v5776, %v2228
    %v5779 = vmul.f32 %v5776, %v2229
    %v5780 = vmul.f32 %v5776, %v2230
    %v5781 = vmul.f32 %v5776, %v2231
    %v5782 = vmul.f32 %v5776, %v2232
    %v5783 = vmul.f32 %v5776, %v2233
    %v5784 = vmul.f32 %v5776, %v2234
    %v5785 = vadd.f32 %v5713, %v5777
    %v5786 = vadd.f32 %v5714, %v5778
    %v5787 = vadd.f32 %v5715, %v5779
    %v5788 = vadd.f32 %v5716, %v5780
    %v5789 = vadd.f32 %v5717, %v5781
    %v5790 = vadd.f32 %v5718, %v5782
    %v5791 = vadd.f32 %v5719, %v5783
    %v5792 = vadd.f32 %v5720, %v5784
    %s5793 = sld [smem:[#allocation2 + $0xec]]
    %v5794 = vstv %s5793
    %v5795 = vmul.f32 %v5794, %v2227
    %v5796 = vmul.f32 %v5794, %v2228
    %v5797 = vmul.f32 %v5794, %v2229
    %v5798 = vmul.f32 %v5794, %v2230
    %v5799 = vmul.f32 %v5794, %v2231
    %v5800 = vmul.f32 %v5794, %v2232
    %v5801 = vmul.f32 %v5794, %v2233
    %v5802 = vmul.f32 %v5794, %v2234
    %v5803 = vadd.f32 %v5731, %v5795
    %v5804 = vadd.f32 %v5732, %v5796
    %v5805 = vadd.f32 %v5733, %v5797
    %v5806 = vadd.f32 %v5734, %v5798
    %v5807 = vadd.f32 %v5735, %v5799
    %v5808 = vadd.f32 %v5736, %v5800
    %v5809 = vadd.f32 %v5737, %v5801
    %v5810 = vadd.f32 %v5738, %v5802
    %s5811 = sld [smem:[#allocation2 + $0x110]]
    %v5812 = vstv %s5811
    %v5813 = vmul.f32 %v5812, %v2227
    %v5814 = vmul.f32 %v5812, %v2228
    %v5815 = vmul.f32 %v5812, %v2229
    %v5816 = vmul.f32 %v5812, %v2230
    %v5817 = vmul.f32 %v5812, %v2231
    %v5818 = vmul.f32 %v5812, %v2232
    %v5819 = vmul.f32 %v5812, %v2233
    %v5820 = vmul.f32 %v5812, %v2234
    %v5821 = vadd.f32 %v5749, %v5813
    %v5822 = vadd.f32 %v5750, %v5814
    %v5823 = vadd.f32 %v5751, %v5815
    %v5824 = vadd.f32 %v5752, %v5816
    %v5825 = vadd.f32 %v5753, %v5817
    %v5826 = vadd.f32 %v5754, %v5818
    %v5827 = vadd.f32 %v5755, %v5819
    %v5828 = vadd.f32 %v5756, %v5820
    %s5829 = sld [smem:[#allocation2 + $0xa5]]
    %v5830 = vstv %s5829
    %v5831 = vmul.f32 %v5830, %v2331
    %v5832 = vmul.f32 %v5830, %v2332
    %v5833 = vmul.f32 %v5830, %v2333
    %v5834 = vmul.f32 %v5830, %v2334
    %v5835 = vmul.f32 %v5830, %v2335
    %v5836 = vmul.f32 %v5830, %v2336
    %v5837 = vmul.f32 %v5830, %v2337
    %v5838 = vmul.f32 %v5830, %v2338
    %v5839 = vadd.f32 %v5767, %v5831
    %v5840 = vadd.f32 %v5768, %v5832
    %v5841 = vadd.f32 %v5769, %v5833
    %v5842 = vadd.f32 %v5770, %v5834
    %v5843 = vadd.f32 %v5771, %v5835
    %v5844 = vadd.f32 %v5772, %v5836
    %v5845 = vadd.f32 %v5773, %v5837
    %v5846 = vadd.f32 %v5774, %v5838
    %s5847 = sld [smem:[#allocation2 + $0xc9]]
    %v5848 = vstv %s5847
    %v5849 = vmul.f32 %v5848, %v2331
    %v5850 = vmul.f32 %v5848, %v2332
    %v5851 = vmul.f32 %v5848, %v2333
    %v5852 = vmul.f32 %v5848, %v2334
    %v5853 = vmul.f32 %v5848, %v2335
    %v5854 = vmul.f32 %v5848, %v2336
    %v5855 = vmul.f32 %v5848, %v2337
    %v5856 = vmul.f32 %v5848, %v2338
    %v5857 = vadd.f32 %v5785, %v5849
    %v5858 = vadd.f32 %v5786, %v5850
    %v5859 = vadd.f32 %v5787, %v5851
    %v5860 = vadd.f32 %v5788, %v5852
    %v5861 = vadd.f32 %v5789, %v5853
    %v5862 = vadd.f32 %v5790, %v5854
    %v5863 = vadd.f32 %v5791, %v5855
    %v5864 = vadd.f32 %v5792, %v5856
    %s5865 = sld [smem:[#allocation2 + $0xed]]
    %v5866 = vstv %s5865
    %v5867 = vmul.f32 %v5866, %v2331
    %v5868 = vmul.f32 %v5866, %v2332
    %v5869 = vmul.f32 %v5866, %v2333
    %v5870 = vmul.f32 %v5866, %v2334
    %v5871 = vmul.f32 %v5866, %v2335
    %v5872 = vmul.f32 %v5866, %v2336
    %v5873 = vmul.f32 %v5866, %v2337
    %v5874 = vmul.f32 %v5866, %v2338
    %v5875 = vadd.f32 %v5803, %v5867
    %v5876 = vadd.f32 %v5804, %v5868
    %v5877 = vadd.f32 %v5805, %v5869
    %v5878 = vadd.f32 %v5806, %v5870
    %v5879 = vadd.f32 %v5807, %v5871
    %v5880 = vadd.f32 %v5808, %v5872
    %v5881 = vadd.f32 %v5809, %v5873
    %v5882 = vadd.f32 %v5810, %v5874
    %s5883 = sld [smem:[#allocation2 + $0x111]]
    %v5884 = vstv %s5883
    %v5885 = vmul.f32 %v5884, %v2331
    %v5886 = vmul.f32 %v5884, %v2332
    %v5887 = vmul.f32 %v5884, %v2333
    %v5888 = vmul.f32 %v5884, %v2334
    %v5889 = vmul.f32 %v5884, %v2335
    %v5890 = vmul.f32 %v5884, %v2336
    %v5891 = vmul.f32 %v5884, %v2337
    %v5892 = vmul.f32 %v5884, %v2338
    %v5893 = vadd.f32 %v5821, %v5885
    %v5894 = vadd.f32 %v5822, %v5886
    %v5895 = vadd.f32 %v5823, %v5887
    %v5896 = vadd.f32 %v5824, %v5888
    %v5897 = vadd.f32 %v5825, %v5889
    %v5898 = vadd.f32 %v5826, %v5890
    %v5899 = vadd.f32 %v5827, %v5891
    %v5900 = vadd.f32 %v5828, %v5892
    %s5901 = sld [smem:[#allocation2 + $0xa6]]
    %v5902 = vstv %s5901
    %v5903 = vmul.f32 %v5902, %v1987
    %v5904 = vmul.f32 %v5902, %v1988
    %v5905 = vmul.f32 %v5902, %v1989
    %v5906 = vmul.f32 %v5902, %v1990
    %v5907 = vmul.f32 %v5902, %v1991
    %v5908 = vmul.f32 %v5902, %v1992
    %v5909 = vmul.f32 %v5902, %v1993
    %v5910 = vmul.f32 %v5902, %v1994
    %v5911 = vadd.f32 %v5839, %v5903
    %v5912 = vadd.f32 %v5840, %v5904
    %v5913 = vadd.f32 %v5841, %v5905
    %v5914 = vadd.f32 %v5842, %v5906
    %v5915 = vadd.f32 %v5843, %v5907
    %v5916 = vadd.f32 %v5844, %v5908
    %v5917 = vadd.f32 %v5845, %v5909
    %v5918 = vadd.f32 %v5846, %v5910
    %s5919 = sld [smem:[#allocation2 + $0xca]]
    %v5920 = vstv %s5919
    %v5921 = vmul.f32 %v5920, %v1987
    %v5922 = vmul.f32 %v5920, %v1988
    %v5923 = vmul.f32 %v5920, %v1989
    %v5924 = vmul.f32 %v5920, %v1990
    %v5925 = vmul.f32 %v5920, %v1991
    %v5926 = vmul.f32 %v5920, %v1992
    %v5927 = vmul.f32 %v5920, %v1993
    %v5928 = vmul.f32 %v5920, %v1994
    %v5929 = vadd.f32 %v5857, %v5921
    %v5930 = vadd.f32 %v5858, %v5922
    %v5931 = vadd.f32 %v5859, %v5923
    %v5932 = vadd.f32 %v5860, %v5924
    %v5933 = vadd.f32 %v5861, %v5925
    %v5934 = vadd.f32 %v5862, %v5926
    %v5935 = vadd.f32 %v5863, %v5927
    %v5936 = vadd.f32 %v5864, %v5928
    %s5937 = sld [smem:[#allocation2 + $0xee]]
    %v5938 = vstv %s5937
    %v5939 = vmul.f32 %v5938, %v1987
    %v5940 = vmul.f32 %v5938, %v1988
    %v5941 = vmul.f32 %v5938, %v1989
    %v5942 = vmul.f32 %v5938, %v1990
    %v5943 = vmul.f32 %v5938, %v1991
    %v5944 = vmul.f32 %v5938, %v1992
    %v5945 = vmul.f32 %v5938, %v1993
    %v5946 = vmul.f32 %v5938, %v1994
    %v5947 = vadd.f32 %v5875, %v5939
    %v5948 = vadd.f32 %v5876, %v5940
    %v5949 = vadd.f32 %v5877, %v5941
    %v5950 = vadd.f32 %v5878, %v5942
    %v5951 = vadd.f32 %v5879, %v5943
    %v5952 = vadd.f32 %v5880, %v5944
    %v5953 = vadd.f32 %v5881, %v5945
    %v5954 = vadd.f32 %v5882, %v5946
    %s5955 = sld [smem:[#allocation2 + $0x112]]
    %v5956 = vstv %s5955
    %v5957 = vmul.f32 %v5956, %v1987
    %v5958 = vmul.f32 %v5956, %v1988
    %v5959 = vmul.f32 %v5956, %v1989
    %v5960 = vmul.f32 %v5956, %v1990
    %v5961 = vmul.f32 %v5956, %v1991
    %v5962 = vmul.f32 %v5956, %v1992
    %v5963 = vmul.f32 %v5956, %v1993
    %v5964 = vmul.f32 %v5956, %v1994
    %v5965 = vadd.f32 %v5893, %v5957
    %v5966 = vadd.f32 %v5894, %v5958
    %v5967 = vadd.f32 %v5895, %v5959
    %v5968 = vadd.f32 %v5896, %v5960
    %v5969 = vadd.f32 %v5897, %v5961
    %v5970 = vadd.f32 %v5898, %v5962
    %v5971 = vadd.f32 %v5899, %v5963
    %v5972 = vadd.f32 %v5900, %v5964
    %s5973 = sld [smem:[#allocation2 + $0xa7]]
    %v5974 = vstv %s5973
    %v5975 = vmul.f32 %v5974, %v2507
    %v5976 = vmul.f32 %v5974, %v2508
    %v5977 = vmul.f32 %v5974, %v2509
    %v5978 = vmul.f32 %v5974, %v2510
    %v5979 = vmul.f32 %v5974, %v2511
    %v5980 = vmul.f32 %v5974, %v2512
    %v5981 = vmul.f32 %v5974, %v2513
    %v5982 = vmul.f32 %v5974, %v2514
    %v5983 = vadd.f32 %v5911, %v5975
    %v5984 = vadd.f32 %v5912, %v5976
    %v5985 = vadd.f32 %v5913, %v5977
    %v5986 = vadd.f32 %v5914, %v5978
    %v5987 = vadd.f32 %v5915, %v5979
    %v5988 = vadd.f32 %v5916, %v5980
    %v5989 = vadd.f32 %v5917, %v5981
    %v5990 = vadd.f32 %v5918, %v5982
    %s5991 = sld [smem:[#allocation2 + $0xcb]]
    %v5992 = vstv %s5991
    %v5993 = vmul.f32 %v5992, %v2507
    %v5994 = vmul.f32 %v5992, %v2508
    %v5995 = vmul.f32 %v5992, %v2509
    %v5996 = vmul.f32 %v5992, %v2510
    %v5997 = vmul.f32 %v5992, %v2511
    %v5998 = vmul.f32 %v5992, %v2512
    %v5999 = vmul.f32 %v5992, %v2513
    %v6000 = vmul.f32 %v5992, %v2514
    %v6001 = vadd.f32 %v5929, %v5993
    %v6002 = vadd.f32 %v5930, %v5994
    %v6003 = vadd.f32 %v5931, %v5995
    %v6004 = vadd.f32 %v5932, %v5996
    %v6005 = vadd.f32 %v5933, %v5997
    %v6006 = vadd.f32 %v5934, %v5998
    %v6007 = vadd.f32 %v5935, %v5999
    %v6008 = vadd.f32 %v5936, %v6000
    %s6009 = sld [smem:[#allocation2 + $0xef]]
    %v6010 = vstv %s6009
    %v6011 = vmul.f32 %v6010, %v2507
    %v6012 = vmul.f32 %v6010, %v2508
    %v6013 = vmul.f32 %v6010, %v2509
    %v6014 = vmul.f32 %v6010, %v2510
    %v6015 = vmul.f32 %v6010, %v2511
    %v6016 = vmul.f32 %v6010, %v2512
    %v6017 = vmul.f32 %v6010, %v2513
    %v6018 = vmul.f32 %v6010, %v2514
    %v6019 = vadd.f32 %v5947, %v6011
    %v6020 = vadd.f32 %v5948, %v6012
    %v6021 = vadd.f32 %v5949, %v6013
    %v6022 = vadd.f32 %v5950, %v6014
    %v6023 = vadd.f32 %v5951, %v6015
    %v6024 = vadd.f32 %v5952, %v6016
    %v6025 = vadd.f32 %v5953, %v6017
    %v6026 = vadd.f32 %v5954, %v6018
    %s6027 = sld [smem:[#allocation2 + $0x113]]
    %v6028 = vstv %s6027
    %v6029 = vmul.f32 %v6028, %v2507
    %v6030 = vmul.f32 %v6028, %v2508
    %v6031 = vmul.f32 %v6028, %v2509
    %v6032 = vmul.f32 %v6028, %v2510
    %v6033 = vmul.f32 %v6028, %v2511
    %v6034 = vmul.f32 %v6028, %v2512
    %v6035 = vmul.f32 %v6028, %v2513
    %v6036 = vmul.f32 %v6028, %v2514
    %v6037 = vadd.f32 %v5965, %v6029
    %v6038 = vadd.f32 %v5966, %v6030
    %v6039 = vadd.f32 %v5967, %v6031
    %v6040 = vadd.f32 %v5968, %v6032
    %v6041 = vadd.f32 %v5969, %v6033
    %v6042 = vadd.f32 %v5970, %v6034
    %v6043 = vadd.f32 %v5971, %v6035
    %v6044 = vadd.f32 %v5972, %v6036
    %s6045 = sld [smem:[#allocation2 + $0xa8]]
    %v6046 = vstv %s6045
    %v6047 = vmul.f32 %v6046, %v2611
    %v6048 = vmul.f32 %v6046, %v2612
    %v6049 = vmul.f32 %v6046, %v2613
    %v6050 = vmul.f32 %v6046, %v2614
    %v6051 = vmul.f32 %v6046, %v2615
    %v6052 = vmul.f32 %v6046, %v2616
    %v6053 = vmul.f32 %v6046, %v2617
    %v6054 = vmul.f32 %v6046, %v2618
    %v6055 = vadd.f32 %v5983, %v6047
    %v6056 = vadd.f32 %v5984, %v6048
    %v6057 = vadd.f32 %v5985, %v6049
    %v6058 = vadd.f32 %v5986, %v6050
    %v6059 = vadd.f32 %v5987, %v6051
    %v6060 = vadd.f32 %v5988, %v6052
    %v6061 = vadd.f32 %v5989, %v6053
    %v6062 = vadd.f32 %v5990, %v6054
    %s6063 = sld [smem:[#allocation2 + $0xcc]]
    %v6064 = vstv %s6063
    %v6065 = vmul.f32 %v6064, %v2611
    %v6066 = vmul.f32 %v6064, %v2612
    %v6067 = vmul.f32 %v6064, %v2613
    %v6068 = vmul.f32 %v6064, %v2614
    %v6069 = vmul.f32 %v6064, %v2615
    %v6070 = vmul.f32 %v6064, %v2616
    %v6071 = vmul.f32 %v6064, %v2617
    %v6072 = vmul.f32 %v6064, %v2618
    %v6073 = vadd.f32 %v6001, %v6065
    %v6074 = vadd.f32 %v6002, %v6066
    %v6075 = vadd.f32 %v6003, %v6067
    %v6076 = vadd.f32 %v6004, %v6068
    %v6077 = vadd.f32 %v6005, %v6069
    %v6078 = vadd.f32 %v6006, %v6070
    %v6079 = vadd.f32 %v6007, %v6071
    %v6080 = vadd.f32 %v6008, %v6072
    %s6081 = sld [smem:[#allocation2 + $0xf0]]
    %v6082 = vstv %s6081
    %v6083 = vmul.f32 %v6082, %v2611
    %v6084 = vmul.f32 %v6082, %v2612
    %v6085 = vmul.f32 %v6082, %v2613
    %v6086 = vmul.f32 %v6082, %v2614
    %v6087 = vmul.f32 %v6082, %v2615
    %v6088 = vmul.f32 %v6082, %v2616
    %v6089 = vmul.f32 %v6082, %v2617
    %v6090 = vmul.f32 %v6082, %v2618
    %v6091 = vadd.f32 %v6019, %v6083
    %v6092 = vadd.f32 %v6020, %v6084
    %v6093 = vadd.f32 %v6021, %v6085
    %v6094 = vadd.f32 %v6022, %v6086
    %v6095 = vadd.f32 %v6023, %v6087
    %v6096 = vadd.f32 %v6024, %v6088
    %v6097 = vadd.f32 %v6025, %v6089
    %v6098 = vadd.f32 %v6026, %v6090
    %s6099 = sld [smem:[#allocation2 + $0x114]]
    %v6100 = vstv %s6099
    %v6101 = vmul.f32 %v6100, %v2611
    %v6102 = vmul.f32 %v6100, %v2612
    %v6103 = vmul.f32 %v6100, %v2613
    %v6104 = vmul.f32 %v6100, %v2614
    %v6105 = vmul.f32 %v6100, %v2615
    %v6106 = vmul.f32 %v6100, %v2616
    %v6107 = vmul.f32 %v6100, %v2617
    %v6108 = vmul.f32 %v6100, %v2618
    %v6109 = vadd.f32 %v6037, %v6101
    %v6110 = vadd.f32 %v6038, %v6102
    %v6111 = vadd.f32 %v6039, %v6103
    %v6112 = vadd.f32 %v6040, %v6104
    %v6113 = vadd.f32 %v6041, %v6105
    %v6114 = vadd.f32 %v6042, %v6106
    %v6115 = vadd.f32 %v6043, %v6107
    %v6116 = vadd.f32 %v6044, %v6108
    %s6117 = sld [smem:[#allocation2 + $0xa9]]
    %v6118 = vstv %s6117
    %v6119 = vmul.f32 %v6118, %v2715
    %v6120 = vmul.f32 %v6118, %v2716
    %v6121 = vmul.f32 %v6118, %v2717
    %v6122 = vmul.f32 %v6118, %v2718
    %v6123 = vmul.f32 %v6118, %v2719
    %v6124 = vmul.f32 %v6118, %v2720
    %v6125 = vmul.f32 %v6118, %v2721
    %v6126 = vmul.f32 %v6118, %v2722
    %v6127 = vadd.f32 %v6055, %v6119
    %v6128 = vadd.f32 %v6056, %v6120
    %v6129 = vadd.f32 %v6057, %v6121
    %v6130 = vadd.f32 %v6058, %v6122
    %v6131 = vadd.f32 %v6059, %v6123
    %v6132 = vadd.f32 %v6060, %v6124
    %v6133 = vadd.f32 %v6061, %v6125
    %v6134 = vadd.f32 %v6062, %v6126
    %s6135 = sld [smem:[#allocation2 + $0xcd]]
    %v6136 = vstv %s6135
    %v6137 = vmul.f32 %v6136, %v2715
    %v6138 = vmul.f32 %v6136, %v2716
    %v6139 = vmul.f32 %v6136, %v2717
    %v6140 = vmul.f32 %v6136, %v2718
    %v6141 = vmul.f32 %v6136, %v2719
    %v6142 = vmul.f32 %v6136, %v2720
    %v6143 = vmul.f32 %v6136, %v2721
    %v6144 = vmul.f32 %v6136, %v2722
    %v6145 = vadd.f32 %v6073, %v6137
    %v6146 = vadd.f32 %v6074, %v6138
    %v6147 = vadd.f32 %v6075, %v6139
    %v6148 = vadd.f32 %v6076, %v6140
    %v6149 = vadd.f32 %v6077, %v6141
    %v6150 = vadd.f32 %v6078, %v6142
    %v6151 = vadd.f32 %v6079, %v6143
    %v6152 = vadd.f32 %v6080, %v6144
    %s6153 = sld [smem:[#allocation2 + $0xf1]]
    %v6154 = vstv %s6153
    %v6155 = vmul.f32 %v6154, %v2715
    %v6156 = vmul.f32 %v6154, %v2716
    %v6157 = vmul.f32 %v6154, %v2717
    %v6158 = vmul.f32 %v6154, %v2718
    %v6159 = vmul.f32 %v6154, %v2719
    %v6160 = vmul.f32 %v6154, %v2720
    %v6161 = vmul.f32 %v6154, %v2721
    %v6162 = vmul.f32 %v6154, %v2722
    %v6163 = vadd.f32 %v6091, %v6155
    %v6164 = vadd.f32 %v6092, %v6156
    %v6165 = vadd.f32 %v6093, %v6157
    %v6166 = vadd.f32 %v6094, %v6158
    %v6167 = vadd.f32 %v6095, %v6159
    %v6168 = vadd.f32 %v6096, %v6160
    %v6169 = vadd.f32 %v6097, %v6161
    %v6170 = vadd.f32 %v6098, %v6162
    %s6171 = sld [smem:[#allocation2 + $0x115]]
    %v6172 = vstv %s6171
    %v6173 = vmul.f32 %v6172, %v2715
    %v6174 = vmul.f32 %v6172, %v2716
    %v6175 = vmul.f32 %v6172, %v2717
    %v6176 = vmul.f32 %v6172, %v2718
    %v6177 = vmul.f32 %v6172, %v2719
    %v6178 = vmul.f32 %v6172, %v2720
    %v6179 = vmul.f32 %v6172, %v2721
    %v6180 = vmul.f32 %v6172, %v2722
    %v6181 = vadd.f32 %v6109, %v6173
    %v6182 = vadd.f32 %v6110, %v6174
    %v6183 = vadd.f32 %v6111, %v6175
    %v6184 = vadd.f32 %v6112, %v6176
    %v6185 = vadd.f32 %v6113, %v6177
    %v6186 = vadd.f32 %v6114, %v6178
    %v6187 = vadd.f32 %v6115, %v6179
    %v6188 = vadd.f32 %v6116, %v6180
    %s6189 = sld [smem:[#allocation2 + $0xaa]]
    %v6190 = vstv %s6189
    %v6191 = vmul.f32 %v6190, %v2819
    %v6192 = vmul.f32 %v6190, %v2820
    %v6193 = vmul.f32 %v6190, %v2821
    %v6194 = vmul.f32 %v6190, %v2822
    %v6195 = vmul.f32 %v6190, %v2823
    %v6196 = vmul.f32 %v6190, %v2824
    %v6197 = vmul.f32 %v6190, %v2825
    %v6198 = vmul.f32 %v6190, %v2826
    %v6199 = vadd.f32 %v6127, %v6191
    %v6200 = vadd.f32 %v6128, %v6192
    %v6201 = vadd.f32 %v6129, %v6193
    %v6202 = vadd.f32 %v6130, %v6194
    %v6203 = vadd.f32 %v6131, %v6195
    %v6204 = vadd.f32 %v6132, %v6196
    %v6205 = vadd.f32 %v6133, %v6197
    %v6206 = vadd.f32 %v6134, %v6198
    %s6207 = sld [smem:[#allocation2 + $0xce]]
    %v6208 = vstv %s6207
    %v6209 = vmul.f32 %v6208, %v2819
    %v6210 = vmul.f32 %v6208, %v2820
    %v6211 = vmul.f32 %v6208, %v2821
    %v6212 = vmul.f32 %v6208, %v2822
    %v6213 = vmul.f32 %v6208, %v2823
    %v6214 = vmul.f32 %v6208, %v2824
    %v6215 = vmul.f32 %v6208, %v2825
    %v6216 = vmul.f32 %v6208, %v2826
    %v6217 = vadd.f32 %v6145, %v6209
    %v6218 = vadd.f32 %v6146, %v6210
    %v6219 = vadd.f32 %v6147, %v6211
    %v6220 = vadd.f32 %v6148, %v6212
    %v6221 = vadd.f32 %v6149, %v6213
    %v6222 = vadd.f32 %v6150, %v6214
    %v6223 = vadd.f32 %v6151, %v6215
    %v6224 = vadd.f32 %v6152, %v6216
    %s6225 = sld [smem:[#allocation2 + $0xf2]]
    %v6226 = vstv %s6225
    %v6227 = vmul.f32 %v6226, %v2819
    %v6228 = vmul.f32 %v6226, %v2820
    %v6229 = vmul.f32 %v6226, %v2821
    %v6230 = vmul.f32 %v6226, %v2822
    %v6231 = vmul.f32 %v6226, %v2823
    %v6232 = vmul.f32 %v6226, %v2824
    %v6233 = vmul.f32 %v6226, %v2825
    %v6234 = vmul.f32 %v6226, %v2826
    %v6235 = vadd.f32 %v6163, %v6227
    %v6236 = vadd.f32 %v6164, %v6228
    %v6237 = vadd.f32 %v6165, %v6229
    %v6238 = vadd.f32 %v6166, %v6230
    %v6239 = vadd.f32 %v6167, %v6231
    %v6240 = vadd.f32 %v6168, %v6232
    %v6241 = vadd.f32 %v6169, %v6233
    %v6242 = vadd.f32 %v6170, %v6234
    %s6243 = sld [smem:[#allocation2 + $0x116]]
    %v6244 = vstv %s6243
    %v6245 = vmul.f32 %v6244, %v2819
    %v6246 = vmul.f32 %v6244, %v2820
    %v6247 = vmul.f32 %v6244, %v2821
    %v6248 = vmul.f32 %v6244, %v2822
    %v6249 = vmul.f32 %v6244, %v2823
    %v6250 = vmul.f32 %v6244, %v2824
    %v6251 = vmul.f32 %v6244, %v2825
    %v6252 = vmul.f32 %v6244, %v2826
    %v6253 = vadd.f32 %v6181, %v6245
    %v6254 = vadd.f32 %v6182, %v6246
    %v6255 = vadd.f32 %v6183, %v6247
    %v6256 = vadd.f32 %v6184, %v6248
    %v6257 = vadd.f32 %v6185, %v6249
    %v6258 = vadd.f32 %v6186, %v6250
    %v6259 = vadd.f32 %v6187, %v6251
    %v6260 = vadd.f32 %v6188, %v6252
    %s6261 = sld [smem:[#allocation2 + $0xab]]
    %v6262 = vstv %s6261
    %v6263 = vmul.f32 %v6262, %v2934
    %v6264 = vmul.f32 %v6262, %v2935
    %v6265 = vmul.f32 %v6262, %v2936
    %v6266 = vmul.f32 %v6262, %v2937
    %v6267 = vmul.f32 %v6262, %v2938
    %v6268 = vmul.f32 %v6262, %v2939
    %v6269 = vmul.f32 %v6262, %v2940
    %v6270 = vmul.f32 %v6262, %v2941
    %v6271 = vadd.f32 %v6199, %v6263
    %v6272 = vadd.f32 %v6200, %v6264
    %v6273 = vadd.f32 %v6201, %v6265
    %v6274 = vadd.f32 %v6202, %v6266
    %v6275 = vadd.f32 %v6203, %v6267
    %v6276 = vadd.f32 %v6204, %v6268
    %v6277 = vadd.f32 %v6205, %v6269
    %v6278 = vadd.f32 %v6206, %v6270
    %s6279 = sld [smem:[#allocation2 + $0xcf]]
    %v6280 = vstv %s6279
    %v6281 = vmul.f32 %v6280, %v2934
    %v6282 = vmul.f32 %v6280, %v2935
    %v6283 = vmul.f32 %v6280, %v2936
    %v6284 = vmul.f32 %v6280, %v2937
    %v6285 = vmul.f32 %v6280, %v2938
    %v6286 = vmul.f32 %v6280, %v2939
    %v6287 = vmul.f32 %v6280, %v2940
    %v6288 = vmul.f32 %v6280, %v2941
    %v6289 = vadd.f32 %v6217, %v6281
    %v6290 = vadd.f32 %v6218, %v6282
    %v6291 = vadd.f32 %v6219, %v6283
    %v6292 = vadd.f32 %v6220, %v6284
    %v6293 = vadd.f32 %v6221, %v6285
    %v6294 = vadd.f32 %v6222, %v6286
    %v6295 = vadd.f32 %v6223, %v6287
    %v6296 = vadd.f32 %v6224, %v6288
    %s6297 = sld [smem:[#allocation2 + $0xf3]]
    %v6298 = vstv %s6297
    %v6299 = vmul.f32 %v6298, %v2934
    %v6300 = vmul.f32 %v6298, %v2935
    %v6301 = vmul.f32 %v6298, %v2936
    %v6302 = vmul.f32 %v6298, %v2937
    %v6303 = vmul.f32 %v6298, %v2938
    %v6304 = vmul.f32 %v6298, %v2939
    %v6305 = vmul.f32 %v6298, %v2940
    %v6306 = vmul.f32 %v6298, %v2941
    %v6307 = vadd.f32 %v6235, %v6299
    %v6308 = vadd.f32 %v6236, %v6300
    %v6309 = vadd.f32 %v6237, %v6301
    %v6310 = vadd.f32 %v6238, %v6302
    %v6311 = vadd.f32 %v6239, %v6303
    %v6312 = vadd.f32 %v6240, %v6304
    %v6313 = vadd.f32 %v6241, %v6305
    %v6314 = vadd.f32 %v6242, %v6306
    %s6315 = sld [smem:[#allocation2 + $0x117]]
    %v6316 = vstv %s6315
    %v6317 = vmul.f32 %v6316, %v2934
    %v6318 = vmul.f32 %v6316, %v2935
    %v6319 = vmul.f32 %v6316, %v2936
    %v6320 = vmul.f32 %v6316, %v2937
    %v6321 = vmul.f32 %v6316, %v2938
    %v6322 = vmul.f32 %v6316, %v2939
    %v6323 = vmul.f32 %v6316, %v2940
    %v6324 = vmul.f32 %v6316, %v2941
    %v6325 = vadd.f32 %v6253, %v6317
    %v6326 = vadd.f32 %v6254, %v6318
    %v6327 = vadd.f32 %v6255, %v6319
    %v6328 = vadd.f32 %v6256, %v6320
    %v6329 = vadd.f32 %v6257, %v6321
    %v6330 = vadd.f32 %v6258, %v6322
    %v6331 = vadd.f32 %v6259, %v6323
    %v6332 = vadd.f32 %v6260, %v6324
    %s6333 = sld [smem:[#allocation2 + $0xac]]
    %v6334 = vstv %s6333
    %v6335 = vmul.f32 %v6334, %v3038
    %v6336 = vmul.f32 %v6334, %v3039
    %v6337 = vmul.f32 %v6334, %v3040
    %v6338 = vmul.f32 %v6334, %v3041
    %v6339 = vmul.f32 %v6334, %v3042
    %v6340 = vmul.f32 %v6334, %v3043
    %v6341 = vmul.f32 %v6334, %v3044
    %v6342 = vmul.f32 %v6334, %v3045
    %v6343 = vadd.f32 %v6271, %v6335
    %v6344 = vadd.f32 %v6272, %v6336
    %v6345 = vadd.f32 %v6273, %v6337
    %v6346 = vadd.f32 %v6274, %v6338
    %v6347 = vadd.f32 %v6275, %v6339
    %v6348 = vadd.f32 %v6276, %v6340
    %v6349 = vadd.f32 %v6277, %v6341
    %v6350 = vadd.f32 %v6278, %v6342
    %s6351 = sld [smem:[#allocation2 + $0xd0]]
    %v6352 = vstv %s6351
    %v6353 = vmul.f32 %v6352, %v3038
    %v6354 = vmul.f32 %v6352, %v3039
    %v6355 = vmul.f32 %v6352, %v3040
    %v6356 = vmul.f32 %v6352, %v3041
    %v6357 = vmul.f32 %v6352, %v3042
    %v6358 = vmul.f32 %v6352, %v3043
    %v6359 = vmul.f32 %v6352, %v3044
    %v6360 = vmul.f32 %v6352, %v3045
    %v6361 = vadd.f32 %v6289, %v6353
    %v6362 = vadd.f32 %v6290, %v6354
    %v6363 = vadd.f32 %v6291, %v6355
    %v6364 = vadd.f32 %v6292, %v6356
    %v6365 = vadd.f32 %v6293, %v6357
    %v6366 = vadd.f32 %v6294, %v6358
    %v6367 = vadd.f32 %v6295, %v6359
    %v6368 = vadd.f32 %v6296, %v6360
    %s6369 = sld [smem:[#allocation2 + $0xf4]]
    %v6370 = vstv %s6369
    %v6371 = vmul.f32 %v6370, %v3038
    %v6372 = vmul.f32 %v6370, %v3039
    %v6373 = vmul.f32 %v6370, %v3040
    %v6374 = vmul.f32 %v6370, %v3041
    %v6375 = vmul.f32 %v6370, %v3042
    %v6376 = vmul.f32 %v6370, %v3043
    %v6377 = vmul.f32 %v6370, %v3044
    %v6378 = vmul.f32 %v6370, %v3045
    %v6379 = vadd.f32 %v6307, %v6371
    %v6380 = vadd.f32 %v6308, %v6372
    %v6381 = vadd.f32 %v6309, %v6373
    %v6382 = vadd.f32 %v6310, %v6374
    %v6383 = vadd.f32 %v6311, %v6375
    %v6384 = vadd.f32 %v6312, %v6376
    %v6385 = vadd.f32 %v6313, %v6377
    %v6386 = vadd.f32 %v6314, %v6378
    %s6387 = sld [smem:[#allocation2 + $0x118]]
    %v6388 = vstv %s6387
    %v6389 = vmul.f32 %v6388, %v3038
    %v6390 = vmul.f32 %v6388, %v3039
    %v6391 = vmul.f32 %v6388, %v3040
    %v6392 = vmul.f32 %v6388, %v3041
    %v6393 = vmul.f32 %v6388, %v3042
    %v6394 = vmul.f32 %v6388, %v3043
    %v6395 = vmul.f32 %v6388, %v3044
    %v6396 = vmul.f32 %v6388, %v3045
    %v6397 = vadd.f32 %v6325, %v6389
    %v6398 = vadd.f32 %v6326, %v6390
    %v6399 = vadd.f32 %v6327, %v6391
    %v6400 = vadd.f32 %v6328, %v6392
    %v6401 = vadd.f32 %v6329, %v6393
    %v6402 = vadd.f32 %v6330, %v6394
    %v6403 = vadd.f32 %v6331, %v6395
    %v6404 = vadd.f32 %v6332, %v6396
    %s6405 = sld [smem:[#allocation2 + $0xad]]
    %v6406 = vstv %s6405
    %v6407 = vmul.f32 %v6406, %v3142
    %v6408 = vmul.f32 %v6406, %v3143
    %v6409 = vmul.f32 %v6406, %v3144
    %v6410 = vmul.f32 %v6406, %v3145
    %v6411 = vmul.f32 %v6406, %v3146
    %v6412 = vmul.f32 %v6406, %v3147
    %v6413 = vmul.f32 %v6406, %v3148
    %v6414 = vmul.f32 %v6406, %v3149
    %v6415 = vadd.f32 %v6343, %v6407
    %v6416 = vadd.f32 %v6344, %v6408
    %v6417 = vadd.f32 %v6345, %v6409
    %v6418 = vadd.f32 %v6346, %v6410
    %v6419 = vadd.f32 %v6347, %v6411
    %v6420 = vadd.f32 %v6348, %v6412
    %v6421 = vadd.f32 %v6349, %v6413
    %v6422 = vadd.f32 %v6350, %v6414
    %s6423 = sld [smem:[#allocation2 + $0xd1]]
    %v6424 = vstv %s6423
    %v6425 = vmul.f32 %v6424, %v3142
    %v6426 = vmul.f32 %v6424, %v3143
    %v6427 = vmul.f32 %v6424, %v3144
    %v6428 = vmul.f32 %v6424, %v3145
    %v6429 = vmul.f32 %v6424, %v3146
    %v6430 = vmul.f32 %v6424, %v3147
    %v6431 = vmul.f32 %v6424, %v3148
    %v6432 = vmul.f32 %v6424, %v3149
    %v6433 = vadd.f32 %v6361, %v6425
    %v6434 = vadd.f32 %v6362, %v6426
    %v6435 = vadd.f32 %v6363, %v6427
    %v6436 = vadd.f32 %v6364, %v6428
    %v6437 = vadd.f32 %v6365, %v6429
    %v6438 = vadd.f32 %v6366, %v6430
    %v6439 = vadd.f32 %v6367, %v6431
    %v6440 = vadd.f32 %v6368, %v6432
    %s6441 = sld [smem:[#allocation2 + $0xf5]]
    %v6442 = vstv %s6441
    %v6443 = vmul.f32 %v6442, %v3142
    %v6444 = vmul.f32 %v6442, %v3143
    %v6445 = vmul.f32 %v6442, %v3144
    %v6446 = vmul.f32 %v6442, %v3145
    %v6447 = vmul.f32 %v6442, %v3146
    %v6448 = vmul.f32 %v6442, %v3147
    %v6449 = vmul.f32 %v6442, %v3148
    %v6450 = vmul.f32 %v6442, %v3149
    %v6451 = vadd.f32 %v6379, %v6443
    %v6452 = vadd.f32 %v6380, %v6444
    %v6453 = vadd.f32 %v6381, %v6445
    %v6454 = vadd.f32 %v6382, %v6446
    %v6455 = vadd.f32 %v6383, %v6447
    %v6456 = vadd.f32 %v6384, %v6448
    %v6457 = vadd.f32 %v6385, %v6449
    %v6458 = vadd.f32 %v6386, %v6450
    %s6459 = sld [smem:[#allocation2 + $0x119]]
    %v6460 = vstv %s6459
    %v6461 = vmul.f32 %v6460, %v3142
    %v6462 = vmul.f32 %v6460, %v3143
    %v6463 = vmul.f32 %v6460, %v3144
    %v6464 = vmul.f32 %v6460, %v3145
    %v6465 = vmul.f32 %v6460, %v3146
    %v6466 = vmul.f32 %v6460, %v3147
    %v6467 = vmul.f32 %v6460, %v3148
    %v6468 = vmul.f32 %v6460, %v3149
    %v6469 = vadd.f32 %v6397, %v6461
    %v6470 = vadd.f32 %v6398, %v6462
    %v6471 = vadd.f32 %v6399, %v6463
    %v6472 = vadd.f32 %v6400, %v6464
    %v6473 = vadd.f32 %v6401, %v6465
    %v6474 = vadd.f32 %v6402, %v6466
    %v6475 = vadd.f32 %v6403, %v6467
    %v6476 = vadd.f32 %v6404, %v6468
    %s6477 = sld [smem:[#allocation2 + $0xae]]
    %v6478 = vstv %s6477
    %v6479 = vmul.f32 %v6478, %v3246
    %v6480 = vmul.f32 %v6478, %v3247
    %v6481 = vmul.f32 %v6478, %v3248
    %v6482 = vmul.f32 %v6478, %v3249
    %v6483 = vmul.f32 %v6478, %v3250
    %v6484 = vmul.f32 %v6478, %v3251
    %v6485 = vmul.f32 %v6478, %v3252
    %v6486 = vmul.f32 %v6478, %v3253
    %v6487 = vadd.f32 %v6415, %v6479
    %v6488 = vadd.f32 %v6416, %v6480
    %v6489 = vadd.f32 %v6417, %v6481
    %v6490 = vadd.f32 %v6418, %v6482
    %v6491 = vadd.f32 %v6419, %v6483
    %v6492 = vadd.f32 %v6420, %v6484
    %v6493 = vadd.f32 %v6421, %v6485
    %v6494 = vadd.f32 %v6422, %v6486
    %s6495 = sld [smem:[#allocation2 + $0xd2]]
    %v6496 = vstv %s6495
    %v6497 = vmul.f32 %v6496, %v3246
    %v6498 = vmul.f32 %v6496, %v3247
    %v6499 = vmul.f32 %v6496, %v3248
    %v6500 = vmul.f32 %v6496, %v3249
    %v6501 = vmul.f32 %v6496, %v3250
    %v6502 = vmul.f32 %v6496, %v3251
    %v6503 = vmul.f32 %v6496, %v3252
    %v6504 = vmul.f32 %v6496, %v3253
    %v6505 = vadd.f32 %v6433, %v6497
    %v6506 = vadd.f32 %v6434, %v6498
    %v6507 = vadd.f32 %v6435, %v6499
    %v6508 = vadd.f32 %v6436, %v6500
    %v6509 = vadd.f32 %v6437, %v6501
    %v6510 = vadd.f32 %v6438, %v6502
    %v6511 = vadd.f32 %v6439, %v6503
    %v6512 = vadd.f32 %v6440, %v6504
    %s6513 = sld [smem:[#allocation2 + $0xf6]]
    %v6514 = vstv %s6513
    %v6515 = vmul.f32 %v6514, %v3246
    %v6516 = vmul.f32 %v6514, %v3247
    %v6517 = vmul.f32 %v6514, %v3248
    %v6518 = vmul.f32 %v6514, %v3249
    %v6519 = vmul.f32 %v6514, %v3250
    %v6520 = vmul.f32 %v6514, %v3251
    %v6521 = vmul.f32 %v6514, %v3252
    %v6522 = vmul.f32 %v6514, %v3253
    %v6523 = vadd.f32 %v6451, %v6515
    %v6524 = vadd.f32 %v6452, %v6516
    %v6525 = vadd.f32 %v6453, %v6517
    %v6526 = vadd.f32 %v6454, %v6518
    %v6527 = vadd.f32 %v6455, %v6519
    %v6528 = vadd.f32 %v6456, %v6520
    %v6529 = vadd.f32 %v6457, %v6521
    %v6530 = vadd.f32 %v6458, %v6522
    %s6531 = sld [smem:[#allocation2 + $0x11a]]
    %v6532 = vstv %s6531
    %v6533 = vmul.f32 %v6532, %v3246
    %v6534 = vmul.f32 %v6532, %v3247
    %v6535 = vmul.f32 %v6532, %v3248
    %v6536 = vmul.f32 %v6532, %v3249
    %v6537 = vmul.f32 %v6532, %v3250
    %v6538 = vmul.f32 %v6532, %v3251
    %v6539 = vmul.f32 %v6532, %v3252
    %v6540 = vmul.f32 %v6532, %v3253
    %v6541 = vadd.f32 %v6469, %v6533
    %v6542 = vadd.f32 %v6470, %v6534
    %v6543 = vadd.f32 %v6471, %v6535
    %v6544 = vadd.f32 %v6472, %v6536
    %v6545 = vadd.f32 %v6473, %v6537
    %v6546 = vadd.f32 %v6474, %v6538
    %v6547 = vadd.f32 %v6475, %v6539
    %v6548 = vadd.f32 %v6476, %v6540
    %s6549 = sld [smem:[#allocation2 + $0xaf]]
    %v6550 = vstv %s6549
    %v6551 = vmul.f32 %v6550, %v2902
    %v6552 = vmul.f32 %v6550, %v2903
    %v6553 = vmul.f32 %v6550, %v2904
    %v6554 = vmul.f32 %v6550, %v2905
    %v6555 = vmul.f32 %v6550, %v2906
    %v6556 = vmul.f32 %v6550, %v2907
    %v6557 = vmul.f32 %v6550, %v2908
    %v6558 = vmul.f32 %v6550, %v2909
    %v6559 = vadd.f32 %v6487, %v6551
    %v6560 = vadd.f32 %v6488, %v6552
    %v6561 = vadd.f32 %v6489, %v6553
    %v6562 = vadd.f32 %v6490, %v6554
    %v6563 = vadd.f32 %v6491, %v6555
    %v6564 = vadd.f32 %v6492, %v6556
    %v6565 = vadd.f32 %v6493, %v6557
    %v6566 = vadd.f32 %v6494, %v6558
    %s6567 = sld [smem:[#allocation2 + $0xd3]]
    %v6568 = vstv %s6567
    %v6569 = vmul.f32 %v6568, %v2902
    %v6570 = vmul.f32 %v6568, %v2903
    %v6571 = vmul.f32 %v6568, %v2904
    %v6572 = vmul.f32 %v6568, %v2905
    %v6573 = vmul.f32 %v6568, %v2906
    %v6574 = vmul.f32 %v6568, %v2907
    %v6575 = vmul.f32 %v6568, %v2908
    %v6576 = vmul.f32 %v6568, %v2909
    %v6577 = vadd.f32 %v6505, %v6569
    %v6578 = vadd.f32 %v6506, %v6570
    %v6579 = vadd.f32 %v6507, %v6571
    %v6580 = vadd.f32 %v6508, %v6572
    %v6581 = vadd.f32 %v6509, %v6573
    %v6582 = vadd.f32 %v6510, %v6574
    %v6583 = vadd.f32 %v6511, %v6575
    %v6584 = vadd.f32 %v6512, %v6576
    %s6585 = sld [smem:[#allocation2 + $0xf7]]
    %v6586 = vstv %s6585
    %v6587 = vmul.f32 %v6586, %v2902
    %v6588 = vmul.f32 %v6586, %v2903
    %v6589 = vmul.f32 %v6586, %v2904
    %v6590 = vmul.f32 %v6586, %v2905
    %v6591 = vmul.f32 %v6586, %v2906
    %v6592 = vmul.f32 %v6586, %v2907
    %v6593 = vmul.f32 %v6586, %v2908
    %v6594 = vmul.f32 %v6586, %v2909
    %v6595 = vadd.f32 %v6523, %v6587
    %v6596 = vadd.f32 %v6524, %v6588
    %v6597 = vadd.f32 %v6525, %v6589
    %v6598 = vadd.f32 %v6526, %v6590
    %v6599 = vadd.f32 %v6527, %v6591
    %v6600 = vadd.f32 %v6528, %v6592
    %v6601 = vadd.f32 %v6529, %v6593
    %v6602 = vadd.f32 %v6530, %v6594
    %s6603 = sld [smem:[#allocation2 + $0x11b]]
    %v6604 = vstv %s6603
    %v6605 = vmul.f32 %v6604, %v2902
    %v6606 = vmul.f32 %v6604, %v2903
    %v6607 = vmul.f32 %v6604, %v2904
    %v6608 = vmul.f32 %v6604, %v2905
    %v6609 = vmul.f32 %v6604, %v2906
    %v6610 = vmul.f32 %v6604, %v2907
    %v6611 = vmul.f32 %v6604, %v2908
    %v6612 = vmul.f32 %v6604, %v2909
    %v6613 = vadd.f32 %v6541, %v6605
    %v6614 = vadd.f32 %v6542, %v6606
    %v6615 = vadd.f32 %v6543, %v6607
    %v6616 = vadd.f32 %v6544, %v6608
    %v6617 = vadd.f32 %v6545, %v6609
    %v6618 = vadd.f32 %v6546, %v6610
    %v6619 = vadd.f32 %v6547, %v6611
    %v6620 = vadd.f32 %v6548, %v6612
    %s6621 = sld [smem:[#allocation2 + $0xb0]]
    %v6622 = vstv %s6621
    %v6623 = vmul.f32 %v6622, %v3422
    %v6624 = vmul.f32 %v6622, %v3423
    %v6625 = vmul.f32 %v6622, %v3424
    %v6626 = vmul.f32 %v6622, %v3425
    %v6627 = vmul.f32 %v6622, %v3426
    %v6628 = vmul.f32 %v6622, %v3427
    %v6629 = vmul.f32 %v6622, %v3428
    %v6630 = vmul.f32 %v6622, %v3429
    %v6631 = vadd.f32 %v6559, %v6623
    %v6632 = vadd.f32 %v6560, %v6624
    %v6633 = vadd.f32 %v6561, %v6625
    %v6634 = vadd.f32 %v6562, %v6626
    %v6635 = vadd.f32 %v6563, %v6627
    %v6636 = vadd.f32 %v6564, %v6628
    %v6637 = vadd.f32 %v6565, %v6629
    %v6638 = vadd.f32 %v6566, %v6630
    %s6639 = sld [smem:[#allocation2 + $0xd4]]
    %v6640 = vstv %s6639
    %v6641 = vmul.f32 %v6640, %v3422
    %v6642 = vmul.f32 %v6640, %v3423
    %v6643 = vmul.f32 %v6640, %v3424
    %v6644 = vmul.f32 %v6640, %v3425
    %v6645 = vmul.f32 %v6640, %v3426
    %v6646 = vmul.f32 %v6640, %v3427
    %v6647 = vmul.f32 %v6640, %v3428
    %v6648 = vmul.f32 %v6640, %v3429
    %v6649 = vadd.f32 %v6577, %v6641
    %v6650 = vadd.f32 %v6578, %v6642
    %v6651 = vadd.f32 %v6579, %v6643
    %v6652 = vadd.f32 %v6580, %v6644
    %v6653 = vadd.f32 %v6581, %v6645
    %v6654 = vadd.f32 %v6582, %v6646
    %v6655 = vadd.f32 %v6583, %v6647
    %v6656 = vadd.f32 %v6584, %v6648
    %s6657 = sld [smem:[#allocation2 + $0xf8]]
    %v6658 = vstv %s6657
    %v6659 = vmul.f32 %v6658, %v3422
    %v6660 = vmul.f32 %v6658, %v3423
    %v6661 = vmul.f32 %v6658, %v3424
    %v6662 = vmul.f32 %v6658, %v3425
    %v6663 = vmul.f32 %v6658, %v3426
    %v6664 = vmul.f32 %v6658, %v3427
    %v6665 = vmul.f32 %v6658, %v3428
    %v6666 = vmul.f32 %v6658, %v3429
    %v6667 = vadd.f32 %v6595, %v6659
    %v6668 = vadd.f32 %v6596, %v6660
    %v6669 = vadd.f32 %v6597, %v6661
    %v6670 = vadd.f32 %v6598, %v6662
    %v6671 = vadd.f32 %v6599, %v6663
    %v6672 = vadd.f32 %v6600, %v6664
    %v6673 = vadd.f32 %v6601, %v6665
    %v6674 = vadd.f32 %v6602, %v6666
    %s6675 = sld [smem:[#allocation2 + $0x11c]]
    %v6676 = vstv %s6675
    %v6677 = vmul.f32 %v6676, %v3422
    %v6678 = vmul.f32 %v6676, %v3423
    %v6679 = vmul.f32 %v6676, %v3424
    %v6680 = vmul.f32 %v6676, %v3425
    %v6681 = vmul.f32 %v6676, %v3426
    %v6682 = vmul.f32 %v6676, %v3427
    %v6683 = vmul.f32 %v6676, %v3428
    %v6684 = vmul.f32 %v6676, %v3429
    %v6685 = vadd.f32 %v6613, %v6677
    %v6686 = vadd.f32 %v6614, %v6678
    %v6687 = vadd.f32 %v6615, %v6679
    %v6688 = vadd.f32 %v6616, %v6680
    %v6689 = vadd.f32 %v6617, %v6681
    %v6690 = vadd.f32 %v6618, %v6682
    %v6691 = vadd.f32 %v6619, %v6683
    %v6692 = vadd.f32 %v6620, %v6684
    %s6693 = sld [smem:[#allocation2 + $0xb1]]
    %v6694 = vstv %s6693
    %v6695 = vmul.f32 %v6694, %v3526
    %v6696 = vmul.f32 %v6694, %v3527
    %v6697 = vmul.f32 %v6694, %v3528
    %v6698 = vmul.f32 %v6694, %v3529
    %v6699 = vmul.f32 %v6694, %v3530
    %v6700 = vmul.f32 %v6694, %v3531
    %v6701 = vmul.f32 %v6694, %v3532
    %v6702 = vmul.f32 %v6694, %v3533
    %v6703 = vadd.f32 %v6631, %v6695
    %v6704 = vadd.f32 %v6632, %v6696
    %v6705 = vadd.f32 %v6633, %v6697
    %v6706 = vadd.f32 %v6634, %v6698
    %v6707 = vadd.f32 %v6635, %v6699
    %v6708 = vadd.f32 %v6636, %v6700
    %v6709 = vadd.f32 %v6637, %v6701
    %v6710 = vadd.f32 %v6638, %v6702
    %s6711 = sld [smem:[#allocation2 + $0xd5]]
    %v6712 = vstv %s6711
    %v6713 = vmul.f32 %v6712, %v3526
    %v6714 = vmul.f32 %v6712, %v3527
    %v6715 = vmul.f32 %v6712, %v3528
    %v6716 = vmul.f32 %v6712, %v3529
    %v6717 = vmul.f32 %v6712, %v3530
    %v6718 = vmul.f32 %v6712, %v3531
    %v6719 = vmul.f32 %v6712, %v3532
    %v6720 = vmul.f32 %v6712, %v3533
    %v6721 = vadd.f32 %v6649, %v6713
    %v6722 = vadd.f32 %v6650, %v6714
    %v6723 = vadd.f32 %v6651, %v6715
    %v6724 = vadd.f32 %v6652, %v6716
    %v6725 = vadd.f32 %v6653, %v6717
    %v6726 = vadd.f32 %v6654, %v6718
    %v6727 = vadd.f32 %v6655, %v6719
    %v6728 = vadd.f32 %v6656, %v6720
    %s6729 = sld [smem:[#allocation2 + $0xf9]]
    %v6730 = vstv %s6729
    %v6731 = vmul.f32 %v6730, %v3526
    %v6732 = vmul.f32 %v6730, %v3527
    %v6733 = vmul.f32 %v6730, %v3528
    %v6734 = vmul.f32 %v6730, %v3529
    %v6735 = vmul.f32 %v6730, %v3530
    %v6736 = vmul.f32 %v6730, %v3531
    %v6737 = vmul.f32 %v6730, %v3532
    %v6738 = vmul.f32 %v6730, %v3533
    %v6739 = vadd.f32 %v6667, %v6731
    %v6740 = vadd.f32 %v6668, %v6732
    %v6741 = vadd.f32 %v6669, %v6733
    %v6742 = vadd.f32 %v6670, %v6734
    %v6743 = vadd.f32 %v6671, %v6735
    %v6744 = vadd.f32 %v6672, %v6736
    %v6745 = vadd.f32 %v6673, %v6737
    %v6746 = vadd.f32 %v6674, %v6738
    %s6747 = sld [smem:[#allocation2 + $0x11d]]
    %v6748 = vstv %s6747
    %v6749 = vmul.f32 %v6748, %v3526
    %v6750 = vmul.f32 %v6748, %v3527
    %v6751 = vmul.f32 %v6748, %v3528
    %v6752 = vmul.f32 %v6748, %v3529
    %v6753 = vmul.f32 %v6748, %v3530
    %v6754 = vmul.f32 %v6748, %v3531
    %v6755 = vmul.f32 %v6748, %v3532
    %v6756 = vmul.f32 %v6748, %v3533
    %v6757 = vadd.f32 %v6685, %v6749
    %v6758 = vadd.f32 %v6686, %v6750
    %v6759 = vadd.f32 %v6687, %v6751
    %v6760 = vadd.f32 %v6688, %v6752
    %v6761 = vadd.f32 %v6689, %v6753
    %v6762 = vadd.f32 %v6690, %v6754
    %v6763 = vadd.f32 %v6691, %v6755
    %v6764 = vadd.f32 %v6692, %v6756
    %s6765 = sld [smem:[#allocation2 + $0xb2]]
    %v6766 = vstv %s6765
    %v6767 = vmul.f32 %v6766, %v3630
    %v6768 = vmul.f32 %v6766, %v3631
    %v6769 = vmul.f32 %v6766, %v3632
    %v6770 = vmul.f32 %v6766, %v3633
    %v6771 = vmul.f32 %v6766, %v3634
    %v6772 = vmul.f32 %v6766, %v3635
    %v6773 = vmul.f32 %v6766, %v3636
    %v6774 = vmul.f32 %v6766, %v3637
    %v6775 = vadd.f32 %v6703, %v6767
    %v6776 = vadd.f32 %v6704, %v6768
    %v6777 = vadd.f32 %v6705, %v6769
    %v6778 = vadd.f32 %v6706, %v6770
    %v6779 = vadd.f32 %v6707, %v6771
    %v6780 = vadd.f32 %v6708, %v6772
    %v6781 = vadd.f32 %v6709, %v6773
    %v6782 = vadd.f32 %v6710, %v6774
    %s6783 = sld [smem:[#allocation2 + $0xd6]]
    %v6784 = vstv %s6783
    %v6785 = vmul.f32 %v6784, %v3630
    %v6786 = vmul.f32 %v6784, %v3631
    %v6787 = vmul.f32 %v6784, %v3632
    %v6788 = vmul.f32 %v6784, %v3633
    %v6789 = vmul.f32 %v6784, %v3634
    %v6790 = vmul.f32 %v6784, %v3635
    %v6791 = vmul.f32 %v6784, %v3636
    %v6792 = vmul.f32 %v6784, %v3637
    %v6793 = vadd.f32 %v6721, %v6785
    %v6794 = vadd.f32 %v6722, %v6786
    %v6795 = vadd.f32 %v6723, %v6787
    %v6796 = vadd.f32 %v6724, %v6788
    %v6797 = vadd.f32 %v6725, %v6789
    %v6798 = vadd.f32 %v6726, %v6790
    %v6799 = vadd.f32 %v6727, %v6791
    %v6800 = vadd.f32 %v6728, %v6792
    %s6801 = sld [smem:[#allocation2 + $0xfa]]
    %v6802 = vstv %s6801
    %v6803 = vmul.f32 %v6802, %v3630
    %v6804 = vmul.f32 %v6802, %v3631
    %v6805 = vmul.f32 %v6802, %v3632
    %v6806 = vmul.f32 %v6802, %v3633
    %v6807 = vmul.f32 %v6802, %v3634
    %v6808 = vmul.f32 %v6802, %v3635
    %v6809 = vmul.f32 %v6802, %v3636
    %v6810 = vmul.f32 %v6802, %v3637
    %v6811 = vadd.f32 %v6739, %v6803
    %v6812 = vadd.f32 %v6740, %v6804
    %v6813 = vadd.f32 %v6741, %v6805
    %v6814 = vadd.f32 %v6742, %v6806
    %v6815 = vadd.f32 %v6743, %v6807
    %v6816 = vadd.f32 %v6744, %v6808
    %v6817 = vadd.f32 %v6745, %v6809
    %v6818 = vadd.f32 %v6746, %v6810
    %s6819 = sld [smem:[#allocation2 + $0x11e]]
    %v6820 = vstv %s6819
    %v6821 = vmul.f32 %v6820, %v3630
    %v6822 = vmul.f32 %v6820, %v3631
    %v6823 = vmul.f32 %v6820, %v3632
    %v6824 = vmul.f32 %v6820, %v3633
    %v6825 = vmul.f32 %v6820, %v3634
    %v6826 = vmul.f32 %v6820, %v3635
    %v6827 = vmul.f32 %v6820, %v3636
    %v6828 = vmul.f32 %v6820, %v3637
    %v6829 = vadd.f32 %v6757, %v6821
    %v6830 = vadd.f32 %v6758, %v6822
    %v6831 = vadd.f32 %v6759, %v6823
    %v6832 = vadd.f32 %v6760, %v6824
    %v6833 = vadd.f32 %v6761, %v6825
    %v6834 = vadd.f32 %v6762, %v6826
    %v6835 = vadd.f32 %v6763, %v6827
    %v6836 = vadd.f32 %v6764, %v6828
    %s6837 = sld [smem:[#allocation2 + $0xb3]]
    %v6838 = vstv %s6837
    %v6839 = vmul.f32 %v6838, %v3734
    %v6840 = vmul.f32 %v6838, %v3735
    %v6841 = vmul.f32 %v6838, %v3736
    %v6842 = vmul.f32 %v6838, %v3737
    %v6843 = vmul.f32 %v6838, %v3738
    %v6844 = vmul.f32 %v6838, %v3739
    %v6845 = vmul.f32 %v6838, %v3740
    %v6846 = vmul.f32 %v6838, %v3741
    %v6847 = vadd.f32 %v6775, %v6839
    %v6848 = vadd.f32 %v6776, %v6840
    %v6849 = vadd.f32 %v6777, %v6841
    %v6850 = vadd.f32 %v6778, %v6842
    %v6851 = vadd.f32 %v6779, %v6843
    %v6852 = vadd.f32 %v6780, %v6844
    %v6853 = vadd.f32 %v6781, %v6845
    %v6854 = vadd.f32 %v6782, %v6846
    %s6855 = sld [smem:[#allocation2 + $0xd7]]
    %v6856 = vstv %s6855
    %v6857 = vmul.f32 %v6856, %v3734
    %v6858 = vmul.f32 %v6856, %v3735
    %v6859 = vmul.f32 %v6856, %v3736
    %v6860 = vmul.f32 %v6856, %v3737
    %v6861 = vmul.f32 %v6856, %v3738
    %v6862 = vmul.f32 %v6856, %v3739
    %v6863 = vmul.f32 %v6856, %v3740
    %v6864 = vmul.f32 %v6856, %v3741
    %v6865 = vadd.f32 %v6793, %v6857
    %v6866 = vadd.f32 %v6794, %v6858
    %v6867 = vadd.f32 %v6795, %v6859
    %v6868 = vadd.f32 %v6796, %v6860
    %v6869 = vadd.f32 %v6797, %v6861
    %v6870 = vadd.f32 %v6798, %v6862
    %v6871 = vadd.f32 %v6799, %v6863
    %v6872 = vadd.f32 %v6800, %v6864
    %s6873 = sld [smem:[#allocation2 + $0xfb]]
    %v6874 = vstv %s6873
    %v6875 = vmul.f32 %v6874, %v3734
    %v6876 = vmul.f32 %v6874, %v3735
    %v6877 = vmul.f32 %v6874, %v3736
    %v6878 = vmul.f32 %v6874, %v3737
    %v6879 = vmul.f32 %v6874, %v3738
    %v6880 = vmul.f32 %v6874, %v3739
    %v6881 = vmul.f32 %v6874, %v3740
    %v6882 = vmul.f32 %v6874, %v3741
    %v6883 = vadd.f32 %v6811, %v6875
    %v6884 = vadd.f32 %v6812, %v6876
    %v6885 = vadd.f32 %v6813, %v6877
    %v6886 = vadd.f32 %v6814, %v6878
    %v6887 = vadd.f32 %v6815, %v6879
    %v6888 = vadd.f32 %v6816, %v6880
    %v6889 = vadd.f32 %v6817, %v6881
    %v6890 = vadd.f32 %v6818, %v6882
    %s6891 = sld [smem:[#allocation2 + $0x11f]]
    %v6892 = vstv %s6891
    %v6893 = vmul.f32 %v6892, %v3734
    %v6894 = vmul.f32 %v6892, %v3735
    %v6895 = vmul.f32 %v6892, %v3736
    %v6896 = vmul.f32 %v6892, %v3737
    %v6897 = vmul.f32 %v6892, %v3738
    %v6898 = vmul.f32 %v6892, %v3739
    %v6899 = vmul.f32 %v6892, %v3740
    %v6900 = vmul.f32 %v6892, %v3741
    %v6901 = vadd.f32 %v6829, %v6893
    %v6902 = vadd.f32 %v6830, %v6894
    %v6903 = vadd.f32 %v6831, %v6895
    %v6904 = vadd.f32 %v6832, %v6896
    %v6905 = vadd.f32 %v6833, %v6897
    %v6906 = vadd.f32 %v6834, %v6898
    %v6907 = vadd.f32 %v6835, %v6899
    %v6908 = vadd.f32 %v6836, %v6900
    %s6909 = sld [smem:[#allocation5 + $0x4]]
    %v6910 = vstv %s6909
    %v6911 = vadd.f32 %v6847, %v6910
    %v6912 = vadd.f32 %v6848, %v6910
    %v6913 = vadd.f32 %v6849, %v6910
    %v6914 = vadd.f32 %v6850, %v6910
    %v6915 = vadd.f32 %v6851, %v6910
    %v6916 = vadd.f32 %v6852, %v6910
    %v6917 = vadd.f32 %v6853, %v6910
    %v6918 = vadd.f32 %v6854, %v6910
    %v6919 = vmax.f32 %v6911, 0.0
    %v6920 = vmax.f32 %v6912, 0.0
    %v6921 = vmax.f32 %v6913, 0.0
    %v6922 = vmax.f32 %v6914, 0.0
    %v6923 = vmax.f32 %v6915, 0.0
    %v6924 = vmax.f32 %v6916, 0.0
    %v6925 = vmax.f32 %v6917, 0.0
    %v6926 = vmax.f32 %v6918, 0.0
    %s6927 = scalar_lea.vmem [#allocation7], 1024
    %v6928 = vld [vmem:[%s6927] sm:$0xff]
    %v6929 = vld [vmem:[%s6927 + $0x8] sm:$0xff]
    %v6930 = vld [vmem:[%s6927 + $0x10] sm:$0xff]
    %v6931 = vld [vmem:[%s6927 + $0x18] sm:$0xff]
    %v6932 = vld [vmem:[%s6927 + $0x20] sm:$0xff]
    %v6933 = vld [vmem:[%s6927 + $0x28] sm:$0xff]
    %v6934 = vld [vmem:[%s6927 + $0x30] sm:$0xff]
    %v6935 = vld [vmem:[%s6927 + $0x38] sm:$0xff]
    %v6936 = vmul.f32 %v6919, %v6928
    %v6937 = vmul.f32 %v6920, %v6929
    %v6938 = vmul.f32 %v6921, %v6930
    %v6939 = vmul.f32 %v6922, %v6931
    %v6940 = vmul.f32 %v6923, %v6932
    %v6941 = vmul.f32 %v6924, %v6933
    %v6942 = vmul.f32 %v6925, %v6934
    %v6943 = vmul.f32 %v6926, %v6935
    %v6944 = vadd.f32 %v6936, %v6937
    %v6945 = vadd.f32 %v6944, %v6938
    %v6946 = vadd.f32 %v6945, %v6939
    %v6947 = vadd.f32 %v6946, %v6940
    %v6948 = vadd.f32 %v6947, %v6941
    %v6949 = vadd.f32 %v6948, %v6942
    %v6950 = vadd.f32 %v6949, %v6943
    %6951 = vadd.xlane.f32.xlu0 %v6950
    %v6952 = vpop.xlane.xlu0 %6951
    %v6953 = vadd.f32 %v4235, %v6952
    %s6954 = scalar_lea.vmem [#allocation7], 1088
    %v6955 = vld [vmem:[%s6954] sm:$0xff]
    %v6956 = vld [vmem:[%s6954 + $0x8] sm:$0xff]
    %v6957 = vld [vmem:[%s6954 + $0x10] sm:$0xff]
    %v6958 = vld [vmem:[%s6954 + $0x18] sm:$0xff]
    %v6959 = vld [vmem:[%s6954 + $0x20] sm:$0xff]
    %v6960 = vld [vmem:[%s6954 + $0x28] sm:$0xff]
    %v6961 = vld [vmem:[%s6954 + $0x30] sm:$0xff]
    %v6962 = vld [vmem:[%s6954 + $0x38] sm:$0xff]
    %v6963 = vmul.f32 %v6919, %v6955
    %v6964 = vmul.f32 %v6920, %v6956
    %v6965 = vmul.f32 %v6921, %v6957
    %v6966 = vmul.f32 %v6922, %v6958
    %v6967 = vmul.f32 %v6923, %v6959
    %v6968 = vmul.f32 %v6924, %v6960
    %v6969 = vmul.f32 %v6925, %v6961
    %v6970 = vmul.f32 %v6926, %v6962
    %v6971 = vadd.f32 %v6963, %v6964
    %v6972 = vadd.f32 %v6971, %v6965
    %v6973 = vadd.f32 %v6972, %v6966
    %v6974 = vadd.f32 %v6973, %v6967
    %v6975 = vadd.f32 %v6974, %v6968
    %v6976 = vadd.f32 %v6975, %v6969
    %v6977 = vadd.f32 %v6976, %v6970
    %6978 = vadd.xlane.f32.xlu0 %v6977
    %v6979 = vpop.xlane.xlu0 %6978
    %v6980 = vadd.f32 %v4262, %v6979
    %s6981 = scalar_lea.vmem [#allocation7], 1152
    %v6982 = vld [vmem:[%s6981] sm:$0xff]
    %v6983 = vld [vmem:[%s6981 + $0x8] sm:$0xff]
    %v6984 = vld [vmem:[%s6981 + $0x10] sm:$0xff]
    %v6985 = vld [vmem:[%s6981 + $0x18] sm:$0xff]
    %v6986 = vld [vmem:[%s6981 + $0x20] sm:$0xff]
    %v6987 = vld [vmem:[%s6981 + $0x28] sm:$0xff]
    %v6988 = vld [vmem:[%s6981 + $0x30] sm:$0xff]
    %v6989 = vld [vmem:[%s6981 + $0x38] sm:$0xff]
    %v6990 = vmul.f32 %v6919, %v6982
    %v6991 = vmul.f32 %v6920, %v6983
    %v6992 = vmul.f32 %v6921, %v6984
    %v6993 = vmul.f32 %v6922, %v6985
    %v6994 = vmul.f32 %v6923, %v6986
    %v6995 = vmul.f32 %v6924, %v6987
    %v6996 = vmul.f32 %v6925, %v6988
    %v6997 = vmul.f32 %v6926, %v6989
    %v6998 = vadd.f32 %v6990, %v6991
    %v6999 = vadd.f32 %v6998, %v6992
    %v7000 = vadd.f32 %v6999, %v6993
    %v7001 = vadd.f32 %v7000, %v6994
    %v7002 = vadd.f32 %v7001, %v6995
    %v7003 = vadd.f32 %v7002, %v6996
    %v7004 = vadd.f32 %v7003, %v6997
    %7005 = vadd.xlane.f32.xlu0 %v7004
    %v7006 = vpop.xlane.xlu0 %7005
    %v7007 = vadd.f32 %v4289, %v7006
    %s7008 = scalar_lea.vmem [#allocation7], 1216
    %v7009 = vld [vmem:[%s7008] sm:$0xff]
    %v7010 = vld [vmem:[%s7008 + $0x8] sm:$0xff]
    %v7011 = vld [vmem:[%s7008 + $0x10] sm:$0xff]
    %v7012 = vld [vmem:[%s7008 + $0x18] sm:$0xff]
    %v7013 = vld [vmem:[%s7008 + $0x20] sm:$0xff]
    %v7014 = vld [vmem:[%s7008 + $0x28] sm:$0xff]
    %v7015 = vld [vmem:[%s7008 + $0x30] sm:$0xff]
    %v7016 = vld [vmem:[%s7008 + $0x38] sm:$0xff]
    %v7017 = vmul.f32 %v6919, %v7009
    %v7018 = vmul.f32 %v6920, %v7010
    %v7019 = vmul.f32 %v6921, %v7011
    %v7020 = vmul.f32 %v6922, %v7012
    %v7021 = vmul.f32 %v6923, %v7013
    %v7022 = vmul.f32 %v6924, %v7014
    %v7023 = vmul.f32 %v6925, %v7015
    %v7024 = vmul.f32 %v6926, %v7016
    %v7025 = vadd.f32 %v7017, %v7018
    %v7026 = vadd.f32 %v7025, %v7019
    %v7027 = vadd.f32 %v7026, %v7020
    %v7028 = vadd.f32 %v7027, %v7021
    %v7029 = vadd.f32 %v7028, %v7022
    %v7030 = vadd.f32 %v7029, %v7023
    %v7031 = vadd.f32 %v7030, %v7024
    %7032 = vadd.xlane.f32.xlu0 %v7031
    %v7033 = vpop.xlane.xlu0 %7032
    %v7034 = vadd.f32 %v4316, %v7033
    %s7035 = sld [smem:[#allocation5 + $0x5]]
    %v7036 = vstv %s7035
    %v7037 = vadd.f32 %v6865, %v7036
    %v7038 = vadd.f32 %v6866, %v7036
    %v7039 = vadd.f32 %v6867, %v7036
    %v7040 = vadd.f32 %v6868, %v7036
    %v7041 = vadd.f32 %v6869, %v7036
    %v7042 = vadd.f32 %v6870, %v7036
    %v7043 = vadd.f32 %v6871, %v7036
    %v7044 = vadd.f32 %v6872, %v7036
    %v7045 = vmax.f32 %v7037, 0.0
    %v7046 = vmax.f32 %v7038, 0.0
    %v7047 = vmax.f32 %v7039, 0.0
    %v7048 = vmax.f32 %v7040, 0.0
    %v7049 = vmax.f32 %v7041, 0.0
    %v7050 = vmax.f32 %v7042, 0.0
    %v7051 = vmax.f32 %v7043, 0.0
    %v7052 = vmax.f32 %v7044, 0.0
    %s7053 = scalar_lea.vmem [#allocation7], 1280
    %v7054 = vld [vmem:[%s7053] sm:$0xff]
    %v7055 = vld [vmem:[%s7053 + $0x8] sm:$0xff]
    %v7056 = vld [vmem:[%s7053 + $0x10] sm:$0xff]
    %v7057 = vld [vmem:[%s7053 + $0x18] sm:$0xff]
    %v7058 = vld [vmem:[%s7053 + $0x20] sm:$0xff]
    %v7059 = vld [vmem:[%s7053 + $0x28] sm:$0xff]
    %v7060 = vld [vmem:[%s7053 + $0x30] sm:$0xff]
    %v7061 = vld [vmem:[%s7053 + $0x38] sm:$0xff]
    %v7062 = vmul.f32 %v7045, %v7054
    %v7063 = vmul.f32 %v7046, %v7055
    %v7064 = vmul.f32 %v7047, %v7056
    %v7065 = vmul.f32 %v7048, %v7057
    %v7066 = vmul.f32 %v7049, %v7058
    %v7067 = vmul.f32 %v7050, %v7059
    %v7068 = vmul.f32 %v7051, %v7060
    %v7069 = vmul.f32 %v7052, %v7061
    %v7070 = vadd.f32 %v7062, %v7063
    %v7071 = vadd.f32 %v7070, %v7064
    %v7072 = vadd.f32 %v7071, %v7065
    %v7073 = vadd.f32 %v7072, %v7066
    %v7074 = vadd.f32 %v7073, %v7067
    %v7075 = vadd.f32 %v7074, %v7068
    %v7076 = vadd.f32 %v7075, %v7069
    %7077 = vadd.xlane.f32.xlu0 %v7076
    %v7078 = vpop.xlane.xlu0 %7077
    %v7079 = vadd.f32 %v6953, %v7078
    %s7080 = scalar_lea.vmem [#allocation7], 1344
    %v7081 = vld [vmem:[%s7080] sm:$0xff]
    %v7082 = vld [vmem:[%s7080 + $0x8] sm:$0xff]
    %v7083 = vld [vmem:[%s7080 + $0x10] sm:$0xff]
    %v7084 = vld [vmem:[%s7080 + $0x18] sm:$0xff]
    %v7085 = vld [vmem:[%s7080 + $0x20] sm:$0xff]
    %v7086 = vld [vmem:[%s7080 + $0x28] sm:$0xff]
    %v7087 = vld [vmem:[%s7080 + $0x30] sm:$0xff]
    %v7088 = vld [vmem:[%s7080 + $0x38] sm:$0xff]
    %v7089 = vmul.f32 %v7045, %v7081
    %v7090 = vmul.f32 %v7046, %v7082
    %v7091 = vmul.f32 %v7047, %v7083
    %v7092 = vmul.f32 %v7048, %v7084
    %v7093 = vmul.f32 %v7049, %v7085
    %v7094 = vmul.f32 %v7050, %v7086
    %v7095 = vmul.f32 %v7051, %v7087
    %v7096 = vmul.f32 %v7052, %v7088
    %v7097 = vadd.f32 %v7089, %v7090
    %v7098 = vadd.f32 %v7097, %v7091
    %v7099 = vadd.f32 %v7098, %v7092
    %v7100 = vadd.f32 %v7099, %v7093
    %v7101 = vadd.f32 %v7100, %v7094
    %v7102 = vadd.f32 %v7101, %v7095
    %v7103 = vadd.f32 %v7102, %v7096
    %7104 = vadd.xlane.f32.xlu0 %v7103
    %v7105 = vpop.xlane.xlu0 %7104
    %v7106 = vadd.f32 %v6980, %v7105
    %s7107 = scalar_lea.vmem [#allocation7], 1408
    %v7108 = vld [vmem:[%s7107] sm:$0xff]
    %v7109 = vld [vmem:[%s7107 + $0x8] sm:$0xff]
    %v7110 = vld [vmem:[%s7107 + $0x10] sm:$0xff]
    %v7111 = vld [vmem:[%s7107 + $0x18] sm:$0xff]
    %v7112 = vld [vmem:[%s7107 + $0x20] sm:$0xff]
    %v7113 = vld [vmem:[%s7107 + $0x28] sm:$0xff]
    %v7114 = vld [vmem:[%s7107 + $0x30] sm:$0xff]
    %v7115 = vld [vmem:[%s7107 + $0x38] sm:$0xff]
    %v7116 = vmul.f32 %v7045, %v7108
    %v7117 = vmul.f32 %v7046, %v7109
    %v7118 = vmul.f32 %v7047, %v7110
    %v7119 = vmul.f32 %v7048, %v7111
    %v7120 = vmul.f32 %v7049, %v7112
    %v7121 = vmul.f32 %v7050, %v7113
    %v7122 = vmul.f32 %v7051, %v7114
    %v7123 = vmul.f32 %v7052, %v7115
    %v7124 = vadd.f32 %v7116, %v7117
    %v7125 = vadd.f32 %v7124, %v7118
    %v7126 = vadd.f32 %v7125, %v7119
    %v7127 = vadd.f32 %v7126, %v7120
    %v7128 = vadd.f32 %v7127, %v7121
    %v7129 = vadd.f32 %v7128, %v7122
    %v7130 = vadd.f32 %v7129, %v7123
    %7131 = vadd.xlane.f32.xlu0 %v7130
    %v7132 = vpop.xlane.xlu0 %7131
    %v7133 = vadd.f32 %v7007, %v7132
    %s7134 = scalar_lea.vmem [#allocation7], 1472
    %v7135 = vld [vmem:[%s7134] sm:$0xff]
    %v7136 = vld [vmem:[%s7134 + $0x8] sm:$0xff]
    %v7137 = vld [vmem:[%s7134 + $0x10] sm:$0xff]
    %v7138 = vld [vmem:[%s7134 + $0x18] sm:$0xff]
    %v7139 = vld [vmem:[%s7134 + $0x20] sm:$0xff]
    %v7140 = vld [vmem:[%s7134 + $0x28] sm:$0xff]
    %v7141 = vld [vmem:[%s7134 + $0x30] sm:$0xff]
    %v7142 = vld [vmem:[%s7134 + $0x38] sm:$0xff]
    %v7143 = vmul.f32 %v7045, %v7135
    %v7144 = vmul.f32 %v7046, %v7136
    %v7145 = vmul.f32 %v7047, %v7137
    %v7146 = vmul.f32 %v7048, %v7138
    %v7147 = vmul.f32 %v7049, %v7139
    %v7148 = vmul.f32 %v7050, %v7140
    %v7149 = vmul.f32 %v7051, %v7141
    %v7150 = vmul.f32 %v7052, %v7142
    %v7151 = vadd.f32 %v7143, %v7144
    %v7152 = vadd.f32 %v7151, %v7145
    %v7153 = vadd.f32 %v7152, %v7146
    %v7154 = vadd.f32 %v7153, %v7147
    %v7155 = vadd.f32 %v7154, %v7148
    %v7156 = vadd.f32 %v7155, %v7149
    %v7157 = vadd.f32 %v7156, %v7150
    %7158 = vadd.xlane.f32.xlu0 %v7157
    %v7159 = vpop.xlane.xlu0 %7158
    %v7160 = vadd.f32 %v7034, %v7159
    %s7161 = sld [smem:[#allocation5 + $0x6]]
    %v7162 = vstv %s7161
    %v7163 = vadd.f32 %v6883, %v7162
    %v7164 = vadd.f32 %v6884, %v7162
    %v7165 = vadd.f32 %v6885, %v7162
    %v7166 = vadd.f32 %v6886, %v7162
    %v7167 = vadd.f32 %v6887, %v7162
    %v7168 = vadd.f32 %v6888, %v7162
    %v7169 = vadd.f32 %v6889, %v7162
    %v7170 = vadd.f32 %v6890, %v7162
    %v7171 = vmax.f32 %v7163, 0.0
    %v7172 = vmax.f32 %v7164, 0.0
    %v7173 = vmax.f32 %v7165, 0.0
    %v7174 = vmax.f32 %v7166, 0.0
    %v7175 = vmax.f32 %v7167, 0.0
    %v7176 = vmax.f32 %v7168, 0.0
    %v7177 = vmax.f32 %v7169, 0.0
    %v7178 = vmax.f32 %v7170, 0.0
    %s7179 = scalar_lea.vmem [#allocation7], 1536
    %v7180 = vld [vmem:[%s7179] sm:$0xff]
    %v7181 = vld [vmem:[%s7179 + $0x8] sm:$0xff]
    %v7182 = vld [vmem:[%s7179 + $0x10] sm:$0xff]
    %v7183 = vld [vmem:[%s7179 + $0x18] sm:$0xff]
    %v7184 = vld [vmem:[%s7179 + $0x20] sm:$0xff]
    %v7185 = vld [vmem:[%s7179 + $0x28] sm:$0xff]
    %v7186 = vld [vmem:[%s7179 + $0x30] sm:$0xff]
    %v7187 = vld [vmem:[%s7179 + $0x38] sm:$0xff]
    %v7188 = vmul.f32 %v7171, %v7180
    %v7189 = vmul.f32 %v7172, %v7181
    %v7190 = vmul.f32 %v7173, %v7182
    %v7191 = vmul.f32 %v7174, %v7183
    %v7192 = vmul.f32 %v7175, %v7184
    %v7193 = vmul.f32 %v7176, %v7185
    %v7194 = vmul.f32 %v7177, %v7186
    %v7195 = vmul.f32 %v7178, %v7187
    %v7196 = vadd.f32 %v7188, %v7189
    %v7197 = vadd.f32 %v7196, %v7190
    %v7198 = vadd.f32 %v7197, %v7191
    %v7199 = vadd.f32 %v7198, %v7192
    %v7200 = vadd.f32 %v7199, %v7193
    %v7201 = vadd.f32 %v7200, %v7194
    %v7202 = vadd.f32 %v7201, %v7195
    %7203 = vadd.xlane.f32.xlu0 %v7202
    %v7204 = vpop.xlane.xlu0 %7203
    %v7205 = vadd.f32 %v7079, %v7204
    %s7206 = scalar_lea.vmem [#allocation7], 1600
    %v7207 = vld [vmem:[%s7206] sm:$0xff]
    %v7208 = vld [vmem:[%s7206 + $0x8] sm:$0xff]
    %v7209 = vld [vmem:[%s7206 + $0x10] sm:$0xff]
    %v7210 = vld [vmem:[%s7206 + $0x18] sm:$0xff]
    %v7211 = vld [vmem:[%s7206 + $0x20] sm:$0xff]
    %v7212 = vld [vmem:[%s7206 + $0x28] sm:$0xff]
    %v7213 = vld [vmem:[%s7206 + $0x30] sm:$0xff]
    %v7214 = vld [vmem:[%s7206 + $0x38] sm:$0xff]
    %v7215 = vmul.f32 %v7171, %v7207
    %v7216 = vmul.f32 %v7172, %v7208
    %v7217 = vmul.f32 %v7173, %v7209
    %v7218 = vmul.f32 %v7174, %v7210
    %v7219 = vmul.f32 %v7175, %v7211
    %v7220 = vmul.f32 %v7176, %v7212
    %v7221 = vmul.f32 %v7177, %v7213
    %v7222 = vmul.f32 %v7178, %v7214
    %v7223 = vadd.f32 %v7215, %v7216
    %v7224 = vadd.f32 %v7223, %v7217
    %v7225 = vadd.f32 %v7224, %v7218
    %v7226 = vadd.f32 %v7225, %v7219
    %v7227 = vadd.f32 %v7226, %v7220
    %v7228 = vadd.f32 %v7227, %v7221
    %v7229 = vadd.f32 %v7228, %v7222
    %7230 = vadd.xlane.f32.xlu0 %v7229
    %v7231 = vpop.xlane.xlu0 %7230
    %v7232 = vadd.f32 %v7106, %v7231
    %s7233 = scalar_lea.vmem [#allocation7], 1664
    %v7234 = vld [vmem:[%s7233] sm:$0xff]
    %v7235 = vld [vmem:[%s7233 + $0x8] sm:$0xff]
    %v7236 = vld [vmem:[%s7233 + $0x10] sm:$0xff]
    %v7237 = vld [vmem:[%s7233 + $0x18] sm:$0xff]
    %v7238 = vld [vmem:[%s7233 + $0x20] sm:$0xff]
    %v7239 = vld [vmem:[%s7233 + $0x28] sm:$0xff]
    %v7240 = vld [vmem:[%s7233 + $0x30] sm:$0xff]
    %v7241 = vld [vmem:[%s7233 + $0x38] sm:$0xff]
    %v7242 = vmul.f32 %v7171, %v7234
    %v7243 = vmul.f32 %v7172, %v7235
    %v7244 = vmul.f32 %v7173, %v7236
    %v7245 = vmul.f32 %v7174, %v7237
    %v7246 = vmul.f32 %v7175, %v7238
    %v7247 = vmul.f32 %v7176, %v7239
    %v7248 = vmul.f32 %v7177, %v7240
    %v7249 = vmul.f32 %v7178, %v7241
    %v7250 = vadd.f32 %v7242, %v7243
    %v7251 = vadd.f32 %v7250, %v7244
    %v7252 = vadd.f32 %v7251, %v7245
    %v7253 = vadd.f32 %v7252, %v7246
    %v7254 = vadd.f32 %v7253, %v7247
    %v7255 = vadd.f32 %v7254, %v7248
    %v7256 = vadd.f32 %v7255, %v7249
    %7257 = vadd.xlane.f32.xlu0 %v7256
    %v7258 = vpop.xlane.xlu0 %7257
    %v7259 = vadd.f32 %v7133, %v7258
    %s7260 = scalar_lea.vmem [#allocation7], 1728
    %v7261 = vld [vmem:[%s7260] sm:$0xff]
    %v7262 = vld [vmem:[%s7260 + $0x8] sm:$0xff]
    %v7263 = vld [vmem:[%s7260 + $0x10] sm:$0xff]
    %v7264 = vld [vmem:[%s7260 + $0x18] sm:$0xff]
    %v7265 = vld [vmem:[%s7260 + $0x20] sm:$0xff]
    %v7266 = vld [vmem:[%s7260 + $0x28] sm:$0xff]
    %v7267 = vld [vmem:[%s7260 + $0x30] sm:$0xff]
    %v7268 = vld [vmem:[%s7260 + $0x38] sm:$0xff]
    %v7269 = vmul.f32 %v7171, %v7261
    %v7270 = vmul.f32 %v7172, %v7262
    %v7271 = vmul.f32 %v7173, %v7263
    %v7272 = vmul.f32 %v7174, %v7264
    %v7273 = vmul.f32 %v7175, %v7265
    %v7274 = vmul.f32 %v7176, %v7266
    %v7275 = vmul.f32 %v7177, %v7267
    %v7276 = vmul.f32 %v7178, %v7268
    %v7277 = vadd.f32 %v7269, %v7270
    %v7278 = vadd.f32 %v7277, %v7271
    %v7279 = vadd.f32 %v7278, %v7272
    %v7280 = vadd.f32 %v7279, %v7273
    %v7281 = vadd.f32 %v7280, %v7274
    %v7282 = vadd.f32 %v7281, %v7275
    %v7283 = vadd.f32 %v7282, %v7276
    %7284 = vadd.xlane.f32.xlu0 %v7283
    %v7285 = vpop.xlane.xlu0 %7284
    %v7286 = vadd.f32 %v7160, %v7285
    %s7287 = sld [smem:[#allocation5 + $0x7]]
    %v7288 = vstv %s7287
    %v7289 = vadd.f32 %v6901, %v7288
    %v7290 = vadd.f32 %v6902, %v7288
    %v7291 = vadd.f32 %v6903, %v7288
    %v7292 = vadd.f32 %v6904, %v7288
    %v7293 = vadd.f32 %v6905, %v7288
    %v7294 = vadd.f32 %v6906, %v7288
    %v7295 = vadd.f32 %v6907, %v7288
    %v7296 = vadd.f32 %v6908, %v7288
    %v7297 = vmax.f32 %v7289, 0.0
    %v7298 = vmax.f32 %v7290, 0.0
    %v7299 = vmax.f32 %v7291, 0.0
    %v7300 = vmax.f32 %v7292, 0.0
    %v7301 = vmax.f32 %v7293, 0.0
    %v7302 = vmax.f32 %v7294, 0.0
    %v7303 = vmax.f32 %v7295, 0.0
    %v7304 = vmax.f32 %v7296, 0.0
    %s7305 = scalar_lea.vmem [#allocation7], 1792
    %v7306 = vld [vmem:[%s7305] sm:$0xff]
    %v7307 = vld [vmem:[%s7305 + $0x8] sm:$0xff]
    %v7308 = vld [vmem:[%s7305 + $0x10] sm:$0xff]
    %v7309 = vld [vmem:[%s7305 + $0x18] sm:$0xff]
    %v7310 = vld [vmem:[%s7305 + $0x20] sm:$0xff]
    %v7311 = vld [vmem:[%s7305 + $0x28] sm:$0xff]
    %v7312 = vld [vmem:[%s7305 + $0x30] sm:$0xff]
    %v7313 = vld [vmem:[%s7305 + $0x38] sm:$0xff]
    %v7314 = vmul.f32 %v7297, %v7306
    %v7315 = vmul.f32 %v7298, %v7307
    %v7316 = vmul.f32 %v7299, %v7308
    %v7317 = vmul.f32 %v7300, %v7309
    %v7318 = vmul.f32 %v7301, %v7310
    %v7319 = vmul.f32 %v7302, %v7311
    %v7320 = vmul.f32 %v7303, %v7312
    %v7321 = vmul.f32 %v7304, %v7313
    %v7322 = vadd.f32 %v7314, %v7315
    %v7323 = vadd.f32 %v7322, %v7316
    %v7324 = vadd.f32 %v7323, %v7317
    %v7325 = vadd.f32 %v7324, %v7318
    %v7326 = vadd.f32 %v7325, %v7319
    %v7327 = vadd.f32 %v7326, %v7320
    %v7328 = vadd.f32 %v7327, %v7321
    %7329 = vadd.xlane.f32.xlu0 %v7328
    %v7330 = vpop.xlane.xlu0 %7329
    %v7331 = vadd.f32 %v7205, %v7330
    %s7332 = scalar_lea.vmem [#allocation7], 1856
    %v7333 = vld [vmem:[%s7332] sm:$0xff]
    %v7334 = vld [vmem:[%s7332 + $0x8] sm:$0xff]
    %v7335 = vld [vmem:[%s7332 + $0x10] sm:$0xff]
    %v7336 = vld [vmem:[%s7332 + $0x18] sm:$0xff]
    %v7337 = vld [vmem:[%s7332 + $0x20] sm:$0xff]
    %v7338 = vld [vmem:[%s7332 + $0x28] sm:$0xff]
    %v7339 = vld [vmem:[%s7332 + $0x30] sm:$0xff]
    %v7340 = vld [vmem:[%s7332 + $0x38] sm:$0xff]
    %v7341 = vmul.f32 %v7297, %v7333
    %v7342 = vmul.f32 %v7298, %v7334
    %v7343 = vmul.f32 %v7299, %v7335
    %v7344 = vmul.f32 %v7300, %v7336
    %v7345 = vmul.f32 %v7301, %v7337
    %v7346 = vmul.f32 %v7302, %v7338
    %v7347 = vmul.f32 %v7303, %v7339
    %v7348 = vmul.f32 %v7304, %v7340
    %v7349 = vadd.f32 %v7341, %v7342
    %v7350 = vadd.f32 %v7349, %v7343
    %v7351 = vadd.f32 %v7350, %v7344
    %v7352 = vadd.f32 %v7351, %v7345
    %v7353 = vadd.f32 %v7352, %v7346
    %v7354 = vadd.f32 %v7353, %v7347
    %v7355 = vadd.f32 %v7354, %v7348
    %7356 = vadd.xlane.f32.xlu0 %v7355
    %v7357 = vpop.xlane.xlu0 %7356
    %v7358 = vadd.f32 %v7232, %v7357
    %s7359 = scalar_lea.vmem [#allocation7], 1920
    %v7360 = vld [vmem:[%s7359] sm:$0xff]
    %v7361 = vld [vmem:[%s7359 + $0x8] sm:$0xff]
    %v7362 = vld [vmem:[%s7359 + $0x10] sm:$0xff]
    %v7363 = vld [vmem:[%s7359 + $0x18] sm:$0xff]
    %v7364 = vld [vmem:[%s7359 + $0x20] sm:$0xff]
    %v7365 = vld [vmem:[%s7359 + $0x28] sm:$0xff]
    %v7366 = vld [vmem:[%s7359 + $0x30] sm:$0xff]
    %v7367 = vld [vmem:[%s7359 + $0x38] sm:$0xff]
    %v7368 = vmul.f32 %v7297, %v7360
    %v7369 = vmul.f32 %v7298, %v7361
    %v7370 = vmul.f32 %v7299, %v7362
    %v7371 = vmul.f32 %v7300, %v7363
    %v7372 = vmul.f32 %v7301, %v7364
    %v7373 = vmul.f32 %v7302, %v7365
    %v7374 = vmul.f32 %v7303, %v7366
    %v7375 = vmul.f32 %v7304, %v7367
    %v7376 = vadd.f32 %v7368, %v7369
    %v7377 = vadd.f32 %v7376, %v7370
    %v7378 = vadd.f32 %v7377, %v7371
    %v7379 = vadd.f32 %v7378, %v7372
    %v7380 = vadd.f32 %v7379, %v7373
    %v7381 = vadd.f32 %v7380, %v7374
    %v7382 = vadd.f32 %v7381, %v7375
    %7383 = vadd.xlane.f32.xlu0 %v7382
    %v7384 = vpop.xlane.xlu0 %7383
    %v7385 = vadd.f32 %v7259, %v7384
    %s7386 = scalar_lea.vmem [#allocation7], 1984
    %v7387 = vld [vmem:[%s7386] sm:$0xff]
    %v7388 = vld [vmem:[%s7386 + $0x8] sm:$0xff]
    %v7389 = vld [vmem:[%s7386 + $0x10] sm:$0xff]
    %v7390 = vld [vmem:[%s7386 + $0x18] sm:$0xff]
    %v7391 = vld [vmem:[%s7386 + $0x20] sm:$0xff]
    %v7392 = vld [vmem:[%s7386 + $0x28] sm:$0xff]
    %v7393 = vld [vmem:[%s7386 + $0x30] sm:$0xff]
    %v7394 = vld [vmem:[%s7386 + $0x38] sm:$0xff]
    %v7395 = vmul.f32 %v7297, %v7387
    %v7396 = vmul.f32 %v7298, %v7388
    %v7397 = vmul.f32 %v7299, %v7389
    %v7398 = vmul.f32 %v7300, %v7390
    %v7399 = vmul.f32 %v7301, %v7391
    %v7400 = vmul.f32 %v7302, %v7392
    %v7401 = vmul.f32 %v7303, %v7393
    %v7402 = vmul.f32 %v7304, %v7394
    %v7403 = vadd.f32 %v7395, %v7396
    %v7404 = vadd.f32 %v7403, %v7397
    %v7405 = vadd.f32 %v7404, %v7398
    %v7406 = vadd.f32 %v7405, %v7399
    %v7407 = vadd.f32 %v7406, %v7400
    %v7408 = vadd.f32 %v7407, %v7401
    %v7409 = vadd.f32 %v7408, %v7402
    %7410 = vadd.xlane.f32.xlu0 %v7409
    %v7411 = vpop.xlane.xlu0 %7410
    %v7412 = vadd.f32 %v7286, %v7411
    %s7413 = sld [smem:[#allocation8]]
    %v7414 = vstv %s7413
    %v7415 = vadd.f32 %v7331, %v7414
    %v7416 = vsub.f32 0.0, %v7415
    %v7417 = vmul.f32 %v7416, 1.442695
    %v7418 = vpow.pop %v7417
    %v7419 = vadd.f32 %v7418, 1.0
    %v7420 = vrcp.pop %v7419
    %v7421 = vmul.f32 1.0, %v7420
    %s7422 = sld [smem:[#allocation8 + $0x1]]
    %v7423 = vstv %s7422
    %v7424 = vadd.f32 %v7358, %v7423
    %v7425 = vsub.f32 0.0, %v7424
    %v7426 = vmul.f32 %v7425, 1.442695
    %v7427 = vpow.pop %v7426
    %v7428 = vadd.f32 %v7427, 1.0
    %v7429 = vrcp.pop %v7428
    %v7430 = vmul.f32 1.0, %v7429
    %s7431 = sld [smem:[#allocation8 + $0x2]]
    %v7432 = vstv %s7431
    %v7433 = vadd.f32 %v7385, %v7432
    %v7434 = vsub.f32 0.0, %v7433
    %v7435 = vmul.f32 %v7434, 1.442695
    %v7436 = vpow.pop %v7435
    %v7437 = vadd.f32 %v7436, 1.0
    %v7438 = vrcp.pop %v7437
    %v7439 = vmul.f32 1.0, %v7438
    %s7440 = sld [smem:[#allocation8 + $0x3]]
    %v7441 = vstv %s7440
    %v7442 = vadd.f32 %v7412, %v7441
    %v7443 = vsub.f32 0.0, %v7442
    %v7444 = vmul.f32 %v7443, 1.442695
    %v7445 = vpow.pop %v7444
    %v7446 = vadd.f32 %v7445, 1.0
    %v7447 = vrcp.pop %v7446
    %v7448 = vmul.f32 1.0, %v7447
    %v7449 = vsub.f32 %v7421, %v7439
    %v7450 = vadd.f32 %v7421, %v7439
    %v7451 = vsub.f32 %v7430, %v7448
    %v7452 = vadd.f32 %v7430, %v7448
    %vm7453 = vcmask 7168
    %v7454 = vsel %vm7453, %v7449, %v7451
    %vm7455 = vcmask 15360
    %v7456 = vsel %vm7455, %v7454, %v7450
    %vm7457 = vcmask 23552
    %v7458 = vsel %vm7457, %v7456, %v7451
    %vm7459 = vcmask 31744
    %v7460 = vsel %vm7459, %v7458, %v7450
    %vm7461 = vcmask 39936
    %v7462 = vsel %vm7461, %v7460, %v7452
    %vm7463 = vcmask 48128
    %v7464 = vsel %vm7463, %v7462, %v7449
    %vm7465 = vcmask 56320
    %v7466 = vsel %vm7465, %v7464, %v7452
    %v7467 = vmax.f32 %v7466, 0.0
    %v7468 = vmin.f32 %v7467, 1.0
    %vm7469 = vcmask 64512
    %7470 = vst.msk [vmem:[%s6] sm:$0xff] %vm7469, %v7468
    // Predicated region
    $region42: #{_lambda_.1} parent=1 // pred_check
      _
    $region43: #{_lambda_.1} parent=1 // pred_check_branch
      %7472 = sbr.rel (0) target = $region45
    $region44: #{_lambda_.1} parent=1 // pred_region
      _
    $region45: #{_lambda_.1} parent=1 // pred_fallthru
      _
    // Predicated region
    $region46: #{_lambda_.1} parent=1 // pred_check
      _
    $region47: #{_lambda_.1} parent=1 // pred_check_branch
      %7474 = sbr.rel (0) target = $region49
    $region48: #{_lambda_.1} parent=1 // pred_region
      _
    $region49: #{_lambda_.1} parent=1 // pred_fallthru
      _
    %7475 = vsyncpa [#allocation3], 1
    %7476 = vsyncpa [#allocation4], 1
    %7477 = vsyncpa [#allocation6], 1

</llo_original>
